<compile_context>
chip_gen: v7x
topology: tpu7x:2x2x1
jax: 0.10.0
libtpu: 0.0.40
codegen_flags: <defaults>
</compile_context>

<pallas_src>
import functools
import math

import jax
import jax.numpy as jnp
import numpy as np
from jax.experimental import pallas as pl
from jax.experimental.pallas import tpu as pltpu


# ----------------------------------------------------------------------------
# Pallas kernel: fused {channel-concat, KxK tap accumulation, bias, ReLU,
# residual add} for a stride-1 'same' convolution.
#
# refs = (x_piece_0, ..., x_piece_{n-1}, w, b, [residual], out)
#   3x3 path: x pieces are (1, H+2, W+2, Cp) spatially padded blocks.
#   1x1 path: x pieces are (1, H*W,  Cp) flattened blocks.
#   w: (KH, KW, Cin_total, Cout) bf16, b: (1, Cout) f32,
#   residual/out: (1, H*W, Cout).
# ----------------------------------------------------------------------------
def _conv_kernel(*refs, kh, kw, h, w, c_off, c_sz, relu, has_res):
    n_in = len(c_sz)
    x_refs = refs[:n_in]
    w_ref = refs[n_in]
    b_ref = refs[n_in + 1]
    res_ref = refs[n_in + 2] if has_res else None
    o_ref = refs[-1]
    hw = h * w

    acc = None
    for dy in range(kh):
        for dx in range(kw):
            for p in range(n_in):
                c0, cp = c_off[p], c_sz[p]
                if kh == 1 and kw == 1:
                    slab = x_refs[p][0]                                 # (HW, Cp)
                else:
                    # shifted tap window, loaded straight from VMEM (no im2col)
                    slab = x_refs[p][0, dy:dy + h, dx:dx + w, :].reshape(hw, cp)
                wtap = w_ref[dy, dx, c0:c0 + cp, :]                     # (Cp, Cout)
                part = jnp.dot(slab, wtap,
                               preferred_element_type=jnp.float32)     # MXU, f32 acc
                acc = part if acc is None else acc + part

    acc = acc + b_ref[...]                       # f32 bias
    if relu:
        acc = jnp.maximum(acc, 0.0)
    if has_res:
        acc = acc + res_ref[0].astype(jnp.float32)   # fused residual add
    o_ref[0] = acc.astype(o_ref.dtype)


def conv2d_fused(inputs, w, b, *, relu=False, residual=None,
                 out_dtype=jnp.bfloat16):
    """Stride-1 'same' Conv2d over the channel-concatenation of `inputs`.

    inputs:   list of NHWC arrays (same N, H, W); their channel widths sum to
              Cin of `w`.  The concatenation happens inside the kernel.
    w:        (KH, KW, Cin, Cout) weights.
    b:        (Cout,) bias.
    residual: optional NHWC (N, H, W, Cout) array added to the conv output.
    """
    if not isinstance(inputs, (list, tuple)):
        inputs = [inputs]
    n, h, wd, _ = inputs[0].shape
    kh, kw, cin, cout = w.shape
    c_sz = tuple(int(x.shape[-1]) for x in inputs)
    assert sum(c_sz) == cin, (c_sz, cin)
    c_off = tuple(int(sum(c_sz[:i])) for i in range(len(c_sz)))
    hw = h * wd
    ph, pw = kh // 2, kw // 2

    if kh == 1 and kw == 1:
        xs = [x.astype(jnp.bfloat16).reshape(n, hw, c)
              for x, c in zip(inputs, c_sz)]
        in_specs = [pl.BlockSpec((1, hw, c), lambda i: (i, 0, 0)) for c in c_sz]
    else:
        xs = [jnp.pad(x.astype(jnp.bfloat16),
                      ((0, 0), (ph, ph), (pw, pw), (0, 0))) for x in inputs]
        in_specs = [pl.BlockSpec((1, h + 2 * ph, wd + 2 * pw, c),
                                 lambda i: (i, 0, 0, 0)) for c in c_sz]

    w2 = w.astype(jnp.bfloat16)
    b2 = b.astype(jnp.float32).reshape(1, cout)
    args = list(xs) + [w2, b2]
    in_specs += [pl.BlockSpec((kh, kw, cin, cout), lambda i: (0, 0, 0, 0)),
                 pl.BlockSpec((1, cout), lambda i: (0, 0))]

    has_res = residual is not None
    if has_res:
        args.append(residual.astype(jnp.bfloat16).reshape(n, hw, cout))
        in_specs.append(pl.BlockSpec((1, hw, cout), lambda i: (i, 0, 0)))

    flops = 2 * n * hw * kh * kw * cin * cout
    bytes_accessed = sum(int(a.size) * a.dtype.itemsize for a in args)
    bytes_accessed += n * hw * cout * np.dtype(out_dtype).itemsize

    out = pl.pallas_call(
        functools.partial(_conv_kernel, kh=kh, kw=kw, h=h, w=wd,
                          c_off=c_off, c_sz=c_sz, relu=relu, has_res=has_res),
        out_shape=jax.ShapeDtypeStruct((n, hw, cout), out_dtype),
        grid=(n,),
        in_specs=in_specs,
        out_specs=pl.BlockSpec((1, hw, cout), lambda i: (i, 0, 0)),
        compiler_params=pltpu.CompilerParams(
            dimension_semantics=("parallel",)),
        cost_estimate=pl.CostEstimate(flops=flops, transcendentals=0,
                                      bytes_accessed=bytes_accessed),
    )(*args)
    return out.reshape(n, h, wd, cout)


def pixel_shuffle(x, r):
    """NHWC pixel shuffle matching torch.nn.PixelShuffle channel ordering."""
    n, h, w, c = x.shape
    co = c // (r * r)
    x = x.reshape(n, h, w, co, r, r)
    x = jnp.transpose(x, (0, 1, 4, 2, 5, 3))
    return x.reshape(n, h * r, w * r, co)


# ----------------------------------------------------------------------------
# Parameter init (deterministic, synthetic)
# ----------------------------------------------------------------------------
def _init_conv(key, kh, kw, cin, cout):
    k1, k2 = jax.random.split(key)
    fan_in = kh * kw * cin
    w = jax.random.normal(k1, (kh, kw, cin, cout), jnp.float32) / jnp.sqrt(
        float(fan_in))
    b = 0.01 * jax.random.normal(k2, (cout,), jnp.float32)
    return w, b


def init_rdn_params(key, in_c, out_c, scale, n_feats, D, G, C):
    n_up = int(round(math.log2(scale))) if scale > 1 else 0
    n_keys = 2 + D * (C + 1) + 2 + n_up + 1
    keys = iter(jax.random.split(key, n_keys))
    p = {}
    p["sfe1"] = _init_conv(next(keys), 3, 3, in_c, n_feats)
    p["sfe2"] = _init_conv(next(keys), 3, 3, n_feats, n_feats)
    p["rdb"] = []
    for _ in range(D):
        blk = {"convs": [], "fusion": None}
        for j in range(C):
            blk["convs"].append(_init_conv(next(keys), 3, 3, n_feats + j * G, G))
        blk["fusion"] = _init_conv(next(keys), 1, 1, n_feats + C * G, n_feats)
        p["rdb"].append(blk)
    p["gff1"] = _init_conv(next(keys), 1, 1, n_feats * D, n_feats)
    p["gff2"] = _init_conv(next(keys), 3, 3, n_feats, n_feats)
    p["up"] = [_init_conv(next(keys), 3, 3, n_feats, 4 * n_feats)
               for _ in range(n_up)]
    p["tail"] = _init_conv(next(keys), 3, 3, n_feats, out_c)
    return p


# ----------------------------------------------------------------------------
# Forward pass (mirrors RDN.forward / ResDenseBlock.forward / ConvLayer.forward)
# ----------------------------------------------------------------------------
def rdb_forward(blk, x, C):
    # Dense connectivity: the channel concatenation never touches HBM; the
    # individual feature maps are fed straight to the fused conv kernel.
    feats = [x]
    for i in range(C):
        new = conv2d_fused(feats, *blk["convs"][i], relu=True)   # ConvLayer
        feats.append(new)
    # 1x1 fusion + residual add fused in one kernel.
    return conv2d_fused(feats, *blk["fusion"], relu=False, residual=x)


def rdn_forward(params, x_nchw, *, D, C):
    # NCHW -> NHWC
    x = jnp.transpose(x_nchw, (0, 2, 3, 1)).astype(jnp.float32)

    f1 = conv2d_fused([x], *params["sfe1"])
    cur = conv2d_fused([f1], *params["sfe2"])

    dff = []
    for i in range(D):
        cur = rdb_forward(params["rdb"][i], cur, C)
        dff.append(cur)

    # GFF: the D-way concat is fused into the 1x1 kernel; the F_1 residual is
    # fused into the following 3x3 kernel.
    g = conv2d_fused(dff, *params["gff1"])                  # 1x1 over D pieces
    x = conv2d_fused([g], *params["gff2"], residual=f1)     # 3x3 + F_1 add

    # tail: UpsampleBlock (conv -> pixel shuffle, repeated) then final conv
    for (w, b) in params["up"]:
        x = conv2d_fused([x], w, b)
        x = pixel_shuffle(x, 2)
    x = conv2d_fused([x], *params["tail"], out_dtype=jnp.float32)

    # NHWC -> NCHW
    return jnp.transpose(x, (0, 3, 1, 2))


# ----------------------------------------------------------------------------
if __name__ == "__main__":
    # Small, module-consistent configuration.
    in_c, out_c = 3, 3
    scale = 2
    n_feats, D, G, C = 8, 2, 4, 2
    N, H, W = 2, 16, 16

    key = jax.random.PRNGKey(0)
    kx, kp, kc = jax.random.split(key, 3)

    # Lightweight numeric self-check of the fused conv kernel (multi-input
    # channel split + 3x3 taps) against the XLA conv, at loose bf16 tolerance.
    cx = jax.random.normal(kc, (2, 16, 16, 8), jnp.float32)
    cw, cb = _init_conv(jax.random.PRNGKey(1), 3, 3, 8, 4)
    ref = jax.lax.conv_general_dilated(
        cx, cw, window_strides=(1, 1), padding="SAME",
        dimension_numbers=("NHWC", "HWIO", "NHWC"),
        precision=jax.lax.Precision.HIGHEST) + cb
    got = conv2d_fused([cx[..., :5], cx[..., 5:]], cw, cb,
                       out_dtype=jnp.float32)
    got = jax.block_until_ready(got)
    assert float(jnp.max(jnp.abs(got - ref))) < 0.1, "fused conv mismatch"

    # Full RDN forward.
    x = jax.random.normal(kx, (N, in_c, H, W), jnp.float32)   # NCHW like torch
    params = init_rdn_params(kp, in_c, out_c, scale, n_feats, D, G, C)

    fwd = jax.jit(functools.partial(rdn_forward, D=D, C=C))
    out = jax.block_until_ready(fwd(params, x))

    assert out.shape == (N, out_c, H * scale, W * scale), out.shape
    assert out.dtype == jnp.float32
    print("KERNEL_OK")
</pallas_src>

<mosaic_0001>
module attributes {stable_mosaic.version = 11 : i64} {
  func.func @_conv_kernel(%arg0: i32, %arg1: memref<1x18x18x5xbf16, #tpu.memory_space<vmem>>, %arg2: memref<1x18x18x3xbf16, #tpu.memory_space<vmem>>, %arg3: memref<3x3x8x4xbf16, #tpu.memory_space<vmem>>, %arg4: memref<1x4xf32, #tpu.memory_space<vmem>>, %arg5: memref<1x256x4xf32, #tpu.memory_space<vmem>>) attributes {dimension_semantics = [#tpu.dimension_semantics<parallel>], iteration_bounds = array<i64: 2>, scalar_prefetch = 0 : i64, scratch_operands = 0 : i64, tpu.core_type = #tpu.core_type<tc>, window_params = [{transform_indices = @transform_0, window_bounds = array<i64: 1, 18, 18, 5>}, {transform_indices = @transform_1, window_bounds = array<i64: 1, 18, 18, 3>}, {pipeline_mode = #tpu.pipeline_mode<synchronous>, transform_indices = @transform_2, window_bounds = array<i64: 3, 3, 8, 4>}, {pipeline_mode = #tpu.pipeline_mode<synchronous>, transform_indices = @transform_3, window_bounds = array<i64: 1, 4>}, {transform_indices = @transform_4, window_bounds = array<i64: 1, 256, 4>}]} {
    %c0 = arith.constant 0 : index
    %c0_0 = arith.constant 0 : index
    %c0_1 = arith.constant 0 : index
    %c0_2 = arith.constant 0 : index
    %0 = vector.load %arg1[%c0, %c0_0, %c0_1, %c0_2] : memref<1x18x18x5xbf16, #tpu.memory_space<vmem>>, vector<1x16x16x5xbf16>
    %1 = vector.shape_cast %0 : vector<1x16x16x5xbf16> to vector<16x16x5xbf16>
    %2 = vector.shape_cast %1 : vector<16x16x5xbf16> to vector<256x5xbf16>
    %c0_3 = arith.constant 0 : index
    %c0_4 = arith.constant 0 : index
    %c0_5 = arith.constant 0 : index
    %c0_6 = arith.constant 0 : index
    %3 = vector.load %arg3[%c0_3, %c0_4, %c0_5, %c0_6] : memref<3x3x8x4xbf16, #tpu.memory_space<vmem>>, vector<1x1x5x4xbf16>
    %4 = vector.shape_cast %3 : vector<1x1x5x4xbf16> to vector<5x4xbf16>
    %cst = arith.constant dense<0.000000e+00> : vector<256x4xf32>
    %5 = tpu.matmul %2, %4, %cst {dimension_numbers = #tpu.dot_dimension_numbers<[1], [0], [0], [1], [0, 0, 1, 1], [], []>} : vector<256x5xbf16>, vector<5x4xbf16>, vector<256x4xf32> -> vector<256x4xf32>
    %c0_7 = arith.constant 0 : index
    %c0_8 = arith.constant 0 : index
    %c0_9 = arith.constant 0 : index
    %c0_10 = arith.constant 0 : index
    %6 = vector.load %arg2[%c0_7, %c0_8, %c0_9, %c0_10] : memref<1x18x18x3xbf16, #tpu.memory_space<vmem>>, vector<1x16x16x3xbf16>
    %7 = vector.shape_cast %6 : vector<1x16x16x3xbf16> to vector<16x16x3xbf16>
    %8 = vector.shape_cast %7 : vector<16x16x3xbf16> to vector<256x3xbf16>
    %c0_11 = arith.constant 0 : index
    %c0_12 = arith.constant 0 : index
    %c5 = arith.constant 5 : index
    %c0_13 = arith.constant 0 : index
    %9 = vector.load %arg3[%c0_11, %c0_12, %c5, %c0_13] : memref<3x3x8x4xbf16, #tpu.memory_space<vmem>>, vector<1x1x3x4xbf16>
    %10 = vector.shape_cast %9 : vector<1x1x3x4xbf16> to vector<3x4xbf16>
    %cst_14 = arith.constant dense<0.000000e+00> : vector<256x4xf32>
    %11 = tpu.matmul %8, %10, %cst_14 {dimension_numbers = #tpu.dot_dimension_numbers<[1], [0], [0], [1], [0, 0, 1, 1], [], []>} : vector<256x3xbf16>, vector<3x4xbf16>, vector<256x4xf32> -> vector<256x4xf32>
    %12 = arith.addf %5, %11 : vector<256x4xf32>
    %c0_15 = arith.constant 0 : index
    %c0_16 = arith.constant 0 : index
    %c1 = arith.constant 1 : index
    %c0_17 = arith.constant 0 : index
    %13 = vector.load %arg1[%c0_15, %c0_16, %c1, %c0_17] : memref<1x18x18x5xbf16, #tpu.memory_space<vmem>>, vector<1x16x16x5xbf16>
    %14 = vector.shape_cast %13 : vector<1x16x16x5xbf16> to vector<16x16x5xbf16>
    %15 = vector.shape_cast %14 : vector<16x16x5xbf16> to vector<256x5xbf16>
    %c0_18 = arith.constant 0 : index
    %c1_19 = arith.constant 1 : index
    %c0_20 = arith.constant 0 : index
    %c0_21 = arith.constant 0 : index
    %16 = vector.load %arg3[%c0_18, %c1_19, %c0_20, %c0_21] : memref<3x3x8x4xbf16, #tpu.memory_space<vmem>>, vector<1x1x5x4xbf16>
    %17 = vector.shape_cast %16 : vector<1x1x5x4xbf16> to vector<5x4xbf16>
    %cst_22 = arith.constant dense<0.000000e+00> : vector<256x4xf32>
    %18 = tpu.matmul %15, %17, %cst_22 {dimension_numbers = #tpu.dot_dimension_numbers<[1], [0], [0], [1], [0, 0, 1, 1], [], []>} : vector<256x5xbf16>, vector<5x4xbf16>, vector<256x4xf32> -> vector<256x4xf32>
    %19 = arith.addf %12, %18 : vector<256x4xf32>
    %c0_23 = arith.constant 0 : index
    %c0_24 = arith.constant 0 : index
    %c1_25 = arith.constant 1 : index
    %c0_26 = arith.constant 0 : index
    %20 = vector.load %arg2[%c0_23, %c0_24, %c1_25, %c0_26] : memref<1x18x18x3xbf16, #tpu.memory_space<vmem>>, vector<1x16x16x3xbf16>
    %21 = vector.shape_cast %20 : vector<1x16x16x3xbf16> to vector<16x16x3xbf16>
    %22 = vector.shape_cast %21 : vector<16x16x3xbf16> to vector<256x3xbf16>
    %c0_27 = arith.constant 0 : index
    %c1_28 = arith.constant 1 : index
    %c5_29 = arith.constant 5 : index
    %c0_30 = arith.constant 0 : index
    %23 = vector.load %arg3[%c0_27, %c1_28, %c5_29, %c0_30] : memref<3x3x8x4xbf16, #tpu.memory_space<vmem>>, vector<1x1x3x4xbf16>
    %24 = vector.shape_cast %23 : vector<1x1x3x4xbf16> to vector<3x4xbf16>
    %cst_31 = arith.constant dense<0.000000e+00> : vector<256x4xf32>
    %25 = tpu.matmul %22, %24, %cst_31 {dimension_numbers = #tpu.dot_dimension_numbers<[1], [0], [0], [1], [0, 0, 1, 1], [], []>} : vector<256x3xbf16>, vector<3x4xbf16>, vector<256x4xf32> -> vector<256x4xf32>
    %26 = arith.addf %19, %25 : vector<256x4xf32>
    %c0_32 = arith.constant 0 : index
    %c0_33 = arith.constant 0 : index
    %c2 = arith.constant 2 : index
    %c0_34 = arith.constant 0 : index
    %27 = vector.load %arg1[%c0_32, %c0_33, %c2, %c0_34] : memref<1x18x18x5xbf16, #tpu.memory_space<vmem>>, vector<1x16x16x5xbf16>
    %28 = vector.shape_cast %27 : vector<1x16x16x5xbf16> to vector<16x16x5xbf16>
    %29 = vector.shape_cast %28 : vector<16x16x5xbf16> to vector<256x5xbf16>
    %c0_35 = arith.constant 0 : index
    %c2_36 = arith.constant 2 : index
    %c0_37 = arith.constant 0 : index
    %c0_38 = arith.constant 0 : index
    %30 = vector.load %arg3[%c0_35, %c2_36, %c0_37, %c0_38] : memref<3x3x8x4xbf16, #tpu.memory_space<vmem>>, vector<1x1x5x4xbf16>
    %31 = vector.shape_cast %30 : vector<1x1x5x4xbf16> to vector<5x4xbf16>
    %cst_39 = arith.constant dense<0.000000e+00> : vector<256x4xf32>
    %32 = tpu.matmul %29, %31, %cst_39 {dimension_numbers = #tpu.dot_dimension_numbers<[1], [0], [0], [1], [0, 0, 1, 1], [], []>} : vector<256x5xbf16>, vector<5x4xbf16>, vector<256x4xf32> -> vector<256x4xf32>
    %33 = arith.addf %26, %32 : vector<256x4xf32>
    %c0_40 = arith.constant 0 : index
    %c0_41 = arith.constant 0 : index
    %c2_42 = arith.constant 2 : index
    %c0_43 = arith.constant 0 : index
    %34 = vector.load %arg2[%c0_40, %c0_41, %c2_42, %c0_43] : memref<1x18x18x3xbf16, #tpu.memory_space<vmem>>, vector<1x16x16x3xbf16>
    %35 = vector.shape_cast %34 : vector<1x16x16x3xbf16> to vector<16x16x3xbf16>
    %36 = vector.shape_cast %35 : vector<16x16x3xbf16> to vector<256x3xbf16>
    %c0_44 = arith.constant 0 : index
    %c2_45 = arith.constant 2 : index
    %c5_46 = arith.constant 5 : index
    %c0_47 = arith.constant 0 : index
    %37 = vector.load %arg3[%c0_44, %c2_45, %c5_46, %c0_47] : memref<3x3x8x4xbf16, #tpu.memory_space<vmem>>, vector<1x1x3x4xbf16>
    %38 = vector.shape_cast %37 : vector<1x1x3x4xbf16> to vector<3x4xbf16>
    %cst_48 = arith.constant dense<0.000000e+00> : vector<256x4xf32>
    %39 = tpu.matmul %36, %38, %cst_48 {dimension_numbers = #tpu.dot_dimension_numbers<[1], [0], [0], [1], [0, 0, 1, 1], [], []>} : vector<256x3xbf16>, vector<3x4xbf16>, vector<256x4xf32> -> vector<256x4xf32>
    %40 = arith.addf %33, %39 : vector<256x4xf32>
    %c0_49 = arith.constant 0 : index
    %c1_50 = arith.constant 1 : index
    %c0_51 = arith.constant 0 : index
    %c0_52 = arith.constant 0 : index
    %41 = vector.load %arg1[%c0_49, %c1_50, %c0_51, %c0_52] : memref<1x18x18x5xbf16, #tpu.memory_space<vmem>>, vector<1x16x16x5xbf16>
    %42 = vector.shape_cast %41 : vector<1x16x16x5xbf16> to vector<16x16x5xbf16>
    %43 = vector.shape_cast %42 : vector<16x16x5xbf16> to vector<256x5xbf16>
    %c1_53 = arith.constant 1 : index
    %c0_54 = arith.constant 0 : index
    %c0_55 = arith.constant 0 : index
    %c0_56 = arith.constant 0 : index
    %44 = vector.load %arg3[%c1_53, %c0_54, %c0_55, %c0_56] : memref<3x3x8x4xbf16, #tpu.memory_space<vmem>>, vector<1x1x5x4xbf16>
    %45 = vector.shape_cast %44 : vector<1x1x5x4xbf16> to vector<5x4xbf16>
    %cst_57 = arith.constant dense<0.000000e+00> : vector<256x4xf32>
    %46 = tpu.matmul %43, %45, %cst_57 {dimension_numbers = #tpu.dot_dimension_numbers<[1], [0], [0], [1], [0, 0, 1, 1], [], []>} : vector<256x5xbf16>, vector<5x4xbf16>, vector<256x4xf32> -> vector<256x4xf32>
    %47 = arith.addf %40, %46 : vector<256x4xf32>
    %c0_58 = arith.constant 0 : index
    %c1_59 = arith.constant 1 : index
    %c0_60 = arith.constant 0 : index
    %c0_61 = arith.constant 0 : index
    %48 = vector.load %arg2[%c0_58, %c1_59, %c0_60, %c0_61] : memref<1x18x18x3xbf16, #tpu.memory_space<vmem>>, vector<1x16x16x3xbf16>
    %49 = vector.shape_cast %48 : vector<1x16x16x3xbf16> to vector<16x16x3xbf16>
    %50 = vector.shape_cast %49 : vector<16x16x3xbf16> to vector<256x3xbf16>
    %c1_62 = arith.constant 1 : index
    %c0_63 = arith.constant 0 : index
    %c5_64 = arith.constant 5 : index
    %c0_65 = arith.constant 0 : index
    %51 = vector.load %arg3[%c1_62, %c0_63, %c5_64, %c0_65] : memref<3x3x8x4xbf16, #tpu.memory_space<vmem>>, vector<1x1x3x4xbf16>
    %52 = vector.shape_cast %51 : vector<1x1x3x4xbf16> to vector<3x4xbf16>
    %cst_66 = arith.constant dense<0.000000e+00> : vector<256x4xf32>
    %53 = tpu.matmul %50, %52, %cst_66 {dimension_numbers = #tpu.dot_dimension_numbers<[1], [0], [0], [1], [0, 0, 1, 1], [], []>} : vector<256x3xbf16>, vector<3x4xbf16>, vector<256x4xf32> -> vector<256x4xf32>
    %54 = arith.addf %47, %53 : vector<256x4xf32>
    %c0_67 = arith.constant 0 : index
    %c1_68 = arith.constant 1 : index
    %c1_69 = arith.constant 1 : index
    %c0_70 = arith.constant 0 : index
    %55 = vector.load %arg1[%c0_67, %c1_68, %c1_69, %c0_70] : memref<1x18x18x5xbf16, #tpu.memory_space<vmem>>, vector<1x16x16x5xbf16>
    %56 = vector.shape_cast %55 : vector<1x16x16x5xbf16> to vector<16x16x5xbf16>
    %57 = vector.shape_cast %56 : vector<16x16x5xbf16> to vector<256x5xbf16>
    %c1_71 = arith.constant 1 : index
    %c1_72 = arith.constant 1 : index
    %c0_73 = arith.constant 0 : index
    %c0_74 = arith.constant 0 : index
    %58 = vector.load %arg3[%c1_71, %c1_72, %c0_73, %c0_74] : memref<3x3x8x4xbf16, #tpu.memory_space<vmem>>, vector<1x1x5x4xbf16>
    %59 = vector.shape_cast %58 : vector<1x1x5x4xbf16> to vector<5x4xbf16>
    %cst_75 = arith.constant dense<0.000000e+00> : vector<256x4xf32>
    %60 = tpu.matmul %57, %59, %cst_75 {dimension_numbers = #tpu.dot_dimension_numbers<[1], [0], [0], [1], [0, 0, 1, 1], [], []>} : vector<256x5xbf16>, vector<5x4xbf16>, vector<256x4xf32> -> vector<256x4xf32>
    %61 = arith.addf %54, %60 : vector<256x4xf32>
    %c0_76 = arith.constant 0 : index
    %c1_77 = arith.constant 1 : index
    %c1_78 = arith.constant 1 : index
    %c0_79 = arith.constant 0 : index
    %62 = vector.load %arg2[%c0_76, %c1_77, %c1_78, %c0_79] : memref<1x18x18x3xbf16, #tpu.memory_space<vmem>>, vector<1x16x16x3xbf16>
    %63 = vector.shape_cast %62 : vector<1x16x16x3xbf16> to vector<16x16x3xbf16>
    %64 = vector.shape_cast %63 : vector<16x16x3xbf16> to vector<256x3xbf16>
    %c1_80 = arith.constant 1 : index
    %c1_81 = arith.constant 1 : index
    %c5_82 = arith.constant 5 : index
    %c0_83 = arith.constant 0 : index
    %65 = vector.load %arg3[%c1_80, %c1_81, %c5_82, %c0_83] : memref<3x3x8x4xbf16, #tpu.memory_space<vmem>>, vector<1x1x3x4xbf16>
    %66 = vector.shape_cast %65 : vector<1x1x3x4xbf16> to vector<3x4xbf16>
    %cst_84 = arith.constant dense<0.000000e+00> : vector<256x4xf32>
    %67 = tpu.matmul %64, %66, %cst_84 {dimension_numbers = #tpu.dot_dimension_numbers<[1], [0], [0], [1], [0, 0, 1, 1], [], []>} : vector<256x3xbf16>, vector<3x4xbf16>, vector<256x4xf32> -> vector<256x4xf32>
    %68 = arith.addf %61, %67 : vector<256x4xf32>
    %c0_85 = arith.constant 0 : index
    %c1_86 = arith.constant 1 : index
    %c2_87 = arith.constant 2 : index
    %c0_88 = arith.constant 0 : index
    %69 = vector.load %arg1[%c0_85, %c1_86, %c2_87, %c0_88] : memref<1x18x18x5xbf16, #tpu.memory_space<vmem>>, vector<1x16x16x5xbf16>
    %70 = vector.shape_cast %69 : vector<1x16x16x5xbf16> to vector<16x16x5xbf16>
    %71 = vector.shape_cast %70 : vector<16x16x5xbf16> to vector<256x5xbf16>
    %c1_89 = arith.constant 1 : index
    %c2_90 = arith.constant 2 : index
    %c0_91 = arith.constant 0 : index
    %c0_92 = arith.constant 0 : index
    %72 = vector.load %arg3[%c1_89, %c2_90, %c0_91, %c0_92] : memref<3x3x8x4xbf16, #tpu.memory_space<vmem>>, vector<1x1x5x4xbf16>
    %73 = vector.shape_cast %72 : vector<1x1x5x4xbf16> to vector<5x4xbf16>
    %cst_93 = arith.constant dense<0.000000e+00> : vector<256x4xf32>
    %74 = tpu.matmul %71, %73, %cst_93 {dimension_numbers = #tpu.dot_dimension_numbers<[1], [0], [0], [1], [0, 0, 1, 1], [], []>} : vector<256x5xbf16>, vector<5x4xbf16>, vector<256x4xf32> -> vector<256x4xf32>
    %75 = arith.addf %68, %74 : vector<256x4xf32>
    %c0_94 = arith.constant 0 : index
    %c1_95 = arith.constant 1 : index
    %c2_96 = arith.constant 2 : index
    %c0_97 = arith.constant 0 : index
    %76 = vector.load %arg2[%c0_94, %c1_95, %c2_96, %c0_97] : memref<1x18x18x3xbf16, #tpu.memory_space<vmem>>, vector<1x16x16x3xbf16>
    %77 = vector.shape_cast %76 : vector<1x16x16x3xbf16> to vector<16x16x3xbf16>
    %78 = vector.shape_cast %77 : vector<16x16x3xbf16> to vector<256x3xbf16>
    %c1_98 = arith.constant 1 : index
    %c2_99 = arith.constant 2 : index
    %c5_100 = arith.constant 5 : index
    %c0_101 = arith.constant 0 : index
    %79 = vector.load %arg3[%c1_98, %c2_99, %c5_100, %c0_101] : memref<3x3x8x4xbf16, #tpu.memory_space<vmem>>, vector<1x1x3x4xbf16>
    %80 = vector.shape_cast %79 : vector<1x1x3x4xbf16> to vector<3x4xbf16>
    %cst_102 = arith.constant dense<0.000000e+00> : vector<256x4xf32>
    %81 = tpu.matmul %78, %80, %cst_102 {dimension_numbers = #tpu.dot_dimension_numbers<[1], [0], [0], [1], [0, 0, 1, 1], [], []>} : vector<256x3xbf16>, vector<3x4xbf16>, vector<256x4xf32> -> vector<256x4xf32>
    %82 = arith.addf %75, %81 : vector<256x4xf32>
    %c0_103 = arith.constant 0 : index
    %c2_104 = arith.constant 2 : index
    %c0_105 = arith.constant 0 : index
    %c0_106 = arith.constant 0 : index
    %83 = vector.load %arg1[%c0_103, %c2_104, %c0_105, %c0_106] : memref<1x18x18x5xbf16, #tpu.memory_space<vmem>>, vector<1x16x16x5xbf16>
    %84 = vector.shape_cast %83 : vector<1x16x16x5xbf16> to vector<16x16x5xbf16>
    %85 = vector.shape_cast %84 : vector<16x16x5xbf16> to vector<256x5xbf16>
    %c2_107 = arith.constant 2 : index
    %c0_108 = arith.constant 0 : index
    %c0_109 = arith.constant 0 : index
    %c0_110 = arith.constant 0 : index
    %86 = vector.load %arg3[%c2_107, %c0_108, %c0_109, %c0_110] : memref<3x3x8x4xbf16, #tpu.memory_space<vmem>>, vector<1x1x5x4xbf16>
    %87 = vector.shape_cast %86 : vector<1x1x5x4xbf16> to vector<5x4xbf16>
    %cst_111 = arith.constant dense<0.000000e+00> : vector<256x4xf32>
    %88 = tpu.matmul %85, %87, %cst_111 {dimension_numbers = #tpu.dot_dimension_numbers<[1], [0], [0], [1], [0, 0, 1, 1], [], []>} : vector<256x5xbf16>, vector<5x4xbf16>, vector<256x4xf32> -> vector<256x4xf32>
    %89 = arith.addf %82, %88 : vector<256x4xf32>
    %c0_112 = arith.constant 0 : index
    %c2_113 = arith.constant 2 : index
    %c0_114 = arith.constant 0 : index
    %c0_115 = arith.constant 0 : index
    %90 = vector.load %arg2[%c0_112, %c2_113, %c0_114, %c0_115] : memref<1x18x18x3xbf16, #tpu.memory_space<vmem>>, vector<1x16x16x3xbf16>
    %91 = vector.shape_cast %90 : vector<1x16x16x3xbf16> to vector<16x16x3xbf16>
    %92 = vector.shape_cast %91 : vector<16x16x3xbf16> to vector<256x3xbf16>
    %c2_116 = arith.constant 2 : index
    %c0_117 = arith.constant 0 : index
    %c5_118 = arith.constant 5 : index
    %c0_119 = arith.constant 0 : index
    %93 = vector.load %arg3[%c2_116, %c0_117, %c5_118, %c0_119] : memref<3x3x8x4xbf16, #tpu.memory_space<vmem>>, vector<1x1x3x4xbf16>
    %94 = vector.shape_cast %93 : vector<1x1x3x4xbf16> to vector<3x4xbf16>
    %cst_120 = arith.constant dense<0.000000e+00> : vector<256x4xf32>
    %95 = tpu.matmul %92, %94, %cst_120 {dimension_numbers = #tpu.dot_dimension_numbers<[1], [0], [0], [1], [0, 0, 1, 1], [], []>} : vector<256x3xbf16>, vector<3x4xbf16>, vector<256x4xf32> -> vector<256x4xf32>
    %96 = arith.addf %89, %95 : vector<256x4xf32>
    %c0_121 = arith.constant 0 : index
    %c2_122 = arith.constant 2 : index
    %c1_123 = arith.constant 1 : index
    %c0_124 = arith.constant 0 : index
    %97 = vector.load %arg1[%c0_121, %c2_122, %c1_123, %c0_124] : memref<1x18x18x5xbf16, #tpu.memory_space<vmem>>, vector<1x16x16x5xbf16>
    %98 = vector.shape_cast %97 : vector<1x16x16x5xbf16> to vector<16x16x5xbf16>
    %99 = vector.shape_cast %98 : vector<16x16x5xbf16> to vector<256x5xbf16>
    %c2_125 = arith.constant 2 : index
    %c1_126 = arith.constant 1 : index
    %c0_127 = arith.constant 0 : index
    %c0_128 = arith.constant 0 : index
    %100 = vector.load %arg3[%c2_125, %c1_126, %c0_127, %c0_128] : memref<3x3x8x4xbf16, #tpu.memory_space<vmem>>, vector<1x1x5x4xbf16>
    %101 = vector.shape_cast %100 : vector<1x1x5x4xbf16> to vector<5x4xbf16>
    %cst_129 = arith.constant dense<0.000000e+00> : vector<256x4xf32>
    %102 = tpu.matmul %99, %101, %cst_129 {dimension_numbers = #tpu.dot_dimension_numbers<[1], [0], [0], [1], [0, 0, 1, 1], [], []>} : vector<256x5xbf16>, vector<5x4xbf16>, vector<256x4xf32> -> vector<256x4xf32>
    %103 = arith.addf %96, %102 : vector<256x4xf32>
    %c0_130 = arith.constant 0 : index
    %c2_131 = arith.constant 2 : index
    %c1_132 = arith.constant 1 : index
    %c0_133 = arith.constant 0 : index
    %104 = vector.load %arg2[%c0_130, %c2_131, %c1_132, %c0_133] : memref<1x18x18x3xbf16, #tpu.memory_space<vmem>>, vector<1x16x16x3xbf16>
    %105 = vector.shape_cast %104 : vector<1x16x16x3xbf16> to vector<16x16x3xbf16>
    %106 = vector.shape_cast %105 : vector<16x16x3xbf16> to vector<256x3xbf16>
    %c2_134 = arith.constant 2 : index
    %c1_135 = arith.constant 1 : index
    %c5_136 = arith.constant 5 : index
    %c0_137 = arith.constant 0 : index
    %107 = vector.load %arg3[%c2_134, %c1_135, %c5_136, %c0_137] : memref<3x3x8x4xbf16, #tpu.memory_space<vmem>>, vector<1x1x3x4xbf16>
    %108 = vector.shape_cast %107 : vector<1x1x3x4xbf16> to vector<3x4xbf16>
    %cst_138 = arith.constant dense<0.000000e+00> : vector<256x4xf32>
    %109 = tpu.matmul %106, %108, %cst_138 {dimension_numbers = #tpu.dot_dimension_numbers<[1], [0], [0], [1], [0, 0, 1, 1], [], []>} : vector<256x3xbf16>, vector<3x4xbf16>, vector<256x4xf32> -> vector<256x4xf32>
    %110 = arith.addf %103, %109 : vector<256x4xf32>
    %c0_139 = arith.constant 0 : index
    %c2_140 = arith.constant 2 : index
    %c2_141 = arith.constant 2 : index
    %c0_142 = arith.constant 0 : index
    %111 = vector.load %arg1[%c0_139, %c2_140, %c2_141, %c0_142] : memref<1x18x18x5xbf16, #tpu.memory_space<vmem>>, vector<1x16x16x5xbf16>
    %112 = vector.shape_cast %111 : vector<1x16x16x5xbf16> to vector<16x16x5xbf16>
    %113 = vector.shape_cast %112 : vector<16x16x5xbf16> to vector<256x5xbf16>
    %c2_143 = arith.constant 2 : index
    %c2_144 = arith.constant 2 : index
    %c0_145 = arith.constant 0 : index
    %c0_146 = arith.constant 0 : index
    %114 = vector.load %arg3[%c2_143, %c2_144, %c0_145, %c0_146] : memref<3x3x8x4xbf16, #tpu.memory_space<vmem>>, vector<1x1x5x4xbf16>
    %115 = vector.shape_cast %114 : vector<1x1x5x4xbf16> to vector<5x4xbf16>
    %cst_147 = arith.constant dense<0.000000e+00> : vector<256x4xf32>
    %116 = tpu.matmul %113, %115, %cst_147 {dimension_numbers = #tpu.dot_dimension_numbers<[1], [0], [0], [1], [0, 0, 1, 1], [], []>} : vector<256x5xbf16>, vector<5x4xbf16>, vector<256x4xf32> -> vector<256x4xf32>
    %117 = arith.addf %110, %116 : vector<256x4xf32>
    %c0_148 = arith.constant 0 : index
    %c2_149 = arith.constant 2 : index
    %c2_150 = arith.constant 2 : index
    %c0_151 = arith.constant 0 : index
    %118 = vector.load %arg2[%c0_148, %c2_149, %c2_150, %c0_151] : memref<1x18x18x3xbf16, #tpu.memory_space<vmem>>, vector<1x16x16x3xbf16>
    %119 = vector.shape_cast %118 : vector<1x16x16x3xbf16> to vector<16x16x3xbf16>
    %120 = vector.shape_cast %119 : vector<16x16x3xbf16> to vector<256x3xbf16>
    %c2_152 = arith.constant 2 : index
    %c2_153 = arith.constant 2 : index
    %c5_154 = arith.constant 5 : index
    %c0_155 = arith.constant 0 : index
    %121 = vector.load %arg3[%c2_152, %c2_153, %c5_154, %c0_155] : memref<3x3x8x4xbf16, #tpu.memory_space<vmem>>, vector<1x1x3x4xbf16>
    %122 = vector.shape_cast %121 : vector<1x1x3x4xbf16> to vector<3x4xbf16>
    %cst_156 = arith.constant dense<0.000000e+00> : vector<256x4xf32>
    %123 = tpu.matmul %120, %122, %cst_156 {dimension_numbers = #tpu.dot_dimension_numbers<[1], [0], [0], [1], [0, 0, 1, 1], [], []>} : vector<256x3xbf16>, vector<3x4xbf16>, vector<256x4xf32> -> vector<256x4xf32>
    %124 = arith.addf %117, %123 : vector<256x4xf32>
    %c0_157 = arith.constant 0 : index
    %c0_158 = arith.constant 0 : index
    %125 = vector.load %arg4[%c0_157, %c0_158] : memref<1x4xf32, #tpu.memory_space<vmem>>, vector<1x4xf32>
    %126 = vector.broadcast %125 : vector<1x4xf32> to vector<256x4xf32>
    %127 = arith.addf %124, %126 : vector<256x4xf32>
    %c0_159 = arith.constant 0 : index
    %c0_160 = arith.constant 0 : index
    %c0_161 = arith.constant 0 : index
    %128 = vector.load %arg5[%c0_159, %c0_160, %c0_161] : memref<1x256x4xf32, #tpu.memory_space<vmem>>, vector<1x256x4xf32>
    %129 = vector.shape_cast %128 : vector<1x256x4xf32> to vector<256x4xf32>
    %130 = vector.shape_cast %127 : vector<256x4xf32> to vector<1x256x4xf32>
    tpu.vector_store %arg5[%c0_159, %c0_160, %c0_161], %130 {strides = array<i32>} : memref<1x256x4xf32, #tpu.memory_space<vmem>>, vector<1x256x4xf32>,
    return
  }
  func.func @transform_0(%arg0: i32) -> (i32, i32, i32, i32) {
    %c0_i32 = arith.constant 0 : i32
    %c0_i32_0 = arith.constant 0 : i32
    %c0_i32_1 = arith.constant 0 : i32
    %c0_i32_2 = arith.constant 0 : i32
    return %arg0, %c0_i32, %c0_i32_0, %c0_i32_1 : i32, i32, i32, i32
  }
  func.func @transform_1(%arg0: i32) -> (i32, i32, i32, i32) {
    %c0_i32 = arith.constant 0 : i32
    %c0_i32_0 = arith.constant 0 : i32
    %c0_i32_1 = arith.constant 0 : i32
    %c0_i32_2 = arith.constant 0 : i32
    return %arg0, %c0_i32, %c0_i32_0, %c0_i32_1 : i32, i32, i32, i32
  }
  func.func @transform_2(%arg0: i32) -> (i32, i32, i32, i32) {
    %c0_i32 = arith.constant 0 : i32
    %c0_i32_0 = arith.constant 0 : i32
    %c0_i32_1 = arith.constant 0 : i32
    %c0_i32_2 = arith.constant 0 : i32
    %c0_i32_3 = arith.constant 0 : i32
    return %c0_i32, %c0_i32_0, %c0_i32_1, %c0_i32_2 : i32, i32, i32, i32
  }
  func.func @transform_3(%arg0: i32) -> (i32, i32) {
    %c0_i32 = arith.constant 0 : i32
    %c0_i32_0 = arith.constant 0 : i32
    %c0_i32_1 = arith.constant 0 : i32
    return %c0_i32, %c0_i32_0 : i32, i32
  }
  func.func @transform_4(%arg0: i32) -> (i32, i32, i32) {
    %c0_i32 = arith.constant 0 : i32
    %c0_i32_0 = arith.constant 0 : i32
    %c0_i32_1 = arith.constant 0 : i32
    return %arg0, %c0_i32, %c0_i32_0 : i32, i32, i32
  }
}

</mosaic_0001>

<llo_original>
// kernel: tpu_custom_call.1
$region0: #{tpu_custom_call.1}
  #allocation0 [shape = 'u32[]', space=smem, size = 0x4, offset = 0x4, fixed_abs, tag = 'smem constant byte address 0x4 - core index']
  #allocation1 [shape = 'u32[144,128]{1,0:T(1,128)}', space=vmem, size = 0x12000, scoped, tag = 'internal scratch']
  %s0 = inlined_call_operand.vmem [shape: bf16[2,18,18,5], index: 0, kind: input, shape index: {}]
  %s1 = inlined_call_operand.vmem [shape: bf16[2,18,18,3], index: 1, kind: input, shape index: {}]
  %s2 = inlined_call_operand.vmem [shape: bf16[3,3,8,4], index: 2, kind: input, shape index: {}]
  %s3 = inlined_call_operand.vmem [shape: f32[1,4], index: 3, kind: input, shape index: {}]
  %s4 = inlined_call_operand.vmem [shape: f32[2,256,4], index: 4, kind: output, shape index: {}]
  %s5 = sld [smem:[#allocation0]]
  $region49: #{tpu_custom_call.1} parent=0
    _
  %s7 = ssub.s32 1, %s5
  %s8 = scalar_select 0, %s7, %s5
  loop: start=0, step=1, limit=4
  $region2: #{tpu_custom_call.1} parent=0 // loop_pre_header
    _
  $region3: #{tpu_custom_call.1} parent=0 // loop_header
    %s10 = sphi 0, %s14
    %p11 = scmp.ge.s32.totalorder %s10, 4
    %s20 = sphi 0, %s22
    %s23 = sphi 0, %s20
    %s24 = sphi 0, %s23
    %s40 = sphi 0, %s24
    %s46 = sphi 0, %s48
    %s49 = sphi 0, %s46
    %s50 = sphi 0, %s49
    %s66 = sphi 0, %s50
    %s70 = sphi 0, %s70
    %s72 = sphi 0, %s70
    %s73 = sphi 0, %s72
    %s87 = sphi 0, %s73
    %s91 = sphi 0, %s91
    %s93 = sphi 0, %s91
    %s94 = sphi 0, %s93
    %s108 = sphi 0, %s94
    %s114 = sphi 0, %s116
    %s117 = sphi 0, %s114
    %s118 = sphi 0, %s117
    %s134 = sphi 0, %s118
  $region4: #{tpu_custom_call.1} parent=0 // loop_header_branch
    %13 = sbr.rel (%p11) target = $region8
  $region5: #{tpu_custom_call.1} parent=0 // loop_body
    %s15 = ssub.s32 %s10, 1
    %s16 = ssub.s32 %s10, 2
    %s17 = sadd.s32 %s10, 1
    %s18 = ssub.s32 %s10, %s17
    %p19 = scmp.eq.s32.totalorder %s18, 0
    %s21 = sadd.s32 %s20, 1
    %s22 = scalar_select %p19, %s20, %s21
    %p25 = pneg %p19
    %p26 = scmp.eq.s32.totalorder %s10, 1
    %p27 = por %p25, %p26
    %p28 = scmp.ne.s32.totalorder %s20, %s23
    %p29 = scmp.eq.s32.totalorder %s10, 0
    %p30 = por %p28, %p29
    %p31 = scmp.ne.s32.totalorder %s20, %s23
    %p32 = scmp.eq.s32.totalorder %s15, 1
    %p33 = por %p31, %p32
    %p34 = scmp.ne.s32.totalorder %s23, %s24
    %p35 = scmp.eq.s32.totalorder %s15, 0
    %p36 = por %p34, %p35
    %p37 = scmp.ne.s32.totalorder %s23, %s24
    %p38 = scmp.eq.s32.totalorder %s16, 1
    %p39 = por %p37, %p38
    %p41 = scmp.ne.s32.totalorder %s24, %s40
    %p42 = scmp.eq.s32.totalorder %s16, 0
    %p43 = por %p41, %p42
    %s44 = ssub.s32 %s10, %s17
    %p45 = scmp.eq.s32.totalorder %s44, 0
    %s47 = sadd.s32 %s46, 1
    %s48 = scalar_select %p45, %s46, %s47
    %p51 = pneg %p45
    %p52 = scmp.eq.s32.totalorder %s10, 1
    %p53 = por %p51, %p52
    %p54 = scmp.ne.s32.totalorder %s46, %s49
    %p55 = scmp.eq.s32.totalorder %s10, 0
    %p56 = por %p54, %p55
    %p57 = scmp.ne.s32.totalorder %s46, %s49
    %p58 = scmp.eq.s32.totalorder %s15, 1
    %p59 = por %p57, %p58
    %p60 = scmp.ne.s32.totalorder %s49, %s50
    %p61 = scmp.eq.s32.totalorder %s15, 0
    %p62 = por %p60, %p61
    %p63 = scmp.ne.s32.totalorder %s49, %s50
    %p64 = scmp.eq.s32.totalorder %s16, 1
    %p65 = por %p63, %p64
    %p67 = scmp.ne.s32.totalorder %s50, %s66
    %p68 = scmp.eq.s32.totalorder %s16, 0
    %p69 = por %p67, %p68
    %s71 = sadd.s32 %s70, 1
    %p74 = scmp.eq.s32.totalorder %s10, 1
    %p75 = scmp.ne.s32.totalorder %s70, %s72
    %p76 = scmp.eq.s32.totalorder %s10, 0
    %p77 = por %p75, %p76
    %p78 = scmp.ne.s32.totalorder %s70, %s72
    %p79 = scmp.eq.s32.totalorder %s15, 1
    %p80 = por %p78, %p79
    %p81 = scmp.ne.s32.totalorder %s72, %s73
    %p82 = scmp.eq.s32.totalorder %s15, 0
    %p83 = por %p81, %p82
    %p84 = scmp.ne.s32.totalorder %s72, %s73
    %p85 = scmp.eq.s32.totalorder %s16, 1
    %p86 = por %p84, %p85
    %p88 = scmp.ne.s32.totalorder %s73, %s87
    %p89 = scmp.eq.s32.totalorder %s16, 0
    %p90 = por %p88, %p89
    %s92 = sadd.s32 %s91, 1
    %p95 = scmp.eq.s32.totalorder %s10, 1
    %p96 = scmp.ne.s32.totalorder %s91, %s93
    %p97 = scmp.eq.s32.totalorder %s10, 0
    %p98 = por %p96, %p97
    %p99 = scmp.ne.s32.totalorder %s91, %s93
    %p100 = scmp.eq.s32.totalorder %s15, 1
    %p101 = por %p99, %p100
    %p102 = scmp.ne.s32.totalorder %s93, %s94
    %p103 = scmp.eq.s32.totalorder %s15, 0
    %p104 = por %p102, %p103
    %p105 = scmp.ne.s32.totalorder %s93, %s94
    %p106 = scmp.eq.s32.totalorder %s16, 1
    %p107 = por %p105, %p106
    %p109 = scmp.ne.s32.totalorder %s94, %s108
    %p110 = scmp.eq.s32.totalorder %s16, 0
    %p111 = por %p109, %p110
    %s112 = ssub.s32 %s10, %s17
    %p113 = scmp.eq.s32.totalorder %s112, 0
    %s115 = sadd.s32 %s114, 1
    %s116 = scalar_select %p113, %s114, %s115
    %p119 = pneg %p113
    %p120 = scmp.eq.s32.totalorder %s10, 1
    %p121 = por %p119, %p120
    %p122 = scmp.ne.s32.totalorder %s114, %s117
    %p123 = scmp.eq.s32.totalorder %s10, 0
    %p124 = por %p122, %p123
    %p125 = scmp.ne.s32.totalorder %s114, %s117
    %p126 = scmp.eq.s32.totalorder %s15, 1
    %p127 = por %p125, %p126
    %p128 = scmp.ne.s32.totalorder %s117, %s118
    %p129 = scmp.eq.s32.totalorder %s15, 0
    %p130 = por %p128, %p129
    %p131 = scmp.ne.s32.totalorder %s117, %s118
    %p132 = scmp.eq.s32.totalorder %s16, 1
    %p133 = por %p131, %p132
    %p135 = scmp.ne.s32.totalorder %s118, %s134
    %p136 = scmp.eq.s32.totalorder %s16, 0
    %p137 = por %p135, %p136
    %p138 = scmp.le.s32.totalorder 1, %s10
    %p139 = scmp.lt.s32.totalorder %s10, 3
    %p140 = pnand %p138, %p139
    %p141 = pneg %p140
    // Predicated region
    $region9: #{tpu_custom_call.1} parent=5 // pred_check
      _
    $region10: #{tpu_custom_call.1} parent=5 // pred_check_branch
      %143 = sbr.rel (%p140) target = $region12
    $region11: #{tpu_custom_call.1} parent=5 // pred_region
      %s144 = ssub.s32 %s10, 1
      // Predicated region
      $region13: #{tpu_custom_call.1} parent=11 // pred_check
        %p145 = pneg %p83
      $region14: #{tpu_custom_call.1} parent=11 // pred_check_branch
        %147 = sbr.rel (%p145) target = $region16
      $region15: #{tpu_custom_call.1} parent=11 // pred_region
        _
      $region16: #{tpu_custom_call.1} parent=11 // pred_fallthru
        _
      // Predicated region
      $region17: #{tpu_custom_call.1} parent=11 // pred_check
        %p148 = pneg %p104
      $region18: #{tpu_custom_call.1} parent=11 // pred_check_branch
        %150 = sbr.rel (%p148) target = $region20
      $region19: #{tpu_custom_call.1} parent=11 // pred_region
        _
      $region20: #{tpu_custom_call.1} parent=11 // pred_fallthru
        _
    $region12: #{tpu_custom_call.1} parent=5 // pred_fallthru
      _
    %p151 = scmp.lt.s32.totalorder %s10, 2
    // Predicated region
    $region21: #{tpu_custom_call.1} parent=5 // pred_check
      %p152 = pneg %p151
    $region22: #{tpu_custom_call.1} parent=5 // pred_check_branch
      %154 = sbr.rel (%p152) target = $region24
    $region23: #{tpu_custom_call.1} parent=5 // pred_region
      // Predicated region
      $region25: #{tpu_custom_call.1} parent=23 // pred_check
        %p155 = pneg %p30
      $region26: #{tpu_custom_call.1} parent=23 // pred_check_branch
        %157 = sbr.rel (%p155) target = $region28
      $region27: #{tpu_custom_call.1} parent=23 // pred_region
        %p158 = scmp.lt.s32.totalorder %s10, 1
        %s159 = scalar_select %p158, %s10, 1
        %s160 = smul.addr %s159, 54
        %s161 = smul.addr %s160, 4
        %s162 = scalar_lea.vmem %s0, %s161
      $region28: #{tpu_custom_call.1} parent=23 // pred_fallthru
        _
      // Predicated region
      $region29: #{tpu_custom_call.1} parent=23 // pred_check
        %p163 = pneg %p56
      $region30: #{tpu_custom_call.1} parent=23 // pred_check_branch
        %165 = sbr.rel (%p163) target = $region32
      $region31: #{tpu_custom_call.1} parent=23 // pred_region
        %p166 = scmp.lt.s32.totalorder %s10, 1
        %s167 = scalar_select %p166, %s10, 1
        %s168 = smul.addr %s167, 54
        %s169 = smul.addr %s168, 4
        %s170 = scalar_lea.vmem %s1, %s169
      $region32: #{tpu_custom_call.1} parent=23 // pred_fallthru
        _
    $region24: #{tpu_custom_call.1} parent=5 // pred_fallthru
      _
    %p171 = scmp.le.s32.totalorder 1, %s10
    %p172 = scmp.lt.s32.totalorder %s10, 3
    %p173 = pnand %p171, %p172
    %p174 = pneg %p173
    // Predicated region
    $region33: #{tpu_custom_call.1} parent=5 // pred_check
      _
    $region34: #{tpu_custom_call.1} parent=5 // pred_check_branch
      %176 = sbr.rel (%p173) target = $region36
    $region35: #{tpu_custom_call.1} parent=5 // pred_region
      %s177 = ssub.s32 %s10, 1
      %p178 = scmp.lt.s32.totalorder %s15, 1
      %s179 = scalar_select %p178, %s15, 1
      %s180 = smul.addr %s179, 54
      %s181 = smul.addr %s180, 4
      %s182 = scalar_lea.vmem %s0, %s181
      %p183 = pneg %p36
      %p184 = pneg %p33
      %p185 = scmp.lt.s32.totalorder %s15, 1
      %s186 = scalar_select %p185, %s15, 1
      %s187 = smul.addr %s186, 54
      %s188 = smul.addr %s187, 4
      %s189 = scalar_lea.vmem %s1, %s188
      %p190 = pneg %p62
      %p191 = pneg %p59
      %p192 = pneg %p83
      %p193 = pneg %p80
      %p194 = pneg %p104
      %p195 = pneg %p101
      %p196 = pneg %p130
      %p197 = pneg %p127
      %p198 = scmp.lt.s32.totalorder %s15, 1
      %s199 = scalar_select %p198, %s15, 1
      %s200 = smul.addr %s199, 32
      %s201 = smul.addr %s200, 8
      %s202 = scalar_lea.vmem %s4, %s201
      %p203 = scmp.lt.s32.totalorder %s15, 1
      %s204 = scalar_select %p203, %s15, 1
      %s205 = smul.addr %s204, 54
      %s206 = smul.addr %s205, 4
      %s207 = scalar_lea.vmem %s0, %s206
      %p208 = scmp.lt.s32.totalorder %s15, 1
      %s209 = scalar_select %p208, %s15, 1
      %s210 = smul.addr %s209, 54
      %s211 = smul.addr %s210, 4
      %s212 = scalar_lea.vmem %s1, %s211
      %p213 = scmp.lt.s32.totalorder %s15, 1
      %s214 = scalar_select %p213, %s15, 1
      %s215 = smul.addr %s214, 32
      %s216 = smul.addr %s215, 8
      %s217 = scalar_lea.vmem %s4, %s216
      %v219 = vld [vmem:[%s207] sm:$0xf]
      %v220 = vld [vmem:[%s207 + $0x4] sm:$0xf]
      %v221 = vld [vmem:[%s207 + $0xc] sm:$0xf]
      %v222 = vld [vmem:[%s207 + $0x10] sm:$0xf]
      %v223 = vld [vmem:[%s207 + $0x18] sm:$0xf]
      %v224 = vld [vmem:[%s207 + $0x1c] sm:$0xf]
      %v225 = vld [vmem:[%s207 + $0x24] sm:$0xf]
      %v226 = vld [vmem:[%s207 + $0x28] sm:$0xf]
      %v227 = vld [vmem:[%s207 + $0x30] sm:$0xf]
      %v228 = vld [vmem:[%s207 + $0x34] sm:$0xf]
      %v229 = vld [vmem:[%s207 + $0x3c] sm:$0xf]
      %v230 = vld [vmem:[%s207 + $0x40] sm:$0xf]
      %v231 = vld [vmem:[%s207 + $0x48] sm:$0xf]
      %v232 = vld [vmem:[%s207 + $0x4c] sm:$0xf]
      %v233 = vld [vmem:[%s207 + $0x54] sm:$0xf]
      %v234 = vld [vmem:[%s207 + $0x58] sm:$0xf]
      %v235 = vld [vmem:[%s207 + $0x60] sm:$0xf]
      %v236 = vld [vmem:[%s207 + $0x64] sm:$0xf]
      %v237 = vld [vmem:[%s207 + $0x6c] sm:$0xf]
      %v238 = vld [vmem:[%s207 + $0x70] sm:$0xf]
      %v239 = vld [vmem:[%s207 + $0x78] sm:$0xf]
      %v240 = vld [vmem:[%s207 + $0x7c] sm:$0xf]
      %v241 = vld [vmem:[%s207 + $0x84] sm:$0xf]
      %v242 = vld [vmem:[%s207 + $0x88] sm:$0xf]
      %v243 = vld [vmem:[%s207 + $0x90] sm:$0xf]
      %v244 = vld [vmem:[%s207 + $0x94] sm:$0xf]
      %v245 = vld [vmem:[%s207 + $0x9c] sm:$0xf]
      %v246 = vld [vmem:[%s207 + $0xa0] sm:$0xf]
      %v247 = vld [vmem:[%s207 + $0xa8] sm:$0xf]
      %v248 = vld [vmem:[%s207 + $0xac] sm:$0xf]
      %v249 = vld [vmem:[%s207 + $0xb4] sm:$0xf]
      %v250 = vld [vmem:[%s207 + $0xb8] sm:$0xf]
      %v251 = vld [vmem:[%s2] sm:$0x7]
      %v252 = vld [vmem:[%s212] sm:$0xf]
      %v253 = vld [vmem:[%s212 + $0x4] sm:$0xf]
      %v254 = vld [vmem:[%s212 + $0xc] sm:$0xf]
      %v255 = vld [vmem:[%s212 + $0x10] sm:$0xf]
      %v256 = vld [vmem:[%s212 + $0x18] sm:$0xf]
      %v257 = vld [vmem:[%s212 + $0x1c] sm:$0xf]
      %v258 = vld [vmem:[%s212 + $0x24] sm:$0xf]
      %v259 = vld [vmem:[%s212 + $0x28] sm:$0xf]
      %v260 = vld [vmem:[%s212 + $0x30] sm:$0xf]
      %v261 = vld [vmem:[%s212 + $0x34] sm:$0xf]
      %v262 = vld [vmem:[%s212 + $0x3c] sm:$0xf]
      %v263 = vld [vmem:[%s212 + $0x40] sm:$0xf]
      %v264 = vld [vmem:[%s212 + $0x48] sm:$0xf]
      %v265 = vld [vmem:[%s212 + $0x4c] sm:$0xf]
      %v266 = vld [vmem:[%s212 + $0x54] sm:$0xf]
      %v267 = vld [vmem:[%s212 + $0x58] sm:$0xf]
      %v268 = vld [vmem:[%s212 + $0x60] sm:$0xf]
      %v269 = vld [vmem:[%s212 + $0x64] sm:$0xf]
      %v270 = vld [vmem:[%s212 + $0x6c] sm:$0xf]
      %v271 = vld [vmem:[%s212 + $0x70] sm:$0xf]
      %v272 = vld [vmem:[%s212 + $0x78] sm:$0xf]
      %v273 = vld [vmem:[%s212 + $0x7c] sm:$0xf]
      %v274 = vld [vmem:[%s212 + $0x84] sm:$0xf]
      %v275 = vld [vmem:[%s212 + $0x88] sm:$0xf]
      %v276 = vld [vmem:[%s212 + $0x90] sm:$0xf]
      %v277 = vld [vmem:[%s212 + $0x94] sm:$0xf]
      %v278 = vld [vmem:[%s212 + $0x9c] sm:$0xf]
      %v279 = vld [vmem:[%s212 + $0xa0] sm:$0xf]
      %v280 = vld [vmem:[%s212 + $0xa8] sm:$0xf]
      %v281 = vld [vmem:[%s212 + $0xac] sm:$0xf]
      %v282 = vld [vmem:[%s212 + $0xb4] sm:$0xf]
      %v283 = vld [vmem:[%s212 + $0xb8] sm:$0xf]
      %v284 = vld [vmem:[%s2] sm:$0xc]
      %v317 = vunpack.c.l.b16 %v252
      %v318 = vunpack.c.l.b16 %v253
      %v319 = vunpack.c.l.b16 %v254
      %v320 = vunpack.c.l.b16 %v255
      %v321 = vunpack.c.l.b16 %v256
      %v322 = vunpack.c.l.b16 %v257
      %v323 = vunpack.c.l.b16 %v258
      %v324 = vunpack.c.l.b16 %v259
      %v325 = vunpack.c.l.b16 %v260
      %v326 = vunpack.c.l.b16 %v261
      %v327 = vunpack.c.l.b16 %v262
      %v328 = vunpack.c.l.b16 %v263
      %v329 = vunpack.c.l.b16 %v264
      %v330 = vunpack.c.l.b16 %v265
      %v331 = vunpack.c.l.b16 %v266
      %v332 = vunpack.c.l.b16 %v267
      %v333 = vunpack.c.l.b16 %v268
      %v334 = vunpack.c.l.b16 %v269
      %v335 = vunpack.c.l.b16 %v270
      %v336 = vunpack.c.l.b16 %v271
      %v337 = vunpack.c.l.b16 %v272
      %v338 = vunpack.c.l.b16 %v273
      %v339 = vunpack.c.l.b16 %v274
      %v340 = vunpack.c.l.b16 %v275
      %v341 = vunpack.c.l.b16 %v276
      %v342 = vunpack.c.l.b16 %v277
      %v343 = vunpack.c.l.b16 %v278
      %v344 = vunpack.c.l.b16 %v279
      %v345 = vunpack.c.l.b16 %v280
      %v346 = vunpack.c.l.b16 %v281
      %v347 = vunpack.c.l.b16 %v282
      %v348 = vunpack.c.l.b16 %v283
      %v349 = vpack.c.b16 %v318, %v317
      %v350 = vpack.c.b16 %v320, %v319
      %v351 = vpack.c.b16 %v322, %v321
      %v352 = vpack.c.b16 %v324, %v323
      %v353 = vpack.c.b16 %v326, %v325
      %v354 = vpack.c.b16 %v328, %v327
      %v355 = vpack.c.b16 %v330, %v329
      %v356 = vpack.c.b16 %v332, %v331
      %v357 = vpack.c.b16 %v334, %v333
      %v358 = vpack.c.b16 %v336, %v335
      %v359 = vpack.c.b16 %v338, %v337
      %v360 = vpack.c.b16 %v340, %v339
      %v361 = vpack.c.b16 %v342, %v341
      %v362 = vpack.c.b16 %v344, %v343
      %v363 = vpack.c.b16 %v346, %v345
      %v364 = vpack.c.b16 %v348, %v347
      %v366 = vunpack.c.l.b16 %v284
      %v367 = vpack.c.b16 %v366, %v366
      %v369 = vshrl.u32 %v367, 16
      %v371 = vrot.slane %v369, 2
      %v372 = vshll.u32 %v367, 16
      %v374 = vrot.slane %v372, 3
      %v375 = vor.u32 %v371, %v374
      %vm376 = vcmask 23552
      %v378 = vsel %vm376, %v349, 0
      %v381 = vsel %vm376, %v350, 0
      %v384 = vsel %vm376, %v351, 0
      %v387 = vsel %vm376, %v352, 0
      %v390 = vsel %vm376, %v353, 0
      %v393 = vsel %vm376, %v354, 0
      %v396 = vsel %vm376, %v355, 0
      %v399 = vsel %vm376, %v356, 0
      %v402 = vsel %vm376, %v357, 0
      %v405 = vsel %vm376, %v358, 0
      %v408 = vsel %vm376, %v359, 0
      %v411 = vsel %vm376, %v360, 0
      %v414 = vsel %vm376, %v361, 0
      %v417 = vsel %vm376, %v362, 0
      %v420 = vsel %vm376, %v363, 0
      %v423 = vsel %vm376, %v364, 0
      %vm425 = vcmask 1040384
      %vm426 = vcmask 1041408
      %v427 = vsel %vm425, 4294967295, 65535
      %v428 = vsel %vm426, %v427, 0
      %v430 = vand.u32 %v375, %v428
      %432 = vmatprep.subr.bf16.mxu0 0
      %433 = vmatpush1.bf16.msra.mxu0 %v430
      %434 = vmatprep.subr.bf16.mxu0 0
      %435 = vmatpush1.bf16.msra.mxu0 0
      %436 = vmatprep.subr.bf16.mxu0 0
      %437 = vmatpush1.bf16.msra.mxu0 0
      %438 = vmatprep.subr.bf16.mxu0 0
      %439 = vmatpush1.bf16.msra.mxu0 0
      %440 = vmatprep.subr.bf16.mxu0 0
      %441 = vmatpush1.bf16.msra.mxu0 0
      %442 = vmatprep.subr.bf16.mxu0 0
      %443 = vmatpush1.bf16.msra.mxu0 0
      %444 = vmatprep.subr.bf16.mxu0 0
      %445 = vmatpush1.bf16.msra.mxu0 0
      %446 = vmatprep.subr.bf16.mxu0 0
      %447 = vmatpush1.bf16.msra.mxu0 0
      %448 = vmatprep.subr.bf16.mxu0 0
      %449 = vmatpush1.bf16.msra.mxu0 0
      %450 = vmatprep.subr.bf16.mxu0 0
      %451 = vmatpush1.bf16.msra.mxu0 0
      %452 = vmatprep.subr.bf16.mxu0 0
      %453 = vmatpush1.bf16.msra.mxu0 0
      %454 = vmatprep.subr.bf16.mxu0 0
      %455 = vmatpush1.bf16.msra.mxu0 0
      %456 = vmatprep.subr.bf16.mxu0 0
      %457 = vmatpush1.bf16.msra.mxu0 0
      %458 = vmatprep.subr.bf16.mxu0 0
      %459 = vmatpush1.bf16.msra.mxu0 0
      %460 = vmatprep.subr.bf16.mxu0 0
      %461 = vmatpush1.bf16.msra.mxu0 0
      %462 = vmatprep.subr.bf16.mxu0 0
      %463 = vmatpush1.bf16.msra.mxu0 0
      %464 = vmatprep.mubr.bf16.mxu0 0
      %465 = vmatmul.mubr.bf16.gmra.mrb[0].mxu0 %v378
      %v466 = vpop.f32.mrb[0].mxu0
      %v467 = vadd.f32 0.0, %v466
      %v468 = vpop.f32.mrb[0].mxu0
      %v469 = vpop.f32.mrb[0].mxu0
      %v470 = vadd.f32 0.0, %v469
      %v471 = vpop.f32.mrb[0].mxu0
      %472 = vmatprep.mubr.bf16.mxu0 0
      %473 = vmatmul.mubr.bf16.gmra.mrb[0].mxu0 %v381
      %v474 = vpop.f32.mrb[0].mxu0
      %v475 = vadd.f32 0.0, %v474
      %v476 = vpop.f32.mrb[0].mxu0
      %v477 = vpop.f32.mrb[0].mxu0
      %v478 = vadd.f32 0.0, %v477
      %v479 = vpop.f32.mrb[0].mxu0
      %480 = vmatprep.mubr.bf16.mxu0 0
      %481 = vmatmul.mubr.bf16.gmra.mrb[0].mxu0 %v384
      %v482 = vpop.f32.mrb[0].mxu0
      %v483 = vadd.f32 0.0, %v482
      %v484 = vpop.f32.mrb[0].mxu0
      %v485 = vpop.f32.mrb[0].mxu0
      %v486 = vadd.f32 0.0, %v485
      %v487 = vpop.f32.mrb[0].mxu0
      %488 = vmatprep.mubr.bf16.mxu0 0
      %489 = vmatmul.mubr.bf16.gmra.mrb[0].mxu0 %v387
      %v490 = vpop.f32.mrb[0].mxu0
      %v491 = vadd.f32 0.0, %v490
      %v492 = vpop.f32.mrb[0].mxu0
      %v493 = vpop.f32.mrb[0].mxu0
      %v494 = vadd.f32 0.0, %v493
      %v495 = vpop.f32.mrb[0].mxu0
      %496 = vmatprep.mubr.bf16.mxu0 0
      %497 = vmatmul.mubr.bf16.gmra.mrb[0].mxu0 %v390
      %v498 = vpop.f32.mrb[0].mxu0
      %v499 = vadd.f32 0.0, %v498
      %v500 = vpop.f32.mrb[0].mxu0
      %v501 = vpop.f32.mrb[0].mxu0
      %v502 = vadd.f32 0.0, %v501
      %v503 = vpop.f32.mrb[0].mxu0
      %504 = vmatprep.mubr.bf16.mxu0 0
      %505 = vmatmul.mubr.bf16.gmra.mrb[0].mxu0 %v393
      %v506 = vpop.f32.mrb[0].mxu0
      %v507 = vadd.f32 0.0, %v506
      %v508 = vpop.f32.mrb[0].mxu0
      %v509 = vpop.f32.mrb[0].mxu0
      %v510 = vadd.f32 0.0, %v509
      %v511 = vpop.f32.mrb[0].mxu0
      %512 = vmatprep.mubr.bf16.mxu0 0
      %513 = vmatmul.mubr.bf16.gmra.mrb[0].mxu0 %v396
      %v514 = vpop.f32.mrb[0].mxu0
      %v515 = vadd.f32 0.0, %v514
      %v516 = vpop.f32.mrb[0].mxu0
      %v517 = vpop.f32.mrb[0].mxu0
      %v518 = vadd.f32 0.0, %v517
      %v519 = vpop.f32.mrb[0].mxu0
      %520 = vmatprep.mubr.bf16.mxu0 0
      %521 = vmatmul.mubr.bf16.gmra.mrb[0].mxu0 %v399
      %v522 = vpop.f32.mrb[0].mxu0
      %v523 = vadd.f32 0.0, %v522
      %v524 = vpop.f32.mrb[0].mxu0
      %v525 = vpop.f32.mrb[0].mxu0
      %v526 = vadd.f32 0.0, %v525
      %v527 = vpop.f32.mrb[0].mxu0
      %528 = vmatprep.mubr.bf16.mxu0 0
      %529 = vmatmul.mubr.bf16.gmra.mrb[0].mxu0 %v402
      %v530 = vpop.f32.mrb[0].mxu0
      %v531 = vadd.f32 0.0, %v530
      %v532 = vpop.f32.mrb[0].mxu0
      %v533 = vpop.f32.mrb[0].mxu0
      %v534 = vadd.f32 0.0, %v533
      %v535 = vpop.f32.mrb[0].mxu0
      %536 = vmatprep.mubr.bf16.mxu0 0
      %537 = vmatmul.mubr.bf16.gmra.mrb[0].mxu0 %v405
      %v538 = vpop.f32.mrb[0].mxu0
      %v539 = vadd.f32 0.0, %v538
      %v540 = vpop.f32.mrb[0].mxu0
      %v541 = vpop.f32.mrb[0].mxu0
      %v542 = vadd.f32 0.0, %v541
      %v543 = vpop.f32.mrb[0].mxu0
      %544 = vmatprep.mubr.bf16.mxu0 0
      %545 = vmatmul.mubr.bf16.gmra.mrb[0].mxu0 %v408
      %v546 = vpop.f32.mrb[0].mxu0
      %v547 = vadd.f32 0.0, %v546
      %v548 = vpop.f32.mrb[0].mxu0
      %v549 = vpop.f32.mrb[0].mxu0
      %v550 = vadd.f32 0.0, %v549
      %v551 = vpop.f32.mrb[0].mxu0
      %552 = vmatprep.mubr.bf16.mxu0 0
      %553 = vmatmul.mubr.bf16.gmra.mrb[0].mxu0 %v411
      %v554 = vpop.f32.mrb[0].mxu0
      %v555 = vadd.f32 0.0, %v554
      %v556 = vpop.f32.mrb[0].mxu0
      %v557 = vpop.f32.mrb[0].mxu0
      %v558 = vadd.f32 0.0, %v557
      %v559 = vpop.f32.mrb[0].mxu0
      %560 = vmatprep.mubr.bf16.mxu0 0
      %561 = vmatmul.mubr.bf16.gmra.mrb[0].mxu0 %v414
      %v562 = vpop.f32.mrb[0].mxu0
      %v563 = vadd.f32 0.0, %v562
      %v564 = vpop.f32.mrb[0].mxu0
      %v565 = vpop.f32.mrb[0].mxu0
      %v566 = vadd.f32 0.0, %v565
      %v567 = vpop.f32.mrb[0].mxu0
      %568 = vmatprep.mubr.bf16.mxu0 0
      %569 = vmatmul.mubr.bf16.gmra.mrb[0].mxu0 %v417
      %v570 = vpop.f32.mrb[0].mxu0
      %v571 = vadd.f32 0.0, %v570
      %v572 = vpop.f32.mrb[0].mxu0
      %v573 = vpop.f32.mrb[0].mxu0
      %v574 = vadd.f32 0.0, %v573
      %v575 = vpop.f32.mrb[0].mxu0
      %576 = vmatprep.mubr.bf16.mxu0 0
      %577 = vmatmul.mubr.bf16.gmra.mrb[0].mxu0 %v420
      %v578 = vpop.f32.mrb[0].mxu0
      %v579 = vadd.f32 0.0, %v578
      %v580 = vpop.f32.mrb[0].mxu0
      %v581 = vpop.f32.mrb[0].mxu0
      %v582 = vadd.f32 0.0, %v581
      %v583 = vpop.f32.mrb[0].mxu0
      %584 = vmatprep.mubr.bf16.mxu0 0
      %585 = vmatmul.mubr.bf16.gmra.mrb[0].mxu0 %v423
      %v586 = vpop.f32.mrb[0].mxu0
      %v587 = vadd.f32 0.0, %v586
      %v588 = vpop.f32.mrb[0].mxu0
      %v589 = vpop.f32.mrb[0].mxu0
      %v590 = vadd.f32 0.0, %v589
      %v591 = vpop.f32.mrb[0].mxu0
      %592 = vdwg.mxu0
      %v625 = vunpack.c.l.b16 %v219
      %v626 = vunpack.c.l.b16 %v220
      %v627 = vunpack.c.l.b16 %v221
      %v628 = vunpack.c.l.b16 %v222
      %v629 = vunpack.c.l.b16 %v223
      %v630 = vunpack.c.l.b16 %v224
      %v631 = vunpack.c.l.b16 %v225
      %v632 = vunpack.c.l.b16 %v226
      %v633 = vunpack.c.l.b16 %v227
      %v634 = vunpack.c.l.b16 %v228
      %v635 = vunpack.c.l.b16 %v229
      %v636 = vunpack.c.l.b16 %v230
      %v637 = vunpack.c.l.b16 %v231
      %v638 = vunpack.c.l.b16 %v232
      %v639 = vunpack.c.l.b16 %v233
      %v640 = vunpack.c.l.b16 %v234
      %v641 = vunpack.c.l.b16 %v235
      %v642 = vunpack.c.l.b16 %v236
      %v643 = vunpack.c.l.b16 %v237
      %v644 = vunpack.c.l.b16 %v238
      %v645 = vunpack.c.l.b16 %v239
      %v646 = vunpack.c.l.b16 %v240
      %v647 = vunpack.c.l.b16 %v241
      %v648 = vunpack.c.l.b16 %v242
      %v649 = vunpack.c.l.b16 %v243
      %v650 = vunpack.c.l.b16 %v244
      %v651 = vunpack.c.l.b16 %v245
      %v652 = vunpack.c.l.b16 %v246
      %v653 = vunpack.c.l.b16 %v247
      %v654 = vunpack.c.l.b16 %v248
      %v655 = vunpack.c.l.b16 %v249
      %v656 = vunpack.c.l.b16 %v250
      %v657 = vpack.c.b16 %v626, %v625
      %v658 = vpack.c.b16 %v628, %v627
      %v659 = vpack.c.b16 %v630, %v629
      %v660 = vpack.c.b16 %v632, %v631
      %v661 = vpack.c.b16 %v634, %v633
      %v662 = vpack.c.b16 %v636, %v635
      %v663 = vpack.c.b16 %v638, %v637
      %v664 = vpack.c.b16 %v640, %v639
      %v665 = vpack.c.b16 %v642, %v641
      %v666 = vpack.c.b16 %v644, %v643
      %v667 = vpack.c.b16 %v646, %v645
      %v668 = vpack.c.b16 %v648, %v647
      %v669 = vpack.c.b16 %v650, %v649
      %v670 = vpack.c.b16 %v652, %v651
      %v671 = vpack.c.b16 %v654, %v653
      %v672 = vpack.c.b16 %v656, %v655
      %vm673 = vcmask 39936
      %v675 = vsel %vm673, %v657, 0
      %v678 = vsel %vm673, %v658, 0
      %v681 = vsel %vm673, %v659, 0
      %v684 = vsel %vm673, %v660, 0
      %v687 = vsel %vm673, %v661, 0
      %v690 = vsel %vm673, %v662, 0
      %v693 = vsel %vm673, %v663, 0
      %v696 = vsel %vm673, %v664, 0
      %v699 = vsel %vm673, %v665, 0
      %v702 = vsel %vm673, %v666, 0
      %v705 = vsel %vm673, %v667, 0
      %v708 = vsel %vm673, %v668, 0
      %v711 = vsel %vm673, %v669, 0
      %v714 = vsel %vm673, %v670, 0
      %v717 = vsel %vm673, %v671, 0
      %v720 = vsel %vm673, %v672, 0
      %vm722 = vcmask 1042432
      %v723 = vsel %vm426, 4294967295, 65535
      %v724 = vsel %vm722, %v723, 0
      %v726 = vand.u32 %v251, %v724
      %728 = vmatprep.subr.bf16.mxu0 0
      %729 = vmatpush1.bf16.msra.mxu0 %v726
      %730 = vmatprep.subr.bf16.mxu0 0
      %731 = vmatpush1.bf16.msra.mxu0 0
      %732 = vmatprep.subr.bf16.mxu0 0
      %733 = vmatpush1.bf16.msra.mxu0 0
      %734 = vmatprep.subr.bf16.mxu0 0
      %735 = vmatpush1.bf16.msra.mxu0 0
      %736 = vmatprep.subr.bf16.mxu0 0
      %737 = vmatpush1.bf16.msra.mxu0 0
      %738 = vmatprep.subr.bf16.mxu0 0
      %739 = vmatpush1.bf16.msra.mxu0 0
      %740 = vmatprep.subr.bf16.mxu0 0
      %741 = vmatpush1.bf16.msra.mxu0 0
      %742 = vmatprep.subr.bf16.mxu0 0
      %743 = vmatpush1.bf16.msra.mxu0 0
      %744 = vmatprep.subr.bf16.mxu0 0
      %745 = vmatpush1.bf16.msra.mxu0 0
      %746 = vmatprep.subr.bf16.mxu0 0
      %747 = vmatpush1.bf16.msra.mxu0 0
      %748 = vmatprep.subr.bf16.mxu0 0
      %749 = vmatpush1.bf16.msra.mxu0 0
      %750 = vmatprep.subr.bf16.mxu0 0
      %751 = vmatpush1.bf16.msra.mxu0 0
      %752 = vmatprep.subr.bf16.mxu0 0
      %753 = vmatpush1.bf16.msra.mxu0 0
      %754 = vmatprep.subr.bf16.mxu0 0
      %755 = vmatpush1.bf16.msra.mxu0 0
      %756 = vmatprep.subr.bf16.mxu0 0
      %757 = vmatpush1.bf16.msra.mxu0 0
      %758 = vmatprep.subr.bf16.mxu0 0
      %759 = vmatpush1.bf16.msra.mxu0 0
      %760 = vmatprep.mubr.bf16.mxu0 0
      %761 = vmatmul.mubr.bf16.gmra.mrb[0].mxu0 %v675
      %v762 = vpop.f32.mrb[0].mxu0
      %v763 = vadd.f32 %v467, %v762
      %v764 = vpop.f32.mrb[0].mxu0
      %v765 = vpop.f32.mrb[0].mxu0
      %v766 = vadd.f32 %v470, %v765
      %v767 = vpop.f32.mrb[0].mxu0
      %768 = vmatprep.mubr.bf16.mxu0 0
      %769 = vmatmul.mubr.bf16.gmra.mrb[0].mxu0 %v678
      %v770 = vpop.f32.mrb[0].mxu0
      %v771 = vadd.f32 %v475, %v770
      %v772 = vpop.f32.mrb[0].mxu0
      %v773 = vpop.f32.mrb[0].mxu0
      %v774 = vadd.f32 %v478, %v773
      %v775 = vpop.f32.mrb[0].mxu0
      %776 = vmatprep.mubr.bf16.mxu0 0
      %777 = vmatmul.mubr.bf16.gmra.mrb[0].mxu0 %v681
      %v778 = vpop.f32.mrb[0].mxu0
      %v779 = vadd.f32 %v483, %v778
      %v780 = vpop.f32.mrb[0].mxu0
      %v781 = vpop.f32.mrb[0].mxu0
      %v782 = vadd.f32 %v486, %v781
      %v783 = vpop.f32.mrb[0].mxu0
      %784 = vmatprep.mubr.bf16.mxu0 0
      %785 = vmatmul.mubr.bf16.gmra.mrb[0].mxu0 %v684
      %v786 = vpop.f32.mrb[0].mxu0
      %v787 = vadd.f32 %v491, %v786
      %v788 = vpop.f32.mrb[0].mxu0
      %v789 = vpop.f32.mrb[0].mxu0
      %v790 = vadd.f32 %v494, %v789
      %v791 = vpop.f32.mrb[0].mxu0
      %792 = vmatprep.mubr.bf16.mxu0 0
      %793 = vmatmul.mubr.bf16.gmra.mrb[0].mxu0 %v687
      %v794 = vpop.f32.mrb[0].mxu0
      %v795 = vadd.f32 %v499, %v794
      %v796 = vpop.f32.mrb[0].mxu0
      %v797 = vpop.f32.mrb[0].mxu0
      %v798 = vadd.f32 %v502, %v797
      %v799 = vpop.f32.mrb[0].mxu0
      %800 = vmatprep.mubr.bf16.mxu0 0
      %801 = vmatmul.mubr.bf16.gmra.mrb[0].mxu0 %v690
      %v802 = vpop.f32.mrb[0].mxu0
      %v803 = vadd.f32 %v507, %v802
      %v804 = vpop.f32.mrb[0].mxu0
      %v805 = vpop.f32.mrb[0].mxu0
      %v806 = vadd.f32 %v510, %v805
      %v807 = vpop.f32.mrb[0].mxu0
      %808 = vmatprep.mubr.bf16.mxu0 0
      %809 = vmatmul.mubr.bf16.gmra.mrb[0].mxu0 %v693
      %v810 = vpop.f32.mrb[0].mxu0
      %v811 = vadd.f32 %v515, %v810
      %v812 = vpop.f32.mrb[0].mxu0
      %v813 = vpop.f32.mrb[0].mxu0
      %v814 = vadd.f32 %v518, %v813
      %v815 = vpop.f32.mrb[0].mxu0
      %816 = vmatprep.mubr.bf16.mxu0 0
      %817 = vmatmul.mubr.bf16.gmra.mrb[0].mxu0 %v696
      %v818 = vpop.f32.mrb[0].mxu0
      %v819 = vadd.f32 %v523, %v818
      %v820 = vpop.f32.mrb[0].mxu0
      %v821 = vpop.f32.mrb[0].mxu0
      %v822 = vadd.f32 %v526, %v821
      %v823 = vpop.f32.mrb[0].mxu0
      %824 = vmatprep.mubr.bf16.mxu0 0
      %825 = vmatmul.mubr.bf16.gmra.mrb[0].mxu0 %v699
      %v826 = vpop.f32.mrb[0].mxu0
      %v827 = vadd.f32 %v531, %v826
      %v828 = vpop.f32.mrb[0].mxu0
      %v829 = vpop.f32.mrb[0].mxu0
      %v830 = vadd.f32 %v534, %v829
      %v831 = vpop.f32.mrb[0].mxu0
      %832 = vmatprep.mubr.bf16.mxu0 0
      %833 = vmatmul.mubr.bf16.gmra.mrb[0].mxu0 %v702
      %v834 = vpop.f32.mrb[0].mxu0
      %v835 = vadd.f32 %v539, %v834
      %v836 = vpop.f32.mrb[0].mxu0
      %v837 = vpop.f32.mrb[0].mxu0
      %v838 = vadd.f32 %v542, %v837
      %v839 = vpop.f32.mrb[0].mxu0
      %840 = vmatprep.mubr.bf16.mxu0 0
      %841 = vmatmul.mubr.bf16.gmra.mrb[0].mxu0 %v705
      %v842 = vpop.f32.mrb[0].mxu0
      %v843 = vadd.f32 %v547, %v842
      %v844 = vpop.f32.mrb[0].mxu0
      %v845 = vpop.f32.mrb[0].mxu0
      %v846 = vadd.f32 %v550, %v845
      %v847 = vpop.f32.mrb[0].mxu0
      %848 = vmatprep.mubr.bf16.mxu0 0
      %849 = vmatmul.mubr.bf16.gmra.mrb[0].mxu0 %v708
      %v850 = vpop.f32.mrb[0].mxu0
      %v851 = vadd.f32 %v555, %v850
      %v852 = vpop.f32.mrb[0].mxu0
      %v853 = vpop.f32.mrb[0].mxu0
      %v854 = vadd.f32 %v558, %v853
      %v855 = vpop.f32.mrb[0].mxu0
      %856 = vmatprep.mubr.bf16.mxu0 0
      %857 = vmatmul.mubr.bf16.gmra.mrb[0].mxu0 %v711
      %v858 = vpop.f32.mrb[0].mxu0
      %v859 = vadd.f32 %v563, %v858
      %v860 = vpop.f32.mrb[0].mxu0
      %v861 = vpop.f32.mrb[0].mxu0
      %v862 = vadd.f32 %v566, %v861
      %v863 = vpop.f32.mrb[0].mxu0
      %864 = vmatprep.mubr.bf16.mxu0 0
      %865 = vmatmul.mubr.bf16.gmra.mrb[0].mxu0 %v714
      %v866 = vpop.f32.mrb[0].mxu0
      %v867 = vadd.f32 %v571, %v866
      %v868 = vpop.f32.mrb[0].mxu0
      %v869 = vpop.f32.mrb[0].mxu0
      %v870 = vadd.f32 %v574, %v869
      %v871 = vpop.f32.mrb[0].mxu0
      %872 = vmatprep.mubr.bf16.mxu0 0
      %873 = vmatmul.mubr.bf16.gmra.mrb[0].mxu0 %v717
      %v874 = vpop.f32.mrb[0].mxu0
      %v875 = vadd.f32 %v579, %v874
      %v876 = vpop.f32.mrb[0].mxu0
      %v877 = vpop.f32.mrb[0].mxu0
      %v878 = vadd.f32 %v582, %v877
      %v879 = vpop.f32.mrb[0].mxu0
      %880 = vmatprep.mubr.bf16.mxu0 0
      %881 = vmatmul.mubr.bf16.gmra.mrb[0].mxu0 %v720
      %v882 = vpop.f32.mrb[0].mxu0
      %v883 = vadd.f32 %v587, %v882
      %v884 = vpop.f32.mrb[0].mxu0
      %v885 = vpop.f32.mrb[0].mxu0
      %v886 = vadd.f32 %v590, %v885
      %v887 = vpop.f32.mrb[0].mxu0
      %888 = vdwg.mxu0
      %v889 = vld [vmem:[%s207] sm:$0xf]
      %v890 = vld [vmem:[%s207 + $0x4] sm:$0xf]
      %v891 = vld [vmem:[%s207 + $0x8] sm:$0x1]
      %v892 = vld [vmem:[%s207 + $0xc] sm:$0xf]
      %v893 = vld [vmem:[%s207 + $0x10] sm:$0xf]
      %v894 = vld [vmem:[%s207 + $0x14] sm:$0x1]
      %v895 = vld [vmem:[%s207 + $0x18] sm:$0xf]
      %v896 = vld [vmem:[%s207 + $0x1c] sm:$0xf]
      %v897 = vld [vmem:[%s207 + $0x20] sm:$0x1]
      %v898 = vld [vmem:[%s207 + $0x24] sm:$0xf]
      %v899 = vld [vmem:[%s207 + $0x28] sm:$0xf]
      %v900 = vld [vmem:[%s207 + $0x2c] sm:$0x1]
      %v901 = vld [vmem:[%s207 + $0x30] sm:$0xf]
      %v902 = vld [vmem:[%s207 + $0x34] sm:$0xf]
      %v903 = vld [vmem:[%s207 + $0x38] sm:$0x1]
      %v904 = vld [vmem:[%s207 + $0x3c] sm:$0xf]
      %v905 = vld [vmem:[%s207 + $0x40] sm:$0xf]
      %v906 = vld [vmem:[%s207 + $0x44] sm:$0x1]
      %v907 = vld [vmem:[%s207 + $0x48] sm:$0xf]
      %v908 = vld [vmem:[%s207 + $0x4c] sm:$0xf]
      %v909 = vld [vmem:[%s207 + $0x50] sm:$0x1]
      %v910 = vld [vmem:[%s207 + $0x54] sm:$0xf]
      %v911 = vld [vmem:[%s207 + $0x58] sm:$0xf]
      %v912 = vld [vmem:[%s207 + $0x5c] sm:$0x1]
      %v913 = vld [vmem:[%s207 + $0x60] sm:$0xf]
      %v914 = vld [vmem:[%s207 + $0x64] sm:$0xf]
      %v915 = vld [vmem:[%s207 + $0x68] sm:$0x1]
      %v916 = vld [vmem:[%s207 + $0x6c] sm:$0xf]
      %v917 = vld [vmem:[%s207 + $0x70] sm:$0xf]
      %v918 = vld [vmem:[%s207 + $0x74] sm:$0x1]
      %v919 = vld [vmem:[%s207 + $0x78] sm:$0xf]
      %v920 = vld [vmem:[%s207 + $0x7c] sm:$0xf]
      %v921 = vld [vmem:[%s207 + $0x80] sm:$0x1]
      %v922 = vld [vmem:[%s207 + $0x84] sm:$0xf]
      %v923 = vld [vmem:[%s207 + $0x88] sm:$0xf]
      %v924 = vld [vmem:[%s207 + $0x8c] sm:$0x1]
      %v925 = vld [vmem:[%s207 + $0x90] sm:$0xf]
      %v926 = vld [vmem:[%s207 + $0x94] sm:$0xf]
      %v927 = vld [vmem:[%s207 + $0x98] sm:$0x1]
      %v928 = vld [vmem:[%s207 + $0x9c] sm:$0xf]
      %v929 = vld [vmem:[%s207 + $0xa0] sm:$0xf]
      %v930 = vld [vmem:[%s207 + $0xa4] sm:$0x1]
      %v931 = vld [vmem:[%s207 + $0xa8] sm:$0xf]
      %v932 = vld [vmem:[%s207 + $0xac] sm:$0xf]
      %v933 = vld [vmem:[%s207 + $0xb0] sm:$0x1]
      %v934 = vld [vmem:[%s207 + $0xb4] sm:$0xf]
      %v935 = vld [vmem:[%s207 + $0xb8] sm:$0xf]
      %v936 = vld [vmem:[%s207 + $0xbc] sm:$0x1]
      %vm937 = vsmask.f32 3328
      %vm938 = vsmask.f32 7440
      %vm939 = vmor %vm937, %vm938
      %v941 = vshrl.u32 %v889, 16
      %v943 = vrot.slane %v941, 4
      %v944 = vshll.u32 %v889, 16
      %v946 = vrot.slane %v944, 5
      %v947 = vor.u32 %v943, %v946
      %v948 = vrot.slane %v947, 4
      %v950 = vshll.u32 %v890, 16
      %v952 = vrot.slane %v950, 5
      %v953 = vsel %vm939, %v948, %v952
      %v954 = vshrl.u32 %v890, 16
      %v956 = vrot.slane %v954, 4
      %v957 = vor.u32 %v956, %v952
      %v958 = vrot.slane %v957, 4
      %v960 = vshll.u32 %v891, 16
      %v962 = vrot.slane %v960, 5
      %v963 = vsel %vm939, %v958, %v962
      %v965 = vshrl.u32 %v892, 16
      %v967 = vrot.slane %v965, 4
      %v968 = vshll.u32 %v892, 16
      %v970 = vrot.slane %v968, 5
      %v971 = vor.u32 %v967, %v970
      %v972 = vrot.slane %v971, 4
      %v974 = vshll.u32 %v893, 16
      %v976 = vrot.slane %v974, 5
      %v977 = vsel %vm939, %v972, %v976
      %v978 = vshrl.u32 %v893, 16
      %v980 = vrot.slane %v978, 4
      %v981 = vor.u32 %v980, %v976
      %v982 = vrot.slane %v981, 4
      %v984 = vshll.u32 %v894, 16
      %v986 = vrot.slane %v984, 5
      %v987 = vsel %vm939, %v982, %v986
      %v989 = vshrl.u32 %v895, 16
      %v991 = vrot.slane %v989, 4
      %v992 = vshll.u32 %v895, 16
      %v994 = vrot.slane %v992, 5
      %v995 = vor.u32 %v991, %v994
      %v996 = vrot.slane %v995, 4
      %v998 = vshll.u32 %v896, 16
      %v1000 = vrot.slane %v998, 5
      %v1001 = vsel %vm939, %v996, %v1000
      %v1002 = vshrl.u32 %v896, 16
      %v1004 = vrot.slane %v1002, 4
      %v1005 = vor.u32 %v1004, %v1000
      %v1006 = vrot.slane %v1005, 4
      %v1008 = vshll.u32 %v897, 16
      %v1010 = vrot.slane %v1008, 5
      %v1011 = vsel %vm939, %v1006, %v1010
      %v1013 = vshrl.u32 %v898, 16
      %v1015 = vrot.slane %v1013, 4
      %v1016 = vshll.u32 %v898, 16
      %v1018 = vrot.slane %v1016, 5
      %v1019 = vor.u32 %v1015, %v1018
      %v1020 = vrot.slane %v1019, 4
      %v1022 = vshll.u32 %v899, 16
      %v1024 = vrot.slane %v1022, 5
      %v1025 = vsel %vm939, %v1020, %v1024
      %v1026 = vshrl.u32 %v899, 16
      %v1028 = vrot.slane %v1026, 4
      %v1029 = vor.u32 %v1028, %v1024
      %v1030 = vrot.slane %v1029, 4
      %v1032 = vshll.u32 %v900, 16
      %v1034 = vrot.slane %v1032, 5
      %v1035 = vsel %vm939, %v1030, %v1034
      %v1037 = vshrl.u32 %v901, 16
      %v1039 = vrot.slane %v1037, 4
      %v1040 = vshll.u32 %v901, 16
      %v1042 = vrot.slane %v1040, 5
      %v1043 = vor.u32 %v1039, %v1042
      %v1044 = vrot.slane %v1043, 4
      %v1046 = vshll.u32 %v902, 16
      %v1048 = vrot.slane %v1046, 5
      %v1049 = vsel %vm939, %v1044, %v1048
      %v1050 = vshrl.u32 %v902, 16
      %v1052 = vrot.slane %v1050, 4
      %v1053 = vor.u32 %v1052, %v1048
      %v1054 = vrot.slane %v1053, 4
      %v1056 = vshll.u32 %v903, 16
      %v1058 = vrot.slane %v1056, 5
      %v1059 = vsel %vm939, %v1054, %v1058
      %v1061 = vshrl.u32 %v904, 16
      %v1063 = vrot.slane %v1061, 4
      %v1064 = vshll.u32 %v904, 16
      %v1066 = vrot.slane %v1064, 5
      %v1067 = vor.u32 %v1063, %v1066
      %v1068 = vrot.slane %v1067, 4
      %v1070 = vshll.u32 %v905, 16
      %v1072 = vrot.slane %v1070, 5
      %v1073 = vsel %vm939, %v1068, %v1072
      %v1074 = vshrl.u32 %v905, 16
      %v1076 = vrot.slane %v1074, 4
      %v1077 = vor.u32 %v1076, %v1072
      %v1078 = vrot.slane %v1077, 4
      %v1080 = vshll.u32 %v906, 16
      %v1082 = vrot.slane %v1080, 5
      %v1083 = vsel %vm939, %v1078, %v1082
      %v1085 = vshrl.u32 %v907, 16
      %v1087 = vrot.slane %v1085, 4
      %v1088 = vshll.u32 %v907, 16
      %v1090 = vrot.slane %v1088, 5
      %v1091 = vor.u32 %v1087, %v1090
      %v1092 = vrot.slane %v1091, 4
      %v1094 = vshll.u32 %v908, 16
      %v1096 = vrot.slane %v1094, 5
      %v1097 = vsel %vm939, %v1092, %v1096
      %v1098 = vshrl.u32 %v908, 16
      %v1100 = vrot.slane %v1098, 4
      %v1101 = vor.u32 %v1100, %v1096
      %v1102 = vrot.slane %v1101, 4
      %v1104 = vshll.u32 %v909, 16
      %v1106 = vrot.slane %v1104, 5
      %v1107 = vsel %vm939, %v1102, %v1106
      %v1109 = vshrl.u32 %v910, 16
      %v1111 = vrot.slane %v1109, 4
      %v1112 = vshll.u32 %v910, 16
      %v1114 = vrot.slane %v1112, 5
      %v1115 = vor.u32 %v1111, %v1114
      %v1116 = vrot.slane %v1115, 4
      %v1118 = vshll.u32 %v911, 16
      %v1120 = vrot.slane %v1118, 5
      %v1121 = vsel %vm939, %v1116, %v1120
      %v1122 = vshrl.u32 %v911, 16
      %v1124 = vrot.slane %v1122, 4
      %v1125 = vor.u32 %v1124, %v1120
      %v1126 = vrot.slane %v1125, 4
      %v1128 = vshll.u32 %v912, 16
      %v1130 = vrot.slane %v1128, 5
      %v1131 = vsel %vm939, %v1126, %v1130
      %v1133 = vshrl.u32 %v913, 16
      %v1135 = vrot.slane %v1133, 4
      %v1136 = vshll.u32 %v913, 16
      %v1138 = vrot.slane %v1136, 5
      %v1139 = vor.u32 %v1135, %v1138
      %v1140 = vrot.slane %v1139, 4
      %v1142 = vshll.u32 %v914, 16
      %v1144 = vrot.slane %v1142, 5
      %v1145 = vsel %vm939, %v1140, %v1144
      %v1146 = vshrl.u32 %v914, 16
      %v1148 = vrot.slane %v1146, 4
      %v1149 = vor.u32 %v1148, %v1144
      %v1150 = vrot.slane %v1149, 4
      %v1152 = vshll.u32 %v915, 16
      %v1154 = vrot.slane %v1152, 5
      %v1155 = vsel %vm939, %v1150, %v1154
      %v1157 = vshrl.u32 %v916, 16
      %v1159 = vrot.slane %v1157, 4
      %v1160 = vshll.u32 %v916, 16
      %v1162 = vrot.slane %v1160, 5
      %v1163 = vor.u32 %v1159, %v1162
      %v1164 = vrot.slane %v1163, 4
      %v1166 = vshll.u32 %v917, 16
      %v1168 = vrot.slane %v1166, 5
      %v1169 = vsel %vm939, %v1164, %v1168
      %v1170 = vshrl.u32 %v917, 16
      %v1172 = vrot.slane %v1170, 4
      %v1173 = vor.u32 %v1172, %v1168
      %v1174 = vrot.slane %v1173, 4
      %v1176 = vshll.u32 %v918, 16
      %v1178 = vrot.slane %v1176, 5
      %v1179 = vsel %vm939, %v1174, %v1178
      %v1181 = vshrl.u32 %v919, 16
      %v1183 = vrot.slane %v1181, 4
      %v1184 = vshll.u32 %v919, 16
      %v1186 = vrot.slane %v1184, 5
      %v1187 = vor.u32 %v1183, %v1186
      %v1188 = vrot.slane %v1187, 4
      %v1190 = vshll.u32 %v920, 16
      %v1192 = vrot.slane %v1190, 5
      %v1193 = vsel %vm939, %v1188, %v1192
      %v1194 = vshrl.u32 %v920, 16
      %v1196 = vrot.slane %v1194, 4
      %v1197 = vor.u32 %v1196, %v1192
      %v1198 = vrot.slane %v1197, 4
      %v1200 = vshll.u32 %v921, 16
      %v1202 = vrot.slane %v1200, 5
      %v1203 = vsel %vm939, %v1198, %v1202
      %v1205 = vshrl.u32 %v922, 16
      %v1207 = vrot.slane %v1205, 4
      %v1208 = vshll.u32 %v922, 16
      %v1210 = vrot.slane %v1208, 5
      %v1211 = vor.u32 %v1207, %v1210
      %v1212 = vrot.slane %v1211, 4
      %v1214 = vshll.u32 %v923, 16
      %v1216 = vrot.slane %v1214, 5
      %v1217 = vsel %vm939, %v1212, %v1216
      %v1218 = vshrl.u32 %v923, 16
      %v1220 = vrot.slane %v1218, 4
      %v1221 = vor.u32 %v1220, %v1216
      %v1222 = vrot.slane %v1221, 4
      %v1224 = vshll.u32 %v924, 16
      %v1226 = vrot.slane %v1224, 5
      %v1227 = vsel %vm939, %v1222, %v1226
      %v1229 = vshrl.u32 %v925, 16
      %v1231 = vrot.slane %v1229, 4
      %v1232 = vshll.u32 %v925, 16
      %v1234 = vrot.slane %v1232, 5
      %v1235 = vor.u32 %v1231, %v1234
      %v1236 = vrot.slane %v1235, 4
      %v1238 = vshll.u32 %v926, 16
      %v1240 = vrot.slane %v1238, 5
      %v1241 = vsel %vm939, %v1236, %v1240
      %v1242 = vshrl.u32 %v926, 16
      %v1244 = vrot.slane %v1242, 4
      %v1245 = vor.u32 %v1244, %v1240
      %v1246 = vrot.slane %v1245, 4
      %v1248 = vshll.u32 %v927, 16
      %v1250 = vrot.slane %v1248, 5
      %v1251 = vsel %vm939, %v1246, %v1250
      %v1253 = vshrl.u32 %v928, 16
      %v1255 = vrot.slane %v1253, 4
      %v1256 = vshll.u32 %v928, 16
      %v1258 = vrot.slane %v1256, 5
      %v1259 = vor.u32 %v1255, %v1258
      %v1260 = vrot.slane %v1259, 4
      %v1262 = vshll.u32 %v929, 16
      %v1264 = vrot.slane %v1262, 5
      %v1265 = vsel %vm939, %v1260, %v1264
      %v1266 = vshrl.u32 %v929, 16
      %v1268 = vrot.slane %v1266, 4
      %v1269 = vor.u32 %v1268, %v1264
      %v1270 = vrot.slane %v1269, 4
      %v1272 = vshll.u32 %v930, 16
      %v1274 = vrot.slane %v1272, 5
      %v1275 = vsel %vm939, %v1270, %v1274
      %v1277 = vshrl.u32 %v931, 16
      %v1279 = vrot.slane %v1277, 4
      %v1280 = vshll.u32 %v931, 16
      %v1282 = vrot.slane %v1280, 5
      %v1283 = vor.u32 %v1279, %v1282
      %v1284 = vrot.slane %v1283, 4
      %v1286 = vshll.u32 %v932, 16
      %v1288 = vrot.slane %v1286, 5
      %v1289 = vsel %vm939, %v1284, %v1288
      %v1290 = vshrl.u32 %v932, 16
      %v1292 = vrot.slane %v1290, 4
      %v1293 = vor.u32 %v1292, %v1288
      %v1294 = vrot.slane %v1293, 4
      %v1296 = vshll.u32 %v933, 16
      %v1298 = vrot.slane %v1296, 5
      %v1299 = vsel %vm939, %v1294, %v1298
      %v1301 = vshrl.u32 %v934, 16
      %v1303 = vrot.slane %v1301, 4
      %v1304 = vshll.u32 %v934, 16
      %v1306 = vrot.slane %v1304, 5
      %v1307 = vor.u32 %v1303, %v1306
      %v1308 = vrot.slane %v1307, 4
      %v1310 = vshll.u32 %v935, 16
      %v1312 = vrot.slane %v1310, 5
      %v1313 = vsel %vm939, %v1308, %v1312
      %v1314 = vshrl.u32 %v935, 16
      %v1316 = vrot.slane %v1314, 4
      %v1317 = vor.u32 %v1316, %v1312
      %v1318 = vrot.slane %v1317, 4
      %v1320 = vshll.u32 %v936, 16
      %v1322 = vrot.slane %v1320, 5
      %v1323 = vsel %vm939, %v1318, %v1322
      %s1324 = scalar_lea.vmem %s2, 4
      %v1325 = vld [vmem:[%s1324] sm:$0x7]
      %v1326 = vunpack.c.l.b16 %v953
      %v1327 = vunpack.c.l.b16 %v963
      %v1328 = vunpack.c.l.b16 %v977
      %v1329 = vunpack.c.l.b16 %v987
      %v1330 = vunpack.c.l.b16 %v1001
      %v1331 = vunpack.c.l.b16 %v1011
      %v1332 = vunpack.c.l.b16 %v1025
      %v1333 = vunpack.c.l.b16 %v1035
      %v1334 = vunpack.c.l.b16 %v1049
      %v1335 = vunpack.c.l.b16 %v1059
      %v1336 = vunpack.c.l.b16 %v1073
      %v1337 = vunpack.c.l.b16 %v1083
      %v1338 = vunpack.c.l.b16 %v1097
      %v1339 = vunpack.c.l.b16 %v1107
      %v1340 = vunpack.c.l.b16 %v1121
      %v1341 = vunpack.c.l.b16 %v1131
      %v1342 = vunpack.c.l.b16 %v1145
      %v1343 = vunpack.c.l.b16 %v1155
      %v1344 = vunpack.c.l.b16 %v1169
      %v1345 = vunpack.c.l.b16 %v1179
      %v1346 = vunpack.c.l.b16 %v1193
      %v1347 = vunpack.c.l.b16 %v1203
      %v1348 = vunpack.c.l.b16 %v1217
      %v1349 = vunpack.c.l.b16 %v1227
      %v1350 = vunpack.c.l.b16 %v1241
      %v1351 = vunpack.c.l.b16 %v1251
      %v1352 = vunpack.c.l.b16 %v1265
      %v1353 = vunpack.c.l.b16 %v1275
      %v1354 = vunpack.c.l.b16 %v1289
      %v1355 = vunpack.c.l.b16 %v1299
      %v1356 = vunpack.c.l.b16 %v1313
      %v1357 = vunpack.c.l.b16 %v1323
      %v1358 = vpack.c.b16 %v1327, %v1326
      %v1359 = vpack.c.b16 %v1329, %v1328
      %v1360 = vpack.c.b16 %v1331, %v1330
      %v1361 = vpack.c.b16 %v1333, %v1332
      %v1362 = vpack.c.b16 %v1335, %v1334
      %v1363 = vpack.c.b16 %v1337, %v1336
      %v1364 = vpack.c.b16 %v1339, %v1338
      %v1365 = vpack.c.b16 %v1341, %v1340
      %v1366 = vpack.c.b16 %v1343, %v1342
      %v1367 = vpack.c.b16 %v1345, %v1344
      %v1368 = vpack.c.b16 %v1347, %v1346
      %v1369 = vpack.c.b16 %v1349, %v1348
      %v1370 = vpack.c.b16 %v1351, %v1350
      %v1371 = vpack.c.b16 %v1353, %v1352
      %v1372 = vpack.c.b16 %v1355, %v1354
      %v1373 = vpack.c.b16 %v1357, %v1356
      %v1375 = vsel %vm673, %v1358, 0
      %v1378 = vsel %vm673, %v1359, 0
      %v1381 = vsel %vm673, %v1360, 0
      %v1384 = vsel %vm673, %v1361, 0
      %v1387 = vsel %vm673, %v1362, 0
      %v1390 = vsel %vm673, %v1363, 0
      %v1393 = vsel %vm673, %v1364, 0
      %v1396 = vsel %vm673, %v1365, 0
      %v1399 = vsel %vm673, %v1366, 0
      %v1402 = vsel %vm673, %v1367, 0
      %v1405 = vsel %vm673, %v1368, 0
      %v1408 = vsel %vm673, %v1369, 0
      %v1411 = vsel %vm673, %v1370, 0
      %v1414 = vsel %vm673, %v1371, 0
      %v1417 = vsel %vm673, %v1372, 0
      %v1420 = vsel %vm673, %v1373, 0
      %v1423 = vand.u32 %v1325, %v724
      %1425 = vmatprep.subr.bf16.mxu0 0
      %1426 = vmatpush1.bf16.msra.mxu0 %v1423
      %1427 = vmatprep.subr.bf16.mxu0 0
      %1428 = vmatpush1.bf16.msra.mxu0 0
      %1429 = vmatprep.subr.bf16.mxu0 0
      %1430 = vmatpush1.bf16.msra.mxu0 0
      %1431 = vmatprep.subr.bf16.mxu0 0
      %1432 = vmatpush1.bf16.msra.mxu0 0
      %1433 = vmatprep.subr.bf16.mxu0 0
      %1434 = vmatpush1.bf16.msra.mxu0 0
      %1435 = vmatprep.subr.bf16.mxu0 0
      %1436 = vmatpush1.bf16.msra.mxu0 0
      %1437 = vmatprep.subr.bf16.mxu0 0
      %1438 = vmatpush1.bf16.msra.mxu0 0
      %1439 = vmatprep.subr.bf16.mxu0 0
      %1440 = vmatpush1.bf16.msra.mxu0 0
      %1441 = vmatprep.subr.bf16.mxu0 0
      %1442 = vmatpush1.bf16.msra.mxu0 0
      %1443 = vmatprep.subr.bf16.mxu0 0
      %1444 = vmatpush1.bf16.msra.mxu0 0
      %1445 = vmatprep.subr.bf16.mxu0 0
      %1446 = vmatpush1.bf16.msra.mxu0 0
      %1447 = vmatprep.subr.bf16.mxu0 0
      %1448 = vmatpush1.bf16.msra.mxu0 0
      %1449 = vmatprep.subr.bf16.mxu0 0
      %1450 = vmatpush1.bf16.msra.mxu0 0
      %1451 = vmatprep.subr.bf16.mxu0 0
      %1452 = vmatpush1.bf16.msra.mxu0 0
      %1453 = vmatprep.subr.bf16.mxu0 0
      %1454 = vmatpush1.bf16.msra.mxu0 0
      %1455 = vmatprep.subr.bf16.mxu0 0
      %1456 = vmatpush1.bf16.msra.mxu0 0
      %1457 = vmatprep.mubr.bf16.mxu0 0
      %1458 = vmatmul.mubr.bf16.gmra.mrb[0].mxu0 %v1375
      %v1459 = vpop.f32.mrb[0].mxu0
      %v1460 = vadd.f32 0.0, %v1459
      %v1461 = vpop.f32.mrb[0].mxu0
      %v1462 = vpop.f32.mrb[0].mxu0
      %v1463 = vadd.f32 0.0, %v1462
      %v1464 = vpop.f32.mrb[0].mxu0
      %1465 = vmatprep.mubr.bf16.mxu0 0
      %1466 = vmatmul.mubr.bf16.gmra.mrb[0].mxu0 %v1378
      %v1467 = vpop.f32.mrb[0].mxu0
      %v1468 = vadd.f32 0.0, %v1467
      %v1469 = vpop.f32.mrb[0].mxu0
      %v1470 = vpop.f32.mrb[0].mxu0
      %v1471 = vadd.f32 0.0, %v1470
      %v1472 = vpop.f32.mrb[0].mxu0
      %1473 = vmatprep.mubr.bf16.mxu0 0
      %1474 = vmatmul.mubr.bf16.gmra.mrb[0].mxu0 %v1381
      %v1475 = vpop.f32.mrb[0].mxu0
      %v1476 = vadd.f32 0.0, %v1475
      %v1477 = vpop.f32.mrb[0].mxu0
      %v1478 = vpop.f32.mrb[0].mxu0
      %v1479 = vadd.f32 0.0, %v1478
      %v1480 = vpop.f32.mrb[0].mxu0
      %1481 = vmatprep.mubr.bf16.mxu0 0
      %1482 = vmatmul.mubr.bf16.gmra.mrb[0].mxu0 %v1384
      %v1483 = vpop.f32.mrb[0].mxu0
      %v1484 = vadd.f32 0.0, %v1483
      %v1485 = vpop.f32.mrb[0].mxu0
      %v1486 = vpop.f32.mrb[0].mxu0
      %v1487 = vadd.f32 0.0, %v1486
      %v1488 = vpop.f32.mrb[0].mxu0
      %1489 = vmatprep.mubr.bf16.mxu0 0
      %1490 = vmatmul.mubr.bf16.gmra.mrb[0].mxu0 %v1387
      %v1491 = vpop.f32.mrb[0].mxu0
      %v1492 = vadd.f32 0.0, %v1491
      %v1493 = vpop.f32.mrb[0].mxu0
      %v1494 = vpop.f32.mrb[0].mxu0
      %v1495 = vadd.f32 0.0, %v1494
      %v1496 = vpop.f32.mrb[0].mxu0
      %1497 = vmatprep.mubr.bf16.mxu0 0
      %1498 = vmatmul.mubr.bf16.gmra.mrb[0].mxu0 %v1390
      %v1499 = vpop.f32.mrb[0].mxu0
      %v1500 = vadd.f32 0.0, %v1499
      %v1501 = vpop.f32.mrb[0].mxu0
      %v1502 = vpop.f32.mrb[0].mxu0
      %v1503 = vadd.f32 0.0, %v1502
      %v1504 = vpop.f32.mrb[0].mxu0
      %1505 = vmatprep.mubr.bf16.mxu0 0
      %1506 = vmatmul.mubr.bf16.gmra.mrb[0].mxu0 %v1393
      %v1507 = vpop.f32.mrb[0].mxu0
      %v1508 = vadd.f32 0.0, %v1507
      %v1509 = vpop.f32.mrb[0].mxu0
      %v1510 = vpop.f32.mrb[0].mxu0
      %v1511 = vadd.f32 0.0, %v1510
      %v1512 = vpop.f32.mrb[0].mxu0
      %1513 = vmatprep.mubr.bf16.mxu0 0
      %1514 = vmatmul.mubr.bf16.gmra.mrb[0].mxu0 %v1396
      %v1515 = vpop.f32.mrb[0].mxu0
      %v1516 = vadd.f32 0.0, %v1515
      %v1517 = vpop.f32.mrb[0].mxu0
      %v1518 = vpop.f32.mrb[0].mxu0
      %v1519 = vadd.f32 0.0, %v1518
      %v1520 = vpop.f32.mrb[0].mxu0
      %1521 = vmatprep.mubr.bf16.mxu0 0
      %1522 = vmatmul.mubr.bf16.gmra.mrb[0].mxu0 %v1399
      %v1523 = vpop.f32.mrb[0].mxu0
      %v1524 = vadd.f32 0.0, %v1523
      %v1525 = vpop.f32.mrb[0].mxu0
      %v1526 = vpop.f32.mrb[0].mxu0
      %v1527 = vadd.f32 0.0, %v1526
      %v1528 = vpop.f32.mrb[0].mxu0
      %1529 = vmatprep.mubr.bf16.mxu0 0
      %1530 = vmatmul.mubr.bf16.gmra.mrb[0].mxu0 %v1402
      %v1531 = vpop.f32.mrb[0].mxu0
      %v1532 = vadd.f32 0.0, %v1531
      %v1533 = vpop.f32.mrb[0].mxu0
      %v1534 = vpop.f32.mrb[0].mxu0
      %v1535 = vadd.f32 0.0, %v1534
      %v1536 = vpop.f32.mrb[0].mxu0
      %1537 = vmatprep.mubr.bf16.mxu0 0
      %1538 = vmatmul.mubr.bf16.gmra.mrb[0].mxu0 %v1405
      %v1539 = vpop.f32.mrb[0].mxu0
      %v1540 = vadd.f32 0.0, %v1539
      %v1541 = vpop.f32.mrb[0].mxu0
      %v1542 = vpop.f32.mrb[0].mxu0
      %v1543 = vadd.f32 0.0, %v1542
      %v1544 = vpop.f32.mrb[0].mxu0
      %1545 = vmatprep.mubr.bf16.mxu0 0
      %1546 = vmatmul.mubr.bf16.gmra.mrb[0].mxu0 %v1408
      %v1547 = vpop.f32.mrb[0].mxu0
      %v1548 = vadd.f32 0.0, %v1547
      %v1549 = vpop.f32.mrb[0].mxu0
      %v1550 = vpop.f32.mrb[0].mxu0
      %v1551 = vadd.f32 0.0, %v1550
      %v1552 = vpop.f32.mrb[0].mxu0
      %1553 = vmatprep.mubr.bf16.mxu0 0
      %1554 = vmatmul.mubr.bf16.gmra.mrb[0].mxu0 %v1411
      %v1555 = vpop.f32.mrb[0].mxu0
      %v1556 = vadd.f32 0.0, %v1555
      %v1557 = vpop.f32.mrb[0].mxu0
      %v1558 = vpop.f32.mrb[0].mxu0
      %v1559 = vadd.f32 0.0, %v1558
      %v1560 = vpop.f32.mrb[0].mxu0
      %1561 = vmatprep.mubr.bf16.mxu0 0
      %1562 = vmatmul.mubr.bf16.gmra.mrb[0].mxu0 %v1414
      %v1563 = vpop.f32.mrb[0].mxu0
      %v1564 = vadd.f32 0.0, %v1563
      %v1565 = vpop.f32.mrb[0].mxu0
      %v1566 = vpop.f32.mrb[0].mxu0
      %v1567 = vadd.f32 0.0, %v1566
      %v1568 = vpop.f32.mrb[0].mxu0
      %1569 = vmatprep.mubr.bf16.mxu0 0
      %1570 = vmatmul.mubr.bf16.gmra.mrb[0].mxu0 %v1417
      %v1571 = vpop.f32.mrb[0].mxu0
      %v1572 = vadd.f32 0.0, %v1571
      %v1573 = vpop.f32.mrb[0].mxu0
      %v1574 = vpop.f32.mrb[0].mxu0
      %v1575 = vadd.f32 0.0, %v1574
      %v1576 = vpop.f32.mrb[0].mxu0
      %1577 = vmatprep.mubr.bf16.mxu0 0
      %1578 = vmatmul.mubr.bf16.gmra.mrb[0].mxu0 %v1420
      %v1579 = vpop.f32.mrb[0].mxu0
      %v1580 = vadd.f32 0.0, %v1579
      %v1581 = vpop.f32.mrb[0].mxu0
      %v1582 = vpop.f32.mrb[0].mxu0
      %v1583 = vadd.f32 0.0, %v1582
      %v1584 = vpop.f32.mrb[0].mxu0
      %1585 = vdwg.mxu0
      %v1586 = vadd.f32 %v763, %v1460
      %v1587 = vadd.f32 %v766, %v1463
      %v1588 = vadd.f32 %v771, %v1468
      %v1589 = vadd.f32 %v774, %v1471
      %v1590 = vadd.f32 %v779, %v1476
      %v1591 = vadd.f32 %v782, %v1479
      %v1592 = vadd.f32 %v787, %v1484
      %v1593 = vadd.f32 %v790, %v1487
      %v1594 = vadd.f32 %v795, %v1492
      %v1595 = vadd.f32 %v798, %v1495
      %v1596 = vadd.f32 %v803, %v1500
      %v1597 = vadd.f32 %v806, %v1503
      %v1598 = vadd.f32 %v811, %v1508
      %v1599 = vadd.f32 %v814, %v1511
      %v1600 = vadd.f32 %v819, %v1516
      %v1601 = vadd.f32 %v822, %v1519
      %v1602 = vadd.f32 %v827, %v1524
      %v1603 = vadd.f32 %v830, %v1527
      %v1604 = vadd.f32 %v835, %v1532
      %v1605 = vadd.f32 %v838, %v1535
      %v1606 = vadd.f32 %v843, %v1540
      %v1607 = vadd.f32 %v846, %v1543
      %v1608 = vadd.f32 %v851, %v1548
      %v1609 = vadd.f32 %v854, %v1551
      %v1610 = vadd.f32 %v859, %v1556
      %v1611 = vadd.f32 %v862, %v1559
      %v1612 = vadd.f32 %v867, %v1564
      %v1613 = vadd.f32 %v870, %v1567
      %v1614 = vadd.f32 %v875, %v1572
      %v1615 = vadd.f32 %v878, %v1575
      %v1616 = vadd.f32 %v883, %v1580
      %v1617 = vadd.f32 %v886, %v1583
      %v1618 = vld [vmem:[%s212] sm:$0xf]
      %v1619 = vld [vmem:[%s212 + $0x4] sm:$0xf]
      %v1620 = vld [vmem:[%s212 + $0x8] sm:$0x1]
      %v1621 = vld [vmem:[%s212 + $0xc] sm:$0xf]
      %v1622 = vld [vmem:[%s212 + $0x10] sm:$0xf]
      %v1623 = vld [vmem:[%s212 + $0x14] sm:$0x1]
      %v1624 = vld [vmem:[%s212 + $0x18] sm:$0xf]
      %v1625 = vld [vmem:[%s212 + $0x1c] sm:$0xf]
      %v1626 = vld [vmem:[%s212 + $0x20] sm:$0x1]
      %v1627 = vld [vmem:[%s212 + $0x24] sm:$0xf]
      %v1628 = vld [vmem:[%s212 + $0x28] sm:$0xf]
      %v1629 = vld [vmem:[%s212 + $0x2c] sm:$0x1]
      %v1630 = vld [vmem:[%s212 + $0x30] sm:$0xf]
      %v1631 = vld [vmem:[%s212 + $0x34] sm:$0xf]
      %v1632 = vld [vmem:[%s212 + $0x38] sm:$0x1]
      %v1633 = vld [vmem:[%s212 + $0x3c] sm:$0xf]
      %v1634 = vld [vmem:[%s212 + $0x40] sm:$0xf]
      %v1635 = vld [vmem:[%s212 + $0x44] sm:$0x1]
      %v1636 = vld [vmem:[%s212 + $0x48] sm:$0xf]
      %v1637 = vld [vmem:[%s212 + $0x4c] sm:$0xf]
      %v1638 = vld [vmem:[%s212 + $0x50] sm:$0x1]
      %v1639 = vld [vmem:[%s212 + $0x54] sm:$0xf]
      %v1640 = vld [vmem:[%s212 + $0x58] sm:$0xf]
      %v1641 = vld [vmem:[%s212 + $0x5c] sm:$0x1]
      %v1642 = vld [vmem:[%s212 + $0x60] sm:$0xf]
      %v1643 = vld [vmem:[%s212 + $0x64] sm:$0xf]
      %v1644 = vld [vmem:[%s212 + $0x68] sm:$0x1]
      %v1645 = vld [vmem:[%s212 + $0x6c] sm:$0xf]
      %v1646 = vld [vmem:[%s212 + $0x70] sm:$0xf]
      %v1647 = vld [vmem:[%s212 + $0x74] sm:$0x1]
      %v1648 = vld [vmem:[%s212 + $0x78] sm:$0xf]
      %v1649 = vld [vmem:[%s212 + $0x7c] sm:$0xf]
      %v1650 = vld [vmem:[%s212 + $0x80] sm:$0x1]
      %v1651 = vld [vmem:[%s212 + $0x84] sm:$0xf]
      %v1652 = vld [vmem:[%s212 + $0x88] sm:$0xf]
      %v1653 = vld [vmem:[%s212 + $0x8c] sm:$0x1]
      %v1654 = vld [vmem:[%s212 + $0x90] sm:$0xf]
      %v1655 = vld [vmem:[%s212 + $0x94] sm:$0xf]
      %v1656 = vld [vmem:[%s212 + $0x98] sm:$0x1]
      %v1657 = vld [vmem:[%s212 + $0x9c] sm:$0xf]
      %v1658 = vld [vmem:[%s212 + $0xa0] sm:$0xf]
      %v1659 = vld [vmem:[%s212 + $0xa4] sm:$0x1]
      %v1660 = vld [vmem:[%s212 + $0xa8] sm:$0xf]
      %v1661 = vld [vmem:[%s212 + $0xac] sm:$0xf]
      %v1662 = vld [vmem:[%s212 + $0xb0] sm:$0x1]
      %v1663 = vld [vmem:[%s212 + $0xb4] sm:$0xf]
      %v1664 = vld [vmem:[%s212 + $0xb8] sm:$0xf]
      %v1665 = vld [vmem:[%s212 + $0xbc] sm:$0x1]
      %v1667 = vshrl.u32 %v1618, 16
      %v1669 = vrot.slane %v1667, 4
      %v1670 = vshll.u32 %v1618, 16
      %v1672 = vrot.slane %v1670, 5
      %v1673 = vor.u32 %v1669, %v1672
      %v1674 = vrot.slane %v1673, 4
      %v1676 = vshll.u32 %v1619, 16
      %v1678 = vrot.slane %v1676, 5
      %v1679 = vsel %vm939, %v1674, %v1678
      %v1680 = vshrl.u32 %v1619, 16
      %v1682 = vrot.slane %v1680, 4
      %v1683 = vor.u32 %v1682, %v1678
      %v1684 = vrot.slane %v1683, 4
      %v1686 = vshll.u32 %v1620, 16
      %v1688 = vrot.slane %v1686, 5
      %v1689 = vsel %vm939, %v1684, %v1688
      %v1691 = vshrl.u32 %v1621, 16
      %v1693 = vrot.slane %v1691, 4
      %v1694 = vshll.u32 %v1621, 16
      %v1696 = vrot.slane %v1694, 5
      %v1697 = vor.u32 %v1693, %v1696
      %v1698 = vrot.slane %v1697, 4
      %v1700 = vshll.u32 %v1622, 16
      %v1702 = vrot.slane %v1700, 5
      %v1703 = vsel %vm939, %v1698, %v1702
      %v1704 = vshrl.u32 %v1622, 16
      %v1706 = vrot.slane %v1704, 4
      %v1707 = vor.u32 %v1706, %v1702
      %v1708 = vrot.slane %v1707, 4
      %v1710 = vshll.u32 %v1623, 16
      %v1712 = vrot.slane %v1710, 5
      %v1713 = vsel %vm939, %v1708, %v1712
      %v1715 = vshrl.u32 %v1624, 16
      %v1717 = vrot.slane %v1715, 4
      %v1718 = vshll.u32 %v1624, 16
      %v1720 = vrot.slane %v1718, 5
      %v1721 = vor.u32 %v1717, %v1720
      %v1722 = vrot.slane %v1721, 4
      %v1724 = vshll.u32 %v1625, 16
      %v1726 = vrot.slane %v1724, 5
      %v1727 = vsel %vm939, %v1722, %v1726
      %v1728 = vshrl.u32 %v1625, 16
      %v1730 = vrot.slane %v1728, 4
      %v1731 = vor.u32 %v1730, %v1726
      %v1732 = vrot.slane %v1731, 4
      %v1734 = vshll.u32 %v1626, 16
      %v1736 = vrot.slane %v1734, 5
      %v1737 = vsel %vm939, %v1732, %v1736
      %v1739 = vshrl.u32 %v1627, 16
      %v1741 = vrot.slane %v1739, 4
      %v1742 = vshll.u32 %v1627, 16
      %v1744 = vrot.slane %v1742, 5
      %v1745 = vor.u32 %v1741, %v1744
      %v1746 = vrot.slane %v1745, 4
      %v1748 = vshll.u32 %v1628, 16
      %v1750 = vrot.slane %v1748, 5
      %v1751 = vsel %vm939, %v1746, %v1750
      %v1752 = vshrl.u32 %v1628, 16
      %v1754 = vrot.slane %v1752, 4
      %v1755 = vor.u32 %v1754, %v1750
      %v1756 = vrot.slane %v1755, 4
      %v1758 = vshll.u32 %v1629, 16
      %v1760 = vrot.slane %v1758, 5
      %v1761 = vsel %vm939, %v1756, %v1760
      %v1763 = vshrl.u32 %v1630, 16
      %v1765 = vrot.slane %v1763, 4
      %v1766 = vshll.u32 %v1630, 16
      %v1768 = vrot.slane %v1766, 5
      %v1769 = vor.u32 %v1765, %v1768
      %v1770 = vrot.slane %v1769, 4
      %v1772 = vshll.u32 %v1631, 16
      %v1774 = vrot.slane %v1772, 5
      %v1775 = vsel %vm939, %v1770, %v1774
      %v1776 = vshrl.u32 %v1631, 16
      %v1778 = vrot.slane %v1776, 4
      %v1779 = vor.u32 %v1778, %v1774
      %v1780 = vrot.slane %v1779, 4
      %v1782 = vshll.u32 %v1632, 16
      %v1784 = vrot.slane %v1782, 5
      %v1785 = vsel %vm939, %v1780, %v1784
      %v1787 = vshrl.u32 %v1633, 16
      %v1789 = vrot.slane %v1787, 4
      %v1790 = vshll.u32 %v1633, 16
      %v1792 = vrot.slane %v1790, 5
      %v1793 = vor.u32 %v1789, %v1792
      %v1794 = vrot.slane %v1793, 4
      %v1796 = vshll.u32 %v1634, 16
      %v1798 = vrot.slane %v1796, 5
      %v1799 = vsel %vm939, %v1794, %v1798
      %v1800 = vshrl.u32 %v1634, 16
      %v1802 = vrot.slane %v1800, 4
      %v1803 = vor.u32 %v1802, %v1798
      %v1804 = vrot.slane %v1803, 4
      %v1806 = vshll.u32 %v1635, 16
      %v1808 = vrot.slane %v1806, 5
      %v1809 = vsel %vm939, %v1804, %v1808
      %v1811 = vshrl.u32 %v1636, 16
      %v1813 = vrot.slane %v1811, 4
      %v1814 = vshll.u32 %v1636, 16
      %v1816 = vrot.slane %v1814, 5
      %v1817 = vor.u32 %v1813, %v1816
      %v1818 = vrot.slane %v1817, 4
      %v1820 = vshll.u32 %v1637, 16
      %v1822 = vrot.slane %v1820, 5
      %v1823 = vsel %vm939, %v1818, %v1822
      %v1824 = vshrl.u32 %v1637, 16
      %v1826 = vrot.slane %v1824, 4
      %v1827 = vor.u32 %v1826, %v1822
      %v1828 = vrot.slane %v1827, 4
      %v1830 = vshll.u32 %v1638, 16
      %v1832 = vrot.slane %v1830, 5
      %v1833 = vsel %vm939, %v1828, %v1832
      %v1835 = vshrl.u32 %v1639, 16
      %v1837 = vrot.slane %v1835, 4
      %v1838 = vshll.u32 %v1639, 16
      %v1840 = vrot.slane %v1838, 5
      %v1841 = vor.u32 %v1837, %v1840
      %v1842 = vrot.slane %v1841, 4
      %v1844 = vshll.u32 %v1640, 16
      %v1846 = vrot.slane %v1844, 5
      %v1847 = vsel %vm939, %v1842, %v1846
      %v1848 = vshrl.u32 %v1640, 16
      %v1850 = vrot.slane %v1848, 4
      %v1851 = vor.u32 %v1850, %v1846
      %v1852 = vrot.slane %v1851, 4
      %v1854 = vshll.u32 %v1641, 16
      %v1856 = vrot.slane %v1854, 5
      %v1857 = vsel %vm939, %v1852, %v1856
      %v1859 = vshrl.u32 %v1642, 16
      %v1861 = vrot.slane %v1859, 4
      %v1862 = vshll.u32 %v1642, 16
      %v1864 = vrot.slane %v1862, 5
      %v1865 = vor.u32 %v1861, %v1864
      %v1866 = vrot.slane %v1865, 4
      %v1868 = vshll.u32 %v1643, 16
      %v1870 = vrot.slane %v1868, 5
      %v1871 = vsel %vm939, %v1866, %v1870
      %v1872 = vshrl.u32 %v1643, 16
      %v1874 = vrot.slane %v1872, 4
      %v1875 = vor.u32 %v1874, %v1870
      %v1876 = vrot.slane %v1875, 4
      %v1878 = vshll.u32 %v1644, 16
      %v1880 = vrot.slane %v1878, 5
      %v1881 = vsel %vm939, %v1876, %v1880
      %v1883 = vshrl.u32 %v1645, 16
      %v1885 = vrot.slane %v1883, 4
      %v1886 = vshll.u32 %v1645, 16
      %v1888 = vrot.slane %v1886, 5
      %v1889 = vor.u32 %v1885, %v1888
      %v1890 = vrot.slane %v1889, 4
      %v1892 = vshll.u32 %v1646, 16
      %v1894 = vrot.slane %v1892, 5
      %v1895 = vsel %vm939, %v1890, %v1894
      %v1896 = vshrl.u32 %v1646, 16
      %v1898 = vrot.slane %v1896, 4
      %v1899 = vor.u32 %v1898, %v1894
      %v1900 = vrot.slane %v1899, 4
      %v1902 = vshll.u32 %v1647, 16
      %v1904 = vrot.slane %v1902, 5
      %v1905 = vsel %vm939, %v1900, %v1904
      %v1907 = vshrl.u32 %v1648, 16
      %v1909 = vrot.slane %v1907, 4
      %v1910 = vshll.u32 %v1648, 16
      %v1912 = vrot.slane %v1910, 5
      %v1913 = vor.u32 %v1909, %v1912
      %v1914 = vrot.slane %v1913, 4
      %v1916 = vshll.u32 %v1649, 16
      %v1918 = vrot.slane %v1916, 5
      %v1919 = vsel %vm939, %v1914, %v1918
      %v1920 = vshrl.u32 %v1649, 16
      %v1922 = vrot.slane %v1920, 4
      %v1923 = vor.u32 %v1922, %v1918
      %v1924 = vrot.slane %v1923, 4
      %v1926 = vshll.u32 %v1650, 16
      %v1928 = vrot.slane %v1926, 5
      %v1929 = vsel %vm939, %v1924, %v1928
      %v1931 = vshrl.u32 %v1651, 16
      %v1933 = vrot.slane %v1931, 4
      %v1934 = vshll.u32 %v1651, 16
      %v1936 = vrot.slane %v1934, 5
      %v1937 = vor.u32 %v1933, %v1936
      %v1938 = vrot.slane %v1937, 4
      %v1940 = vshll.u32 %v1652, 16
      %v1942 = vrot.slane %v1940, 5
      %v1943 = vsel %vm939, %v1938, %v1942
      %v1944 = vshrl.u32 %v1652, 16
      %v1946 = vrot.slane %v1944, 4
      %v1947 = vor.u32 %v1946, %v1942
      %v1948 = vrot.slane %v1947, 4
      %v1950 = vshll.u32 %v1653, 16
      %v1952 = vrot.slane %v1950, 5
      %v1953 = vsel %vm939, %v1948, %v1952
      %v1955 = vshrl.u32 %v1654, 16
      %v1957 = vrot.slane %v1955, 4
      %v1958 = vshll.u32 %v1654, 16
      %v1960 = vrot.slane %v1958, 5
      %v1961 = vor.u32 %v1957, %v1960
      %v1962 = vrot.slane %v1961, 4
      %v1964 = vshll.u32 %v1655, 16
      %v1966 = vrot.slane %v1964, 5
      %v1967 = vsel %vm939, %v1962, %v1966
      %v1968 = vshrl.u32 %v1655, 16
      %v1970 = vrot.slane %v1968, 4
      %v1971 = vor.u32 %v1970, %v1966
      %v1972 = vrot.slane %v1971, 4
      %v1974 = vshll.u32 %v1656, 16
      %v1976 = vrot.slane %v1974, 5
      %v1977 = vsel %vm939, %v1972, %v1976
      %v1979 = vshrl.u32 %v1657, 16
      %v1981 = vrot.slane %v1979, 4
      %v1982 = vshll.u32 %v1657, 16
      %v1984 = vrot.slane %v1982, 5
      %v1985 = vor.u32 %v1981, %v1984
      %v1986 = vrot.slane %v1985, 4
      %v1988 = vshll.u32 %v1658, 16
      %v1990 = vrot.slane %v1988, 5
      %v1991 = vsel %vm939, %v1986, %v1990
      %v1992 = vshrl.u32 %v1658, 16
      %v1994 = vrot.slane %v1992, 4
      %v1995 = vor.u32 %v1994, %v1990
      %v1996 = vrot.slane %v1995, 4
      %v1998 = vshll.u32 %v1659, 16
      %v2000 = vrot.slane %v1998, 5
      %v2001 = vsel %vm939, %v1996, %v2000
      %v2003 = vshrl.u32 %v1660, 16
      %v2005 = vrot.slane %v2003, 4
      %v2006 = vshll.u32 %v1660, 16
      %v2008 = vrot.slane %v2006, 5
      %v2009 = vor.u32 %v2005, %v2008
      %v2010 = vrot.slane %v2009, 4
      %v2012 = vshll.u32 %v1661, 16
      %v2014 = vrot.slane %v2012, 5
      %v2015 = vsel %vm939, %v2010, %v2014
      %v2016 = vshrl.u32 %v1661, 16
      %v2018 = vrot.slane %v2016, 4
      %v2019 = vor.u32 %v2018, %v2014
      %v2020 = vrot.slane %v2019, 4
      %v2022 = vshll.u32 %v1662, 16
      %v2024 = vrot.slane %v2022, 5
      %v2025 = vsel %vm939, %v2020, %v2024
      %v2027 = vshrl.u32 %v1663, 16
      %v2029 = vrot.slane %v2027, 4
      %v2030 = vshll.u32 %v1663, 16
      %v2032 = vrot.slane %v2030, 5
      %v2033 = vor.u32 %v2029, %v2032
      %v2034 = vrot.slane %v2033, 4
      %v2036 = vshll.u32 %v1664, 16
      %v2038 = vrot.slane %v2036, 5
      %v2039 = vsel %vm939, %v2034, %v2038
      %v2040 = vshrl.u32 %v1664, 16
      %v2042 = vrot.slane %v2040, 4
      %v2043 = vor.u32 %v2042, %v2038
      %v2044 = vrot.slane %v2043, 4
      %v2046 = vshll.u32 %v1665, 16
      %v2048 = vrot.slane %v2046, 5
      %v2049 = vsel %vm939, %v2044, %v2048
      %v2050 = vld [vmem:[%s1324] sm:$0xc]
      %v2051 = vunpack.c.l.b16 %v1679
      %v2052 = vunpack.c.l.b16 %v1689
      %v2053 = vunpack.c.l.b16 %v1703
      %v2054 = vunpack.c.l.b16 %v1713
      %v2055 = vunpack.c.l.b16 %v1727
      %v2056 = vunpack.c.l.b16 %v1737
      %v2057 = vunpack.c.l.b16 %v1751
      %v2058 = vunpack.c.l.b16 %v1761
      %v2059 = vunpack.c.l.b16 %v1775
      %v2060 = vunpack.c.l.b16 %v1785
      %v2061 = vunpack.c.l.b16 %v1799
      %v2062 = vunpack.c.l.b16 %v1809
      %v2063 = vunpack.c.l.b16 %v1823
      %v2064 = vunpack.c.l.b16 %v1833
      %v2065 = vunpack.c.l.b16 %v1847
      %v2066 = vunpack.c.l.b16 %v1857
      %v2067 = vunpack.c.l.b16 %v1871
      %v2068 = vunpack.c.l.b16 %v1881
      %v2069 = vunpack.c.l.b16 %v1895
      %v2070 = vunpack.c.l.b16 %v1905
      %v2071 = vunpack.c.l.b16 %v1919
      %v2072 = vunpack.c.l.b16 %v1929
      %v2073 = vunpack.c.l.b16 %v1943
      %v2074 = vunpack.c.l.b16 %v1953
      %v2075 = vunpack.c.l.b16 %v1967
      %v2076 = vunpack.c.l.b16 %v1977
      %v2077 = vunpack.c.l.b16 %v1991
      %v2078 = vunpack.c.l.b16 %v2001
      %v2079 = vunpack.c.l.b16 %v2015
      %v2080 = vunpack.c.l.b16 %v2025
      %v2081 = vunpack.c.l.b16 %v2039
      %v2082 = vunpack.c.l.b16 %v2049
      %v2083 = vpack.c.b16 %v2052, %v2051
      %v2084 = vpack.c.b16 %v2054, %v2053
      %v2085 = vpack.c.b16 %v2056, %v2055
      %v2086 = vpack.c.b16 %v2058, %v2057
      %v2087 = vpack.c.b16 %v2060, %v2059
      %v2088 = vpack.c.b16 %v2062, %v2061
      %v2089 = vpack.c.b16 %v2064, %v2063
      %v2090 = vpack.c.b16 %v2066, %v2065
      %v2091 = vpack.c.b16 %v2068, %v2067
      %v2092 = vpack.c.b16 %v2070, %v2069
      %v2093 = vpack.c.b16 %v2072, %v2071
      %v2094 = vpack.c.b16 %v2074, %v2073
      %v2095 = vpack.c.b16 %v2076, %v2075
      %v2096 = vpack.c.b16 %v2078, %v2077
      %v2097 = vpack.c.b16 %v2080, %v2079
      %v2098 = vpack.c.b16 %v2082, %v2081
      %v2100 = vunpack.c.l.b16 %v2050
      %v2101 = vpack.c.b16 %v2100, %v2100
      %v2103 = vshrl.u32 %v2101, 16
      %v2105 = vrot.slane %v2103, 2
      %v2106 = vshll.u32 %v2101, 16
      %v2108 = vrot.slane %v2106, 3
      %v2109 = vor.u32 %v2105, %v2108
      %v2111 = vsel %vm376, %v2083, 0
      %v2114 = vsel %vm376, %v2084, 0
      %v2117 = vsel %vm376, %v2085, 0
      %v2120 = vsel %vm376, %v2086, 0
      %v2123 = vsel %vm376, %v2087, 0
      %v2126 = vsel %vm376, %v2088, 0
      %v2129 = vsel %vm376, %v2089, 0
      %v2132 = vsel %vm376, %v2090, 0
      %v2135 = vsel %vm376, %v2091, 0
      %v2138 = vsel %vm376, %v2092, 0
      %v2141 = vsel %vm376, %v2093, 0
      %v2144 = vsel %vm376, %v2094, 0
      %v2147 = vsel %vm376, %v2095, 0
      %v2150 = vsel %vm376, %v2096, 0
      %v2153 = vsel %vm376, %v2097, 0
      %v2156 = vsel %vm376, %v2098, 0
      %v2159 = vand.u32 %v2109, %v428
      %2161 = vmatprep.subr.bf16.mxu0 0
      %2162 = vmatpush1.bf16.msra.mxu0 %v2159
      %2163 = vmatprep.subr.bf16.mxu0 0
      %2164 = vmatpush1.bf16.msra.mxu0 0
      %2165 = vmatprep.subr.bf16.mxu0 0
      %2166 = vmatpush1.bf16.msra.mxu0 0
      %2167 = vmatprep.subr.bf16.mxu0 0
      %2168 = vmatpush1.bf16.msra.mxu0 0
      %2169 = vmatprep.subr.bf16.mxu0 0
      %2170 = vmatpush1.bf16.msra.mxu0 0
      %2171 = vmatprep.subr.bf16.mxu0 0
      %2172 = vmatpush1.bf16.msra.mxu0 0
      %2173 = vmatprep.subr.bf16.mxu0 0
      %2174 = vmatpush1.bf16.msra.mxu0 0
      %2175 = vmatprep.subr.bf16.mxu0 0
      %2176 = vmatpush1.bf16.msra.mxu0 0
      %2177 = vmatprep.subr.bf16.mxu0 0
      %2178 = vmatpush1.bf16.msra.mxu0 0
      %2179 = vmatprep.subr.bf16.mxu0 0
      %2180 = vmatpush1.bf16.msra.mxu0 0
      %2181 = vmatprep.subr.bf16.mxu0 0
      %2182 = vmatpush1.bf16.msra.mxu0 0
      %2183 = vmatprep.subr.bf16.mxu0 0
      %2184 = vmatpush1.bf16.msra.mxu0 0
      %2185 = vmatprep.subr.bf16.mxu0 0
      %2186 = vmatpush1.bf16.msra.mxu0 0
      %2187 = vmatprep.subr.bf16.mxu0 0
      %2188 = vmatpush1.bf16.msra.mxu0 0
      %2189 = vmatprep.subr.bf16.mxu0 0
      %2190 = vmatpush1.bf16.msra.mxu0 0
      %2191 = vmatprep.subr.bf16.mxu0 0
      %2192 = vmatpush1.bf16.msra.mxu0 0
      %2193 = vmatprep.mubr.bf16.mxu0 0
      %2194 = vmatmul.mubr.bf16.gmra.mrb[0].mxu0 %v2111
      %v2195 = vpop.f32.mrb[0].mxu0
      %v2196 = vadd.f32 0.0, %v2195
      %v2197 = vpop.f32.mrb[0].mxu0
      %v2198 = vpop.f32.mrb[0].mxu0
      %v2199 = vadd.f32 0.0, %v2198
      %v2200 = vpop.f32.mrb[0].mxu0
      %2201 = vmatprep.mubr.bf16.mxu0 0
      %2202 = vmatmul.mubr.bf16.gmra.mrb[0].mxu0 %v2114
      %v2203 = vpop.f32.mrb[0].mxu0
      %v2204 = vadd.f32 0.0, %v2203
      %v2205 = vpop.f32.mrb[0].mxu0
      %v2206 = vpop.f32.mrb[0].mxu0
      %v2207 = vadd.f32 0.0, %v2206
      %v2208 = vpop.f32.mrb[0].mxu0
      %2209 = vmatprep.mubr.bf16.mxu0 0
      %2210 = vmatmul.mubr.bf16.gmra.mrb[0].mxu0 %v2117
      %v2211 = vpop.f32.mrb[0].mxu0
      %v2212 = vadd.f32 0.0, %v2211
      %v2213 = vpop.f32.mrb[0].mxu0
      %v2214 = vpop.f32.mrb[0].mxu0
      %v2215 = vadd.f32 0.0, %v2214
      %v2216 = vpop.f32.mrb[0].mxu0
      %2217 = vmatprep.mubr.bf16.mxu0 0
      %2218 = vmatmul.mubr.bf16.gmra.mrb[0].mxu0 %v2120
      %v2219 = vpop.f32.mrb[0].mxu0
      %v2220 = vadd.f32 0.0, %v2219
      %v2221 = vpop.f32.mrb[0].mxu0
      %v2222 = vpop.f32.mrb[0].mxu0
      %v2223 = vadd.f32 0.0, %v2222
      %v2224 = vpop.f32.mrb[0].mxu0
      %2225 = vmatprep.mubr.bf16.mxu0 0
      %2226 = vmatmul.mubr.bf16.gmra.mrb[0].mxu0 %v2123
      %v2227 = vpop.f32.mrb[0].mxu0
      %v2228 = vadd.f32 0.0, %v2227
      %v2229 = vpop.f32.mrb[0].mxu0
      %v2230 = vpop.f32.mrb[0].mxu0
      %v2231 = vadd.f32 0.0, %v2230
      %v2232 = vpop.f32.mrb[0].mxu0
      %2233 = vmatprep.mubr.bf16.mxu0 0
      %2234 = vmatmul.mubr.bf16.gmra.mrb[0].mxu0 %v2126
      %v2235 = vpop.f32.mrb[0].mxu0
      %v2236 = vadd.f32 0.0, %v2235
      %v2237 = vpop.f32.mrb[0].mxu0
      %v2238 = vpop.f32.mrb[0].mxu0
      %v2239 = vadd.f32 0.0, %v2238
      %v2240 = vpop.f32.mrb[0].mxu0
      %2241 = vmatprep.mubr.bf16.mxu0 0
      %2242 = vmatmul.mubr.bf16.gmra.mrb[0].mxu0 %v2129
      %v2243 = vpop.f32.mrb[0].mxu0
      %v2244 = vadd.f32 0.0, %v2243
      %v2245 = vpop.f32.mrb[0].mxu0
      %v2246 = vpop.f32.mrb[0].mxu0
      %v2247 = vadd.f32 0.0, %v2246
      %v2248 = vpop.f32.mrb[0].mxu0
      %2249 = vmatprep.mubr.bf16.mxu0 0
      %2250 = vmatmul.mubr.bf16.gmra.mrb[0].mxu0 %v2132
      %v2251 = vpop.f32.mrb[0].mxu0
      %v2252 = vadd.f32 0.0, %v2251
      %v2253 = vpop.f32.mrb[0].mxu0
      %v2254 = vpop.f32.mrb[0].mxu0
      %v2255 = vadd.f32 0.0, %v2254
      %v2256 = vpop.f32.mrb[0].mxu0
      %2257 = vmatprep.mubr.bf16.mxu0 0
      %2258 = vmatmul.mubr.bf16.gmra.mrb[0].mxu0 %v2135
      %v2259 = vpop.f32.mrb[0].mxu0
      %v2260 = vadd.f32 0.0, %v2259
      %v2261 = vpop.f32.mrb[0].mxu0
      %v2262 = vpop.f32.mrb[0].mxu0
      %v2263 = vadd.f32 0.0, %v2262
      %v2264 = vpop.f32.mrb[0].mxu0
      %2265 = vmatprep.mubr.bf16.mxu0 0
      %2266 = vmatmul.mubr.bf16.gmra.mrb[0].mxu0 %v2138
      %v2267 = vpop.f32.mrb[0].mxu0
      %v2268 = vadd.f32 0.0, %v2267
      %v2269 = vpop.f32.mrb[0].mxu0
      %v2270 = vpop.f32.mrb[0].mxu0
      %v2271 = vadd.f32 0.0, %v2270
      %v2272 = vpop.f32.mrb[0].mxu0
      %2273 = vmatprep.mubr.bf16.mxu0 0
      %2274 = vmatmul.mubr.bf16.gmra.mrb[0].mxu0 %v2141
      %v2275 = vpop.f32.mrb[0].mxu0
      %v2276 = vadd.f32 0.0, %v2275
      %v2277 = vpop.f32.mrb[0].mxu0
      %v2278 = vpop.f32.mrb[0].mxu0
      %v2279 = vadd.f32 0.0, %v2278
      %v2280 = vpop.f32.mrb[0].mxu0
      %2281 = vmatprep.mubr.bf16.mxu0 0
      %2282 = vmatmul.mubr.bf16.gmra.mrb[0].mxu0 %v2144
      %v2283 = vpop.f32.mrb[0].mxu0
      %v2284 = vadd.f32 0.0, %v2283
      %v2285 = vpop.f32.mrb[0].mxu0
      %v2286 = vpop.f32.mrb[0].mxu0
      %v2287 = vadd.f32 0.0, %v2286
      %v2288 = vpop.f32.mrb[0].mxu0
      %2289 = vmatprep.mubr.bf16.mxu0 0
      %2290 = vmatmul.mubr.bf16.gmra.mrb[0].mxu0 %v2147
      %v2291 = vpop.f32.mrb[0].mxu0
      %v2292 = vadd.f32 0.0, %v2291
      %v2293 = vpop.f32.mrb[0].mxu0
      %v2294 = vpop.f32.mrb[0].mxu0
      %v2295 = vadd.f32 0.0, %v2294
      %v2296 = vpop.f32.mrb[0].mxu0
      %2297 = vmatprep.mubr.bf16.mxu0 0
      %2298 = vmatmul.mubr.bf16.gmra.mrb[0].mxu0 %v2150
      %v2299 = vpop.f32.mrb[0].mxu0
      %v2300 = vadd.f32 0.0, %v2299
      %v2301 = vpop.f32.mrb[0].mxu0
      %v2302 = vpop.f32.mrb[0].mxu0
      %v2303 = vadd.f32 0.0, %v2302
      %v2304 = vpop.f32.mrb[0].mxu0
      %2305 = vmatprep.mubr.bf16.mxu0 0
      %2306 = vmatmul.mubr.bf16.gmra.mrb[0].mxu0 %v2153
      %v2307 = vpop.f32.mrb[0].mxu0
      %v2308 = vadd.f32 0.0, %v2307
      %v2309 = vpop.f32.mrb[0].mxu0
      %v2310 = vpop.f32.mrb[0].mxu0
      %v2311 = vadd.f32 0.0, %v2310
      %v2312 = vpop.f32.mrb[0].mxu0
      %2313 = vmatprep.mubr.bf16.mxu0 0
      %2314 = vmatmul.mubr.bf16.gmra.mrb[0].mxu0 %v2156
      %v2315 = vpop.f32.mrb[0].mxu0
      %v2316 = vadd.f32 0.0, %v2315
      %v2317 = vpop.f32.mrb[0].mxu0
      %v2318 = vpop.f32.mrb[0].mxu0
      %v2319 = vadd.f32 0.0, %v2318
      %v2320 = vpop.f32.mrb[0].mxu0
      %2321 = vdwg.mxu0
      %v2322 = vadd.f32 %v1586, %v2196
      %v2323 = vadd.f32 %v1587, %v2199
      %v2324 = vadd.f32 %v1588, %v2204
      %v2325 = vadd.f32 %v1589, %v2207
      %v2326 = vadd.f32 %v1590, %v2212
      %v2327 = vadd.f32 %v1591, %v2215
      %v2328 = vadd.f32 %v1592, %v2220
      %v2329 = vadd.f32 %v1593, %v2223
      %v2330 = vadd.f32 %v1594, %v2228
      %v2331 = vadd.f32 %v1595, %v2231
      %v2332 = vadd.f32 %v1596, %v2236
      %v2333 = vadd.f32 %v1597, %v2239
      %v2334 = vadd.f32 %v1598, %v2244
      %v2335 = vadd.f32 %v1599, %v2247
      %v2336 = vadd.f32 %v1600, %v2252
      %v2337 = vadd.f32 %v1601, %v2255
      %v2338 = vadd.f32 %v1602, %v2260
      %v2339 = vadd.f32 %v1603, %v2263
      %v2340 = vadd.f32 %v1604, %v2268
      %v2341 = vadd.f32 %v1605, %v2271
      %v2342 = vadd.f32 %v1606, %v2276
      %v2343 = vadd.f32 %v1607, %v2279
      %v2344 = vadd.f32 %v1608, %v2284
      %v2345 = vadd.f32 %v1609, %v2287
      %v2346 = vadd.f32 %v1610, %v2292
      %v2347 = vadd.f32 %v1611, %v2295
      %v2348 = vadd.f32 %v1612, %v2300
      %v2349 = vadd.f32 %v1613, %v2303
      %v2350 = vadd.f32 %v1614, %v2308
      %v2351 = vadd.f32 %v1615, %v2311
      %v2352 = vadd.f32 %v1616, %v2316
      %v2353 = vadd.f32 %v1617, %v2319
      %v2354 = vld [vmem:[%s207] sm:$0xe]
      %v2355 = vld [vmem:[%s207 + $0xc] sm:$0xe]
      %v2356 = vld [vmem:[%s207 + $0x18] sm:$0xe]
      %v2357 = vld [vmem:[%s207 + $0x24] sm:$0xe]
      %v2358 = vld [vmem:[%s207 + $0x30] sm:$0xe]
      %v2359 = vld [vmem:[%s207 + $0x3c] sm:$0xe]
      %v2360 = vld [vmem:[%s207 + $0x48] sm:$0xe]
      %v2361 = vld [vmem:[%s207 + $0x54] sm:$0xe]
      %v2362 = vld [vmem:[%s207 + $0x60] sm:$0xe]
      %v2363 = vld [vmem:[%s207 + $0x6c] sm:$0xe]
      %v2364 = vld [vmem:[%s207 + $0x78] sm:$0xe]
      %v2365 = vld [vmem:[%s207 + $0x84] sm:$0xe]
      %v2366 = vld [vmem:[%s207 + $0x90] sm:$0xe]
      %v2367 = vld [vmem:[%s207 + $0x9c] sm:$0xe]
      %v2368 = vld [vmem:[%s207 + $0xa8] sm:$0xe]
      %v2369 = vld [vmem:[%s207 + $0xb4] sm:$0xe]
      %vm2418 = vcmask 1042432
      %vm2419 = vcmask 1046532
      %vm2420 = vmor %vm2418, %vm2419
      %v2421 = vrot.slane %v2354, 5
      %v2422 = vrot.slane %v2421, 4
      %v2423 = vrot.slane %v890, 5
      %v2424 = vsel %vm2420, %v2422, %v2423
      %v2425 = vrot.slane %v2423, 4
      %v2426 = vrot.slane %v891, 5
      %v2427 = vsel %vm2420, %v2425, %v2426
      %v2428 = vrot.slane %v2355, 5
      %v2429 = vrot.slane %v2428, 4
      %v2430 = vrot.slane %v893, 5
      %v2431 = vsel %vm2420, %v2429, %v2430
      %v2432 = vrot.slane %v2430, 4
      %v2433 = vrot.slane %v894, 5
      %v2434 = vsel %vm2420, %v2432, %v2433
      %v2435 = vrot.slane %v2356, 5
      %v2436 = vrot.slane %v2435, 4
      %v2437 = vrot.slane %v896, 5
      %v2438 = vsel %vm2420, %v2436, %v2437
      %v2439 = vrot.slane %v2437, 4
      %v2440 = vrot.slane %v897, 5
      %v2441 = vsel %vm2420, %v2439, %v2440
      %v2442 = vrot.slane %v2357, 5
      %v2443 = vrot.slane %v2442, 4
      %v2444 = vrot.slane %v899, 5
      %v2445 = vsel %vm2420, %v2443, %v2444
      %v2446 = vrot.slane %v2444, 4
      %v2447 = vrot.slane %v900, 5
      %v2448 = vsel %vm2420, %v2446, %v2447
      %v2449 = vrot.slane %v2358, 5
      %v2450 = vrot.slane %v2449, 4
      %v2451 = vrot.slane %v902, 5
      %v2452 = vsel %vm2420, %v2450, %v2451
      %v2453 = vrot.slane %v2451, 4
      %v2454 = vrot.slane %v903, 5
      %v2455 = vsel %vm2420, %v2453, %v2454
      %v2456 = vrot.slane %v2359, 5
      %v2457 = vrot.slane %v2456, 4
      %v2458 = vrot.slane %v905, 5
      %v2459 = vsel %vm2420, %v2457, %v2458
      %v2460 = vrot.slane %v2458, 4
      %v2461 = vrot.slane %v906, 5
      %v2462 = vsel %vm2420, %v2460, %v2461
      %v2463 = vrot.slane %v2360, 5
      %v2464 = vrot.slane %v2463, 4
      %v2465 = vrot.slane %v908, 5
      %v2466 = vsel %vm2420, %v2464, %v2465
      %v2467 = vrot.slane %v2465, 4
      %v2468 = vrot.slane %v909, 5
      %v2469 = vsel %vm2420, %v2467, %v2468
      %v2470 = vrot.slane %v2361, 5
      %v2471 = vrot.slane %v2470, 4
      %v2472 = vrot.slane %v911, 5
      %v2473 = vsel %vm2420, %v2471, %v2472
      %v2474 = vrot.slane %v2472, 4
      %v2475 = vrot.slane %v912, 5
      %v2476 = vsel %vm2420, %v2474, %v2475
      %v2477 = vrot.slane %v2362, 5
      %v2478 = vrot.slane %v2477, 4
      %v2479 = vrot.slane %v914, 5
      %v2480 = vsel %vm2420, %v2478, %v2479
      %v2481 = vrot.slane %v2479, 4
      %v2482 = vrot.slane %v915, 5
      %v2483 = vsel %vm2420, %v2481, %v2482
      %v2484 = vrot.slane %v2363, 5
      %v2485 = vrot.slane %v2484, 4
      %v2486 = vrot.slane %v917, 5
      %v2487 = vsel %vm2420, %v2485, %v2486
      %v2488 = vrot.slane %v2486, 4
      %v2489 = vrot.slane %v918, 5
      %v2490 = vsel %vm2420, %v2488, %v2489
      %v2491 = vrot.slane %v2364, 5
      %v2492 = vrot.slane %v2491, 4
      %v2493 = vrot.slane %v920, 5
      %v2494 = vsel %vm2420, %v2492, %v2493
      %v2495 = vrot.slane %v2493, 4
      %v2496 = vrot.slane %v921, 5
      %v2497 = vsel %vm2420, %v2495, %v2496
      %v2498 = vrot.slane %v2365, 5
      %v2499 = vrot.slane %v2498, 4
      %v2500 = vrot.slane %v923, 5
      %v2501 = vsel %vm2420, %v2499, %v2500
      %v2502 = vrot.slane %v2500, 4
      %v2503 = vrot.slane %v924, 5
      %v2504 = vsel %vm2420, %v2502, %v2503
      %v2505 = vrot.slane %v2366, 5
      %v2506 = vrot.slane %v2505, 4
      %v2507 = vrot.slane %v926, 5
      %v2508 = vsel %vm2420, %v2506, %v2507
      %v2509 = vrot.slane %v2507, 4
      %v2510 = vrot.slane %v927, 5
      %v2511 = vsel %vm2420, %v2509, %v2510
      %v2512 = vrot.slane %v2367, 5
      %v2513 = vrot.slane %v2512, 4
      %v2514 = vrot.slane %v929, 5
      %v2515 = vsel %vm2420, %v2513, %v2514
      %v2516 = vrot.slane %v2514, 4
      %v2517 = vrot.slane %v930, 5
      %v2518 = vsel %vm2420, %v2516, %v2517
      %v2519 = vrot.slane %v2368, 5
      %v2520 = vrot.slane %v2519, 4
      %v2521 = vrot.slane %v932, 5
      %v2522 = vsel %vm2420, %v2520, %v2521
      %v2523 = vrot.slane %v2521, 4
      %v2524 = vrot.slane %v933, 5
      %v2525 = vsel %vm2420, %v2523, %v2524
      %v2526 = vrot.slane %v2369, 5
      %v2527 = vrot.slane %v2526, 4
      %v2528 = vrot.slane %v935, 5
      %v2529 = vsel %vm2420, %v2527, %v2528
      %v2530 = vrot.slane %v2528, 4
      %v2531 = vrot.slane %v936, 5
      %v2532 = vsel %vm2420, %v2530, %v2531
      %s2533 = scalar_lea.vmem %s2, 8
      %v2534 = vld [vmem:[%s2533] sm:$0x7]
      %v2535 = vunpack.c.l.b16 %v2424
      %v2536 = vunpack.c.l.b16 %v2427
      %v2537 = vunpack.c.l.b16 %v2431
      %v2538 = vunpack.c.l.b16 %v2434
      %v2539 = vunpack.c.l.b16 %v2438
      %v2540 = vunpack.c.l.b16 %v2441
      %v2541 = vunpack.c.l.b16 %v2445
      %v2542 = vunpack.c.l.b16 %v2448
      %v2543 = vunpack.c.l.b16 %v2452
      %v2544 = vunpack.c.l.b16 %v2455
      %v2545 = vunpack.c.l.b16 %v2459
      %v2546 = vunpack.c.l.b16 %v2462
      %v2547 = vunpack.c.l.b16 %v2466
      %v2548 = vunpack.c.l.b16 %v2469
      %v2549 = vunpack.c.l.b16 %v2473
      %v2550 = vunpack.c.l.b16 %v2476
      %v2551 = vunpack.c.l.b16 %v2480
      %v2552 = vunpack.c.l.b16 %v2483
      %v2553 = vunpack.c.l.b16 %v2487
      %v2554 = vunpack.c.l.b16 %v2490
      %v2555 = vunpack.c.l.b16 %v2494
      %v2556 = vunpack.c.l.b16 %v2497
      %v2557 = vunpack.c.l.b16 %v2501
      %v2558 = vunpack.c.l.b16 %v2504
      %v2559 = vunpack.c.l.b16 %v2508
      %v2560 = vunpack.c.l.b16 %v2511
      %v2561 = vunpack.c.l.b16 %v2515
      %v2562 = vunpack.c.l.b16 %v2518
      %v2563 = vunpack.c.l.b16 %v2522
      %v2564 = vunpack.c.l.b16 %v2525
      %v2565 = vunpack.c.l.b16 %v2529
      %v2566 = vunpack.c.l.b16 %v2532
      %v2567 = vpack.c.b16 %v2536, %v2535
      %v2568 = vpack.c.b16 %v2538, %v2537
      %v2569 = vpack.c.b16 %v2540, %v2539
      %v2570 = vpack.c.b16 %v2542, %v2541
      %v2571 = vpack.c.b16 %v2544, %v2543
      %v2572 = vpack.c.b16 %v2546, %v2545
      %v2573 = vpack.c.b16 %v2548, %v2547
      %v2574 = vpack.c.b16 %v2550, %v2549
      %v2575 = vpack.c.b16 %v2552, %v2551
      %v2576 = vpack.c.b16 %v2554, %v2553
      %v2577 = vpack.c.b16 %v2556, %v2555
      %v2578 = vpack.c.b16 %v2558, %v2557
      %v2579 = vpack.c.b16 %v2560, %v2559
      %v2580 = vpack.c.b16 %v2562, %v2561
      %v2581 = vpack.c.b16 %v2564, %v2563
      %v2582 = vpack.c.b16 %v2566, %v2565
      %v2584 = vsel %vm673, %v2567, 0
      %v2587 = vsel %vm673, %v2568, 0
      %v2590 = vsel %vm673, %v2569, 0
      %v2593 = vsel %vm673, %v2570, 0
      %v2596 = vsel %vm673, %v2571, 0
      %v2599 = vsel %vm673, %v2572, 0
      %v2602 = vsel %vm673, %v2573, 0
      %v2605 = vsel %vm673, %v2574, 0
      %v2608 = vsel %vm673, %v2575, 0
      %v2611 = vsel %vm673, %v2576, 0
      %v2614 = vsel %vm673, %v2577, 0
      %v2617 = vsel %vm673, %v2578, 0
      %v2620 = vsel %vm673, %v2579, 0
      %v2623 = vsel %vm673, %v2580, 0
      %v2626 = vsel %vm673, %v2581, 0
      %v2629 = vsel %vm673, %v2582, 0
      %v2632 = vand.u32 %v2534, %v724
      %2634 = vmatprep.subr.bf16.mxu0 0
      %2635 = vmatpush1.bf16.msra.mxu0 %v2632
      %2636 = vmatprep.subr.bf16.mxu0 0
      %2637 = vmatpush1.bf16.msra.mxu0 0
      %2638 = vmatprep.subr.bf16.mxu0 0
      %2639 = vmatpush1.bf16.msra.mxu0 0
      %2640 = vmatprep.subr.bf16.mxu0 0
      %2641 = vmatpush1.bf16.msra.mxu0 0
      %2642 = vmatprep.subr.bf16.mxu0 0
      %2643 = vmatpush1.bf16.msra.mxu0 0
      %2644 = vmatprep.subr.bf16.mxu0 0
      %2645 = vmatpush1.bf16.msra.mxu0 0
      %2646 = vmatprep.subr.bf16.mxu0 0
      %2647 = vmatpush1.bf16.msra.mxu0 0
      %2648 = vmatprep.subr.bf16.mxu0 0
      %2649 = vmatpush1.bf16.msra.mxu0 0
      %2650 = vmatprep.subr.bf16.mxu0 0
      %2651 = vmatpush1.bf16.msra.mxu0 0
      %2652 = vmatprep.subr.bf16.mxu0 0
      %2653 = vmatpush1.bf16.msra.mxu0 0
      %2654 = vmatprep.subr.bf16.mxu0 0
      %2655 = vmatpush1.bf16.msra.mxu0 0
      %2656 = vmatprep.subr.bf16.mxu0 0
      %2657 = vmatpush1.bf16.msra.mxu0 0
      %2658 = vmatprep.subr.bf16.mxu0 0
      %2659 = vmatpush1.bf16.msra.mxu0 0
      %2660 = vmatprep.subr.bf16.mxu0 0
      %2661 = vmatpush1.bf16.msra.mxu0 0
      %2662 = vmatprep.subr.bf16.mxu0 0
      %2663 = vmatpush1.bf16.msra.mxu0 0
      %2664 = vmatprep.subr.bf16.mxu0 0
      %2665 = vmatpush1.bf16.msra.mxu0 0
      %2666 = vmatprep.mubr.bf16.mxu0 0
      %2667 = vmatmul.mubr.bf16.gmra.mrb[0].mxu0 %v2584
      %v2668 = vpop.f32.mrb[0].mxu0
      %v2669 = vadd.f32 0.0, %v2668
      %v2670 = vpop.f32.mrb[0].mxu0
      %v2671 = vpop.f32.mrb[0].mxu0
      %v2672 = vadd.f32 0.0, %v2671
      %v2673 = vpop.f32.mrb[0].mxu0
      %2674 = vmatprep.mubr.bf16.mxu0 0
      %2675 = vmatmul.mubr.bf16.gmra.mrb[0].mxu0 %v2587
      %v2676 = vpop.f32.mrb[0].mxu0
      %v2677 = vadd.f32 0.0, %v2676
      %v2678 = vpop.f32.mrb[0].mxu0
      %v2679 = vpop.f32.mrb[0].mxu0
      %v2680 = vadd.f32 0.0, %v2679
      %v2681 = vpop.f32.mrb[0].mxu0
      %2682 = vmatprep.mubr.bf16.mxu0 0
      %2683 = vmatmul.mubr.bf16.gmra.mrb[0].mxu0 %v2590
      %v2684 = vpop.f32.mrb[0].mxu0
      %v2685 = vadd.f32 0.0, %v2684
      %v2686 = vpop.f32.mrb[0].mxu0
      %v2687 = vpop.f32.mrb[0].mxu0
      %v2688 = vadd.f32 0.0, %v2687
      %v2689 = vpop.f32.mrb[0].mxu0
      %2690 = vmatprep.mubr.bf16.mxu0 0
      %2691 = vmatmul.mubr.bf16.gmra.mrb[0].mxu0 %v2593
      %v2692 = vpop.f32.mrb[0].mxu0
      %v2693 = vadd.f32 0.0, %v2692
      %v2694 = vpop.f32.mrb[0].mxu0
      %v2695 = vpop.f32.mrb[0].mxu0
      %v2696 = vadd.f32 0.0, %v2695
      %v2697 = vpop.f32.mrb[0].mxu0
      %2698 = vmatprep.mubr.bf16.mxu0 0
      %2699 = vmatmul.mubr.bf16.gmra.mrb[0].mxu0 %v2596
      %v2700 = vpop.f32.mrb[0].mxu0
      %v2701 = vadd.f32 0.0, %v2700
      %v2702 = vpop.f32.mrb[0].mxu0
      %v2703 = vpop.f32.mrb[0].mxu0
      %v2704 = vadd.f32 0.0, %v2703
      %v2705 = vpop.f32.mrb[0].mxu0
      %2706 = vmatprep.mubr.bf16.mxu0 0
      %2707 = vmatmul.mubr.bf16.gmra.mrb[0].mxu0 %v2599
      %v2708 = vpop.f32.mrb[0].mxu0
      %v2709 = vadd.f32 0.0, %v2708
      %v2710 = vpop.f32.mrb[0].mxu0
      %v2711 = vpop.f32.mrb[0].mxu0
      %v2712 = vadd.f32 0.0, %v2711
      %v2713 = vpop.f32.mrb[0].mxu0
      %2714 = vmatprep.mubr.bf16.mxu0 0
      %2715 = vmatmul.mubr.bf16.gmra.mrb[0].mxu0 %v2602
      %v2716 = vpop.f32.mrb[0].mxu0
      %v2717 = vadd.f32 0.0, %v2716
      %v2718 = vpop.f32.mrb[0].mxu0
      %v2719 = vpop.f32.mrb[0].mxu0
      %v2720 = vadd.f32 0.0, %v2719
      %v2721 = vpop.f32.mrb[0].mxu0
      %2722 = vmatprep.mubr.bf16.mxu0 0
      %2723 = vmatmul.mubr.bf16.gmra.mrb[0].mxu0 %v2605
      %v2724 = vpop.f32.mrb[0].mxu0
      %v2725 = vadd.f32 0.0, %v2724
      %v2726 = vpop.f32.mrb[0].mxu0
      %v2727 = vpop.f32.mrb[0].mxu0
      %v2728 = vadd.f32 0.0, %v2727
      %v2729 = vpop.f32.mrb[0].mxu0
      %2730 = vmatprep.mubr.bf16.mxu0 0
      %2731 = vmatmul.mubr.bf16.gmra.mrb[0].mxu0 %v2608
      %v2732 = vpop.f32.mrb[0].mxu0
      %v2733 = vadd.f32 0.0, %v2732
      %v2734 = vpop.f32.mrb[0].mxu0
      %v2735 = vpop.f32.mrb[0].mxu0
      %v2736 = vadd.f32 0.0, %v2735
      %v2737 = vpop.f32.mrb[0].mxu0
      %2738 = vmatprep.mubr.bf16.mxu0 0
      %2739 = vmatmul.mubr.bf16.gmra.mrb[0].mxu0 %v2611
      %v2740 = vpop.f32.mrb[0].mxu0
      %v2741 = vadd.f32 0.0, %v2740
      %v2742 = vpop.f32.mrb[0].mxu0
      %v2743 = vpop.f32.mrb[0].mxu0
      %v2744 = vadd.f32 0.0, %v2743
      %v2745 = vpop.f32.mrb[0].mxu0
      %2746 = vmatprep.mubr.bf16.mxu0 0
      %2747 = vmatmul.mubr.bf16.gmra.mrb[0].mxu0 %v2614
      %v2748 = vpop.f32.mrb[0].mxu0
      %v2749 = vadd.f32 0.0, %v2748
      %v2750 = vpop.f32.mrb[0].mxu0
      %v2751 = vpop.f32.mrb[0].mxu0
      %v2752 = vadd.f32 0.0, %v2751
      %v2753 = vpop.f32.mrb[0].mxu0
      %2754 = vmatprep.mubr.bf16.mxu0 0
      %2755 = vmatmul.mubr.bf16.gmra.mrb[0].mxu0 %v2617
      %v2756 = vpop.f32.mrb[0].mxu0
      %v2757 = vadd.f32 0.0, %v2756
      %v2758 = vpop.f32.mrb[0].mxu0
      %v2759 = vpop.f32.mrb[0].mxu0
      %v2760 = vadd.f32 0.0, %v2759
      %v2761 = vpop.f32.mrb[0].mxu0
      %2762 = vmatprep.mubr.bf16.mxu0 0
      %2763 = vmatmul.mubr.bf16.gmra.mrb[0].mxu0 %v2620
      %v2764 = vpop.f32.mrb[0].mxu0
      %v2765 = vadd.f32 0.0, %v2764
      %v2766 = vpop.f32.mrb[0].mxu0
      %v2767 = vpop.f32.mrb[0].mxu0
      %v2768 = vadd.f32 0.0, %v2767
      %v2769 = vpop.f32.mrb[0].mxu0
      %2770 = vmatprep.mubr.bf16.mxu0 0
      %2771 = vmatmul.mubr.bf16.gmra.mrb[0].mxu0 %v2623
      %v2772 = vpop.f32.mrb[0].mxu0
      %v2773 = vadd.f32 0.0, %v2772
      %v2774 = vpop.f32.mrb[0].mxu0
      %v2775 = vpop.f32.mrb[0].mxu0
      %v2776 = vadd.f32 0.0, %v2775
      %v2777 = vpop.f32.mrb[0].mxu0
      %2778 = vmatprep.mubr.bf16.mxu0 0
      %2779 = vmatmul.mubr.bf16.gmra.mrb[0].mxu0 %v2626
      %v2780 = vpop.f32.mrb[0].mxu0
      %v2781 = vadd.f32 0.0, %v2780
      %v2782 = vpop.f32.mrb[0].mxu0
      %v2783 = vpop.f32.mrb[0].mxu0
      %v2784 = vadd.f32 0.0, %v2783
      %v2785 = vpop.f32.mrb[0].mxu0
      %2786 = vmatprep.mubr.bf16.mxu0 0
      %2787 = vmatmul.mubr.bf16.gmra.mrb[0].mxu0 %v2629
      %v2788 = vpop.f32.mrb[0].mxu0
      %v2789 = vadd.f32 0.0, %v2788
      %v2790 = vpop.f32.mrb[0].mxu0
      %v2791 = vpop.f32.mrb[0].mxu0
      %v2792 = vadd.f32 0.0, %v2791
      %v2793 = vpop.f32.mrb[0].mxu0
      %2794 = vdwg.mxu0
      %v2795 = vadd.f32 %v2322, %v2669
      %v2796 = vadd.f32 %v2323, %v2672
      %v2797 = vadd.f32 %v2324, %v2677
      %v2798 = vadd.f32 %v2325, %v2680
      %v2799 = vadd.f32 %v2326, %v2685
      %v2800 = vadd.f32 %v2327, %v2688
      %v2801 = vadd.f32 %v2328, %v2693
      %v2802 = vadd.f32 %v2329, %v2696
      %v2803 = vadd.f32 %v2330, %v2701
      %v2804 = vadd.f32 %v2331, %v2704
      %v2805 = vadd.f32 %v2332, %v2709
      %v2806 = vadd.f32 %v2333, %v2712
      %v2807 = vadd.f32 %v2334, %v2717
      %v2808 = vadd.f32 %v2335, %v2720
      %v2809 = vadd.f32 %v2336, %v2725
      %v2810 = vadd.f32 %v2337, %v2728
      %v2811 = vadd.f32 %v2338, %v2733
      %v2812 = vadd.f32 %v2339, %v2736
      %v2813 = vadd.f32 %v2340, %v2741
      %v2814 = vadd.f32 %v2341, %v2744
      %v2815 = vadd.f32 %v2342, %v2749
      %v2816 = vadd.f32 %v2343, %v2752
      %v2817 = vadd.f32 %v2344, %v2757
      %v2818 = vadd.f32 %v2345, %v2760
      %v2819 = vadd.f32 %v2346, %v2765
      %v2820 = vadd.f32 %v2347, %v2768
      %v2821 = vadd.f32 %v2348, %v2773
      %v2822 = vadd.f32 %v2349, %v2776
      %v2823 = vadd.f32 %v2350, %v2781
      %v2824 = vadd.f32 %v2351, %v2784
      %v2825 = vadd.f32 %v2352, %v2789
      %v2826 = vadd.f32 %v2353, %v2792
      %v2827 = vld [vmem:[%s212] sm:$0xe]
      %v2828 = vld [vmem:[%s212 + $0xc] sm:$0xe]
      %v2829 = vld [vmem:[%s212 + $0x18] sm:$0xe]
      %v2830 = vld [vmem:[%s212 + $0x24] sm:$0xe]
      %v2831 = vld [vmem:[%s212 + $0x30] sm:$0xe]
      %v2832 = vld [vmem:[%s212 + $0x3c] sm:$0xe]
      %v2833 = vld [vmem:[%s212 + $0x48] sm:$0xe]
      %v2834 = vld [vmem:[%s212 + $0x54] sm:$0xe]
      %v2835 = vld [vmem:[%s212 + $0x60] sm:$0xe]
      %v2836 = vld [vmem:[%s212 + $0x6c] sm:$0xe]
      %v2837 = vld [vmem:[%s212 + $0x78] sm:$0xe]
      %v2838 = vld [vmem:[%s212 + $0x84] sm:$0xe]
      %v2839 = vld [vmem:[%s212 + $0x90] sm:$0xe]
      %v2840 = vld [vmem:[%s212 + $0x9c] sm:$0xe]
      %v2841 = vld [vmem:[%s212 + $0xa8] sm:$0xe]
      %v2842 = vld [vmem:[%s212 + $0xb4] sm:$0xe]
      %v2891 = vrot.slane %v2827, 5
      %v2892 = vrot.slane %v2891, 4
      %v2893 = vrot.slane %v1619, 5
      %v2894 = vsel %vm2420, %v2892, %v2893
      %v2895 = vrot.slane %v2893, 4
      %v2896 = vrot.slane %v1620, 5
      %v2897 = vsel %vm2420, %v2895, %v2896
      %v2898 = vrot.slane %v2828, 5
      %v2899 = vrot.slane %v2898, 4
      %v2900 = vrot.slane %v1622, 5
      %v2901 = vsel %vm2420, %v2899, %v2900
      %v2902 = vrot.slane %v2900, 4
      %v2903 = vrot.slane %v1623, 5
      %v2904 = vsel %vm2420, %v2902, %v2903
      %v2905 = vrot.slane %v2829, 5
      %v2906 = vrot.slane %v2905, 4
      %v2907 = vrot.slane %v1625, 5
      %v2908 = vsel %vm2420, %v2906, %v2907
      %v2909 = vrot.slane %v2907, 4
      %v2910 = vrot.slane %v1626, 5
      %v2911 = vsel %vm2420, %v2909, %v2910
      %v2912 = vrot.slane %v2830, 5
      %v2913 = vrot.slane %v2912, 4
      %v2914 = vrot.slane %v1628, 5
      %v2915 = vsel %vm2420, %v2913, %v2914
      %v2916 = vrot.slane %v2914, 4
      %v2917 = vrot.slane %v1629, 5
      %v2918 = vsel %vm2420, %v2916, %v2917
      %v2919 = vrot.slane %v2831, 5
      %v2920 = vrot.slane %v2919, 4
      %v2921 = vrot.slane %v1631, 5
      %v2922 = vsel %vm2420, %v2920, %v2921
      %v2923 = vrot.slane %v2921, 4
      %v2924 = vrot.slane %v1632, 5
      %v2925 = vsel %vm2420, %v2923, %v2924
      %v2926 = vrot.slane %v2832, 5
      %v2927 = vrot.slane %v2926, 4
      %v2928 = vrot.slane %v1634, 5
      %v2929 = vsel %vm2420, %v2927, %v2928
      %v2930 = vrot.slane %v2928, 4
      %v2931 = vrot.slane %v1635, 5
      %v2932 = vsel %vm2420, %v2930, %v2931
      %v2933 = vrot.slane %v2833, 5
      %v2934 = vrot.slane %v2933, 4
      %v2935 = vrot.slane %v1637, 5
      %v2936 = vsel %vm2420, %v2934, %v2935
      %v2937 = vrot.slane %v2935, 4
      %v2938 = vrot.slane %v1638, 5
      %v2939 = vsel %vm2420, %v2937, %v2938
      %v2940 = vrot.slane %v2834, 5
      %v2941 = vrot.slane %v2940, 4
      %v2942 = vrot.slane %v1640, 5
      %v2943 = vsel %vm2420, %v2941, %v2942
      %v2944 = vrot.slane %v2942, 4
      %v2945 = vrot.slane %v1641, 5
      %v2946 = vsel %vm2420, %v2944, %v2945
      %v2947 = vrot.slane %v2835, 5
      %v2948 = vrot.slane %v2947, 4
      %v2949 = vrot.slane %v1643, 5
      %v2950 = vsel %vm2420, %v2948, %v2949
      %v2951 = vrot.slane %v2949, 4
      %v2952 = vrot.slane %v1644, 5
      %v2953 = vsel %vm2420, %v2951, %v2952
      %v2954 = vrot.slane %v2836, 5
      %v2955 = vrot.slane %v2954, 4
      %v2956 = vrot.slane %v1646, 5
      %v2957 = vsel %vm2420, %v2955, %v2956
      %v2958 = vrot.slane %v2956, 4
      %v2959 = vrot.slane %v1647, 5
      %v2960 = vsel %vm2420, %v2958, %v2959
      %v2961 = vrot.slane %v2837, 5
      %v2962 = vrot.slane %v2961, 4
      %v2963 = vrot.slane %v1649, 5
      %v2964 = vsel %vm2420, %v2962, %v2963
      %v2965 = vrot.slane %v2963, 4
      %v2966 = vrot.slane %v1650, 5
      %v2967 = vsel %vm2420, %v2965, %v2966
      %v2968 = vrot.slane %v2838, 5
      %v2969 = vrot.slane %v2968, 4
      %v2970 = vrot.slane %v1652, 5
      %v2971 = vsel %vm2420, %v2969, %v2970
      %v2972 = vrot.slane %v2970, 4
      %v2973 = vrot.slane %v1653, 5
      %v2974 = vsel %vm2420, %v2972, %v2973
      %v2975 = vrot.slane %v2839, 5
      %v2976 = vrot.slane %v2975, 4
      %v2977 = vrot.slane %v1655, 5
      %v2978 = vsel %vm2420, %v2976, %v2977
      %v2979 = vrot.slane %v2977, 4
      %v2980 = vrot.slane %v1656, 5
      %v2981 = vsel %vm2420, %v2979, %v2980
      %v2982 = vrot.slane %v2840, 5
      %v2983 = vrot.slane %v2982, 4
      %v2984 = vrot.slane %v1658, 5
      %v2985 = vsel %vm2420, %v2983, %v2984
      %v2986 = vrot.slane %v2984, 4
      %v2987 = vrot.slane %v1659, 5
      %v2988 = vsel %vm2420, %v2986, %v2987
      %v2989 = vrot.slane %v2841, 5
      %v2990 = vrot.slane %v2989, 4
      %v2991 = vrot.slane %v1661, 5
      %v2992 = vsel %vm2420, %v2990, %v2991
      %v2993 = vrot.slane %v2991, 4
      %v2994 = vrot.slane %v1662, 5
      %v2995 = vsel %vm2420, %v2993, %v2994
      %v2996 = vrot.slane %v2842, 5
      %v2997 = vrot.slane %v2996, 4
      %v2998 = vrot.slane %v1664, 5
      %v2999 = vsel %vm2420, %v2997, %v2998
      %v3000 = vrot.slane %v2998, 4
      %v3001 = vrot.slane %v1665, 5
      %v3002 = vsel %vm2420, %v3000, %v3001
      %v3003 = vld [vmem:[%s2533] sm:$0xc]
      %v3004 = vunpack.c.l.b16 %v2894
      %v3005 = vunpack.c.l.b16 %v2897
      %v3006 = vunpack.c.l.b16 %v2901
      %v3007 = vunpack.c.l.b16 %v2904
      %v3008 = vunpack.c.l.b16 %v2908
      %v3009 = vunpack.c.l.b16 %v2911
      %v3010 = vunpack.c.l.b16 %v2915
      %v3011 = vunpack.c.l.b16 %v2918
      %v3012 = vunpack.c.l.b16 %v2922
      %v3013 = vunpack.c.l.b16 %v2925
      %v3014 = vunpack.c.l.b16 %v2929
      %v3015 = vunpack.c.l.b16 %v2932
      %v3016 = vunpack.c.l.b16 %v2936
      %v3017 = vunpack.c.l.b16 %v2939
      %v3018 = vunpack.c.l.b16 %v2943
      %v3019 = vunpack.c.l.b16 %v2946
      %v3020 = vunpack.c.l.b16 %v2950
      %v3021 = vunpack.c.l.b16 %v2953
      %v3022 = vunpack.c.l.b16 %v2957
      %v3023 = vunpack.c.l.b16 %v2960
      %v3024 = vunpack.c.l.b16 %v2964
      %v3025 = vunpack.c.l.b16 %v2967
      %v3026 = vunpack.c.l.b16 %v2971
      %v3027 = vunpack.c.l.b16 %v2974
      %v3028 = vunpack.c.l.b16 %v2978
      %v3029 = vunpack.c.l.b16 %v2981
      %v3030 = vunpack.c.l.b16 %v2985
      %v3031 = vunpack.c.l.b16 %v2988
      %v3032 = vunpack.c.l.b16 %v2992
      %v3033 = vunpack.c.l.b16 %v2995
      %v3034 = vunpack.c.l.b16 %v2999
      %v3035 = vunpack.c.l.b16 %v3002
      %v3036 = vpack.c.b16 %v3005, %v3004
      %v3037 = vpack.c.b16 %v3007, %v3006
      %v3038 = vpack.c.b16 %v3009, %v3008
      %v3039 = vpack.c.b16 %v3011, %v3010
      %v3040 = vpack.c.b16 %v3013, %v3012
      %v3041 = vpack.c.b16 %v3015, %v3014
      %v3042 = vpack.c.b16 %v3017, %v3016
      %v3043 = vpack.c.b16 %v3019, %v3018
      %v3044 = vpack.c.b16 %v3021, %v3020
      %v3045 = vpack.c.b16 %v3023, %v3022
      %v3046 = vpack.c.b16 %v3025, %v3024
      %v3047 = vpack.c.b16 %v3027, %v3026
      %v3048 = vpack.c.b16 %v3029, %v3028
      %v3049 = vpack.c.b16 %v3031, %v3030
      %v3050 = vpack.c.b16 %v3033, %v3032
      %v3051 = vpack.c.b16 %v3035, %v3034
      %v3053 = vunpack.c.l.b16 %v3003
      %v3054 = vpack.c.b16 %v3053, %v3053
      %v3056 = vshrl.u32 %v3054, 16
      %v3058 = vrot.slane %v3056, 2
      %v3059 = vshll.u32 %v3054, 16
      %v3061 = vrot.slane %v3059, 3
      %v3062 = vor.u32 %v3058, %v3061
      %v3064 = vsel %vm376, %v3036, 0
      %v3067 = vsel %vm376, %v3037, 0
      %v3070 = vsel %vm376, %v3038, 0
      %v3073 = vsel %vm376, %v3039, 0
      %v3076 = vsel %vm376, %v3040, 0
      %v3079 = vsel %vm376, %v3041, 0
      %v3082 = vsel %vm376, %v3042, 0
      %v3085 = vsel %vm376, %v3043, 0
      %v3088 = vsel %vm376, %v3044, 0
      %v3091 = vsel %vm376, %v3045, 0
      %v3094 = vsel %vm376, %v3046, 0
      %v3097 = vsel %vm376, %v3047, 0
      %v3100 = vsel %vm376, %v3048, 0
      %v3103 = vsel %vm376, %v3049, 0
      %v3106 = vsel %vm376, %v3050, 0
      %v3109 = vsel %vm376, %v3051, 0
      %v3112 = vand.u32 %v3062, %v428
      %3114 = vmatprep.subr.bf16.mxu0 0
      %3115 = vmatpush1.bf16.msra.mxu0 %v3112
      %3116 = vmatprep.subr.bf16.mxu0 0
      %3117 = vmatpush1.bf16.msra.mxu0 0
      %3118 = vmatprep.subr.bf16.mxu0 0
      %3119 = vmatpush1.bf16.msra.mxu0 0
      %3120 = vmatprep.subr.bf16.mxu0 0
      %3121 = vmatpush1.bf16.msra.mxu0 0
      %3122 = vmatprep.subr.bf16.mxu0 0
      %3123 = vmatpush1.bf16.msra.mxu0 0
      %3124 = vmatprep.subr.bf16.mxu0 0
      %3125 = vmatpush1.bf16.msra.mxu0 0
      %3126 = vmatprep.subr.bf16.mxu0 0
      %3127 = vmatpush1.bf16.msra.mxu0 0
      %3128 = vmatprep.subr.bf16.mxu0 0
      %3129 = vmatpush1.bf16.msra.mxu0 0
      %3130 = vmatprep.subr.bf16.mxu0 0
      %3131 = vmatpush1.bf16.msra.mxu0 0
      %3132 = vmatprep.subr.bf16.mxu0 0
      %3133 = vmatpush1.bf16.msra.mxu0 0
      %3134 = vmatprep.subr.bf16.mxu0 0
      %3135 = vmatpush1.bf16.msra.mxu0 0
      %3136 = vmatprep.subr.bf16.mxu0 0
      %3137 = vmatpush1.bf16.msra.mxu0 0
      %3138 = vmatprep.subr.bf16.mxu0 0
      %3139 = vmatpush1.bf16.msra.mxu0 0
      %3140 = vmatprep.subr.bf16.mxu0 0
      %3141 = vmatpush1.bf16.msra.mxu0 0
      %3142 = vmatprep.subr.bf16.mxu0 0
      %3143 = vmatpush1.bf16.msra.mxu0 0
      %3144 = vmatprep.subr.bf16.mxu0 0
      %3145 = vmatpush1.bf16.msra.mxu0 0
      %3146 = vmatprep.mubr.bf16.mxu0 0
      %3147 = vmatmul.mubr.bf16.gmra.mrb[0].mxu0 %v3064
      %v3148 = vpop.f32.mrb[0].mxu0
      %v3149 = vadd.f32 0.0, %v3148
      %v3150 = vpop.f32.mrb[0].mxu0
      %v3151 = vpop.f32.mrb[0].mxu0
      %v3152 = vadd.f32 0.0, %v3151
      %v3153 = vpop.f32.mrb[0].mxu0
      %3154 = vmatprep.mubr.bf16.mxu0 0
      %3155 = vmatmul.mubr.bf16.gmra.mrb[0].mxu0 %v3067
      %v3156 = vpop.f32.mrb[0].mxu0
      %v3157 = vadd.f32 0.0, %v3156
      %v3158 = vpop.f32.mrb[0].mxu0
      %v3159 = vpop.f32.mrb[0].mxu0
      %v3160 = vadd.f32 0.0, %v3159
      %v3161 = vpop.f32.mrb[0].mxu0
      %3162 = vmatprep.mubr.bf16.mxu0 0
      %3163 = vmatmul.mubr.bf16.gmra.mrb[0].mxu0 %v3070
      %v3164 = vpop.f32.mrb[0].mxu0
      %v3165 = vadd.f32 0.0, %v3164
      %v3166 = vpop.f32.mrb[0].mxu0
      %v3167 = vpop.f32.mrb[0].mxu0
      %v3168 = vadd.f32 0.0, %v3167
      %v3169 = vpop.f32.mrb[0].mxu0
      %3170 = vmatprep.mubr.bf16.mxu0 0
      %3171 = vmatmul.mubr.bf16.gmra.mrb[0].mxu0 %v3073
      %v3172 = vpop.f32.mrb[0].mxu0
      %v3173 = vadd.f32 0.0, %v3172
      %v3174 = vpop.f32.mrb[0].mxu0
      %v3175 = vpop.f32.mrb[0].mxu0
      %v3176 = vadd.f32 0.0, %v3175
      %v3177 = vpop.f32.mrb[0].mxu0
      %3178 = vmatprep.mubr.bf16.mxu0 0
      %3179 = vmatmul.mubr.bf16.gmra.mrb[0].mxu0 %v3076
      %v3180 = vpop.f32.mrb[0].mxu0
      %v3181 = vadd.f32 0.0, %v3180
      %v3182 = vpop.f32.mrb[0].mxu0
      %v3183 = vpop.f32.mrb[0].mxu0
      %v3184 = vadd.f32 0.0, %v3183
      %v3185 = vpop.f32.mrb[0].mxu0
      %3186 = vmatprep.mubr.bf16.mxu0 0
      %3187 = vmatmul.mubr.bf16.gmra.mrb[0].mxu0 %v3079
      %v3188 = vpop.f32.mrb[0].mxu0
      %v3189 = vadd.f32 0.0, %v3188
      %v3190 = vpop.f32.mrb[0].mxu0
      %v3191 = vpop.f32.mrb[0].mxu0
      %v3192 = vadd.f32 0.0, %v3191
      %v3193 = vpop.f32.mrb[0].mxu0
      %3194 = vmatprep.mubr.bf16.mxu0 0
      %3195 = vmatmul.mubr.bf16.gmra.mrb[0].mxu0 %v3082
      %v3196 = vpop.f32.mrb[0].mxu0
      %v3197 = vadd.f32 0.0, %v3196
      %v3198 = vpop.f32.mrb[0].mxu0
      %v3199 = vpop.f32.mrb[0].mxu0
      %v3200 = vadd.f32 0.0, %v3199
      %v3201 = vpop.f32.mrb[0].mxu0
      %3202 = vmatprep.mubr.bf16.mxu0 0
      %3203 = vmatmul.mubr.bf16.gmra.mrb[0].mxu0 %v3085
      %v3204 = vpop.f32.mrb[0].mxu0
      %v3205 = vadd.f32 0.0, %v3204
      %v3206 = vpop.f32.mrb[0].mxu0
      %v3207 = vpop.f32.mrb[0].mxu0
      %v3208 = vadd.f32 0.0, %v3207
      %v3209 = vpop.f32.mrb[0].mxu0
      %3210 = vmatprep.mubr.bf16.mxu0 0
      %3211 = vmatmul.mubr.bf16.gmra.mrb[0].mxu0 %v3088
      %v3212 = vpop.f32.mrb[0].mxu0
      %v3213 = vadd.f32 0.0, %v3212
      %v3214 = vpop.f32.mrb[0].mxu0
      %v3215 = vpop.f32.mrb[0].mxu0
      %v3216 = vadd.f32 0.0, %v3215
      %v3217 = vpop.f32.mrb[0].mxu0
      %3218 = vmatprep.mubr.bf16.mxu0 0
      %3219 = vmatmul.mubr.bf16.gmra.mrb[0].mxu0 %v3091
      %v3220 = vpop.f32.mrb[0].mxu0
      %v3221 = vadd.f32 0.0, %v3220
      %v3222 = vpop.f32.mrb[0].mxu0
      %v3223 = vpop.f32.mrb[0].mxu0
      %v3224 = vadd.f32 0.0, %v3223
      %v3225 = vpop.f32.mrb[0].mxu0
      %3226 = vmatprep.mubr.bf16.mxu0 0
      %3227 = vmatmul.mubr.bf16.gmra.mrb[0].mxu0 %v3094
      %v3228 = vpop.f32.mrb[0].mxu0
      %v3229 = vadd.f32 0.0, %v3228
      %v3230 = vpop.f32.mrb[0].mxu0
      %v3231 = vpop.f32.mrb[0].mxu0
      %v3232 = vadd.f32 0.0, %v3231
      %v3233 = vpop.f32.mrb[0].mxu0
      %3234 = vmatprep.mubr.bf16.mxu0 0
      %3235 = vmatmul.mubr.bf16.gmra.mrb[0].mxu0 %v3097
      %v3236 = vpop.f32.mrb[0].mxu0
      %v3237 = vadd.f32 0.0, %v3236
      %v3238 = vpop.f32.mrb[0].mxu0
      %v3239 = vpop.f32.mrb[0].mxu0
      %v3240 = vadd.f32 0.0, %v3239
      %v3241 = vpop.f32.mrb[0].mxu0
      %3242 = vmatprep.mubr.bf16.mxu0 0
      %3243 = vmatmul.mubr.bf16.gmra.mrb[0].mxu0 %v3100
      %v3244 = vpop.f32.mrb[0].mxu0
      %v3245 = vadd.f32 0.0, %v3244
      %v3246 = vpop.f32.mrb[0].mxu0
      %v3247 = vpop.f32.mrb[0].mxu0
      %v3248 = vadd.f32 0.0, %v3247
      %v3249 = vpop.f32.mrb[0].mxu0
      %3250 = vmatprep.mubr.bf16.mxu0 0
      %3251 = vmatmul.mubr.bf16.gmra.mrb[0].mxu0 %v3103
      %v3252 = vpop.f32.mrb[0].mxu0
      %v3253 = vadd.f32 0.0, %v3252
      %v3254 = vpop.f32.mrb[0].mxu0
      %v3255 = vpop.f32.mrb[0].mxu0
      %v3256 = vadd.f32 0.0, %v3255
      %v3257 = vpop.f32.mrb[0].mxu0
      %3258 = vmatprep.mubr.bf16.mxu0 0
      %3259 = vmatmul.mubr.bf16.gmra.mrb[0].mxu0 %v3106
      %v3260 = vpop.f32.mrb[0].mxu0
      %v3261 = vadd.f32 0.0, %v3260
      %v3262 = vpop.f32.mrb[0].mxu0
      %v3263 = vpop.f32.mrb[0].mxu0
      %v3264 = vadd.f32 0.0, %v3263
      %v3265 = vpop.f32.mrb[0].mxu0
      %3266 = vmatprep.mubr.bf16.mxu0 0
      %3267 = vmatmul.mubr.bf16.gmra.mrb[0].mxu0 %v3109
      %v3268 = vpop.f32.mrb[0].mxu0
      %v3269 = vadd.f32 0.0, %v3268
      %v3270 = vpop.f32.mrb[0].mxu0
      %v3271 = vpop.f32.mrb[0].mxu0
      %v3272 = vadd.f32 0.0, %v3271
      %v3273 = vpop.f32.mrb[0].mxu0
      %3274 = vdwg.mxu0
      %v3275 = vadd.f32 %v2795, %v3149
      %v3276 = vadd.f32 %v2796, %v3152
      %v3277 = vadd.f32 %v2797, %v3157
      %v3278 = vadd.f32 %v2798, %v3160
      %v3279 = vadd.f32 %v2799, %v3165
      %v3280 = vadd.f32 %v2800, %v3168
      %v3281 = vadd.f32 %v2801, %v3173
      %v3282 = vadd.f32 %v2802, %v3176
      %v3283 = vadd.f32 %v2803, %v3181
      %v3284 = vadd.f32 %v2804, %v3184
      %v3285 = vadd.f32 %v2805, %v3189
      %v3286 = vadd.f32 %v2806, %v3192
      %v3287 = vadd.f32 %v2807, %v3197
      %v3288 = vadd.f32 %v2808, %v3200
      %v3289 = vadd.f32 %v2809, %v3205
      %v3290 = vadd.f32 %v2810, %v3208
      %v3291 = vadd.f32 %v2811, %v3213
      %v3292 = vadd.f32 %v2812, %v3216
      %v3293 = vadd.f32 %v2813, %v3221
      %v3294 = vadd.f32 %v2814, %v3224
      %v3295 = vadd.f32 %v2815, %v3229
      %v3296 = vadd.f32 %v2816, %v3232
      %v3297 = vadd.f32 %v2817, %v3237
      %v3298 = vadd.f32 %v2818, %v3240
      %v3299 = vadd.f32 %v2819, %v3245
      %v3300 = vadd.f32 %v2820, %v3248
      %v3301 = vadd.f32 %v2821, %v3253
      %v3302 = vadd.f32 %v2822, %v3256
      %v3303 = vadd.f32 %v2823, %v3261
      %v3304 = vadd.f32 %v2824, %v3264
      %v3305 = vadd.f32 %v2825, %v3269
      %v3306 = vadd.f32 %v2826, %v3272
      %s3307 = scalar_lea.vmem %s207, 12
      %v3308 = vld [vmem:[%s3307] sm:$0xf]
      %v3309 = vld [vmem:[%s3307 + $0x4] sm:$0xf]
      %v3310 = vld [vmem:[%s3307 + $0xc] sm:$0xf]
      %v3311 = vld [vmem:[%s3307 + $0x10] sm:$0xf]
      %v3312 = vld [vmem:[%s3307 + $0x18] sm:$0xf]
      %v3313 = vld [vmem:[%s3307 + $0x1c] sm:$0xf]
      %v3314 = vld [vmem:[%s3307 + $0x24] sm:$0xf]
      %v3315 = vld [vmem:[%s3307 + $0x28] sm:$0xf]
      %v3316 = vld [vmem:[%s3307 + $0x30] sm:$0xf]
      %v3317 = vld [vmem:[%s3307 + $0x34] sm:$0xf]
      %v3318 = vld [vmem:[%s3307 + $0x3c] sm:$0xf]
      %v3319 = vld [vmem:[%s3307 + $0x40] sm:$0xf]
      %v3320 = vld [vmem:[%s3307 + $0x48] sm:$0xf]
      %v3321 = vld [vmem:[%s3307 + $0x4c] sm:$0xf]
      %v3322 = vld [vmem:[%s3307 + $0x54] sm:$0xf]
      %v3323 = vld [vmem:[%s3307 + $0x58] sm:$0xf]
      %v3324 = vld [vmem:[%s3307 + $0x60] sm:$0xf]
      %v3325 = vld [vmem:[%s3307 + $0x64] sm:$0xf]
      %v3326 = vld [vmem:[%s3307 + $0x6c] sm:$0xf]
      %v3327 = vld [vmem:[%s3307 + $0x70] sm:$0xf]
      %v3328 = vld [vmem:[%s3307 + $0x78] sm:$0xf]
      %v3329 = vld [vmem:[%s3307 + $0x7c] sm:$0xf]
      %v3330 = vld [vmem:[%s3307 + $0x84] sm:$0xf]
      %v3331 = vld [vmem:[%s3307 + $0x88] sm:$0xf]
      %v3332 = vld [vmem:[%s3307 + $0x90] sm:$0xf]
      %v3333 = vld [vmem:[%s3307 + $0x94] sm:$0xf]
      %v3334 = vld [vmem:[%s3307 + $0x9c] sm:$0xf]
      %v3335 = vld [vmem:[%s3307 + $0xa0] sm:$0xf]
      %v3336 = vld [vmem:[%s3307 + $0xa8] sm:$0xf]
      %v3337 = vld [vmem:[%s3307 + $0xac] sm:$0xf]
      %v3338 = vld [vmem:[%s3307 + $0xb4] sm:$0xf]
      %v3339 = vld [vmem:[%s3307 + $0xb8] sm:$0xf]
      %s3340 = scalar_lea.vmem %s2, 12
      %v3341 = vld [vmem:[%s3340] sm:$0x7]
      %v3374 = vunpack.c.l.b16 %v3308
      %v3375 = vunpack.c.l.b16 %v3309
      %v3376 = vunpack.c.l.b16 %v3310
      %v3377 = vunpack.c.l.b16 %v3311
      %v3378 = vunpack.c.l.b16 %v3312
      %v3379 = vunpack.c.l.b16 %v3313
      %v3380 = vunpack.c.l.b16 %v3314
      %v3381 = vunpack.c.l.b16 %v3315
      %v3382 = vunpack.c.l.b16 %v3316
      %v3383 = vunpack.c.l.b16 %v3317
      %v3384 = vunpack.c.l.b16 %v3318
      %v3385 = vunpack.c.l.b16 %v3319
      %v3386 = vunpack.c.l.b16 %v3320
      %v3387 = vunpack.c.l.b16 %v3321
      %v3388 = vunpack.c.l.b16 %v3322
      %v3389 = vunpack.c.l.b16 %v3323
      %v3390 = vunpack.c.l.b16 %v3324
      %v3391 = vunpack.c.l.b16 %v3325
      %v3392 = vunpack.c.l.b16 %v3326
      %v3393 = vunpack.c.l.b16 %v3327
      %v3394 = vunpack.c.l.b16 %v3328
      %v3395 = vunpack.c.l.b16 %v3329
      %v3396 = vunpack.c.l.b16 %v3330
      %v3397 = vunpack.c.l.b16 %v3331
      %v3398 = vunpack.c.l.b16 %v3332
      %v3399 = vunpack.c.l.b16 %v3333
      %v3400 = vunpack.c.l.b16 %v3334
      %v3401 = vunpack.c.l.b16 %v3335
      %v3402 = vunpack.c.l.b16 %v3336
      %v3403 = vunpack.c.l.b16 %v3337
      %v3404 = vunpack.c.l.b16 %v3338
      %v3405 = vunpack.c.l.b16 %v3339
      %v3406 = vpack.c.b16 %v3375, %v3374
      %v3407 = vpack.c.b16 %v3377, %v3376
      %v3408 = vpack.c.b16 %v3379, %v3378
      %v3409 = vpack.c.b16 %v3381, %v3380
      %v3410 = vpack.c.b16 %v3383, %v3382
      %v3411 = vpack.c.b16 %v3385, %v3384
      %v3412 = vpack.c.b16 %v3387, %v3386
      %v3413 = vpack.c.b16 %v3389, %v3388
      %v3414 = vpack.c.b16 %v3391, %v3390
      %v3415 = vpack.c.b16 %v3393, %v3392
      %v3416 = vpack.c.b16 %v3395, %v3394
      %v3417 = vpack.c.b16 %v3397, %v3396
      %v3418 = vpack.c.b16 %v3399, %v3398
      %v3419 = vpack.c.b16 %v3401, %v3400
      %v3420 = vpack.c.b16 %v3403, %v3402
      %v3421 = vpack.c.b16 %v3405, %v3404
      %v3423 = vsel %vm673, %v3406, 0
      %v3426 = vsel %vm673, %v3407, 0
      %v3429 = vsel %vm673, %v3408, 0
      %v3432 = vsel %vm673, %v3409, 0
      %v3435 = vsel %vm673, %v3410, 0
      %v3438 = vsel %vm673, %v3411, 0
      %v3441 = vsel %vm673, %v3412, 0
      %v3444 = vsel %vm673, %v3413, 0
      %v3447 = vsel %vm673, %v3414, 0
      %v3450 = vsel %vm673, %v3415, 0
      %v3453 = vsel %vm673, %v3416, 0
      %v3456 = vsel %vm673, %v3417, 0
      %v3459 = vsel %vm673, %v3418, 0
      %v3462 = vsel %vm673, %v3419, 0
      %v3465 = vsel %vm673, %v3420, 0
      %v3468 = vsel %vm673, %v3421, 0
      %v3471 = vand.u32 %v3341, %v724
      %3473 = vmatprep.subr.bf16.mxu0 0
      %3474 = vmatpush1.bf16.msra.mxu0 %v3471
      %3475 = vmatprep.subr.bf16.mxu0 0
      %3476 = vmatpush1.bf16.msra.mxu0 0
      %3477 = vmatprep.subr.bf16.mxu0 0
      %3478 = vmatpush1.bf16.msra.mxu0 0
      %3479 = vmatprep.subr.bf16.mxu0 0
      %3480 = vmatpush1.bf16.msra.mxu0 0
      %3481 = vmatprep.subr.bf16.mxu0 0
      %3482 = vmatpush1.bf16.msra.mxu0 0
      %3483 = vmatprep.subr.bf16.mxu0 0
      %3484 = vmatpush1.bf16.msra.mxu0 0
      %3485 = vmatprep.subr.bf16.mxu0 0
      %3486 = vmatpush1.bf16.msra.mxu0 0
      %3487 = vmatprep.subr.bf16.mxu0 0
      %3488 = vmatpush1.bf16.msra.mxu0 0
      %3489 = vmatprep.subr.bf16.mxu0 0
      %3490 = vmatpush1.bf16.msra.mxu0 0
      %3491 = vmatprep.subr.bf16.mxu0 0
      %3492 = vmatpush1.bf16.msra.mxu0 0
      %3493 = vmatprep.subr.bf16.mxu0 0
      %3494 = vmatpush1.bf16.msra.mxu0 0
      %3495 = vmatprep.subr.bf16.mxu0 0
      %3496 = vmatpush1.bf16.msra.mxu0 0
      %3497 = vmatprep.subr.bf16.mxu0 0
      %3498 = vmatpush1.bf16.msra.mxu0 0
      %3499 = vmatprep.subr.bf16.mxu0 0
      %3500 = vmatpush1.bf16.msra.mxu0 0
      %3501 = vmatprep.subr.bf16.mxu0 0
      %3502 = vmatpush1.bf16.msra.mxu0 0
      %3503 = vmatprep.subr.bf16.mxu0 0
      %3504 = vmatpush1.bf16.msra.mxu0 0
      %3505 = vmatprep.mubr.bf16.mxu0 0
      %3506 = vmatmul.mubr.bf16.gmra.mrb[0].mxu0 %v3423
      %v3507 = vpop.f32.mrb[0].mxu0
      %v3508 = vadd.f32 0.0, %v3507
      %v3509 = vpop.f32.mrb[0].mxu0
      %v3510 = vpop.f32.mrb[0].mxu0
      %v3511 = vadd.f32 0.0, %v3510
      %v3512 = vpop.f32.mrb[0].mxu0
      %3513 = vmatprep.mubr.bf16.mxu0 0
      %3514 = vmatmul.mubr.bf16.gmra.mrb[0].mxu0 %v3426
      %v3515 = vpop.f32.mrb[0].mxu0
      %v3516 = vadd.f32 0.0, %v3515
      %v3517 = vpop.f32.mrb[0].mxu0
      %v3518 = vpop.f32.mrb[0].mxu0
      %v3519 = vadd.f32 0.0, %v3518
      %v3520 = vpop.f32.mrb[0].mxu0
      %3521 = vmatprep.mubr.bf16.mxu0 0
      %3522 = vmatmul.mubr.bf16.gmra.mrb[0].mxu0 %v3429
      %v3523 = vpop.f32.mrb[0].mxu0
      %v3524 = vadd.f32 0.0, %v3523
      %v3525 = vpop.f32.mrb[0].mxu0
      %v3526 = vpop.f32.mrb[0].mxu0
      %v3527 = vadd.f32 0.0, %v3526
      %v3528 = vpop.f32.mrb[0].mxu0
      %3529 = vmatprep.mubr.bf16.mxu0 0
      %3530 = vmatmul.mubr.bf16.gmra.mrb[0].mxu0 %v3432
      %v3531 = vpop.f32.mrb[0].mxu0
      %v3532 = vadd.f32 0.0, %v3531
      %v3533 = vpop.f32.mrb[0].mxu0
      %v3534 = vpop.f32.mrb[0].mxu0
      %v3535 = vadd.f32 0.0, %v3534
      %v3536 = vpop.f32.mrb[0].mxu0
      %3537 = vmatprep.mubr.bf16.mxu0 0
      %3538 = vmatmul.mubr.bf16.gmra.mrb[0].mxu0 %v3435
      %v3539 = vpop.f32.mrb[0].mxu0
      %v3540 = vadd.f32 0.0, %v3539
      %v3541 = vpop.f32.mrb[0].mxu0
      %v3542 = vpop.f32.mrb[0].mxu0
      %v3543 = vadd.f32 0.0, %v3542
      %v3544 = vpop.f32.mrb[0].mxu0
      %3545 = vmatprep.mubr.bf16.mxu0 0
      %3546 = vmatmul.mubr.bf16.gmra.mrb[0].mxu0 %v3438
      %v3547 = vpop.f32.mrb[0].mxu0
      %v3548 = vadd.f32 0.0, %v3547
      %v3549 = vpop.f32.mrb[0].mxu0
      %v3550 = vpop.f32.mrb[0].mxu0
      %v3551 = vadd.f32 0.0, %v3550
      %v3552 = vpop.f32.mrb[0].mxu0
      %3553 = vmatprep.mubr.bf16.mxu0 0
      %3554 = vmatmul.mubr.bf16.gmra.mrb[0].mxu0 %v3441
      %v3555 = vpop.f32.mrb[0].mxu0
      %v3556 = vadd.f32 0.0, %v3555
      %v3557 = vpop.f32.mrb[0].mxu0
      %v3558 = vpop.f32.mrb[0].mxu0
      %v3559 = vadd.f32 0.0, %v3558
      %v3560 = vpop.f32.mrb[0].mxu0
      %3561 = vmatprep.mubr.bf16.mxu0 0
      %3562 = vmatmul.mubr.bf16.gmra.mrb[0].mxu0 %v3444
      %v3563 = vpop.f32.mrb[0].mxu0
      %v3564 = vadd.f32 0.0, %v3563
      %v3565 = vpop.f32.mrb[0].mxu0
      %v3566 = vpop.f32.mrb[0].mxu0
      %v3567 = vadd.f32 0.0, %v3566
      %v3568 = vpop.f32.mrb[0].mxu0
      %3569 = vmatprep.mubr.bf16.mxu0 0
      %3570 = vmatmul.mubr.bf16.gmra.mrb[0].mxu0 %v3447
      %v3571 = vpop.f32.mrb[0].mxu0
      %v3572 = vadd.f32 0.0, %v3571
      %v3573 = vpop.f32.mrb[0].mxu0
      %v3574 = vpop.f32.mrb[0].mxu0
      %v3575 = vadd.f32 0.0, %v3574
      %v3576 = vpop.f32.mrb[0].mxu0
      %3577 = vmatprep.mubr.bf16.mxu0 0
      %3578 = vmatmul.mubr.bf16.gmra.mrb[0].mxu0 %v3450
      %v3579 = vpop.f32.mrb[0].mxu0
      %v3580 = vadd.f32 0.0, %v3579
      %v3581 = vpop.f32.mrb[0].mxu0
      %v3582 = vpop.f32.mrb[0].mxu0
      %v3583 = vadd.f32 0.0, %v3582
      %v3584 = vpop.f32.mrb[0].mxu0
      %3585 = vmatprep.mubr.bf16.mxu0 0
      %3586 = vmatmul.mubr.bf16.gmra.mrb[0].mxu0 %v3453
      %v3587 = vpop.f32.mrb[0].mxu0
      %v3588 = vadd.f32 0.0, %v3587
      %v3589 = vpop.f32.mrb[0].mxu0
      %v3590 = vpop.f32.mrb[0].mxu0
      %v3591 = vadd.f32 0.0, %v3590
      %v3592 = vpop.f32.mrb[0].mxu0
      %3593 = vmatprep.mubr.bf16.mxu0 0
      %3594 = vmatmul.mubr.bf16.gmra.mrb[0].mxu0 %v3456
      %v3595 = vpop.f32.mrb[0].mxu0
      %v3596 = vadd.f32 0.0, %v3595
      %v3597 = vpop.f32.mrb[0].mxu0
      %v3598 = vpop.f32.mrb[0].mxu0
      %v3599 = vadd.f32 0.0, %v3598
      %v3600 = vpop.f32.mrb[0].mxu0
      %3601 = vmatprep.mubr.bf16.mxu0 0
      %3602 = vmatmul.mubr.bf16.gmra.mrb[0].mxu0 %v3459
      %v3603 = vpop.f32.mrb[0].mxu0
      %v3604 = vadd.f32 0.0, %v3603
      %v3605 = vpop.f32.mrb[0].mxu0
      %v3606 = vpop.f32.mrb[0].mxu0
      %v3607 = vadd.f32 0.0, %v3606
      %v3608 = vpop.f32.mrb[0].mxu0
      %3609 = vmatprep.mubr.bf16.mxu0 0
      %3610 = vmatmul.mubr.bf16.gmra.mrb[0].mxu0 %v3462
      %v3611 = vpop.f32.mrb[0].mxu0
      %v3612 = vadd.f32 0.0, %v3611
      %v3613 = vpop.f32.mrb[0].mxu0
      %v3614 = vpop.f32.mrb[0].mxu0
      %v3615 = vadd.f32 0.0, %v3614
      %v3616 = vpop.f32.mrb[0].mxu0
      %3617 = vmatprep.mubr.bf16.mxu0 0
      %3618 = vmatmul.mubr.bf16.gmra.mrb[0].mxu0 %v3465
      %v3619 = vpop.f32.mrb[0].mxu0
      %v3620 = vadd.f32 0.0, %v3619
      %v3621 = vpop.f32.mrb[0].mxu0
      %v3622 = vpop.f32.mrb[0].mxu0
      %v3623 = vadd.f32 0.0, %v3622
      %v3624 = vpop.f32.mrb[0].mxu0
      %3625 = vmatprep.mubr.bf16.mxu0 0
      %3626 = vmatmul.mubr.bf16.gmra.mrb[0].mxu0 %v3468
      %v3627 = vpop.f32.mrb[0].mxu0
      %v3628 = vadd.f32 0.0, %v3627
      %v3629 = vpop.f32.mrb[0].mxu0
      %v3630 = vpop.f32.mrb[0].mxu0
      %v3631 = vadd.f32 0.0, %v3630
      %v3632 = vpop.f32.mrb[0].mxu0
      %3633 = vdwg.mxu0
      %v3634 = vadd.f32 %v3275, %v3508
      %v3635 = vadd.f32 %v3276, %v3511
      %v3636 = vadd.f32 %v3277, %v3516
      %v3637 = vadd.f32 %v3278, %v3519
      %v3638 = vadd.f32 %v3279, %v3524
      %v3639 = vadd.f32 %v3280, %v3527
      %v3640 = vadd.f32 %v3281, %v3532
      %v3641 = vadd.f32 %v3282, %v3535
      %v3642 = vadd.f32 %v3283, %v3540
      %v3643 = vadd.f32 %v3284, %v3543
      %v3644 = vadd.f32 %v3285, %v3548
      %v3645 = vadd.f32 %v3286, %v3551
      %v3646 = vadd.f32 %v3287, %v3556
      %v3647 = vadd.f32 %v3288, %v3559
      %v3648 = vadd.f32 %v3289, %v3564
      %v3649 = vadd.f32 %v3290, %v3567
      %v3650 = vadd.f32 %v3291, %v3572
      %v3651 = vadd.f32 %v3292, %v3575
      %v3652 = vadd.f32 %v3293, %v3580
      %v3653 = vadd.f32 %v3294, %v3583
      %v3654 = vadd.f32 %v3295, %v3588
      %v3655 = vadd.f32 %v3296, %v3591
      %v3656 = vadd.f32 %v3297, %v3596
      %v3657 = vadd.f32 %v3298, %v3599
      %v3658 = vadd.f32 %v3299, %v3604
      %v3659 = vadd.f32 %v3300, %v3607
      %v3660 = vadd.f32 %v3301, %v3612
      %v3661 = vadd.f32 %v3302, %v3615
      %v3662 = vadd.f32 %v3303, %v3620
      %v3663 = vadd.f32 %v3304, %v3623
      %v3664 = vadd.f32 %v3305, %v3628
      %v3665 = vadd.f32 %v3306, %v3631
      %s3666 = scalar_lea.vmem %s212, 12
      %v3667 = vld [vmem:[%s3666] sm:$0xf]
      %v3668 = vld [vmem:[%s3666 + $0x4] sm:$0xf]
      %v3669 = vld [vmem:[%s3666 + $0xc] sm:$0xf]
      %v3670 = vld [vmem:[%s3666 + $0x10] sm:$0xf]
      %v3671 = vld [vmem:[%s3666 + $0x18] sm:$0xf]
      %v3672 = vld [vmem:[%s3666 + $0x1c] sm:$0xf]
      %v3673 = vld [vmem:[%s3666 + $0x24] sm:$0xf]
      %v3674 = vld [vmem:[%s3666 + $0x28] sm:$0xf]
      %v3675 = vld [vmem:[%s3666 + $0x30] sm:$0xf]
      %v3676 = vld [vmem:[%s3666 + $0x34] sm:$0xf]
      %v3677 = vld [vmem:[%s3666 + $0x3c] sm:$0xf]
      %v3678 = vld [vmem:[%s3666 + $0x40] sm:$0xf]
      %v3679 = vld [vmem:[%s3666 + $0x48] sm:$0xf]
      %v3680 = vld [vmem:[%s3666 + $0x4c] sm:$0xf]
      %v3681 = vld [vmem:[%s3666 + $0x54] sm:$0xf]
      %v3682 = vld [vmem:[%s3666 + $0x58] sm:$0xf]
      %v3683 = vld [vmem:[%s3666 + $0x60] sm:$0xf]
      %v3684 = vld [vmem:[%s3666 + $0x64] sm:$0xf]
      %v3685 = vld [vmem:[%s3666 + $0x6c] sm:$0xf]
      %v3686 = vld [vmem:[%s3666 + $0x70] sm:$0xf]
      %v3687 = vld [vmem:[%s3666 + $0x78] sm:$0xf]
      %v3688 = vld [vmem:[%s3666 + $0x7c] sm:$0xf]
      %v3689 = vld [vmem:[%s3666 + $0x84] sm:$0xf]
      %v3690 = vld [vmem:[%s3666 + $0x88] sm:$0xf]
      %v3691 = vld [vmem:[%s3666 + $0x90] sm:$0xf]
      %v3692 = vld [vmem:[%s3666 + $0x94] sm:$0xf]
      %v3693 = vld [vmem:[%s3666 + $0x9c] sm:$0xf]
      %v3694 = vld [vmem:[%s3666 + $0xa0] sm:$0xf]
      %v3695 = vld [vmem:[%s3666 + $0xa8] sm:$0xf]
      %v3696 = vld [vmem:[%s3666 + $0xac] sm:$0xf]
      %v3697 = vld [vmem:[%s3666 + $0xb4] sm:$0xf]
      %v3698 = vld [vmem:[%s3666 + $0xb8] sm:$0xf]
      %v3699 = vld [vmem:[%s3340] sm:$0xc]
      %v3732 = vunpack.c.l.b16 %v3667
      %v3733 = vunpack.c.l.b16 %v3668
      %v3734 = vunpack.c.l.b16 %v3669
      %v3735 = vunpack.c.l.b16 %v3670
      %v3736 = vunpack.c.l.b16 %v3671
      %v3737 = vunpack.c.l.b16 %v3672
      %v3738 = vunpack.c.l.b16 %v3673
      %v3739 = vunpack.c.l.b16 %v3674
      %v3740 = vunpack.c.l.b16 %v3675
      %v3741 = vunpack.c.l.b16 %v3676
      %v3742 = vunpack.c.l.b16 %v3677
      %v3743 = vunpack.c.l.b16 %v3678
      %v3744 = vunpack.c.l.b16 %v3679
      %v3745 = vunpack.c.l.b16 %v3680
      %v3746 = vunpack.c.l.b16 %v3681
      %v3747 = vunpack.c.l.b16 %v3682
      %v3748 = vunpack.c.l.b16 %v3683
      %v3749 = vunpack.c.l.b16 %v3684
      %v3750 = vunpack.c.l.b16 %v3685
      %v3751 = vunpack.c.l.b16 %v3686
      %v3752 = vunpack.c.l.b16 %v3687
      %v3753 = vunpack.c.l.b16 %v3688
      %v3754 = vunpack.c.l.b16 %v3689
      %v3755 = vunpack.c.l.b16 %v3690
      %v3756 = vunpack.c.l.b16 %v3691
      %v3757 = vunpack.c.l.b16 %v3692
      %v3758 = vunpack.c.l.b16 %v3693
      %v3759 = vunpack.c.l.b16 %v3694
      %v3760 = vunpack.c.l.b16 %v3695
      %v3761 = vunpack.c.l.b16 %v3696
      %v3762 = vunpack.c.l.b16 %v3697
      %v3763 = vunpack.c.l.b16 %v3698
      %v3764 = vpack.c.b16 %v3733, %v3732
      %v3765 = vpack.c.b16 %v3735, %v3734
      %v3766 = vpack.c.b16 %v3737, %v3736
      %v3767 = vpack.c.b16 %v3739, %v3738
      %v3768 = vpack.c.b16 %v3741, %v3740
      %v3769 = vpack.c.b16 %v3743, %v3742
      %v3770 = vpack.c.b16 %v3745, %v3744
      %v3771 = vpack.c.b16 %v3747, %v3746
      %v3772 = vpack.c.b16 %v3749, %v3748
      %v3773 = vpack.c.b16 %v3751, %v3750
      %v3774 = vpack.c.b16 %v3753, %v3752
      %v3775 = vpack.c.b16 %v3755, %v3754
      %v3776 = vpack.c.b16 %v3757, %v3756
      %v3777 = vpack.c.b16 %v3759, %v3758
      %v3778 = vpack.c.b16 %v3761, %v3760
      %v3779 = vpack.c.b16 %v3763, %v3762
      %v3781 = vunpack.c.l.b16 %v3699
      %v3782 = vpack.c.b16 %v3781, %v3781
      %v3784 = vshrl.u32 %v3782, 16
      %v3786 = vrot.slane %v3784, 2
      %v3787 = vshll.u32 %v3782, 16
      %v3789 = vrot.slane %v3787, 3
      %v3790 = vor.u32 %v3786, %v3789
      %v3792 = vsel %vm376, %v3764, 0
      %v3795 = vsel %vm376, %v3765, 0
      %v3798 = vsel %vm376, %v3766, 0
      %v3801 = vsel %vm376, %v3767, 0
      %v3804 = vsel %vm376, %v3768, 0
      %v3807 = vsel %vm376, %v3769, 0
      %v3810 = vsel %vm376, %v3770, 0
      %v3813 = vsel %vm376, %v3771, 0
      %v3816 = vsel %vm376, %v3772, 0
      %v3819 = vsel %vm376, %v3773, 0
      %v3822 = vsel %vm376, %v3774, 0
      %v3825 = vsel %vm376, %v3775, 0
      %v3828 = vsel %vm376, %v3776, 0
      %v3831 = vsel %vm376, %v3777, 0
      %v3834 = vsel %vm376, %v3778, 0
      %v3837 = vsel %vm376, %v3779, 0
      %v3840 = vand.u32 %v3790, %v428
      %3842 = vmatprep.subr.bf16.mxu0 0
      %3843 = vmatpush1.bf16.msra.mxu0 %v3840
      %3844 = vmatprep.subr.bf16.mxu0 0
      %3845 = vmatpush1.bf16.msra.mxu0 0
      %3846 = vmatprep.subr.bf16.mxu0 0
      %3847 = vmatpush1.bf16.msra.mxu0 0
      %3848 = vmatprep.subr.bf16.mxu0 0
      %3849 = vmatpush1.bf16.msra.mxu0 0
      %3850 = vmatprep.subr.bf16.mxu0 0
      %3851 = vmatpush1.bf16.msra.mxu0 0
      %3852 = vmatprep.subr.bf16.mxu0 0
      %3853 = vmatpush1.bf16.msra.mxu0 0
      %3854 = vmatprep.subr.bf16.mxu0 0
      %3855 = vmatpush1.bf16.msra.mxu0 0
      %3856 = vmatprep.subr.bf16.mxu0 0
      %3857 = vmatpush1.bf16.msra.mxu0 0
      %3858 = vmatprep.subr.bf16.mxu0 0
      %3859 = vmatpush1.bf16.msra.mxu0 0
      %3860 = vmatprep.subr.bf16.mxu0 0
      %3861 = vmatpush1.bf16.msra.mxu0 0
      %3862 = vmatprep.subr.bf16.mxu0 0
      %3863 = vmatpush1.bf16.msra.mxu0 0
      %3864 = vmatprep.subr.bf16.mxu0 0
      %3865 = vmatpush1.bf16.msra.mxu0 0
      %3866 = vmatprep.subr.bf16.mxu0 0
      %3867 = vmatpush1.bf16.msra.mxu0 0
      %3868 = vmatprep.subr.bf16.mxu0 0
      %3869 = vmatpush1.bf16.msra.mxu0 0
      %3870 = vmatprep.subr.bf16.mxu0 0
      %3871 = vmatpush1.bf16.msra.mxu0 0
      %3872 = vmatprep.subr.bf16.mxu0 0
      %3873 = vmatpush1.bf16.msra.mxu0 0
      %3874 = vmatprep.mubr.bf16.mxu0 0
      %3875 = vmatmul.mubr.bf16.gmra.mrb[0].mxu0 %v3792
      %v3876 = vpop.f32.mrb[0].mxu0
      %v3877 = vadd.f32 0.0, %v3876
      %v3878 = vpop.f32.mrb[0].mxu0
      %v3879 = vpop.f32.mrb[0].mxu0
      %v3880 = vadd.f32 0.0, %v3879
      %v3881 = vpop.f32.mrb[0].mxu0
      %3882 = vmatprep.mubr.bf16.mxu0 0
      %3883 = vmatmul.mubr.bf16.gmra.mrb[0].mxu0 %v3795
      %v3884 = vpop.f32.mrb[0].mxu0
      %v3885 = vadd.f32 0.0, %v3884
      %v3886 = vpop.f32.mrb[0].mxu0
      %v3887 = vpop.f32.mrb[0].mxu0
      %v3888 = vadd.f32 0.0, %v3887
      %v3889 = vpop.f32.mrb[0].mxu0
      %3890 = vmatprep.mubr.bf16.mxu0 0
      %3891 = vmatmul.mubr.bf16.gmra.mrb[0].mxu0 %v3798
      %v3892 = vpop.f32.mrb[0].mxu0
      %v3893 = vadd.f32 0.0, %v3892
      %v3894 = vpop.f32.mrb[0].mxu0
      %v3895 = vpop.f32.mrb[0].mxu0
      %v3896 = vadd.f32 0.0, %v3895
      %v3897 = vpop.f32.mrb[0].mxu0
      %3898 = vmatprep.mubr.bf16.mxu0 0
      %3899 = vmatmul.mubr.bf16.gmra.mrb[0].mxu0 %v3801
      %v3900 = vpop.f32.mrb[0].mxu0
      %v3901 = vadd.f32 0.0, %v3900
      %v3902 = vpop.f32.mrb[0].mxu0
      %v3903 = vpop.f32.mrb[0].mxu0
      %v3904 = vadd.f32 0.0, %v3903
      %v3905 = vpop.f32.mrb[0].mxu0
      %3906 = vmatprep.mubr.bf16.mxu0 0
      %3907 = vmatmul.mubr.bf16.gmra.mrb[0].mxu0 %v3804
      %v3908 = vpop.f32.mrb[0].mxu0
      %v3909 = vadd.f32 0.0, %v3908
      %v3910 = vpop.f32.mrb[0].mxu0
      %v3911 = vpop.f32.mrb[0].mxu0
      %v3912 = vadd.f32 0.0, %v3911
      %v3913 = vpop.f32.mrb[0].mxu0
      %3914 = vmatprep.mubr.bf16.mxu0 0
      %3915 = vmatmul.mubr.bf16.gmra.mrb[0].mxu0 %v3807
      %v3916 = vpop.f32.mrb[0].mxu0
      %v3917 = vadd.f32 0.0, %v3916
      %v3918 = vpop.f32.mrb[0].mxu0
      %v3919 = vpop.f32.mrb[0].mxu0
      %v3920 = vadd.f32 0.0, %v3919
      %v3921 = vpop.f32.mrb[0].mxu0
      %3922 = vmatprep.mubr.bf16.mxu0 0
      %3923 = vmatmul.mubr.bf16.gmra.mrb[0].mxu0 %v3810
      %v3924 = vpop.f32.mrb[0].mxu0
      %v3925 = vadd.f32 0.0, %v3924
      %v3926 = vpop.f32.mrb[0].mxu0
      %v3927 = vpop.f32.mrb[0].mxu0
      %v3928 = vadd.f32 0.0, %v3927
      %v3929 = vpop.f32.mrb[0].mxu0
      %3930 = vmatprep.mubr.bf16.mxu0 0
      %3931 = vmatmul.mubr.bf16.gmra.mrb[0].mxu0 %v3813
      %v3932 = vpop.f32.mrb[0].mxu0
      %v3933 = vadd.f32 0.0, %v3932
      %v3934 = vpop.f32.mrb[0].mxu0
      %v3935 = vpop.f32.mrb[0].mxu0
      %v3936 = vadd.f32 0.0, %v3935
      %v3937 = vpop.f32.mrb[0].mxu0
      %3938 = vmatprep.mubr.bf16.mxu0 0
      %3939 = vmatmul.mubr.bf16.gmra.mrb[0].mxu0 %v3816
      %v3940 = vpop.f32.mrb[0].mxu0
      %v3941 = vadd.f32 0.0, %v3940
      %v3942 = vpop.f32.mrb[0].mxu0
      %v3943 = vpop.f32.mrb[0].mxu0
      %v3944 = vadd.f32 0.0, %v3943
      %v3945 = vpop.f32.mrb[0].mxu0
      %3946 = vmatprep.mubr.bf16.mxu0 0
      %3947 = vmatmul.mubr.bf16.gmra.mrb[0].mxu0 %v3819
      %v3948 = vpop.f32.mrb[0].mxu0
      %v3949 = vadd.f32 0.0, %v3948
      %v3950 = vpop.f32.mrb[0].mxu0
      %v3951 = vpop.f32.mrb[0].mxu0
      %v3952 = vadd.f32 0.0, %v3951
      %v3953 = vpop.f32.mrb[0].mxu0
      %3954 = vmatprep.mubr.bf16.mxu0 0
      %3955 = vmatmul.mubr.bf16.gmra.mrb[0].mxu0 %v3822
      %v3956 = vpop.f32.mrb[0].mxu0
      %v3957 = vadd.f32 0.0, %v3956
      %v3958 = vpop.f32.mrb[0].mxu0
      %v3959 = vpop.f32.mrb[0].mxu0
      %v3960 = vadd.f32 0.0, %v3959
      %v3961 = vpop.f32.mrb[0].mxu0
      %3962 = vmatprep.mubr.bf16.mxu0 0
      %3963 = vmatmul.mubr.bf16.gmra.mrb[0].mxu0 %v3825
      %v3964 = vpop.f32.mrb[0].mxu0
      %v3965 = vadd.f32 0.0, %v3964
      %v3966 = vpop.f32.mrb[0].mxu0
      %v3967 = vpop.f32.mrb[0].mxu0
      %v3968 = vadd.f32 0.0, %v3967
      %v3969 = vpop.f32.mrb[0].mxu0
      %3970 = vmatprep.mubr.bf16.mxu0 0
      %3971 = vmatmul.mubr.bf16.gmra.mrb[0].mxu0 %v3828
      %v3972 = vpop.f32.mrb[0].mxu0
      %v3973 = vadd.f32 0.0, %v3972
      %v3974 = vpop.f32.mrb[0].mxu0
      %v3975 = vpop.f32.mrb[0].mxu0
      %v3976 = vadd.f32 0.0, %v3975
      %v3977 = vpop.f32.mrb[0].mxu0
      %3978 = vmatprep.mubr.bf16.mxu0 0
      %3979 = vmatmul.mubr.bf16.gmra.mrb[0].mxu0 %v3831
      %v3980 = vpop.f32.mrb[0].mxu0
      %v3981 = vadd.f32 0.0, %v3980
      %v3982 = vpop.f32.mrb[0].mxu0
      %v3983 = vpop.f32.mrb[0].mxu0
      %v3984 = vadd.f32 0.0, %v3983
      %v3985 = vpop.f32.mrb[0].mxu0
      %3986 = vmatprep.mubr.bf16.mxu0 0
      %3987 = vmatmul.mubr.bf16.gmra.mrb[0].mxu0 %v3834
      %v3988 = vpop.f32.mrb[0].mxu0
      %v3989 = vadd.f32 0.0, %v3988
      %v3990 = vpop.f32.mrb[0].mxu0
      %v3991 = vpop.f32.mrb[0].mxu0
      %v3992 = vadd.f32 0.0, %v3991
      %v3993 = vpop.f32.mrb[0].mxu0
      %3994 = vmatprep.mubr.bf16.mxu0 0
      %3995 = vmatmul.mubr.bf16.gmra.mrb[0].mxu0 %v3837
      %v3996 = vpop.f32.mrb[0].mxu0
      %v3997 = vadd.f32 0.0, %v3996
      %v3998 = vpop.f32.mrb[0].mxu0
      %v3999 = vpop.f32.mrb[0].mxu0
      %v4000 = vadd.f32 0.0, %v3999
      %v4001 = vpop.f32.mrb[0].mxu0
      %4002 = vdwg.mxu0
      %v4003 = vadd.f32 %v3634, %v3877
      %v4004 = vadd.f32 %v3635, %v3880
      %v4005 = vadd.f32 %v3636, %v3885
      %v4006 = vadd.f32 %v3637, %v3888
      %v4007 = vadd.f32 %v3638, %v3893
      %v4008 = vadd.f32 %v3639, %v3896
      %v4009 = vadd.f32 %v3640, %v3901
      %v4010 = vadd.f32 %v3641, %v3904
      %v4011 = vadd.f32 %v3642, %v3909
      %v4012 = vadd.f32 %v3643, %v3912
      %v4013 = vadd.f32 %v3644, %v3917
      %v4014 = vadd.f32 %v3645, %v3920
      %v4015 = vadd.f32 %v3646, %v3925
      %v4016 = vadd.f32 %v3647, %v3928
      %v4017 = vadd.f32 %v3648, %v3933
      %v4018 = vadd.f32 %v3649, %v3936
      %v4019 = vadd.f32 %v3650, %v3941
      %v4020 = vadd.f32 %v3651, %v3944
      %v4021 = vadd.f32 %v3652, %v3949
      %v4022 = vadd.f32 %v3653, %v3952
      %v4023 = vadd.f32 %v3654, %v3957
      %v4024 = vadd.f32 %v3655, %v3960
      %v4025 = vadd.f32 %v3656, %v3965
      %v4026 = vadd.f32 %v3657, %v3968
      %v4027 = vadd.f32 %v3658, %v3973
      %v4028 = vadd.f32 %v3659, %v3976
      %v4029 = vadd.f32 %v3660, %v3981
      %v4030 = vadd.f32 %v3661, %v3984
      %v4031 = vadd.f32 %v3662, %v3989
      %v4032 = vadd.f32 %v3663, %v3992
      %v4033 = vadd.f32 %v3664, %v3997
      %v4034 = vadd.f32 %v3665, %v4000
      %v4035 = vld [vmem:[%s3307] sm:$0xf]
      %v4036 = vld [vmem:[%s3307 + $0x4] sm:$0xf]
      %v4037 = vld [vmem:[%s3307 + $0x8] sm:$0x1]
      %v4038 = vld [vmem:[%s3307 + $0xc] sm:$0xf]
      %v4039 = vld [vmem:[%s3307 + $0x10] sm:$0xf]
      %v4040 = vld [vmem:[%s3307 + $0x14] sm:$0x1]
      %v4041 = vld [vmem:[%s3307 + $0x18] sm:$0xf]
      %v4042 = vld [vmem:[%s3307 + $0x1c] sm:$0xf]
      %v4043 = vld [vmem:[%s3307 + $0x20] sm:$0x1]
      %v4044 = vld [vmem:[%s3307 + $0x24] sm:$0xf]
      %v4045 = vld [vmem:[%s3307 + $0x28] sm:$0xf]
      %v4046 = vld [vmem:[%s3307 + $0x2c] sm:$0x1]
      %v4047 = vld [vmem:[%s3307 + $0x30] sm:$0xf]
      %v4048 = vld [vmem:[%s3307 + $0x34] sm:$0xf]
      %v4049 = vld [vmem:[%s3307 + $0x38] sm:$0x1]
      %v4050 = vld [vmem:[%s3307 + $0x3c] sm:$0xf]
      %v4051 = vld [vmem:[%s3307 + $0x40] sm:$0xf]
      %v4052 = vld [vmem:[%s3307 + $0x44] sm:$0x1]
      %v4053 = vld [vmem:[%s3307 + $0x48] sm:$0xf]
      %v4054 = vld [vmem:[%s3307 + $0x4c] sm:$0xf]
      %v4055 = vld [vmem:[%s3307 + $0x50] sm:$0x1]
      %v4056 = vld [vmem:[%s3307 + $0x54] sm:$0xf]
      %v4057 = vld [vmem:[%s3307 + $0x58] sm:$0xf]
      %v4058 = vld [vmem:[%s3307 + $0x5c] sm:$0x1]
      %v4059 = vld [vmem:[%s3307 + $0x60] sm:$0xf]
      %v4060 = vld [vmem:[%s3307 + $0x64] sm:$0xf]
      %v4061 = vld [vmem:[%s3307 + $0x68] sm:$0x1]
      %v4062 = vld [vmem:[%s3307 + $0x6c] sm:$0xf]
      %v4063 = vld [vmem:[%s3307 + $0x70] sm:$0xf]
      %v4064 = vld [vmem:[%s3307 + $0x74] sm:$0x1]
      %v4065 = vld [vmem:[%s3307 + $0x78] sm:$0xf]
      %v4066 = vld [vmem:[%s3307 + $0x7c] sm:$0xf]
      %v4067 = vld [vmem:[%s3307 + $0x80] sm:$0x1]
      %v4068 = vld [vmem:[%s3307 + $0x84] sm:$0xf]
      %v4069 = vld [vmem:[%s3307 + $0x88] sm:$0xf]
      %v4070 = vld [vmem:[%s3307 + $0x8c] sm:$0x1]
      %v4071 = vld [vmem:[%s3307 + $0x90] sm:$0xf]
      %v4072 = vld [vmem:[%s3307 + $0x94] sm:$0xf]
      %v4073 = vld [vmem:[%s3307 + $0x98] sm:$0x1]
      %v4074 = vld [vmem:[%s3307 + $0x9c] sm:$0xf]
      %v4075 = vld [vmem:[%s3307 + $0xa0] sm:$0xf]
      %v4076 = vld [vmem:[%s3307 + $0xa4] sm:$0x1]
      %v4077 = vld [vmem:[%s3307 + $0xa8] sm:$0xf]
      %v4078 = vld [vmem:[%s3307 + $0xac] sm:$0xf]
      %v4079 = vld [vmem:[%s3307 + $0xb0] sm:$0x1]
      %v4080 = vld [vmem:[%s3307 + $0xb4] sm:$0xf]
      %v4081 = vld [vmem:[%s3307 + $0xb8] sm:$0xf]
      %v4082 = vld [vmem:[%s3307 + $0xbc] sm:$0x1]
      %v4084 = vshrl.u32 %v4035, 16
      %v4086 = vrot.slane %v4084, 4
      %v4087 = vshll.u32 %v4035, 16
      %v4089 = vrot.slane %v4087, 5
      %v4090 = vor.u32 %v4086, %v4089
      %v4091 = vrot.slane %v4090, 4
      %v4093 = vshll.u32 %v4036, 16
      %v4095 = vrot.slane %v4093, 5
      %v4096 = vsel %vm939, %v4091, %v4095
      %v4097 = vshrl.u32 %v4036, 16
      %v4099 = vrot.slane %v4097, 4
      %v4100 = vor.u32 %v4099, %v4095
      %v4101 = vrot.slane %v4100, 4
      %v4103 = vshll.u32 %v4037, 16
      %v4105 = vrot.slane %v4103, 5
      %v4106 = vsel %vm939, %v4101, %v4105
      %v4108 = vshrl.u32 %v4038, 16
      %v4110 = vrot.slane %v4108, 4
      %v4111 = vshll.u32 %v4038, 16
      %v4113 = vrot.slane %v4111, 5
      %v4114 = vor.u32 %v4110, %v4113
      %v4115 = vrot.slane %v4114, 4
      %v4117 = vshll.u32 %v4039, 16
      %v4119 = vrot.slane %v4117, 5
      %v4120 = vsel %vm939, %v4115, %v4119
      %v4121 = vshrl.u32 %v4039, 16
      %v4123 = vrot.slane %v4121, 4
      %v4124 = vor.u32 %v4123, %v4119
      %v4125 = vrot.slane %v4124, 4
      %v4127 = vshll.u32 %v4040, 16
      %v4129 = vrot.slane %v4127, 5
      %v4130 = vsel %vm939, %v4125, %v4129
      %v4132 = vshrl.u32 %v4041, 16
      %v4134 = vrot.slane %v4132, 4
      %v4135 = vshll.u32 %v4041, 16
      %v4137 = vrot.slane %v4135, 5
      %v4138 = vor.u32 %v4134, %v4137
      %v4139 = vrot.slane %v4138, 4
      %v4141 = vshll.u32 %v4042, 16
      %v4143 = vrot.slane %v4141, 5
      %v4144 = vsel %vm939, %v4139, %v4143
      %v4145 = vshrl.u32 %v4042, 16
      %v4147 = vrot.slane %v4145, 4
      %v4148 = vor.u32 %v4147, %v4143
      %v4149 = vrot.slane %v4148, 4
      %v4151 = vshll.u32 %v4043, 16
      %v4153 = vrot.slane %v4151, 5
      %v4154 = vsel %vm939, %v4149, %v4153
      %v4156 = vshrl.u32 %v4044, 16
      %v4158 = vrot.slane %v4156, 4
      %v4159 = vshll.u32 %v4044, 16
      %v4161 = vrot.slane %v4159, 5
      %v4162 = vor.u32 %v4158, %v4161
      %v4163 = vrot.slane %v4162, 4
      %v4165 = vshll.u32 %v4045, 16
      %v4167 = vrot.slane %v4165, 5
      %v4168 = vsel %vm939, %v4163, %v4167
      %v4169 = vshrl.u32 %v4045, 16
      %v4171 = vrot.slane %v4169, 4
      %v4172 = vor.u32 %v4171, %v4167
      %v4173 = vrot.slane %v4172, 4
      %v4175 = vshll.u32 %v4046, 16
      %v4177 = vrot.slane %v4175, 5
      %v4178 = vsel %vm939, %v4173, %v4177
      %v4180 = vshrl.u32 %v4047, 16
      %v4182 = vrot.slane %v4180, 4
      %v4183 = vshll.u32 %v4047, 16
      %v4185 = vrot.slane %v4183, 5
      %v4186 = vor.u32 %v4182, %v4185
      %v4187 = vrot.slane %v4186, 4
      %v4189 = vshll.u32 %v4048, 16
      %v4191 = vrot.slane %v4189, 5
      %v4192 = vsel %vm939, %v4187, %v4191
      %v4193 = vshrl.u32 %v4048, 16
      %v4195 = vrot.slane %v4193, 4
      %v4196 = vor.u32 %v4195, %v4191
      %v4197 = vrot.slane %v4196, 4
      %v4199 = vshll.u32 %v4049, 16
      %v4201 = vrot.slane %v4199, 5
      %v4202 = vsel %vm939, %v4197, %v4201
      %v4204 = vshrl.u32 %v4050, 16
      %v4206 = vrot.slane %v4204, 4
      %v4207 = vshll.u32 %v4050, 16
      %v4209 = vrot.slane %v4207, 5
      %v4210 = vor.u32 %v4206, %v4209
      %v4211 = vrot.slane %v4210, 4
      %v4213 = vshll.u32 %v4051, 16
      %v4215 = vrot.slane %v4213, 5
      %v4216 = vsel %vm939, %v4211, %v4215
      %v4217 = vshrl.u32 %v4051, 16
      %v4219 = vrot.slane %v4217, 4
      %v4220 = vor.u32 %v4219, %v4215
      %v4221 = vrot.slane %v4220, 4
      %v4223 = vshll.u32 %v4052, 16
      %v4225 = vrot.slane %v4223, 5
      %v4226 = vsel %vm939, %v4221, %v4225
      %v4228 = vshrl.u32 %v4053, 16
      %v4230 = vrot.slane %v4228, 4
      %v4231 = vshll.u32 %v4053, 16
      %v4233 = vrot.slane %v4231, 5
      %v4234 = vor.u32 %v4230, %v4233
      %v4235 = vrot.slane %v4234, 4
      %v4237 = vshll.u32 %v4054, 16
      %v4239 = vrot.slane %v4237, 5
      %v4240 = vsel %vm939, %v4235, %v4239
      %v4241 = vshrl.u32 %v4054, 16
      %v4243 = vrot.slane %v4241, 4
      %v4244 = vor.u32 %v4243, %v4239
      %v4245 = vrot.slane %v4244, 4
      %v4247 = vshll.u32 %v4055, 16
      %v4249 = vrot.slane %v4247, 5
      %v4250 = vsel %vm939, %v4245, %v4249
      %v4252 = vshrl.u32 %v4056, 16
      %v4254 = vrot.slane %v4252, 4
      %v4255 = vshll.u32 %v4056, 16
      %v4257 = vrot.slane %v4255, 5
      %v4258 = vor.u32 %v4254, %v4257
      %v4259 = vrot.slane %v4258, 4
      %v4261 = vshll.u32 %v4057, 16
      %v4263 = vrot.slane %v4261, 5
      %v4264 = vsel %vm939, %v4259, %v4263
      %v4265 = vshrl.u32 %v4057, 16
      %v4267 = vrot.slane %v4265, 4
      %v4268 = vor.u32 %v4267, %v4263
      %v4269 = vrot.slane %v4268, 4
      %v4271 = vshll.u32 %v4058, 16
      %v4273 = vrot.slane %v4271, 5
      %v4274 = vsel %vm939, %v4269, %v4273
      %v4276 = vshrl.u32 %v4059, 16
      %v4278 = vrot.slane %v4276, 4
      %v4279 = vshll.u32 %v4059, 16
      %v4281 = vrot.slane %v4279, 5
      %v4282 = vor.u32 %v4278, %v4281
      %v4283 = vrot.slane %v4282, 4
      %v4285 = vshll.u32 %v4060, 16
      %v4287 = vrot.slane %v4285, 5
      %v4288 = vsel %vm939, %v4283, %v4287
      %v4289 = vshrl.u32 %v4060, 16
      %v4291 = vrot.slane %v4289, 4
      %v4292 = vor.u32 %v4291, %v4287
      %v4293 = vrot.slane %v4292, 4
      %v4295 = vshll.u32 %v4061, 16
      %v4297 = vrot.slane %v4295, 5
      %v4298 = vsel %vm939, %v4293, %v4297
      %v4300 = vshrl.u32 %v4062, 16
      %v4302 = vrot.slane %v4300, 4
      %v4303 = vshll.u32 %v4062, 16
      %v4305 = vrot.slane %v4303, 5
      %v4306 = vor.u32 %v4302, %v4305
      %v4307 = vrot.slane %v4306, 4
      %v4309 = vshll.u32 %v4063, 16
      %v4311 = vrot.slane %v4309, 5
      %v4312 = vsel %vm939, %v4307, %v4311
      %v4313 = vshrl.u32 %v4063, 16
      %v4315 = vrot.slane %v4313, 4
      %v4316 = vor.u32 %v4315, %v4311
      %v4317 = vrot.slane %v4316, 4
      %v4319 = vshll.u32 %v4064, 16
      %v4321 = vrot.slane %v4319, 5
      %v4322 = vsel %vm939, %v4317, %v4321
      %v4324 = vshrl.u32 %v4065, 16
      %v4326 = vrot.slane %v4324, 4
      %v4327 = vshll.u32 %v4065, 16
      %v4329 = vrot.slane %v4327, 5
      %v4330 = vor.u32 %v4326, %v4329
      %v4331 = vrot.slane %v4330, 4
      %v4333 = vshll.u32 %v4066, 16
      %v4335 = vrot.slane %v4333, 5
      %v4336 = vsel %vm939, %v4331, %v4335
      %v4337 = vshrl.u32 %v4066, 16
      %v4339 = vrot.slane %v4337, 4
      %v4340 = vor.u32 %v4339, %v4335
      %v4341 = vrot.slane %v4340, 4
      %v4343 = vshll.u32 %v4067, 16
      %v4345 = vrot.slane %v4343, 5
      %v4346 = vsel %vm939, %v4341, %v4345
      %v4348 = vshrl.u32 %v4068, 16
      %v4350 = vrot.slane %v4348, 4
      %v4351 = vshll.u32 %v4068, 16
      %v4353 = vrot.slane %v4351, 5
      %v4354 = vor.u32 %v4350, %v4353
      %v4355 = vrot.slane %v4354, 4
      %v4357 = vshll.u32 %v4069, 16
      %v4359 = vrot.slane %v4357, 5
      %v4360 = vsel %vm939, %v4355, %v4359
      %v4361 = vshrl.u32 %v4069, 16
      %v4363 = vrot.slane %v4361, 4
      %v4364 = vor.u32 %v4363, %v4359
      %v4365 = vrot.slane %v4364, 4
      %v4367 = vshll.u32 %v4070, 16
      %v4369 = vrot.slane %v4367, 5
      %v4370 = vsel %vm939, %v4365, %v4369
      %v4372 = vshrl.u32 %v4071, 16
      %v4374 = vrot.slane %v4372, 4
      %v4375 = vshll.u32 %v4071, 16
      %v4377 = vrot.slane %v4375, 5
      %v4378 = vor.u32 %v4374, %v4377
      %v4379 = vrot.slane %v4378, 4
      %v4381 = vshll.u32 %v4072, 16
      %v4383 = vrot.slane %v4381, 5
      %v4384 = vsel %vm939, %v4379, %v4383
      %v4385 = vshrl.u32 %v4072, 16
      %v4387 = vrot.slane %v4385, 4
      %v4388 = vor.u32 %v4387, %v4383
      %v4389 = vrot.slane %v4388, 4
      %v4391 = vshll.u32 %v4073, 16
      %v4393 = vrot.slane %v4391, 5
      %v4394 = vsel %vm939, %v4389, %v4393
      %v4396 = vshrl.u32 %v4074, 16
      %v4398 = vrot.slane %v4396, 4
      %v4399 = vshll.u32 %v4074, 16
      %v4401 = vrot.slane %v4399, 5
      %v4402 = vor.u32 %v4398, %v4401
      %v4403 = vrot.slane %v4402, 4
      %v4405 = vshll.u32 %v4075, 16
      %v4407 = vrot.slane %v4405, 5
      %v4408 = vsel %vm939, %v4403, %v4407
      %v4409 = vshrl.u32 %v4075, 16
      %v4411 = vrot.slane %v4409, 4
      %v4412 = vor.u32 %v4411, %v4407
      %v4413 = vrot.slane %v4412, 4
      %v4415 = vshll.u32 %v4076, 16
      %v4417 = vrot.slane %v4415, 5
      %v4418 = vsel %vm939, %v4413, %v4417
      %v4420 = vshrl.u32 %v4077, 16
      %v4422 = vrot.slane %v4420, 4
      %v4423 = vshll.u32 %v4077, 16
      %v4425 = vrot.slane %v4423, 5
      %v4426 = vor.u32 %v4422, %v4425
      %v4427 = vrot.slane %v4426, 4
      %v4429 = vshll.u32 %v4078, 16
      %v4431 = vrot.slane %v4429, 5
      %v4432 = vsel %vm939, %v4427, %v4431
      %v4433 = vshrl.u32 %v4078, 16
      %v4435 = vrot.slane %v4433, 4
      %v4436 = vor.u32 %v4435, %v4431
      %v4437 = vrot.slane %v4436, 4
      %v4439 = vshll.u32 %v4079, 16
      %v4441 = vrot.slane %v4439, 5
      %v4442 = vsel %vm939, %v4437, %v4441
      %v4444 = vshrl.u32 %v4080, 16
      %v4446 = vrot.slane %v4444, 4
      %v4447 = vshll.u32 %v4080, 16
      %v4449 = vrot.slane %v4447, 5
      %v4450 = vor.u32 %v4446, %v4449
      %v4451 = vrot.slane %v4450, 4
      %v4453 = vshll.u32 %v4081, 16
      %v4455 = vrot.slane %v4453, 5
      %v4456 = vsel %vm939, %v4451, %v4455
      %v4457 = vshrl.u32 %v4081, 16
      %v4459 = vrot.slane %v4457, 4
      %v4460 = vor.u32 %v4459, %v4455
      %v4461 = vrot.slane %v4460, 4
      %v4463 = vshll.u32 %v4082, 16
      %v4465 = vrot.slane %v4463, 5
      %v4466 = vsel %vm939, %v4461, %v4465
      %s4467 = scalar_lea.vmem %s2, 16
      %v4468 = vld [vmem:[%s4467] sm:$0x7]
      %v4469 = vunpack.c.l.b16 %v4096
      %v4470 = vunpack.c.l.b16 %v4106
      %v4471 = vunpack.c.l.b16 %v4120
      %v4472 = vunpack.c.l.b16 %v4130
      %v4473 = vunpack.c.l.b16 %v4144
      %v4474 = vunpack.c.l.b16 %v4154
      %v4475 = vunpack.c.l.b16 %v4168
      %v4476 = vunpack.c.l.b16 %v4178
      %v4477 = vunpack.c.l.b16 %v4192
      %v4478 = vunpack.c.l.b16 %v4202
      %v4479 = vunpack.c.l.b16 %v4216
      %v4480 = vunpack.c.l.b16 %v4226
      %v4481 = vunpack.c.l.b16 %v4240
      %v4482 = vunpack.c.l.b16 %v4250
      %v4483 = vunpack.c.l.b16 %v4264
      %v4484 = vunpack.c.l.b16 %v4274
      %v4485 = vunpack.c.l.b16 %v4288
      %v4486 = vunpack.c.l.b16 %v4298
      %v4487 = vunpack.c.l.b16 %v4312
      %v4488 = vunpack.c.l.b16 %v4322
      %v4489 = vunpack.c.l.b16 %v4336
      %v4490 = vunpack.c.l.b16 %v4346
      %v4491 = vunpack.c.l.b16 %v4360
      %v4492 = vunpack.c.l.b16 %v4370
      %v4493 = vunpack.c.l.b16 %v4384
      %v4494 = vunpack.c.l.b16 %v4394
      %v4495 = vunpack.c.l.b16 %v4408
      %v4496 = vunpack.c.l.b16 %v4418
      %v4497 = vunpack.c.l.b16 %v4432
      %v4498 = vunpack.c.l.b16 %v4442
      %v4499 = vunpack.c.l.b16 %v4456
      %v4500 = vunpack.c.l.b16 %v4466
      %v4501 = vpack.c.b16 %v4470, %v4469
      %v4502 = vpack.c.b16 %v4472, %v4471
      %v4503 = vpack.c.b16 %v4474, %v4473
      %v4504 = vpack.c.b16 %v4476, %v4475
      %v4505 = vpack.c.b16 %v4478, %v4477
      %v4506 = vpack.c.b16 %v4480, %v4479
      %v4507 = vpack.c.b16 %v4482, %v4481
      %v4508 = vpack.c.b16 %v4484, %v4483
      %v4509 = vpack.c.b16 %v4486, %v4485
      %v4510 = vpack.c.b16 %v4488, %v4487
      %v4511 = vpack.c.b16 %v4490, %v4489
      %v4512 = vpack.c.b16 %v4492, %v4491
      %v4513 = vpack.c.b16 %v4494, %v4493
      %v4514 = vpack.c.b16 %v4496, %v4495
      %v4515 = vpack.c.b16 %v4498, %v4497
      %v4516 = vpack.c.b16 %v4500, %v4499
      %v4518 = vsel %vm673, %v4501, 0
      %v4521 = vsel %vm673, %v4502, 0
      %v4524 = vsel %vm673, %v4503, 0
      %v4527 = vsel %vm673, %v4504, 0
      %v4530 = vsel %vm673, %v4505, 0
      %v4533 = vsel %vm673, %v4506, 0
      %v4536 = vsel %vm673, %v4507, 0
      %v4539 = vsel %vm673, %v4508, 0
      %v4542 = vsel %vm673, %v4509, 0
      %v4545 = vsel %vm673, %v4510, 0
      %v4548 = vsel %vm673, %v4511, 0
      %v4551 = vsel %vm673, %v4512, 0
      %v4554 = vsel %vm673, %v4513, 0
      %v4557 = vsel %vm673, %v4514, 0
      %v4560 = vsel %vm673, %v4515, 0
      %v4563 = vsel %vm673, %v4516, 0
      %v4566 = vand.u32 %v4468, %v724
      %4568 = vmatprep.subr.bf16.mxu0 0
      %4569 = vmatpush1.bf16.msra.mxu0 %v4566
      %4570 = vmatprep.subr.bf16.mxu0 0
      %4571 = vmatpush1.bf16.msra.mxu0 0
      %4572 = vmatprep.subr.bf16.mxu0 0
      %4573 = vmatpush1.bf16.msra.mxu0 0
      %4574 = vmatprep.subr.bf16.mxu0 0
      %4575 = vmatpush1.bf16.msra.mxu0 0
      %4576 = vmatprep.subr.bf16.mxu0 0
      %4577 = vmatpush1.bf16.msra.mxu0 0
      %4578 = vmatprep.subr.bf16.mxu0 0
      %4579 = vmatpush1.bf16.msra.mxu0 0
      %4580 = vmatprep.subr.bf16.mxu0 0
      %4581 = vmatpush1.bf16.msra.mxu0 0
      %4582 = vmatprep.subr.bf16.mxu0 0
      %4583 = vmatpush1.bf16.msra.mxu0 0
      %4584 = vmatprep.subr.bf16.mxu0 0
      %4585 = vmatpush1.bf16.msra.mxu0 0
      %4586 = vmatprep.subr.bf16.mxu0 0
      %4587 = vmatpush1.bf16.msra.mxu0 0
      %4588 = vmatprep.subr.bf16.mxu0 0
      %4589 = vmatpush1.bf16.msra.mxu0 0
      %4590 = vmatprep.subr.bf16.mxu0 0
      %4591 = vmatpush1.bf16.msra.mxu0 0
      %4592 = vmatprep.subr.bf16.mxu0 0
      %4593 = vmatpush1.bf16.msra.mxu0 0
      %4594 = vmatprep.subr.bf16.mxu0 0
      %4595 = vmatpush1.bf16.msra.mxu0 0
      %4596 = vmatprep.subr.bf16.mxu0 0
      %4597 = vmatpush1.bf16.msra.mxu0 0
      %4598 = vmatprep.subr.bf16.mxu0 0
      %4599 = vmatpush1.bf16.msra.mxu0 0
      %4600 = vmatprep.mubr.bf16.mxu0 0
      %4601 = vmatmul.mubr.bf16.gmra.mrb[0].mxu0 %v4518
      %v4602 = vpop.f32.mrb[0].mxu0
      %v4603 = vadd.f32 0.0, %v4602
      %v4604 = vpop.f32.mrb[0].mxu0
      %v4605 = vpop.f32.mrb[0].mxu0
      %v4606 = vadd.f32 0.0, %v4605
      %v4607 = vpop.f32.mrb[0].mxu0
      %4608 = vmatprep.mubr.bf16.mxu0 0
      %4609 = vmatmul.mubr.bf16.gmra.mrb[0].mxu0 %v4521
      %v4610 = vpop.f32.mrb[0].mxu0
      %v4611 = vadd.f32 0.0, %v4610
      %v4612 = vpop.f32.mrb[0].mxu0
      %v4613 = vpop.f32.mrb[0].mxu0
      %v4614 = vadd.f32 0.0, %v4613
      %v4615 = vpop.f32.mrb[0].mxu0
      %4616 = vmatprep.mubr.bf16.mxu0 0
      %4617 = vmatmul.mubr.bf16.gmra.mrb[0].mxu0 %v4524
      %v4618 = vpop.f32.mrb[0].mxu0
      %v4619 = vadd.f32 0.0, %v4618
      %v4620 = vpop.f32.mrb[0].mxu0
      %v4621 = vpop.f32.mrb[0].mxu0
      %v4622 = vadd.f32 0.0, %v4621
      %v4623 = vpop.f32.mrb[0].mxu0
      %4624 = vmatprep.mubr.bf16.mxu0 0
      %4625 = vmatmul.mubr.bf16.gmra.mrb[0].mxu0 %v4527
      %v4626 = vpop.f32.mrb[0].mxu0
      %v4627 = vadd.f32 0.0, %v4626
      %v4628 = vpop.f32.mrb[0].mxu0
      %v4629 = vpop.f32.mrb[0].mxu0
      %v4630 = vadd.f32 0.0, %v4629
      %v4631 = vpop.f32.mrb[0].mxu0
      %4632 = vmatprep.mubr.bf16.mxu0 0
      %4633 = vmatmul.mubr.bf16.gmra.mrb[0].mxu0 %v4530
      %v4634 = vpop.f32.mrb[0].mxu0
      %v4635 = vadd.f32 0.0, %v4634
      %v4636 = vpop.f32.mrb[0].mxu0
      %v4637 = vpop.f32.mrb[0].mxu0
      %v4638 = vadd.f32 0.0, %v4637
      %v4639 = vpop.f32.mrb[0].mxu0
      %4640 = vmatprep.mubr.bf16.mxu0 0
      %4641 = vmatmul.mubr.bf16.gmra.mrb[0].mxu0 %v4533
      %v4642 = vpop.f32.mrb[0].mxu0
      %v4643 = vadd.f32 0.0, %v4642
      %v4644 = vpop.f32.mrb[0].mxu0
      %v4645 = vpop.f32.mrb[0].mxu0
      %v4646 = vadd.f32 0.0, %v4645
      %v4647 = vpop.f32.mrb[0].mxu0
      %4648 = vmatprep.mubr.bf16.mxu0 0
      %4649 = vmatmul.mubr.bf16.gmra.mrb[0].mxu0 %v4536
      %v4650 = vpop.f32.mrb[0].mxu0
      %v4651 = vadd.f32 0.0, %v4650
      %v4652 = vpop.f32.mrb[0].mxu0
      %v4653 = vpop.f32.mrb[0].mxu0
      %v4654 = vadd.f32 0.0, %v4653
      %v4655 = vpop.f32.mrb[0].mxu0
      %4656 = vmatprep.mubr.bf16.mxu0 0
      %4657 = vmatmul.mubr.bf16.gmra.mrb[0].mxu0 %v4539
      %v4658 = vpop.f32.mrb[0].mxu0
      %v4659 = vadd.f32 0.0, %v4658
      %v4660 = vpop.f32.mrb[0].mxu0
      %v4661 = vpop.f32.mrb[0].mxu0
      %v4662 = vadd.f32 0.0, %v4661
      %v4663 = vpop.f32.mrb[0].mxu0
      %4664 = vmatprep.mubr.bf16.mxu0 0
      %4665 = vmatmul.mubr.bf16.gmra.mrb[0].mxu0 %v4542
      %v4666 = vpop.f32.mrb[0].mxu0
      %v4667 = vadd.f32 0.0, %v4666
      %v4668 = vpop.f32.mrb[0].mxu0
      %v4669 = vpop.f32.mrb[0].mxu0
      %v4670 = vadd.f32 0.0, %v4669
      %v4671 = vpop.f32.mrb[0].mxu0
      %4672 = vmatprep.mubr.bf16.mxu0 0
      %4673 = vmatmul.mubr.bf16.gmra.mrb[0].mxu0 %v4545
      %v4674 = vpop.f32.mrb[0].mxu0
      %v4675 = vadd.f32 0.0, %v4674
      %v4676 = vpop.f32.mrb[0].mxu0
      %v4677 = vpop.f32.mrb[0].mxu0
      %v4678 = vadd.f32 0.0, %v4677
      %v4679 = vpop.f32.mrb[0].mxu0
      %4680 = vmatprep.mubr.bf16.mxu0 0
      %4681 = vmatmul.mubr.bf16.gmra.mrb[0].mxu0 %v4548
      %v4682 = vpop.f32.mrb[0].mxu0
      %v4683 = vadd.f32 0.0, %v4682
      %v4684 = vpop.f32.mrb[0].mxu0
      %v4685 = vpop.f32.mrb[0].mxu0
      %v4686 = vadd.f32 0.0, %v4685
      %v4687 = vpop.f32.mrb[0].mxu0
      %4688 = vmatprep.mubr.bf16.mxu0 0
      %4689 = vmatmul.mubr.bf16.gmra.mrb[0].mxu0 %v4551
      %v4690 = vpop.f32.mrb[0].mxu0
      %v4691 = vadd.f32 0.0, %v4690
      %v4692 = vpop.f32.mrb[0].mxu0
      %v4693 = vpop.f32.mrb[0].mxu0
      %v4694 = vadd.f32 0.0, %v4693
      %v4695 = vpop.f32.mrb[0].mxu0
      %4696 = vmatprep.mubr.bf16.mxu0 0
      %4697 = vmatmul.mubr.bf16.gmra.mrb[0].mxu0 %v4554
      %v4698 = vpop.f32.mrb[0].mxu0
      %v4699 = vadd.f32 0.0, %v4698
      %v4700 = vpop.f32.mrb[0].mxu0
      %v4701 = vpop.f32.mrb[0].mxu0
      %v4702 = vadd.f32 0.0, %v4701
      %v4703 = vpop.f32.mrb[0].mxu0
      %4704 = vmatprep.mubr.bf16.mxu0 0
      %4705 = vmatmul.mubr.bf16.gmra.mrb[0].mxu0 %v4557
      %v4706 = vpop.f32.mrb[0].mxu0
      %v4707 = vadd.f32 0.0, %v4706
      %v4708 = vpop.f32.mrb[0].mxu0
      %v4709 = vpop.f32.mrb[0].mxu0
      %v4710 = vadd.f32 0.0, %v4709
      %v4711 = vpop.f32.mrb[0].mxu0
      %4712 = vmatprep.mubr.bf16.mxu0 0
      %4713 = vmatmul.mubr.bf16.gmra.mrb[0].mxu0 %v4560
      %v4714 = vpop.f32.mrb[0].mxu0
      %v4715 = vadd.f32 0.0, %v4714
      %v4716 = vpop.f32.mrb[0].mxu0
      %v4717 = vpop.f32.mrb[0].mxu0
      %v4718 = vadd.f32 0.0, %v4717
      %v4719 = vpop.f32.mrb[0].mxu0
      %4720 = vmatprep.mubr.bf16.mxu0 0
      %4721 = vmatmul.mubr.bf16.gmra.mrb[0].mxu0 %v4563
      %v4722 = vpop.f32.mrb[0].mxu0
      %v4723 = vadd.f32 0.0, %v4722
      %v4724 = vpop.f32.mrb[0].mxu0
      %v4725 = vpop.f32.mrb[0].mxu0
      %v4726 = vadd.f32 0.0, %v4725
      %v4727 = vpop.f32.mrb[0].mxu0
      %4728 = vdwg.mxu0
      %v4729 = vadd.f32 %v4003, %v4603
      %v4730 = vadd.f32 %v4004, %v4606
      %v4731 = vadd.f32 %v4005, %v4611
      %v4732 = vadd.f32 %v4006, %v4614
      %v4733 = vadd.f32 %v4007, %v4619
      %v4734 = vadd.f32 %v4008, %v4622
      %v4735 = vadd.f32 %v4009, %v4627
      %v4736 = vadd.f32 %v4010, %v4630
      %v4737 = vadd.f32 %v4011, %v4635
      %v4738 = vadd.f32 %v4012, %v4638
      %v4739 = vadd.f32 %v4013, %v4643
      %v4740 = vadd.f32 %v4014, %v4646
      %v4741 = vadd.f32 %v4015, %v4651
      %v4742 = vadd.f32 %v4016, %v4654
      %v4743 = vadd.f32 %v4017, %v4659
      %v4744 = vadd.f32 %v4018, %v4662
      %v4745 = vadd.f32 %v4019, %v4667
      %v4746 = vadd.f32 %v4020, %v4670
      %v4747 = vadd.f32 %v4021, %v4675
      %v4748 = vadd.f32 %v4022, %v4678
      %v4749 = vadd.f32 %v4023, %v4683
      %v4750 = vadd.f32 %v4024, %v4686
      %v4751 = vadd.f32 %v4025, %v4691
      %v4752 = vadd.f32 %v4026, %v4694
      %v4753 = vadd.f32 %v4027, %v4699
      %v4754 = vadd.f32 %v4028, %v4702
      %v4755 = vadd.f32 %v4029, %v4707
      %v4756 = vadd.f32 %v4030, %v4710
      %v4757 = vadd.f32 %v4031, %v4715
      %v4758 = vadd.f32 %v4032, %v4718
      %v4759 = vadd.f32 %v4033, %v4723
      %v4760 = vadd.f32 %v4034, %v4726
      %v4761 = vld [vmem:[%s3666] sm:$0xf]
      %v4762 = vld [vmem:[%s3666 + $0x4] sm:$0xf]
      %v4763 = vld [vmem:[%s3666 + $0x8] sm:$0x1]
      %v4764 = vld [vmem:[%s3666 + $0xc] sm:$0xf]
      %v4765 = vld [vmem:[%s3666 + $0x10] sm:$0xf]
      %v4766 = vld [vmem:[%s3666 + $0x14] sm:$0x1]
      %v4767 = vld [vmem:[%s3666 + $0x18] sm:$0xf]
      %v4768 = vld [vmem:[%s3666 + $0x1c] sm:$0xf]
      %v4769 = vld [vmem:[%s3666 + $0x20] sm:$0x1]
      %v4770 = vld [vmem:[%s3666 + $0x24] sm:$0xf]
      %v4771 = vld [vmem:[%s3666 + $0x28] sm:$0xf]
      %v4772 = vld [vmem:[%s3666 + $0x2c] sm:$0x1]
      %v4773 = vld [vmem:[%s3666 + $0x30] sm:$0xf]
      %v4774 = vld [vmem:[%s3666 + $0x34] sm:$0xf]
      %v4775 = vld [vmem:[%s3666 + $0x38] sm:$0x1]
      %v4776 = vld [vmem:[%s3666 + $0x3c] sm:$0xf]
      %v4777 = vld [vmem:[%s3666 + $0x40] sm:$0xf]
      %v4778 = vld [vmem:[%s3666 + $0x44] sm:$0x1]
      %v4779 = vld [vmem:[%s3666 + $0x48] sm:$0xf]
      %v4780 = vld [vmem:[%s3666 + $0x4c] sm:$0xf]
      %v4781 = vld [vmem:[%s3666 + $0x50] sm:$0x1]
      %v4782 = vld [vmem:[%s3666 + $0x54] sm:$0xf]
      %v4783 = vld [vmem:[%s3666 + $0x58] sm:$0xf]
      %v4784 = vld [vmem:[%s3666 + $0x5c] sm:$0x1]
      %v4785 = vld [vmem:[%s3666 + $0x60] sm:$0xf]
      %v4786 = vld [vmem:[%s3666 + $0x64] sm:$0xf]
      %v4787 = vld [vmem:[%s3666 + $0x68] sm:$0x1]
      %v4788 = vld [vmem:[%s3666 + $0x6c] sm:$0xf]
      %v4789 = vld [vmem:[%s3666 + $0x70] sm:$0xf]
      %v4790 = vld [vmem:[%s3666 + $0x74] sm:$0x1]
      %v4791 = vld [vmem:[%s3666 + $0x78] sm:$0xf]
      %v4792 = vld [vmem:[%s3666 + $0x7c] sm:$0xf]
      %v4793 = vld [vmem:[%s3666 + $0x80] sm:$0x1]
      %v4794 = vld [vmem:[%s3666 + $0x84] sm:$0xf]
      %v4795 = vld [vmem:[%s3666 + $0x88] sm:$0xf]
      %v4796 = vld [vmem:[%s3666 + $0x8c] sm:$0x1]
      %v4797 = vld [vmem:[%s3666 + $0x90] sm:$0xf]
      %v4798 = vld [vmem:[%s3666 + $0x94] sm:$0xf]
      %v4799 = vld [vmem:[%s3666 + $0x98] sm:$0x1]
      %v4800 = vld [vmem:[%s3666 + $0x9c] sm:$0xf]
      %v4801 = vld [vmem:[%s3666 + $0xa0] sm:$0xf]
      %v4802 = vld [vmem:[%s3666 + $0xa4] sm:$0x1]
      %v4803 = vld [vmem:[%s3666 + $0xa8] sm:$0xf]
      %v4804 = vld [vmem:[%s3666 + $0xac] sm:$0xf]
      %v4805 = vld [vmem:[%s3666 + $0xb0] sm:$0x1]
      %v4806 = vld [vmem:[%s3666 + $0xb4] sm:$0xf]
      %v4807 = vld [vmem:[%s3666 + $0xb8] sm:$0xf]
      %v4808 = vld [vmem:[%s3666 + $0xbc] sm:$0x1]
      %v4810 = vshrl.u32 %v4761, 16
      %v4812 = vrot.slane %v4810, 4
      %v4813 = vshll.u32 %v4761, 16
      %v4815 = vrot.slane %v4813, 5
      %v4816 = vor.u32 %v4812, %v4815
      %v4817 = vrot.slane %v4816, 4
      %v4819 = vshll.u32 %v4762, 16
      %v4821 = vrot.slane %v4819, 5
      %v4822 = vsel %vm939, %v4817, %v4821
      %v4823 = vshrl.u32 %v4762, 16
      %v4825 = vrot.slane %v4823, 4
      %v4826 = vor.u32 %v4825, %v4821
      %v4827 = vrot.slane %v4826, 4
      %v4829 = vshll.u32 %v4763, 16
      %v4831 = vrot.slane %v4829, 5
      %v4832 = vsel %vm939, %v4827, %v4831
      %v4834 = vshrl.u32 %v4764, 16
      %v4836 = vrot.slane %v4834, 4
      %v4837 = vshll.u32 %v4764, 16
      %v4839 = vrot.slane %v4837, 5
      %v4840 = vor.u32 %v4836, %v4839
      %v4841 = vrot.slane %v4840, 4
      %v4843 = vshll.u32 %v4765, 16
      %v4845 = vrot.slane %v4843, 5
      %v4846 = vsel %vm939, %v4841, %v4845
      %v4847 = vshrl.u32 %v4765, 16
      %v4849 = vrot.slane %v4847, 4
      %v4850 = vor.u32 %v4849, %v4845
      %v4851 = vrot.slane %v4850, 4
      %v4853 = vshll.u32 %v4766, 16
      %v4855 = vrot.slane %v4853, 5
      %v4856 = vsel %vm939, %v4851, %v4855
      %v4858 = vshrl.u32 %v4767, 16
      %v4860 = vrot.slane %v4858, 4
      %v4861 = vshll.u32 %v4767, 16
      %v4863 = vrot.slane %v4861, 5
      %v4864 = vor.u32 %v4860, %v4863
      %v4865 = vrot.slane %v4864, 4
      %v4867 = vshll.u32 %v4768, 16
      %v4869 = vrot.slane %v4867, 5
      %v4870 = vsel %vm939, %v4865, %v4869
      %v4871 = vshrl.u32 %v4768, 16
      %v4873 = vrot.slane %v4871, 4
      %v4874 = vor.u32 %v4873, %v4869
      %v4875 = vrot.slane %v4874, 4
      %v4877 = vshll.u32 %v4769, 16
      %v4879 = vrot.slane %v4877, 5
      %v4880 = vsel %vm939, %v4875, %v4879
      %v4882 = vshrl.u32 %v4770, 16
      %v4884 = vrot.slane %v4882, 4
      %v4885 = vshll.u32 %v4770, 16
      %v4887 = vrot.slane %v4885, 5
      %v4888 = vor.u32 %v4884, %v4887
      %v4889 = vrot.slane %v4888, 4
      %v4891 = vshll.u32 %v4771, 16
      %v4893 = vrot.slane %v4891, 5
      %v4894 = vsel %vm939, %v4889, %v4893
      %v4895 = vshrl.u32 %v4771, 16
      %v4897 = vrot.slane %v4895, 4
      %v4898 = vor.u32 %v4897, %v4893
      %v4899 = vrot.slane %v4898, 4
      %v4901 = vshll.u32 %v4772, 16
      %v4903 = vrot.slane %v4901, 5
      %v4904 = vsel %vm939, %v4899, %v4903
      %v4906 = vshrl.u32 %v4773, 16
      %v4908 = vrot.slane %v4906, 4
      %v4909 = vshll.u32 %v4773, 16
      %v4911 = vrot.slane %v4909, 5
      %v4912 = vor.u32 %v4908, %v4911
      %v4913 = vrot.slane %v4912, 4
      %v4915 = vshll.u32 %v4774, 16
      %v4917 = vrot.slane %v4915, 5
      %v4918 = vsel %vm939, %v4913, %v4917
      %v4919 = vshrl.u32 %v4774, 16
      %v4921 = vrot.slane %v4919, 4
      %v4922 = vor.u32 %v4921, %v4917
      %v4923 = vrot.slane %v4922, 4
      %v4925 = vshll.u32 %v4775, 16
      %v4927 = vrot.slane %v4925, 5
      %v4928 = vsel %vm939, %v4923, %v4927
      %v4930 = vshrl.u32 %v4776, 16
      %v4932 = vrot.slane %v4930, 4
      %v4933 = vshll.u32 %v4776, 16
      %v4935 = vrot.slane %v4933, 5
      %v4936 = vor.u32 %v4932, %v4935
      %v4937 = vrot.slane %v4936, 4
      %v4939 = vshll.u32 %v4777, 16
      %v4941 = vrot.slane %v4939, 5
      %v4942 = vsel %vm939, %v4937, %v4941
      %v4943 = vshrl.u32 %v4777, 16
      %v4945 = vrot.slane %v4943, 4
      %v4946 = vor.u32 %v4945, %v4941
      %v4947 = vrot.slane %v4946, 4
      %v4949 = vshll.u32 %v4778, 16
      %v4951 = vrot.slane %v4949, 5
      %v4952 = vsel %vm939, %v4947, %v4951
      %v4954 = vshrl.u32 %v4779, 16
      %v4956 = vrot.slane %v4954, 4
      %v4957 = vshll.u32 %v4779, 16
      %v4959 = vrot.slane %v4957, 5
      %v4960 = vor.u32 %v4956, %v4959
      %v4961 = vrot.slane %v4960, 4
      %v4963 = vshll.u32 %v4780, 16
      %v4965 = vrot.slane %v4963, 5
      %v4966 = vsel %vm939, %v4961, %v4965
      %v4967 = vshrl.u32 %v4780, 16
      %v4969 = vrot.slane %v4967, 4
      %v4970 = vor.u32 %v4969, %v4965
      %v4971 = vrot.slane %v4970, 4
      %v4973 = vshll.u32 %v4781, 16
      %v4975 = vrot.slane %v4973, 5
      %v4976 = vsel %vm939, %v4971, %v4975
      %v4978 = vshrl.u32 %v4782, 16
      %v4980 = vrot.slane %v4978, 4
      %v4981 = vshll.u32 %v4782, 16
      %v4983 = vrot.slane %v4981, 5
      %v4984 = vor.u32 %v4980, %v4983
      %v4985 = vrot.slane %v4984, 4
      %v4987 = vshll.u32 %v4783, 16
      %v4989 = vrot.slane %v4987, 5
      %v4990 = vsel %vm939, %v4985, %v4989
      %v4991 = vshrl.u32 %v4783, 16
      %v4993 = vrot.slane %v4991, 4
      %v4994 = vor.u32 %v4993, %v4989
      %v4995 = vrot.slane %v4994, 4
      %v4997 = vshll.u32 %v4784, 16
      %v4999 = vrot.slane %v4997, 5
      %v5000 = vsel %vm939, %v4995, %v4999
      %v5002 = vshrl.u32 %v4785, 16
      %v5004 = vrot.slane %v5002, 4
      %v5005 = vshll.u32 %v4785, 16
      %v5007 = vrot.slane %v5005, 5
      %v5008 = vor.u32 %v5004, %v5007
      %v5009 = vrot.slane %v5008, 4
      %v5011 = vshll.u32 %v4786, 16
      %v5013 = vrot.slane %v5011, 5
      %v5014 = vsel %vm939, %v5009, %v5013
      %v5015 = vshrl.u32 %v4786, 16
      %v5017 = vrot.slane %v5015, 4
      %v5018 = vor.u32 %v5017, %v5013
      %v5019 = vrot.slane %v5018, 4
      %v5021 = vshll.u32 %v4787, 16
      %v5023 = vrot.slane %v5021, 5
      %v5024 = vsel %vm939, %v5019, %v5023
      %v5026 = vshrl.u32 %v4788, 16
      %v5028 = vrot.slane %v5026, 4
      %v5029 = vshll.u32 %v4788, 16
      %v5031 = vrot.slane %v5029, 5
      %v5032 = vor.u32 %v5028, %v5031
      %v5033 = vrot.slane %v5032, 4
      %v5035 = vshll.u32 %v4789, 16
      %v5037 = vrot.slane %v5035, 5
      %v5038 = vsel %vm939, %v5033, %v5037
      %v5039 = vshrl.u32 %v4789, 16
      %v5041 = vrot.slane %v5039, 4
      %v5042 = vor.u32 %v5041, %v5037
      %v5043 = vrot.slane %v5042, 4
      %v5045 = vshll.u32 %v4790, 16
      %v5047 = vrot.slane %v5045, 5
      %v5048 = vsel %vm939, %v5043, %v5047
      %v5050 = vshrl.u32 %v4791, 16
      %v5052 = vrot.slane %v5050, 4
      %v5053 = vshll.u32 %v4791, 16
      %v5055 = vrot.slane %v5053, 5
      %v5056 = vor.u32 %v5052, %v5055
      %v5057 = vrot.slane %v5056, 4
      %v5059 = vshll.u32 %v4792, 16
      %v5061 = vrot.slane %v5059, 5
      %v5062 = vsel %vm939, %v5057, %v5061
      %v5063 = vshrl.u32 %v4792, 16
      %v5065 = vrot.slane %v5063, 4
      %v5066 = vor.u32 %v5065, %v5061
      %v5067 = vrot.slane %v5066, 4
      %v5069 = vshll.u32 %v4793, 16
      %v5071 = vrot.slane %v5069, 5
      %v5072 = vsel %vm939, %v5067, %v5071
      %v5074 = vshrl.u32 %v4794, 16
      %v5076 = vrot.slane %v5074, 4
      %v5077 = vshll.u32 %v4794, 16
      %v5079 = vrot.slane %v5077, 5
      %v5080 = vor.u32 %v5076, %v5079
      %v5081 = vrot.slane %v5080, 4
      %v5083 = vshll.u32 %v4795, 16
      %v5085 = vrot.slane %v5083, 5
      %v5086 = vsel %vm939, %v5081, %v5085
      %v5087 = vshrl.u32 %v4795, 16
      %v5089 = vrot.slane %v5087, 4
      %v5090 = vor.u32 %v5089, %v5085
      %v5091 = vrot.slane %v5090, 4
      %v5093 = vshll.u32 %v4796, 16
      %v5095 = vrot.slane %v5093, 5
      %v5096 = vsel %vm939, %v5091, %v5095
      %v5098 = vshrl.u32 %v4797, 16
      %v5100 = vrot.slane %v5098, 4
      %v5101 = vshll.u32 %v4797, 16
      %v5103 = vrot.slane %v5101, 5
      %v5104 = vor.u32 %v5100, %v5103
      %v5105 = vrot.slane %v5104, 4
      %v5107 = vshll.u32 %v4798, 16
      %v5109 = vrot.slane %v5107, 5
      %v5110 = vsel %vm939, %v5105, %v5109
      %v5111 = vshrl.u32 %v4798, 16
      %v5113 = vrot.slane %v5111, 4
      %v5114 = vor.u32 %v5113, %v5109
      %v5115 = vrot.slane %v5114, 4
      %v5117 = vshll.u32 %v4799, 16
      %v5119 = vrot.slane %v5117, 5
      %v5120 = vsel %vm939, %v5115, %v5119
      %v5122 = vshrl.u32 %v4800, 16
      %v5124 = vrot.slane %v5122, 4
      %v5125 = vshll.u32 %v4800, 16
      %v5127 = vrot.slane %v5125, 5
      %v5128 = vor.u32 %v5124, %v5127
      %v5129 = vrot.slane %v5128, 4
      %v5131 = vshll.u32 %v4801, 16
      %v5133 = vrot.slane %v5131, 5
      %v5134 = vsel %vm939, %v5129, %v5133
      %v5135 = vshrl.u32 %v4801, 16
      %v5137 = vrot.slane %v5135, 4
      %v5138 = vor.u32 %v5137, %v5133
      %v5139 = vrot.slane %v5138, 4
      %v5141 = vshll.u32 %v4802, 16
      %v5143 = vrot.slane %v5141, 5
      %v5144 = vsel %vm939, %v5139, %v5143
      %v5146 = vshrl.u32 %v4803, 16
      %v5148 = vrot.slane %v5146, 4
      %v5149 = vshll.u32 %v4803, 16
      %v5151 = vrot.slane %v5149, 5
      %v5152 = vor.u32 %v5148, %v5151
      %v5153 = vrot.slane %v5152, 4
      %v5155 = vshll.u32 %v4804, 16
      %v5157 = vrot.slane %v5155, 5
      %v5158 = vsel %vm939, %v5153, %v5157
      %v5159 = vshrl.u32 %v4804, 16
      %v5161 = vrot.slane %v5159, 4
      %v5162 = vor.u32 %v5161, %v5157
      %v5163 = vrot.slane %v5162, 4
      %v5165 = vshll.u32 %v4805, 16
      %v5167 = vrot.slane %v5165, 5
      %v5168 = vsel %vm939, %v5163, %v5167
      %v5170 = vshrl.u32 %v4806, 16
      %v5172 = vrot.slane %v5170, 4
      %v5173 = vshll.u32 %v4806, 16
      %v5175 = vrot.slane %v5173, 5
      %v5176 = vor.u32 %v5172, %v5175
      %v5177 = vrot.slane %v5176, 4
      %v5179 = vshll.u32 %v4807, 16
      %v5181 = vrot.slane %v5179, 5
      %v5182 = vsel %vm939, %v5177, %v5181
      %v5183 = vshrl.u32 %v4807, 16
      %v5185 = vrot.slane %v5183, 4
      %v5186 = vor.u32 %v5185, %v5181
      %v5187 = vrot.slane %v5186, 4
      %v5189 = vshll.u32 %v4808, 16
      %v5191 = vrot.slane %v5189, 5
      %v5192 = vsel %vm939, %v5187, %v5191
      %v5193 = vld [vmem:[%s4467] sm:$0xc]
      %v5194 = vunpack.c.l.b16 %v4822
      %v5195 = vunpack.c.l.b16 %v4832
      %v5196 = vunpack.c.l.b16 %v4846
      %v5197 = vunpack.c.l.b16 %v4856
      %v5198 = vunpack.c.l.b16 %v4870
      %v5199 = vunpack.c.l.b16 %v4880
      %v5200 = vunpack.c.l.b16 %v4894
      %v5201 = vunpack.c.l.b16 %v4904
      %v5202 = vunpack.c.l.b16 %v4918
      %v5203 = vunpack.c.l.b16 %v4928
      %v5204 = vunpack.c.l.b16 %v4942
      %v5205 = vunpack.c.l.b16 %v4952
      %v5206 = vunpack.c.l.b16 %v4966
      %v5207 = vunpack.c.l.b16 %v4976
      %v5208 = vunpack.c.l.b16 %v4990
      %v5209 = vunpack.c.l.b16 %v5000
      %v5210 = vunpack.c.l.b16 %v5014
      %v5211 = vunpack.c.l.b16 %v5024
      %v5212 = vunpack.c.l.b16 %v5038
      %v5213 = vunpack.c.l.b16 %v5048
      %v5214 = vunpack.c.l.b16 %v5062
      %v5215 = vunpack.c.l.b16 %v5072
      %v5216 = vunpack.c.l.b16 %v5086
      %v5217 = vunpack.c.l.b16 %v5096
      %v5218 = vunpack.c.l.b16 %v5110
      %v5219 = vunpack.c.l.b16 %v5120
      %v5220 = vunpack.c.l.b16 %v5134
      %v5221 = vunpack.c.l.b16 %v5144
      %v5222 = vunpack.c.l.b16 %v5158
      %v5223 = vunpack.c.l.b16 %v5168
      %v5224 = vunpack.c.l.b16 %v5182
      %v5225 = vunpack.c.l.b16 %v5192
      %v5226 = vpack.c.b16 %v5195, %v5194
      %v5227 = vpack.c.b16 %v5197, %v5196
      %v5228 = vpack.c.b16 %v5199, %v5198
      %v5229 = vpack.c.b16 %v5201, %v5200
      %v5230 = vpack.c.b16 %v5203, %v5202
      %v5231 = vpack.c.b16 %v5205, %v5204
      %v5232 = vpack.c.b16 %v5207, %v5206
      %v5233 = vpack.c.b16 %v5209, %v5208
      %v5234 = vpack.c.b16 %v5211, %v5210
      %v5235 = vpack.c.b16 %v5213, %v5212
      %v5236 = vpack.c.b16 %v5215, %v5214
      %v5237 = vpack.c.b16 %v5217, %v5216
      %v5238 = vpack.c.b16 %v5219, %v5218
      %v5239 = vpack.c.b16 %v5221, %v5220
      %v5240 = vpack.c.b16 %v5223, %v5222
      %v5241 = vpack.c.b16 %v5225, %v5224
      %v5243 = vunpack.c.l.b16 %v5193
      %v5244 = vpack.c.b16 %v5243, %v5243
      %v5246 = vshrl.u32 %v5244, 16
      %v5248 = vrot.slane %v5246, 2
      %v5249 = vshll.u32 %v5244, 16
      %v5251 = vrot.slane %v5249, 3
      %v5252 = vor.u32 %v5248, %v5251
      %v5254 = vsel %vm376, %v5226, 0
      %v5257 = vsel %vm376, %v5227, 0
      %v5260 = vsel %vm376, %v5228, 0
      %v5263 = vsel %vm376, %v5229, 0
      %v5266 = vsel %vm376, %v5230, 0
      %v5269 = vsel %vm376, %v5231, 0
      %v5272 = vsel %vm376, %v5232, 0
      %v5275 = vsel %vm376, %v5233, 0
      %v5278 = vsel %vm376, %v5234, 0
      %v5281 = vsel %vm376, %v5235, 0
      %v5284 = vsel %vm376, %v5236, 0
      %v5287 = vsel %vm376, %v5237, 0
      %v5290 = vsel %vm376, %v5238, 0
      %v5293 = vsel %vm376, %v5239, 0
      %v5296 = vsel %vm376, %v5240, 0
      %v5299 = vsel %vm376, %v5241, 0
      %v5302 = vand.u32 %v5252, %v428
      %5304 = vmatprep.subr.bf16.mxu0 0
      %5305 = vmatpush1.bf16.msra.mxu0 %v5302
      %5306 = vmatprep.subr.bf16.mxu0 0
      %5307 = vmatpush1.bf16.msra.mxu0 0
      %5308 = vmatprep.subr.bf16.mxu0 0
      %5309 = vmatpush1.bf16.msra.mxu0 0
      %5310 = vmatprep.subr.bf16.mxu0 0
      %5311 = vmatpush1.bf16.msra.mxu0 0
      %5312 = vmatprep.subr.bf16.mxu0 0
      %5313 = vmatpush1.bf16.msra.mxu0 0
      %5314 = vmatprep.subr.bf16.mxu0 0
      %5315 = vmatpush1.bf16.msra.mxu0 0
      %5316 = vmatprep.subr.bf16.mxu0 0
      %5317 = vmatpush1.bf16.msra.mxu0 0
      %5318 = vmatprep.subr.bf16.mxu0 0
      %5319 = vmatpush1.bf16.msra.mxu0 0
      %5320 = vmatprep.subr.bf16.mxu0 0
      %5321 = vmatpush1.bf16.msra.mxu0 0
      %5322 = vmatprep.subr.bf16.mxu0 0
      %5323 = vmatpush1.bf16.msra.mxu0 0
      %5324 = vmatprep.subr.bf16.mxu0 0
      %5325 = vmatpush1.bf16.msra.mxu0 0
      %5326 = vmatprep.subr.bf16.mxu0 0
      %5327 = vmatpush1.bf16.msra.mxu0 0
      %5328 = vmatprep.subr.bf16.mxu0 0
      %5329 = vmatpush1.bf16.msra.mxu0 0
      %5330 = vmatprep.subr.bf16.mxu0 0
      %5331 = vmatpush1.bf16.msra.mxu0 0
      %5332 = vmatprep.subr.bf16.mxu0 0
      %5333 = vmatpush1.bf16.msra.mxu0 0
      %5334 = vmatprep.subr.bf16.mxu0 0
      %5335 = vmatpush1.bf16.msra.mxu0 0
      %5336 = vmatprep.mubr.bf16.mxu0 0
      %5337 = vmatmul.mubr.bf16.gmra.mrb[0].mxu0 %v5254
      %v5338 = vpop.f32.mrb[0].mxu0
      %v5339 = vadd.f32 0.0, %v5338
      %v5340 = vpop.f32.mrb[0].mxu0
      %v5341 = vpop.f32.mrb[0].mxu0
      %v5342 = vadd.f32 0.0, %v5341
      %v5343 = vpop.f32.mrb[0].mxu0
      %5344 = vmatprep.mubr.bf16.mxu0 0
      %5345 = vmatmul.mubr.bf16.gmra.mrb[0].mxu0 %v5257
      %v5346 = vpop.f32.mrb[0].mxu0
      %v5347 = vadd.f32 0.0, %v5346
      %v5348 = vpop.f32.mrb[0].mxu0
      %v5349 = vpop.f32.mrb[0].mxu0
      %v5350 = vadd.f32 0.0, %v5349
      %v5351 = vpop.f32.mrb[0].mxu0
      %5352 = vmatprep.mubr.bf16.mxu0 0
      %5353 = vmatmul.mubr.bf16.gmra.mrb[0].mxu0 %v5260
      %v5354 = vpop.f32.mrb[0].mxu0
      %v5355 = vadd.f32 0.0, %v5354
      %v5356 = vpop.f32.mrb[0].mxu0
      %v5357 = vpop.f32.mrb[0].mxu0
      %v5358 = vadd.f32 0.0, %v5357
      %v5359 = vpop.f32.mrb[0].mxu0
      %5360 = vmatprep.mubr.bf16.mxu0 0
      %5361 = vmatmul.mubr.bf16.gmra.mrb[0].mxu0 %v5263
      %v5362 = vpop.f32.mrb[0].mxu0
      %v5363 = vadd.f32 0.0, %v5362
      %v5364 = vpop.f32.mrb[0].mxu0
      %v5365 = vpop.f32.mrb[0].mxu0
      %v5366 = vadd.f32 0.0, %v5365
      %v5367 = vpop.f32.mrb[0].mxu0
      %5368 = vmatprep.mubr.bf16.mxu0 0
      %5369 = vmatmul.mubr.bf16.gmra.mrb[0].mxu0 %v5266
      %v5370 = vpop.f32.mrb[0].mxu0
      %v5371 = vadd.f32 0.0, %v5370
      %v5372 = vpop.f32.mrb[0].mxu0
      %v5373 = vpop.f32.mrb[0].mxu0
      %v5374 = vadd.f32 0.0, %v5373
      %v5375 = vpop.f32.mrb[0].mxu0
      %5376 = vmatprep.mubr.bf16.mxu0 0
      %5377 = vmatmul.mubr.bf16.gmra.mrb[0].mxu0 %v5269
      %v5378 = vpop.f32.mrb[0].mxu0
      %v5379 = vadd.f32 0.0, %v5378
      %v5380 = vpop.f32.mrb[0].mxu0
      %v5381 = vpop.f32.mrb[0].mxu0
      %v5382 = vadd.f32 0.0, %v5381
      %v5383 = vpop.f32.mrb[0].mxu0
      %5384 = vmatprep.mubr.bf16.mxu0 0
      %5385 = vmatmul.mubr.bf16.gmra.mrb[0].mxu0 %v5272
      %v5386 = vpop.f32.mrb[0].mxu0
      %v5387 = vadd.f32 0.0, %v5386
      %v5388 = vpop.f32.mrb[0].mxu0
      %v5389 = vpop.f32.mrb[0].mxu0
      %v5390 = vadd.f32 0.0, %v5389
      %v5391 = vpop.f32.mrb[0].mxu0
      %5392 = vmatprep.mubr.bf16.mxu0 0
      %5393 = vmatmul.mubr.bf16.gmra.mrb[0].mxu0 %v5275
      %v5394 = vpop.f32.mrb[0].mxu0
      %v5395 = vadd.f32 0.0, %v5394
      %v5396 = vpop.f32.mrb[0].mxu0
      %v5397 = vpop.f32.mrb[0].mxu0
      %v5398 = vadd.f32 0.0, %v5397
      %v5399 = vpop.f32.mrb[0].mxu0
      %5400 = vmatprep.mubr.bf16.mxu0 0
      %5401 = vmatmul.mubr.bf16.gmra.mrb[0].mxu0 %v5278
      %v5402 = vpop.f32.mrb[0].mxu0
      %v5403 = vadd.f32 0.0, %v5402
      %v5404 = vpop.f32.mrb[0].mxu0
      %v5405 = vpop.f32.mrb[0].mxu0
      %v5406 = vadd.f32 0.0, %v5405
      %v5407 = vpop.f32.mrb[0].mxu0
      %5408 = vmatprep.mubr.bf16.mxu0 0
      %5409 = vmatmul.mubr.bf16.gmra.mrb[0].mxu0 %v5281
      %v5410 = vpop.f32.mrb[0].mxu0
      %v5411 = vadd.f32 0.0, %v5410
      %v5412 = vpop.f32.mrb[0].mxu0
      %v5413 = vpop.f32.mrb[0].mxu0
      %v5414 = vadd.f32 0.0, %v5413
      %v5415 = vpop.f32.mrb[0].mxu0
      %5416 = vmatprep.mubr.bf16.mxu0 0
      %5417 = vmatmul.mubr.bf16.gmra.mrb[0].mxu0 %v5284
      %v5418 = vpop.f32.mrb[0].mxu0
      %v5419 = vadd.f32 0.0, %v5418
      %v5420 = vpop.f32.mrb[0].mxu0
      %v5421 = vpop.f32.mrb[0].mxu0
      %v5422 = vadd.f32 0.0, %v5421
      %v5423 = vpop.f32.mrb[0].mxu0
      %5424 = vmatprep.mubr.bf16.mxu0 0
      %5425 = vmatmul.mubr.bf16.gmra.mrb[0].mxu0 %v5287
      %v5426 = vpop.f32.mrb[0].mxu0
      %v5427 = vadd.f32 0.0, %v5426
      %v5428 = vpop.f32.mrb[0].mxu0
      %v5429 = vpop.f32.mrb[0].mxu0
      %v5430 = vadd.f32 0.0, %v5429
      %v5431 = vpop.f32.mrb[0].mxu0
      %5432 = vmatprep.mubr.bf16.mxu0 0
      %5433 = vmatmul.mubr.bf16.gmra.mrb[0].mxu0 %v5290
      %v5434 = vpop.f32.mrb[0].mxu0
      %v5435 = vadd.f32 0.0, %v5434
      %v5436 = vpop.f32.mrb[0].mxu0
      %v5437 = vpop.f32.mrb[0].mxu0
      %v5438 = vadd.f32 0.0, %v5437
      %v5439 = vpop.f32.mrb[0].mxu0
      %5440 = vmatprep.mubr.bf16.mxu0 0
      %5441 = vmatmul.mubr.bf16.gmra.mrb[0].mxu0 %v5293
      %v5442 = vpop.f32.mrb[0].mxu0
      %v5443 = vadd.f32 0.0, %v5442
      %v5444 = vpop.f32.mrb[0].mxu0
      %v5445 = vpop.f32.mrb[0].mxu0
      %v5446 = vadd.f32 0.0, %v5445
      %v5447 = vpop.f32.mrb[0].mxu0
      %5448 = vmatprep.mubr.bf16.mxu0 0
      %5449 = vmatmul.mubr.bf16.gmra.mrb[0].mxu0 %v5296
      %v5450 = vpop.f32.mrb[0].mxu0
      %v5451 = vadd.f32 0.0, %v5450
      %v5452 = vpop.f32.mrb[0].mxu0
      %v5453 = vpop.f32.mrb[0].mxu0
      %v5454 = vadd.f32 0.0, %v5453
      %v5455 = vpop.f32.mrb[0].mxu0
      %5456 = vmatprep.mubr.bf16.mxu0 0
      %5457 = vmatmul.mubr.bf16.gmra.mrb[0].mxu0 %v5299
      %v5458 = vpop.f32.mrb[0].mxu0
      %v5459 = vadd.f32 0.0, %v5458
      %v5460 = vpop.f32.mrb[0].mxu0
      %v5461 = vpop.f32.mrb[0].mxu0
      %v5462 = vadd.f32 0.0, %v5461
      %v5463 = vpop.f32.mrb[0].mxu0
      %5464 = vdwg.mxu0
      %v5465 = vadd.f32 %v4729, %v5339
      %v5466 = vadd.f32 %v4730, %v5342
      %v5467 = vadd.f32 %v4731, %v5347
      %v5468 = vadd.f32 %v4732, %v5350
      %v5469 = vadd.f32 %v4733, %v5355
      %v5470 = vadd.f32 %v4734, %v5358
      %v5471 = vadd.f32 %v4735, %v5363
      %v5472 = vadd.f32 %v4736, %v5366
      %v5473 = vadd.f32 %v4737, %v5371
      %v5474 = vadd.f32 %v4738, %v5374
      %v5475 = vadd.f32 %v4739, %v5379
      %v5476 = vadd.f32 %v4740, %v5382
      %v5477 = vadd.f32 %v4741, %v5387
      %v5478 = vadd.f32 %v4742, %v5390
      %v5479 = vadd.f32 %v4743, %v5395
      %v5480 = vadd.f32 %v4744, %v5398
      %v5481 = vadd.f32 %v4745, %v5403
      %v5482 = vadd.f32 %v4746, %v5406
      %v5483 = vadd.f32 %v4747, %v5411
      %v5484 = vadd.f32 %v4748, %v5414
      %v5485 = vadd.f32 %v4749, %v5419
      %v5486 = vadd.f32 %v4750, %v5422
      %v5487 = vadd.f32 %v4751, %v5427
      %v5488 = vadd.f32 %v4752, %v5430
      %v5489 = vadd.f32 %v4753, %v5435
      %v5490 = vadd.f32 %v4754, %v5438
      %v5491 = vadd.f32 %v4755, %v5443
      %v5492 = vadd.f32 %v4756, %v5446
      %v5493 = vadd.f32 %v4757, %v5451
      %v5494 = vadd.f32 %v4758, %v5454
      %v5495 = vadd.f32 %v4759, %v5459
      %v5496 = vadd.f32 %v4760, %v5462
      %v5497 = vld [vmem:[%s3307] sm:$0xe]
      %v5498 = vld [vmem:[%s3307 + $0xc] sm:$0xe]
      %v5499 = vld [vmem:[%s3307 + $0x18] sm:$0xe]
      %v5500 = vld [vmem:[%s3307 + $0x24] sm:$0xe]
      %v5501 = vld [vmem:[%s3307 + $0x30] sm:$0xe]
      %v5502 = vld [vmem:[%s3307 + $0x3c] sm:$0xe]
      %v5503 = vld [vmem:[%s3307 + $0x48] sm:$0xe]
      %v5504 = vld [vmem:[%s3307 + $0x54] sm:$0xe]
      %v5505 = vld [vmem:[%s3307 + $0x60] sm:$0xe]
      %v5506 = vld [vmem:[%s3307 + $0x6c] sm:$0xe]
      %v5507 = vld [vmem:[%s3307 + $0x78] sm:$0xe]
      %v5508 = vld [vmem:[%s3307 + $0x84] sm:$0xe]
      %v5509 = vld [vmem:[%s3307 + $0x90] sm:$0xe]
      %v5510 = vld [vmem:[%s3307 + $0x9c] sm:$0xe]
      %v5511 = vld [vmem:[%s3307 + $0xa8] sm:$0xe]
      %v5512 = vld [vmem:[%s3307 + $0xb4] sm:$0xe]
      %v5561 = vrot.slane %v5497, 5
      %v5562 = vrot.slane %v5561, 4
      %v5563 = vrot.slane %v4036, 5
      %v5564 = vsel %vm2420, %v5562, %v5563
      %v5565 = vrot.slane %v5563, 4
      %v5566 = vrot.slane %v4037, 5
      %v5567 = vsel %vm2420, %v5565, %v5566
      %v5568 = vrot.slane %v5498, 5
      %v5569 = vrot.slane %v5568, 4
      %v5570 = vrot.slane %v4039, 5
      %v5571 = vsel %vm2420, %v5569, %v5570
      %v5572 = vrot.slane %v5570, 4
      %v5573 = vrot.slane %v4040, 5
      %v5574 = vsel %vm2420, %v5572, %v5573
      %v5575 = vrot.slane %v5499, 5
      %v5576 = vrot.slane %v5575, 4
      %v5577 = vrot.slane %v4042, 5
      %v5578 = vsel %vm2420, %v5576, %v5577
      %v5579 = vrot.slane %v5577, 4
      %v5580 = vrot.slane %v4043, 5
      %v5581 = vsel %vm2420, %v5579, %v5580
      %v5582 = vrot.slane %v5500, 5
      %v5583 = vrot.slane %v5582, 4
      %v5584 = vrot.slane %v4045, 5
      %v5585 = vsel %vm2420, %v5583, %v5584
      %v5586 = vrot.slane %v5584, 4
      %v5587 = vrot.slane %v4046, 5
      %v5588 = vsel %vm2420, %v5586, %v5587
      %v5589 = vrot.slane %v5501, 5
      %v5590 = vrot.slane %v5589, 4
      %v5591 = vrot.slane %v4048, 5
      %v5592 = vsel %vm2420, %v5590, %v5591
      %v5593 = vrot.slane %v5591, 4
      %v5594 = vrot.slane %v4049, 5
      %v5595 = vsel %vm2420, %v5593, %v5594
      %v5596 = vrot.slane %v5502, 5
      %v5597 = vrot.slane %v5596, 4
      %v5598 = vrot.slane %v4051, 5
      %v5599 = vsel %vm2420, %v5597, %v5598
      %v5600 = vrot.slane %v5598, 4
      %v5601 = vrot.slane %v4052, 5
      %v5602 = vsel %vm2420, %v5600, %v5601
      %v5603 = vrot.slane %v5503, 5
      %v5604 = vrot.slane %v5603, 4
      %v5605 = vrot.slane %v4054, 5
      %v5606 = vsel %vm2420, %v5604, %v5605
      %v5607 = vrot.slane %v5605, 4
      %v5608 = vrot.slane %v4055, 5
      %v5609 = vsel %vm2420, %v5607, %v5608
      %v5610 = vrot.slane %v5504, 5
      %v5611 = vrot.slane %v5610, 4
      %v5612 = vrot.slane %v4057, 5
      %v5613 = vsel %vm2420, %v5611, %v5612
      %v5614 = vrot.slane %v5612, 4
      %v5615 = vrot.slane %v4058, 5
      %v5616 = vsel %vm2420, %v5614, %v5615
      %v5617 = vrot.slane %v5505, 5
      %v5618 = vrot.slane %v5617, 4
      %v5619 = vrot.slane %v4060, 5
      %v5620 = vsel %vm2420, %v5618, %v5619
      %v5621 = vrot.slane %v5619, 4
      %v5622 = vrot.slane %v4061, 5
      %v5623 = vsel %vm2420, %v5621, %v5622
      %v5624 = vrot.slane %v5506, 5
      %v5625 = vrot.slane %v5624, 4
      %v5626 = vrot.slane %v4063, 5
      %v5627 = vsel %vm2420, %v5625, %v5626
      %v5628 = vrot.slane %v5626, 4
      %v5629 = vrot.slane %v4064, 5
      %v5630 = vsel %vm2420, %v5628, %v5629
      %v5631 = vrot.slane %v5507, 5
      %v5632 = vrot.slane %v5631, 4
      %v5633 = vrot.slane %v4066, 5
      %v5634 = vsel %vm2420, %v5632, %v5633
      %v5635 = vrot.slane %v5633, 4
      %v5636 = vrot.slane %v4067, 5
      %v5637 = vsel %vm2420, %v5635, %v5636
      %v5638 = vrot.slane %v5508, 5
      %v5639 = vrot.slane %v5638, 4
      %v5640 = vrot.slane %v4069, 5
      %v5641 = vsel %vm2420, %v5639, %v5640
      %v5642 = vrot.slane %v5640, 4
      %v5643 = vrot.slane %v4070, 5
      %v5644 = vsel %vm2420, %v5642, %v5643
      %v5645 = vrot.slane %v5509, 5
      %v5646 = vrot.slane %v5645, 4
      %v5647 = vrot.slane %v4072, 5
      %v5648 = vsel %vm2420, %v5646, %v5647
      %v5649 = vrot.slane %v5647, 4
      %v5650 = vrot.slane %v4073, 5
      %v5651 = vsel %vm2420, %v5649, %v5650
      %v5652 = vrot.slane %v5510, 5
      %v5653 = vrot.slane %v5652, 4
      %v5654 = vrot.slane %v4075, 5
      %v5655 = vsel %vm2420, %v5653, %v5654
      %v5656 = vrot.slane %v5654, 4
      %v5657 = vrot.slane %v4076, 5
      %v5658 = vsel %vm2420, %v5656, %v5657
      %v5659 = vrot.slane %v5511, 5
      %v5660 = vrot.slane %v5659, 4
      %v5661 = vrot.slane %v4078, 5
      %v5662 = vsel %vm2420, %v5660, %v5661
      %v5663 = vrot.slane %v5661, 4
      %v5664 = vrot.slane %v4079, 5
      %v5665 = vsel %vm2420, %v5663, %v5664
      %v5666 = vrot.slane %v5512, 5
      %v5667 = vrot.slane %v5666, 4
      %v5668 = vrot.slane %v4081, 5
      %v5669 = vsel %vm2420, %v5667, %v5668
      %v5670 = vrot.slane %v5668, 4
      %v5671 = vrot.slane %v4082, 5
      %v5672 = vsel %vm2420, %v5670, %v5671
      %s5673 = scalar_lea.vmem %s2, 20
      %v5674 = vld [vmem:[%s5673] sm:$0x7]
      %v5675 = vunpack.c.l.b16 %v5564
      %v5676 = vunpack.c.l.b16 %v5567
      %v5677 = vunpack.c.l.b16 %v5571
      %v5678 = vunpack.c.l.b16 %v5574
      %v5679 = vunpack.c.l.b16 %v5578
      %v5680 = vunpack.c.l.b16 %v5581
      %v5681 = vunpack.c.l.b16 %v5585
      %v5682 = vunpack.c.l.b16 %v5588
      %v5683 = vunpack.c.l.b16 %v5592
      %v5684 = vunpack.c.l.b16 %v5595
      %v5685 = vunpack.c.l.b16 %v5599
      %v5686 = vunpack.c.l.b16 %v5602
      %v5687 = vunpack.c.l.b16 %v5606
      %v5688 = vunpack.c.l.b16 %v5609
      %v5689 = vunpack.c.l.b16 %v5613
      %v5690 = vunpack.c.l.b16 %v5616
      %v5691 = vunpack.c.l.b16 %v5620
      %v5692 = vunpack.c.l.b16 %v5623
      %v5693 = vunpack.c.l.b16 %v5627
      %v5694 = vunpack.c.l.b16 %v5630
      %v5695 = vunpack.c.l.b16 %v5634
      %v5696 = vunpack.c.l.b16 %v5637
      %v5697 = vunpack.c.l.b16 %v5641
      %v5698 = vunpack.c.l.b16 %v5644
      %v5699 = vunpack.c.l.b16 %v5648
      %v5700 = vunpack.c.l.b16 %v5651
      %v5701 = vunpack.c.l.b16 %v5655
      %v5702 = vunpack.c.l.b16 %v5658
      %v5703 = vunpack.c.l.b16 %v5662
      %v5704 = vunpack.c.l.b16 %v5665
      %v5705 = vunpack.c.l.b16 %v5669
      %v5706 = vunpack.c.l.b16 %v5672
      %v5707 = vpack.c.b16 %v5676, %v5675
      %v5708 = vpack.c.b16 %v5678, %v5677
      %v5709 = vpack.c.b16 %v5680, %v5679
      %v5710 = vpack.c.b16 %v5682, %v5681
      %v5711 = vpack.c.b16 %v5684, %v5683
      %v5712 = vpack.c.b16 %v5686, %v5685
      %v5713 = vpack.c.b16 %v5688, %v5687
      %v5714 = vpack.c.b16 %v5690, %v5689
      %v5715 = vpack.c.b16 %v5692, %v5691
      %v5716 = vpack.c.b16 %v5694, %v5693
      %v5717 = vpack.c.b16 %v5696, %v5695
      %v5718 = vpack.c.b16 %v5698, %v5697
      %v5719 = vpack.c.b16 %v5700, %v5699
      %v5720 = vpack.c.b16 %v5702, %v5701
      %v5721 = vpack.c.b16 %v5704, %v5703
      %v5722 = vpack.c.b16 %v5706, %v5705
      %v5724 = vsel %vm673, %v5707, 0
      %v5727 = vsel %vm673, %v5708, 0
      %v5730 = vsel %vm673, %v5709, 0
      %v5733 = vsel %vm673, %v5710, 0
      %v5736 = vsel %vm673, %v5711, 0
      %v5739 = vsel %vm673, %v5712, 0
      %v5742 = vsel %vm673, %v5713, 0
      %v5745 = vsel %vm673, %v5714, 0
      %v5748 = vsel %vm673, %v5715, 0
      %v5751 = vsel %vm673, %v5716, 0
      %v5754 = vsel %vm673, %v5717, 0
      %v5757 = vsel %vm673, %v5718, 0
      %v5760 = vsel %vm673, %v5719, 0
      %v5763 = vsel %vm673, %v5720, 0
      %v5766 = vsel %vm673, %v5721, 0
      %v5769 = vsel %vm673, %v5722, 0
      %v5772 = vand.u32 %v5674, %v724
      %5774 = vmatprep.subr.bf16.mxu0 0
      %5775 = vmatpush1.bf16.msra.mxu0 %v5772
      %5776 = vmatprep.subr.bf16.mxu0 0
      %5777 = vmatpush1.bf16.msra.mxu0 0
      %5778 = vmatprep.subr.bf16.mxu0 0
      %5779 = vmatpush1.bf16.msra.mxu0 0
      %5780 = vmatprep.subr.bf16.mxu0 0
      %5781 = vmatpush1.bf16.msra.mxu0 0
      %5782 = vmatprep.subr.bf16.mxu0 0
      %5783 = vmatpush1.bf16.msra.mxu0 0
      %5784 = vmatprep.subr.bf16.mxu0 0
      %5785 = vmatpush1.bf16.msra.mxu0 0
      %5786 = vmatprep.subr.bf16.mxu0 0
      %5787 = vmatpush1.bf16.msra.mxu0 0
      %5788 = vmatprep.subr.bf16.mxu0 0
      %5789 = vmatpush1.bf16.msra.mxu0 0
      %5790 = vmatprep.subr.bf16.mxu0 0
      %5791 = vmatpush1.bf16.msra.mxu0 0
      %5792 = vmatprep.subr.bf16.mxu0 0
      %5793 = vmatpush1.bf16.msra.mxu0 0
      %5794 = vmatprep.subr.bf16.mxu0 0
      %5795 = vmatpush1.bf16.msra.mxu0 0
      %5796 = vmatprep.subr.bf16.mxu0 0
      %5797 = vmatpush1.bf16.msra.mxu0 0
      %5798 = vmatprep.subr.bf16.mxu0 0
      %5799 = vmatpush1.bf16.msra.mxu0 0
      %5800 = vmatprep.subr.bf16.mxu0 0
      %5801 = vmatpush1.bf16.msra.mxu0 0
      %5802 = vmatprep.subr.bf16.mxu0 0
      %5803 = vmatpush1.bf16.msra.mxu0 0
      %5804 = vmatprep.subr.bf16.mxu0 0
      %5805 = vmatpush1.bf16.msra.mxu0 0
      %5806 = vmatprep.mubr.bf16.mxu0 0
      %5807 = vmatmul.mubr.bf16.gmra.mrb[0].mxu0 %v5724
      %v5808 = vpop.f32.mrb[0].mxu0
      %v5809 = vadd.f32 0.0, %v5808
      %v5810 = vpop.f32.mrb[0].mxu0
      %v5811 = vpop.f32.mrb[0].mxu0
      %v5812 = vadd.f32 0.0, %v5811
      %v5813 = vpop.f32.mrb[0].mxu0
      %5814 = vmatprep.mubr.bf16.mxu0 0
      %5815 = vmatmul.mubr.bf16.gmra.mrb[0].mxu0 %v5727
      %v5816 = vpop.f32.mrb[0].mxu0
      %v5817 = vadd.f32 0.0, %v5816
      %v5818 = vpop.f32.mrb[0].mxu0
      %v5819 = vpop.f32.mrb[0].mxu0
      %v5820 = vadd.f32 0.0, %v5819
      %v5821 = vpop.f32.mrb[0].mxu0
      %5822 = vmatprep.mubr.bf16.mxu0 0
      %5823 = vmatmul.mubr.bf16.gmra.mrb[0].mxu0 %v5730
      %v5824 = vpop.f32.mrb[0].mxu0
      %v5825 = vadd.f32 0.0, %v5824
      %v5826 = vpop.f32.mrb[0].mxu0
      %v5827 = vpop.f32.mrb[0].mxu0
      %v5828 = vadd.f32 0.0, %v5827
      %v5829 = vpop.f32.mrb[0].mxu0
      %5830 = vmatprep.mubr.bf16.mxu0 0
      %5831 = vmatmul.mubr.bf16.gmra.mrb[0].mxu0 %v5733
      %v5832 = vpop.f32.mrb[0].mxu0
      %v5833 = vadd.f32 0.0, %v5832
      %v5834 = vpop.f32.mrb[0].mxu0
      %v5835 = vpop.f32.mrb[0].mxu0
      %v5836 = vadd.f32 0.0, %v5835
      %v5837 = vpop.f32.mrb[0].mxu0
      %5838 = vmatprep.mubr.bf16.mxu0 0
      %5839 = vmatmul.mubr.bf16.gmra.mrb[0].mxu0 %v5736
      %v5840 = vpop.f32.mrb[0].mxu0
      %v5841 = vadd.f32 0.0, %v5840
      %v5842 = vpop.f32.mrb[0].mxu0
      %v5843 = vpop.f32.mrb[0].mxu0
      %v5844 = vadd.f32 0.0, %v5843
      %v5845 = vpop.f32.mrb[0].mxu0
      %5846 = vmatprep.mubr.bf16.mxu0 0
      %5847 = vmatmul.mubr.bf16.gmra.mrb[0].mxu0 %v5739
      %v5848 = vpop.f32.mrb[0].mxu0
      %v5849 = vadd.f32 0.0, %v5848
      %v5850 = vpop.f32.mrb[0].mxu0
      %v5851 = vpop.f32.mrb[0].mxu0
      %v5852 = vadd.f32 0.0, %v5851
      %v5853 = vpop.f32.mrb[0].mxu0
      %5854 = vmatprep.mubr.bf16.mxu0 0
      %5855 = vmatmul.mubr.bf16.gmra.mrb[0].mxu0 %v5742
      %v5856 = vpop.f32.mrb[0].mxu0
      %v5857 = vadd.f32 0.0, %v5856
      %v5858 = vpop.f32.mrb[0].mxu0
      %v5859 = vpop.f32.mrb[0].mxu0
      %v5860 = vadd.f32 0.0, %v5859
      %v5861 = vpop.f32.mrb[0].mxu0
      %5862 = vmatprep.mubr.bf16.mxu0 0
      %5863 = vmatmul.mubr.bf16.gmra.mrb[0].mxu0 %v5745
      %v5864 = vpop.f32.mrb[0].mxu0
      %v5865 = vadd.f32 0.0, %v5864
      %v5866 = vpop.f32.mrb[0].mxu0
      %v5867 = vpop.f32.mrb[0].mxu0
      %v5868 = vadd.f32 0.0, %v5867
      %v5869 = vpop.f32.mrb[0].mxu0
      %5870 = vmatprep.mubr.bf16.mxu0 0
      %5871 = vmatmul.mubr.bf16.gmra.mrb[0].mxu0 %v5748
      %v5872 = vpop.f32.mrb[0].mxu0
      %v5873 = vadd.f32 0.0, %v5872
      %v5874 = vpop.f32.mrb[0].mxu0
      %v5875 = vpop.f32.mrb[0].mxu0
      %v5876 = vadd.f32 0.0, %v5875
      %v5877 = vpop.f32.mrb[0].mxu0
      %5878 = vmatprep.mubr.bf16.mxu0 0
      %5879 = vmatmul.mubr.bf16.gmra.mrb[0].mxu0 %v5751
      %v5880 = vpop.f32.mrb[0].mxu0
      %v5881 = vadd.f32 0.0, %v5880
      %v5882 = vpop.f32.mrb[0].mxu0
      %v5883 = vpop.f32.mrb[0].mxu0
      %v5884 = vadd.f32 0.0, %v5883
      %v5885 = vpop.f32.mrb[0].mxu0
      %5886 = vmatprep.mubr.bf16.mxu0 0
      %5887 = vmatmul.mubr.bf16.gmra.mrb[0].mxu0 %v5754
      %v5888 = vpop.f32.mrb[0].mxu0
      %v5889 = vadd.f32 0.0, %v5888
      %v5890 = vpop.f32.mrb[0].mxu0
      %v5891 = vpop.f32.mrb[0].mxu0
      %v5892 = vadd.f32 0.0, %v5891
      %v5893 = vpop.f32.mrb[0].mxu0
      %5894 = vmatprep.mubr.bf16.mxu0 0
      %5895 = vmatmul.mubr.bf16.gmra.mrb[0].mxu0 %v5757
      %v5896 = vpop.f32.mrb[0].mxu0
      %v5897 = vadd.f32 0.0, %v5896
      %v5898 = vpop.f32.mrb[0].mxu0
      %v5899 = vpop.f32.mrb[0].mxu0
      %v5900 = vadd.f32 0.0, %v5899
      %v5901 = vpop.f32.mrb[0].mxu0
      %5902 = vmatprep.mubr.bf16.mxu0 0
      %5903 = vmatmul.mubr.bf16.gmra.mrb[0].mxu0 %v5760
      %v5904 = vpop.f32.mrb[0].mxu0
      %v5905 = vadd.f32 0.0, %v5904
      %v5906 = vpop.f32.mrb[0].mxu0
      %v5907 = vpop.f32.mrb[0].mxu0
      %v5908 = vadd.f32 0.0, %v5907
      %v5909 = vpop.f32.mrb[0].mxu0
      %5910 = vmatprep.mubr.bf16.mxu0 0
      %5911 = vmatmul.mubr.bf16.gmra.mrb[0].mxu0 %v5763
      %v5912 = vpop.f32.mrb[0].mxu0
      %v5913 = vadd.f32 0.0, %v5912
      %v5914 = vpop.f32.mrb[0].mxu0
      %v5915 = vpop.f32.mrb[0].mxu0
      %v5916 = vadd.f32 0.0, %v5915
      %v5917 = vpop.f32.mrb[0].mxu0
      %5918 = vmatprep.mubr.bf16.mxu0 0
      %5919 = vmatmul.mubr.bf16.gmra.mrb[0].mxu0 %v5766
      %v5920 = vpop.f32.mrb[0].mxu0
      %v5921 = vadd.f32 0.0, %v5920
      %v5922 = vpop.f32.mrb[0].mxu0
      %v5923 = vpop.f32.mrb[0].mxu0
      %v5924 = vadd.f32 0.0, %v5923
      %v5925 = vpop.f32.mrb[0].mxu0
      %5926 = vmatprep.mubr.bf16.mxu0 0
      %5927 = vmatmul.mubr.bf16.gmra.mrb[0].mxu0 %v5769
      %v5928 = vpop.f32.mrb[0].mxu0
      %v5929 = vadd.f32 0.0, %v5928
      %v5930 = vpop.f32.mrb[0].mxu0
      %v5931 = vpop.f32.mrb[0].mxu0
      %v5932 = vadd.f32 0.0, %v5931
      %v5933 = vpop.f32.mrb[0].mxu0
      %5934 = vdwg.mxu0
      %v5935 = vadd.f32 %v5465, %v5809
      %v5936 = vadd.f32 %v5466, %v5812
      %v5937 = vadd.f32 %v5467, %v5817
      %v5938 = vadd.f32 %v5468, %v5820
      %v5939 = vadd.f32 %v5469, %v5825
      %v5940 = vadd.f32 %v5470, %v5828
      %v5941 = vadd.f32 %v5471, %v5833
      %v5942 = vadd.f32 %v5472, %v5836
      %v5943 = vadd.f32 %v5473, %v5841
      %v5944 = vadd.f32 %v5474, %v5844
      %v5945 = vadd.f32 %v5475, %v5849
      %v5946 = vadd.f32 %v5476, %v5852
      %v5947 = vadd.f32 %v5477, %v5857
      %v5948 = vadd.f32 %v5478, %v5860
      %v5949 = vadd.f32 %v5479, %v5865
      %v5950 = vadd.f32 %v5480, %v5868
      %v5951 = vadd.f32 %v5481, %v5873
      %v5952 = vadd.f32 %v5482, %v5876
      %v5953 = vadd.f32 %v5483, %v5881
      %v5954 = vadd.f32 %v5484, %v5884
      %v5955 = vadd.f32 %v5485, %v5889
      %v5956 = vadd.f32 %v5486, %v5892
      %v5957 = vadd.f32 %v5487, %v5897
      %v5958 = vadd.f32 %v5488, %v5900
      %v5959 = vadd.f32 %v5489, %v5905
      %v5960 = vadd.f32 %v5490, %v5908
      %v5961 = vadd.f32 %v5491, %v5913
      %v5962 = vadd.f32 %v5492, %v5916
      %v5963 = vadd.f32 %v5493, %v5921
      %v5964 = vadd.f32 %v5494, %v5924
      %v5965 = vadd.f32 %v5495, %v5929
      %v5966 = vadd.f32 %v5496, %v5932
      %v5967 = vld [vmem:[%s3666] sm:$0xe]
      %v5968 = vld [vmem:[%s3666 + $0xc] sm:$0xe]
      %v5969 = vld [vmem:[%s3666 + $0x18] sm:$0xe]
      %v5970 = vld [vmem:[%s3666 + $0x24] sm:$0xe]
      %v5971 = vld [vmem:[%s3666 + $0x30] sm:$0xe]
      %v5972 = vld [vmem:[%s3666 + $0x3c] sm:$0xe]
      %v5973 = vld [vmem:[%s3666 + $0x48] sm:$0xe]
      %v5974 = vld [vmem:[%s3666 + $0x54] sm:$0xe]
      %v5975 = vld [vmem:[%s3666 + $0x60] sm:$0xe]
      %v5976 = vld [vmem:[%s3666 + $0x6c] sm:$0xe]
      %v5977 = vld [vmem:[%s3666 + $0x78] sm:$0xe]
      %v5978 = vld [vmem:[%s3666 + $0x84] sm:$0xe]
      %v5979 = vld [vmem:[%s3666 + $0x90] sm:$0xe]
      %v5980 = vld [vmem:[%s3666 + $0x9c] sm:$0xe]
      %v5981 = vld [vmem:[%s3666 + $0xa8] sm:$0xe]
      %v5982 = vld [vmem:[%s3666 + $0xb4] sm:$0xe]
      %v6031 = vrot.slane %v5967, 5
      %v6032 = vrot.slane %v6031, 4
      %v6033 = vrot.slane %v4762, 5
      %v6034 = vsel %vm2420, %v6032, %v6033
      %v6035 = vrot.slane %v6033, 4
      %v6036 = vrot.slane %v4763, 5
      %v6037 = vsel %vm2420, %v6035, %v6036
      %v6038 = vrot.slane %v5968, 5
      %v6039 = vrot.slane %v6038, 4
      %v6040 = vrot.slane %v4765, 5
      %v6041 = vsel %vm2420, %v6039, %v6040
      %v6042 = vrot.slane %v6040, 4
      %v6043 = vrot.slane %v4766, 5
      %v6044 = vsel %vm2420, %v6042, %v6043
      %v6045 = vrot.slane %v5969, 5
      %v6046 = vrot.slane %v6045, 4
      %v6047 = vrot.slane %v4768, 5
      %v6048 = vsel %vm2420, %v6046, %v6047
      %v6049 = vrot.slane %v6047, 4
      %v6050 = vrot.slane %v4769, 5
      %v6051 = vsel %vm2420, %v6049, %v6050
      %v6052 = vrot.slane %v5970, 5
      %v6053 = vrot.slane %v6052, 4
      %v6054 = vrot.slane %v4771, 5
      %v6055 = vsel %vm2420, %v6053, %v6054
      %v6056 = vrot.slane %v6054, 4
      %v6057 = vrot.slane %v4772, 5
      %v6058 = vsel %vm2420, %v6056, %v6057
      %v6059 = vrot.slane %v5971, 5
      %v6060 = vrot.slane %v6059, 4
      %v6061 = vrot.slane %v4774, 5
      %v6062 = vsel %vm2420, %v6060, %v6061
      %v6063 = vrot.slane %v6061, 4
      %v6064 = vrot.slane %v4775, 5
      %v6065 = vsel %vm2420, %v6063, %v6064
      %v6066 = vrot.slane %v5972, 5
      %v6067 = vrot.slane %v6066, 4
      %v6068 = vrot.slane %v4777, 5
      %v6069 = vsel %vm2420, %v6067, %v6068
      %v6070 = vrot.slane %v6068, 4
      %v6071 = vrot.slane %v4778, 5
      %v6072 = vsel %vm2420, %v6070, %v6071
      %v6073 = vrot.slane %v5973, 5
      %v6074 = vrot.slane %v6073, 4
      %v6075 = vrot.slane %v4780, 5
      %v6076 = vsel %vm2420, %v6074, %v6075
      %v6077 = vrot.slane %v6075, 4
      %v6078 = vrot.slane %v4781, 5
      %v6079 = vsel %vm2420, %v6077, %v6078
      %v6080 = vrot.slane %v5974, 5
      %v6081 = vrot.slane %v6080, 4
      %v6082 = vrot.slane %v4783, 5
      %v6083 = vsel %vm2420, %v6081, %v6082
      %v6084 = vrot.slane %v6082, 4
      %v6085 = vrot.slane %v4784, 5
      %v6086 = vsel %vm2420, %v6084, %v6085
      %v6087 = vrot.slane %v5975, 5
      %v6088 = vrot.slane %v6087, 4
      %v6089 = vrot.slane %v4786, 5
      %v6090 = vsel %vm2420, %v6088, %v6089
      %v6091 = vrot.slane %v6089, 4
      %v6092 = vrot.slane %v4787, 5
      %v6093 = vsel %vm2420, %v6091, %v6092
      %v6094 = vrot.slane %v5976, 5
      %v6095 = vrot.slane %v6094, 4
      %v6096 = vrot.slane %v4789, 5
      %v6097 = vsel %vm2420, %v6095, %v6096
      %v6098 = vrot.slane %v6096, 4
      %v6099 = vrot.slane %v4790, 5
      %v6100 = vsel %vm2420, %v6098, %v6099
      %v6101 = vrot.slane %v5977, 5
      %v6102 = vrot.slane %v6101, 4
      %v6103 = vrot.slane %v4792, 5
      %v6104 = vsel %vm2420, %v6102, %v6103
      %v6105 = vrot.slane %v6103, 4
      %v6106 = vrot.slane %v4793, 5
      %v6107 = vsel %vm2420, %v6105, %v6106
      %v6108 = vrot.slane %v5978, 5
      %v6109 = vrot.slane %v6108, 4
      %v6110 = vrot.slane %v4795, 5
      %v6111 = vsel %vm2420, %v6109, %v6110
      %v6112 = vrot.slane %v6110, 4
      %v6113 = vrot.slane %v4796, 5
      %v6114 = vsel %vm2420, %v6112, %v6113
      %v6115 = vrot.slane %v5979, 5
      %v6116 = vrot.slane %v6115, 4
      %v6117 = vrot.slane %v4798, 5
      %v6118 = vsel %vm2420, %v6116, %v6117
      %v6119 = vrot.slane %v6117, 4
      %v6120 = vrot.slane %v4799, 5
      %v6121 = vsel %vm2420, %v6119, %v6120
      %v6122 = vrot.slane %v5980, 5
      %v6123 = vrot.slane %v6122, 4
      %v6124 = vrot.slane %v4801, 5
      %v6125 = vsel %vm2420, %v6123, %v6124
      %v6126 = vrot.slane %v6124, 4
      %v6127 = vrot.slane %v4802, 5
      %v6128 = vsel %vm2420, %v6126, %v6127
      %v6129 = vrot.slane %v5981, 5
      %v6130 = vrot.slane %v6129, 4
      %v6131 = vrot.slane %v4804, 5
      %v6132 = vsel %vm2420, %v6130, %v6131
      %v6133 = vrot.slane %v6131, 4
      %v6134 = vrot.slane %v4805, 5
      %v6135 = vsel %vm2420, %v6133, %v6134
      %v6136 = vrot.slane %v5982, 5
      %v6137 = vrot.slane %v6136, 4
      %v6138 = vrot.slane %v4807, 5
      %v6139 = vsel %vm2420, %v6137, %v6138
      %v6140 = vrot.slane %v6138, 4
      %v6141 = vrot.slane %v4808, 5
      %v6142 = vsel %vm2420, %v6140, %v6141
      %v6143 = vld [vmem:[%s5673] sm:$0xc]
      %v6144 = vunpack.c.l.b16 %v6034
      %v6145 = vunpack.c.l.b16 %v6037
      %v6146 = vunpack.c.l.b16 %v6041
      %v6147 = vunpack.c.l.b16 %v6044
      %v6148 = vunpack.c.l.b16 %v6048
      %v6149 = vunpack.c.l.b16 %v6051
      %v6150 = vunpack.c.l.b16 %v6055
      %v6151 = vunpack.c.l.b16 %v6058
      %v6152 = vunpack.c.l.b16 %v6062
      %v6153 = vunpack.c.l.b16 %v6065
      %v6154 = vunpack.c.l.b16 %v6069
      %v6155 = vunpack.c.l.b16 %v6072
      %v6156 = vunpack.c.l.b16 %v6076
      %v6157 = vunpack.c.l.b16 %v6079
      %v6158 = vunpack.c.l.b16 %v6083
      %v6159 = vunpack.c.l.b16 %v6086
      %v6160 = vunpack.c.l.b16 %v6090
      %v6161 = vunpack.c.l.b16 %v6093
      %v6162 = vunpack.c.l.b16 %v6097
      %v6163 = vunpack.c.l.b16 %v6100
      %v6164 = vunpack.c.l.b16 %v6104
      %v6165 = vunpack.c.l.b16 %v6107
      %v6166 = vunpack.c.l.b16 %v6111
      %v6167 = vunpack.c.l.b16 %v6114
      %v6168 = vunpack.c.l.b16 %v6118
      %v6169 = vunpack.c.l.b16 %v6121
      %v6170 = vunpack.c.l.b16 %v6125
      %v6171 = vunpack.c.l.b16 %v6128
      %v6172 = vunpack.c.l.b16 %v6132
      %v6173 = vunpack.c.l.b16 %v6135
      %v6174 = vunpack.c.l.b16 %v6139
      %v6175 = vunpack.c.l.b16 %v6142
      %v6176 = vpack.c.b16 %v6145, %v6144
      %v6177 = vpack.c.b16 %v6147, %v6146
      %v6178 = vpack.c.b16 %v6149, %v6148
      %v6179 = vpack.c.b16 %v6151, %v6150
      %v6180 = vpack.c.b16 %v6153, %v6152
      %v6181 = vpack.c.b16 %v6155, %v6154
      %v6182 = vpack.c.b16 %v6157, %v6156
      %v6183 = vpack.c.b16 %v6159, %v6158
      %v6184 = vpack.c.b16 %v6161, %v6160
      %v6185 = vpack.c.b16 %v6163, %v6162
      %v6186 = vpack.c.b16 %v6165, %v6164
      %v6187 = vpack.c.b16 %v6167, %v6166
      %v6188 = vpack.c.b16 %v6169, %v6168
      %v6189 = vpack.c.b16 %v6171, %v6170
      %v6190 = vpack.c.b16 %v6173, %v6172
      %v6191 = vpack.c.b16 %v6175, %v6174
      %v6193 = vunpack.c.l.b16 %v6143
      %v6194 = vpack.c.b16 %v6193, %v6193
      %v6196 = vshrl.u32 %v6194, 16
      %v6198 = vrot.slane %v6196, 2
      %v6199 = vshll.u32 %v6194, 16
      %v6201 = vrot.slane %v6199, 3
      %v6202 = vor.u32 %v6198, %v6201
      %v6204 = vsel %vm376, %v6176, 0
      %v6207 = vsel %vm376, %v6177, 0
      %v6210 = vsel %vm376, %v6178, 0
      %v6213 = vsel %vm376, %v6179, 0
      %v6216 = vsel %vm376, %v6180, 0
      %v6219 = vsel %vm376, %v6181, 0
      %v6222 = vsel %vm376, %v6182, 0
      %v6225 = vsel %vm376, %v6183, 0
      %v6228 = vsel %vm376, %v6184, 0
      %v6231 = vsel %vm376, %v6185, 0
      %v6234 = vsel %vm376, %v6186, 0
      %v6237 = vsel %vm376, %v6187, 0
      %v6240 = vsel %vm376, %v6188, 0
      %v6243 = vsel %vm376, %v6189, 0
      %v6246 = vsel %vm376, %v6190, 0
      %v6249 = vsel %vm376, %v6191, 0
      %v6252 = vand.u32 %v6202, %v428
      %6254 = vmatprep.subr.bf16.mxu0 0
      %6255 = vmatpush1.bf16.msra.mxu0 %v6252
      %6256 = vmatprep.subr.bf16.mxu0 0
      %6257 = vmatpush1.bf16.msra.mxu0 0
      %6258 = vmatprep.subr.bf16.mxu0 0
      %6259 = vmatpush1.bf16.msra.mxu0 0
      %6260 = vmatprep.subr.bf16.mxu0 0
      %6261 = vmatpush1.bf16.msra.mxu0 0
      %6262 = vmatprep.subr.bf16.mxu0 0
      %6263 = vmatpush1.bf16.msra.mxu0 0
      %6264 = vmatprep.subr.bf16.mxu0 0
      %6265 = vmatpush1.bf16.msra.mxu0 0
      %6266 = vmatprep.subr.bf16.mxu0 0
      %6267 = vmatpush1.bf16.msra.mxu0 0
      %6268 = vmatprep.subr.bf16.mxu0 0
      %6269 = vmatpush1.bf16.msra.mxu0 0
      %6270 = vmatprep.subr.bf16.mxu0 0
      %6271 = vmatpush1.bf16.msra.mxu0 0
      %6272 = vmatprep.subr.bf16.mxu0 0
      %6273 = vmatpush1.bf16.msra.mxu0 0
      %6274 = vmatprep.subr.bf16.mxu0 0
      %6275 = vmatpush1.bf16.msra.mxu0 0
      %6276 = vmatprep.subr.bf16.mxu0 0
      %6277 = vmatpush1.bf16.msra.mxu0 0
      %6278 = vmatprep.subr.bf16.mxu0 0
      %6279 = vmatpush1.bf16.msra.mxu0 0
      %6280 = vmatprep.subr.bf16.mxu0 0
      %6281 = vmatpush1.bf16.msra.mxu0 0
      %6282 = vmatprep.subr.bf16.mxu0 0
      %6283 = vmatpush1.bf16.msra.mxu0 0
      %6284 = vmatprep.subr.bf16.mxu0 0
      %6285 = vmatpush1.bf16.msra.mxu0 0
      %6286 = vmatprep.mubr.bf16.mxu0 0
      %6287 = vmatmul.mubr.bf16.gmra.mrb[0].mxu0 %v6204
      %v6288 = vpop.f32.mrb[0].mxu0
      %v6289 = vadd.f32 0.0, %v6288
      %v6290 = vpop.f32.mrb[0].mxu0
      %v6291 = vpop.f32.mrb[0].mxu0
      %v6292 = vadd.f32 0.0, %v6291
      %v6293 = vpop.f32.mrb[0].mxu0
      %6294 = vmatprep.mubr.bf16.mxu0 0
      %6295 = vmatmul.mubr.bf16.gmra.mrb[0].mxu0 %v6207
      %v6296 = vpop.f32.mrb[0].mxu0
      %v6297 = vadd.f32 0.0, %v6296
      %v6298 = vpop.f32.mrb[0].mxu0
      %v6299 = vpop.f32.mrb[0].mxu0
      %v6300 = vadd.f32 0.0, %v6299
      %v6301 = vpop.f32.mrb[0].mxu0
      %6302 = vmatprep.mubr.bf16.mxu0 0
      %6303 = vmatmul.mubr.bf16.gmra.mrb[0].mxu0 %v6210
      %v6304 = vpop.f32.mrb[0].mxu0
      %v6305 = vadd.f32 0.0, %v6304
      %v6306 = vpop.f32.mrb[0].mxu0
      %v6307 = vpop.f32.mrb[0].mxu0
      %v6308 = vadd.f32 0.0, %v6307
      %v6309 = vpop.f32.mrb[0].mxu0
      %6310 = vmatprep.mubr.bf16.mxu0 0
      %6311 = vmatmul.mubr.bf16.gmra.mrb[0].mxu0 %v6213
      %v6312 = vpop.f32.mrb[0].mxu0
      %v6313 = vadd.f32 0.0, %v6312
      %v6314 = vpop.f32.mrb[0].mxu0
      %v6315 = vpop.f32.mrb[0].mxu0
      %v6316 = vadd.f32 0.0, %v6315
      %v6317 = vpop.f32.mrb[0].mxu0
      %6318 = vmatprep.mubr.bf16.mxu0 0
      %6319 = vmatmul.mubr.bf16.gmra.mrb[0].mxu0 %v6216
      %v6320 = vpop.f32.mrb[0].mxu0
      %v6321 = vadd.f32 0.0, %v6320
      %v6322 = vpop.f32.mrb[0].mxu0
      %v6323 = vpop.f32.mrb[0].mxu0
      %v6324 = vadd.f32 0.0, %v6323
      %v6325 = vpop.f32.mrb[0].mxu0
      %6326 = vmatprep.mubr.bf16.mxu0 0
      %6327 = vmatmul.mubr.bf16.gmra.mrb[0].mxu0 %v6219
      %v6328 = vpop.f32.mrb[0].mxu0
      %v6329 = vadd.f32 0.0, %v6328
      %v6330 = vpop.f32.mrb[0].mxu0
      %v6331 = vpop.f32.mrb[0].mxu0
      %v6332 = vadd.f32 0.0, %v6331
      %v6333 = vpop.f32.mrb[0].mxu0
      %6334 = vmatprep.mubr.bf16.mxu0 0
      %6335 = vmatmul.mubr.bf16.gmra.mrb[0].mxu0 %v6222
      %v6336 = vpop.f32.mrb[0].mxu0
      %v6337 = vadd.f32 0.0, %v6336
      %v6338 = vpop.f32.mrb[0].mxu0
      %v6339 = vpop.f32.mrb[0].mxu0
      %v6340 = vadd.f32 0.0, %v6339
      %v6341 = vpop.f32.mrb[0].mxu0
      %6342 = vmatprep.mubr.bf16.mxu0 0
      %6343 = vmatmul.mubr.bf16.gmra.mrb[0].mxu0 %v6225
      %v6344 = vpop.f32.mrb[0].mxu0
      %v6345 = vadd.f32 0.0, %v6344
      %v6346 = vpop.f32.mrb[0].mxu0
      %v6347 = vpop.f32.mrb[0].mxu0
      %v6348 = vadd.f32 0.0, %v6347
      %v6349 = vpop.f32.mrb[0].mxu0
      %6350 = vmatprep.mubr.bf16.mxu0 0
      %6351 = vmatmul.mubr.bf16.gmra.mrb[0].mxu0 %v6228
      %v6352 = vpop.f32.mrb[0].mxu0
      %v6353 = vadd.f32 0.0, %v6352
      %v6354 = vpop.f32.mrb[0].mxu0
      %v6355 = vpop.f32.mrb[0].mxu0
      %v6356 = vadd.f32 0.0, %v6355
      %v6357 = vpop.f32.mrb[0].mxu0
      %6358 = vmatprep.mubr.bf16.mxu0 0
      %6359 = vmatmul.mubr.bf16.gmra.mrb[0].mxu0 %v6231
      %v6360 = vpop.f32.mrb[0].mxu0
      %v6361 = vadd.f32 0.0, %v6360
      %v6362 = vpop.f32.mrb[0].mxu0
      %v6363 = vpop.f32.mrb[0].mxu0
      %v6364 = vadd.f32 0.0, %v6363
      %v6365 = vpop.f32.mrb[0].mxu0
      %6366 = vmatprep.mubr.bf16.mxu0 0
      %6367 = vmatmul.mubr.bf16.gmra.mrb[0].mxu0 %v6234
      %v6368 = vpop.f32.mrb[0].mxu0
      %v6369 = vadd.f32 0.0, %v6368
      %v6370 = vpop.f32.mrb[0].mxu0
      %v6371 = vpop.f32.mrb[0].mxu0
      %v6372 = vadd.f32 0.0, %v6371
      %v6373 = vpop.f32.mrb[0].mxu0
      %6374 = vmatprep.mubr.bf16.mxu0 0
      %6375 = vmatmul.mubr.bf16.gmra.mrb[0].mxu0 %v6237
      %v6376 = vpop.f32.mrb[0].mxu0
      %v6377 = vadd.f32 0.0, %v6376
      %v6378 = vpop.f32.mrb[0].mxu0
      %v6379 = vpop.f32.mrb[0].mxu0
      %v6380 = vadd.f32 0.0, %v6379
      %v6381 = vpop.f32.mrb[0].mxu0
      %6382 = vmatprep.mubr.bf16.mxu0 0
      %6383 = vmatmul.mubr.bf16.gmra.mrb[0].mxu0 %v6240
      %v6384 = vpop.f32.mrb[0].mxu0
      %v6385 = vadd.f32 0.0, %v6384
      %v6386 = vpop.f32.mrb[0].mxu0
      %v6387 = vpop.f32.mrb[0].mxu0
      %v6388 = vadd.f32 0.0, %v6387
      %v6389 = vpop.f32.mrb[0].mxu0
      %6390 = vmatprep.mubr.bf16.mxu0 0
      %6391 = vmatmul.mubr.bf16.gmra.mrb[0].mxu0 %v6243
      %v6392 = vpop.f32.mrb[0].mxu0
      %v6393 = vadd.f32 0.0, %v6392
      %v6394 = vpop.f32.mrb[0].mxu0
      %v6395 = vpop.f32.mrb[0].mxu0
      %v6396 = vadd.f32 0.0, %v6395
      %v6397 = vpop.f32.mrb[0].mxu0
      %6398 = vmatprep.mubr.bf16.mxu0 0
      %6399 = vmatmul.mubr.bf16.gmra.mrb[0].mxu0 %v6246
      %v6400 = vpop.f32.mrb[0].mxu0
      %v6401 = vadd.f32 0.0, %v6400
      %v6402 = vpop.f32.mrb[0].mxu0
      %v6403 = vpop.f32.mrb[0].mxu0
      %v6404 = vadd.f32 0.0, %v6403
      %v6405 = vpop.f32.mrb[0].mxu0
      %6406 = vmatprep.mubr.bf16.mxu0 0
      %6407 = vmatmul.mubr.bf16.gmra.mrb[0].mxu0 %v6249
      %v6408 = vpop.f32.mrb[0].mxu0
      %v6409 = vadd.f32 0.0, %v6408
      %v6410 = vpop.f32.mrb[0].mxu0
      %v6411 = vpop.f32.mrb[0].mxu0
      %v6412 = vadd.f32 0.0, %v6411
      %v6413 = vpop.f32.mrb[0].mxu0
      %6414 = vdwg.mxu0
      %v6415 = vadd.f32 %v5935, %v6289
      %v6416 = vadd.f32 %v5936, %v6292
      %v6417 = vadd.f32 %v5937, %v6297
      %v6418 = vadd.f32 %v5938, %v6300
      %v6419 = vadd.f32 %v5939, %v6305
      %v6420 = vadd.f32 %v5940, %v6308
      %v6421 = vadd.f32 %v5941, %v6313
      %v6422 = vadd.f32 %v5942, %v6316
      %v6423 = vadd.f32 %v5943, %v6321
      %v6424 = vadd.f32 %v5944, %v6324
      %v6425 = vadd.f32 %v5945, %v6329
      %v6426 = vadd.f32 %v5946, %v6332
      %v6427 = vadd.f32 %v5947, %v6337
      %v6428 = vadd.f32 %v5948, %v6340
      %v6429 = vadd.f32 %v5949, %v6345
      %v6430 = vadd.f32 %v5950, %v6348
      %v6431 = vadd.f32 %v5951, %v6353
      %v6432 = vadd.f32 %v5952, %v6356
      %v6433 = vadd.f32 %v5953, %v6361
      %v6434 = vadd.f32 %v5954, %v6364
      %v6435 = vadd.f32 %v5955, %v6369
      %v6436 = vadd.f32 %v5956, %v6372
      %v6437 = vadd.f32 %v5957, %v6377
      %v6438 = vadd.f32 %v5958, %v6380
      %v6439 = vadd.f32 %v5959, %v6385
      %v6440 = vadd.f32 %v5960, %v6388
      %v6441 = vadd.f32 %v5961, %v6393
      %v6442 = vadd.f32 %v5962, %v6396
      %v6443 = vadd.f32 %v5963, %v6401
      %v6444 = vadd.f32 %v5964, %v6404
      %v6445 = vadd.f32 %v5965, %v6409
      %v6446 = vadd.f32 %v5966, %v6412
      %s6447 = scalar_lea.vmem %s207, 24
      %v6448 = vld [vmem:[%s6447] sm:$0xf]
      %v6449 = vld [vmem:[%s6447 + $0x4] sm:$0xf]
      %v6450 = vld [vmem:[%s6447 + $0xc] sm:$0xf]
      %v6451 = vld [vmem:[%s6447 + $0x10] sm:$0xf]
      %v6452 = vld [vmem:[%s6447 + $0x18] sm:$0xf]
      %v6453 = vld [vmem:[%s6447 + $0x1c] sm:$0xf]
      %v6454 = vld [vmem:[%s6447 + $0x24] sm:$0xf]
      %v6455 = vld [vmem:[%s6447 + $0x28] sm:$0xf]
      %v6456 = vld [vmem:[%s6447 + $0x30] sm:$0xf]
      %v6457 = vld [vmem:[%s6447 + $0x34] sm:$0xf]
      %v6458 = vld [vmem:[%s6447 + $0x3c] sm:$0xf]
      %v6459 = vld [vmem:[%s6447 + $0x40] sm:$0xf]
      %v6460 = vld [vmem:[%s6447 + $0x48] sm:$0xf]
      %v6461 = vld [vmem:[%s6447 + $0x4c] sm:$0xf]
      %v6462 = vld [vmem:[%s6447 + $0x54] sm:$0xf]
      %v6463 = vld [vmem:[%s6447 + $0x58] sm:$0xf]
      %v6464 = vld [vmem:[%s6447 + $0x60] sm:$0xf]
      %v6465 = vld [vmem:[%s6447 + $0x64] sm:$0xf]
      %v6466 = vld [vmem:[%s6447 + $0x6c] sm:$0xf]
      %v6467 = vld [vmem:[%s6447 + $0x70] sm:$0xf]
      %v6468 = vld [vmem:[%s6447 + $0x78] sm:$0xf]
      %v6469 = vld [vmem:[%s6447 + $0x7c] sm:$0xf]
      %v6470 = vld [vmem:[%s6447 + $0x84] sm:$0xf]
      %v6471 = vld [vmem:[%s6447 + $0x88] sm:$0xf]
      %v6472 = vld [vmem:[%s6447 + $0x90] sm:$0xf]
      %v6473 = vld [vmem:[%s6447 + $0x94] sm:$0xf]
      %v6474 = vld [vmem:[%s6447 + $0x9c] sm:$0xf]
      %v6475 = vld [vmem:[%s6447 + $0xa0] sm:$0xf]
      %v6476 = vld [vmem:[%s6447 + $0xa8] sm:$0xf]
      %v6477 = vld [vmem:[%s6447 + $0xac] sm:$0xf]
      %v6478 = vld [vmem:[%s6447 + $0xb4] sm:$0xf]
      %v6479 = vld [vmem:[%s6447 + $0xb8] sm:$0xf]
      %s6480 = scalar_lea.vmem %s2, 24
      %v6481 = vld [vmem:[%s6480] sm:$0x7]
      %v6514 = vunpack.c.l.b16 %v6448
      %v6515 = vunpack.c.l.b16 %v6449
      %v6516 = vunpack.c.l.b16 %v6450
      %v6517 = vunpack.c.l.b16 %v6451
      %v6518 = vunpack.c.l.b16 %v6452
      %v6519 = vunpack.c.l.b16 %v6453
      %v6520 = vunpack.c.l.b16 %v6454
      %v6521 = vunpack.c.l.b16 %v6455
      %v6522 = vunpack.c.l.b16 %v6456
      %v6523 = vunpack.c.l.b16 %v6457
      %v6524 = vunpack.c.l.b16 %v6458
      %v6525 = vunpack.c.l.b16 %v6459
      %v6526 = vunpack.c.l.b16 %v6460
      %v6527 = vunpack.c.l.b16 %v6461
      %v6528 = vunpack.c.l.b16 %v6462
      %v6529 = vunpack.c.l.b16 %v6463
      %v6530 = vunpack.c.l.b16 %v6464
      %v6531 = vunpack.c.l.b16 %v6465
      %v6532 = vunpack.c.l.b16 %v6466
      %v6533 = vunpack.c.l.b16 %v6467
      %v6534 = vunpack.c.l.b16 %v6468
      %v6535 = vunpack.c.l.b16 %v6469
      %v6536 = vunpack.c.l.b16 %v6470
      %v6537 = vunpack.c.l.b16 %v6471
      %v6538 = vunpack.c.l.b16 %v6472
      %v6539 = vunpack.c.l.b16 %v6473
      %v6540 = vunpack.c.l.b16 %v6474
      %v6541 = vunpack.c.l.b16 %v6475
      %v6542 = vunpack.c.l.b16 %v6476
      %v6543 = vunpack.c.l.b16 %v6477
      %v6544 = vunpack.c.l.b16 %v6478
      %v6545 = vunpack.c.l.b16 %v6479
      %v6546 = vpack.c.b16 %v6515, %v6514
      %v6547 = vpack.c.b16 %v6517, %v6516
      %v6548 = vpack.c.b16 %v6519, %v6518
      %v6549 = vpack.c.b16 %v6521, %v6520
      %v6550 = vpack.c.b16 %v6523, %v6522
      %v6551 = vpack.c.b16 %v6525, %v6524
      %v6552 = vpack.c.b16 %v6527, %v6526
      %v6553 = vpack.c.b16 %v6529, %v6528
      %v6554 = vpack.c.b16 %v6531, %v6530
      %v6555 = vpack.c.b16 %v6533, %v6532
      %v6556 = vpack.c.b16 %v6535, %v6534
      %v6557 = vpack.c.b16 %v6537, %v6536
      %v6558 = vpack.c.b16 %v6539, %v6538
      %v6559 = vpack.c.b16 %v6541, %v6540
      %v6560 = vpack.c.b16 %v6543, %v6542
      %v6561 = vpack.c.b16 %v6545, %v6544
      %v6563 = vsel %vm673, %v6546, 0
      %v6566 = vsel %vm673, %v6547, 0
      %v6569 = vsel %vm673, %v6548, 0
      %v6572 = vsel %vm673, %v6549, 0
      %v6575 = vsel %vm673, %v6550, 0
      %v6578 = vsel %vm673, %v6551, 0
      %v6581 = vsel %vm673, %v6552, 0
      %v6584 = vsel %vm673, %v6553, 0
      %v6587 = vsel %vm673, %v6554, 0
      %v6590 = vsel %vm673, %v6555, 0
      %v6593 = vsel %vm673, %v6556, 0
      %v6596 = vsel %vm673, %v6557, 0
      %v6599 = vsel %vm673, %v6558, 0
      %v6602 = vsel %vm673, %v6559, 0
      %v6605 = vsel %vm673, %v6560, 0
      %v6608 = vsel %vm673, %v6561, 0
      %v6611 = vand.u32 %v6481, %v724
      %6613 = vmatprep.subr.bf16.mxu0 0
      %6614 = vmatpush1.bf16.msra.mxu0 %v6611
      %6615 = vmatprep.subr.bf16.mxu0 0
      %6616 = vmatpush1.bf16.msra.mxu0 0
      %6617 = vmatprep.subr.bf16.mxu0 0
      %6618 = vmatpush1.bf16.msra.mxu0 0
      %6619 = vmatprep.subr.bf16.mxu0 0
      %6620 = vmatpush1.bf16.msra.mxu0 0
      %6621 = vmatprep.subr.bf16.mxu0 0
      %6622 = vmatpush1.bf16.msra.mxu0 0
      %6623 = vmatprep.subr.bf16.mxu0 0
      %6624 = vmatpush1.bf16.msra.mxu0 0
      %6625 = vmatprep.subr.bf16.mxu0 0
      %6626 = vmatpush1.bf16.msra.mxu0 0
      %6627 = vmatprep.subr.bf16.mxu0 0
      %6628 = vmatpush1.bf16.msra.mxu0 0
      %6629 = vmatprep.subr.bf16.mxu0 0
      %6630 = vmatpush1.bf16.msra.mxu0 0
      %6631 = vmatprep.subr.bf16.mxu0 0
      %6632 = vmatpush1.bf16.msra.mxu0 0
      %6633 = vmatprep.subr.bf16.mxu0 0
      %6634 = vmatpush1.bf16.msra.mxu0 0
      %6635 = vmatprep.subr.bf16.mxu0 0
      %6636 = vmatpush1.bf16.msra.mxu0 0
      %6637 = vmatprep.subr.bf16.mxu0 0
      %6638 = vmatpush1.bf16.msra.mxu0 0
      %6639 = vmatprep.subr.bf16.mxu0 0
      %6640 = vmatpush1.bf16.msra.mxu0 0
      %6641 = vmatprep.subr.bf16.mxu0 0
      %6642 = vmatpush1.bf16.msra.mxu0 0
      %6643 = vmatprep.subr.bf16.mxu0 0
      %6644 = vmatpush1.bf16.msra.mxu0 0
      %6645 = vmatprep.mubr.bf16.mxu0 0
      %6646 = vmatmul.mubr.bf16.gmra.mrb[0].mxu0 %v6563
      %v6647 = vpop.f32.mrb[0].mxu0
      %v6648 = vadd.f32 0.0, %v6647
      %v6649 = vpop.f32.mrb[0].mxu0
      %v6650 = vpop.f32.mrb[0].mxu0
      %v6651 = vadd.f32 0.0, %v6650
      %v6652 = vpop.f32.mrb[0].mxu0
      %6653 = vmatprep.mubr.bf16.mxu0 0
      %6654 = vmatmul.mubr.bf16.gmra.mrb[0].mxu0 %v6566
      %v6655 = vpop.f32.mrb[0].mxu0
      %v6656 = vadd.f32 0.0, %v6655
      %v6657 = vpop.f32.mrb[0].mxu0
      %v6658 = vpop.f32.mrb[0].mxu0
      %v6659 = vadd.f32 0.0, %v6658
      %v6660 = vpop.f32.mrb[0].mxu0
      %6661 = vmatprep.mubr.bf16.mxu0 0
      %6662 = vmatmul.mubr.bf16.gmra.mrb[0].mxu0 %v6569
      %v6663 = vpop.f32.mrb[0].mxu0
      %v6664 = vadd.f32 0.0, %v6663
      %v6665 = vpop.f32.mrb[0].mxu0
      %v6666 = vpop.f32.mrb[0].mxu0
      %v6667 = vadd.f32 0.0, %v6666
      %v6668 = vpop.f32.mrb[0].mxu0
      %6669 = vmatprep.mubr.bf16.mxu0 0
      %6670 = vmatmul.mubr.bf16.gmra.mrb[0].mxu0 %v6572
      %v6671 = vpop.f32.mrb[0].mxu0
      %v6672 = vadd.f32 0.0, %v6671
      %v6673 = vpop.f32.mrb[0].mxu0
      %v6674 = vpop.f32.mrb[0].mxu0
      %v6675 = vadd.f32 0.0, %v6674
      %v6676 = vpop.f32.mrb[0].mxu0
      %6677 = vmatprep.mubr.bf16.mxu0 0
      %6678 = vmatmul.mubr.bf16.gmra.mrb[0].mxu0 %v6575
      %v6679 = vpop.f32.mrb[0].mxu0
      %v6680 = vadd.f32 0.0, %v6679
      %v6681 = vpop.f32.mrb[0].mxu0
      %v6682 = vpop.f32.mrb[0].mxu0
      %v6683 = vadd.f32 0.0, %v6682
      %v6684 = vpop.f32.mrb[0].mxu0
      %6685 = vmatprep.mubr.bf16.mxu0 0
      %6686 = vmatmul.mubr.bf16.gmra.mrb[0].mxu0 %v6578
      %v6687 = vpop.f32.mrb[0].mxu0
      %v6688 = vadd.f32 0.0, %v6687
      %v6689 = vpop.f32.mrb[0].mxu0
      %v6690 = vpop.f32.mrb[0].mxu0
      %v6691 = vadd.f32 0.0, %v6690
      %v6692 = vpop.f32.mrb[0].mxu0
      %6693 = vmatprep.mubr.bf16.mxu0 0
      %6694 = vmatmul.mubr.bf16.gmra.mrb[0].mxu0 %v6581
      %v6695 = vpop.f32.mrb[0].mxu0
      %v6696 = vadd.f32 0.0, %v6695
      %v6697 = vpop.f32.mrb[0].mxu0
      %v6698 = vpop.f32.mrb[0].mxu0
      %v6699 = vadd.f32 0.0, %v6698
      %v6700 = vpop.f32.mrb[0].mxu0
      %6701 = vmatprep.mubr.bf16.mxu0 0
      %6702 = vmatmul.mubr.bf16.gmra.mrb[0].mxu0 %v6584
      %v6703 = vpop.f32.mrb[0].mxu0
      %v6704 = vadd.f32 0.0, %v6703
      %v6705 = vpop.f32.mrb[0].mxu0
      %v6706 = vpop.f32.mrb[0].mxu0
      %v6707 = vadd.f32 0.0, %v6706
      %v6708 = vpop.f32.mrb[0].mxu0
      %6709 = vmatprep.mubr.bf16.mxu0 0
      %6710 = vmatmul.mubr.bf16.gmra.mrb[0].mxu0 %v6587
      %v6711 = vpop.f32.mrb[0].mxu0
      %v6712 = vadd.f32 0.0, %v6711
      %v6713 = vpop.f32.mrb[0].mxu0
      %v6714 = vpop.f32.mrb[0].mxu0
      %v6715 = vadd.f32 0.0, %v6714
      %v6716 = vpop.f32.mrb[0].mxu0
      %6717 = vmatprep.mubr.bf16.mxu0 0
      %6718 = vmatmul.mubr.bf16.gmra.mrb[0].mxu0 %v6590
      %v6719 = vpop.f32.mrb[0].mxu0
      %v6720 = vadd.f32 0.0, %v6719
      %v6721 = vpop.f32.mrb[0].mxu0
      %v6722 = vpop.f32.mrb[0].mxu0
      %v6723 = vadd.f32 0.0, %v6722
      %v6724 = vpop.f32.mrb[0].mxu0
      %6725 = vmatprep.mubr.bf16.mxu0 0
      %6726 = vmatmul.mubr.bf16.gmra.mrb[0].mxu0 %v6593
      %v6727 = vpop.f32.mrb[0].mxu0
      %v6728 = vadd.f32 0.0, %v6727
      %v6729 = vpop.f32.mrb[0].mxu0
      %v6730 = vpop.f32.mrb[0].mxu0
      %v6731 = vadd.f32 0.0, %v6730
      %v6732 = vpop.f32.mrb[0].mxu0
      %6733 = vmatprep.mubr.bf16.mxu0 0
      %6734 = vmatmul.mubr.bf16.gmra.mrb[0].mxu0 %v6596
      %v6735 = vpop.f32.mrb[0].mxu0
      %v6736 = vadd.f32 0.0, %v6735
      %v6737 = vpop.f32.mrb[0].mxu0
      %v6738 = vpop.f32.mrb[0].mxu0
      %v6739 = vadd.f32 0.0, %v6738
      %v6740 = vpop.f32.mrb[0].mxu0
      %6741 = vmatprep.mubr.bf16.mxu0 0
      %6742 = vmatmul.mubr.bf16.gmra.mrb[0].mxu0 %v6599
      %v6743 = vpop.f32.mrb[0].mxu0
      %v6744 = vadd.f32 0.0, %v6743
      %v6745 = vpop.f32.mrb[0].mxu0
      %v6746 = vpop.f32.mrb[0].mxu0
      %v6747 = vadd.f32 0.0, %v6746
      %v6748 = vpop.f32.mrb[0].mxu0
      %6749 = vmatprep.mubr.bf16.mxu0 0
      %6750 = vmatmul.mubr.bf16.gmra.mrb[0].mxu0 %v6602
      %v6751 = vpop.f32.mrb[0].mxu0
      %v6752 = vadd.f32 0.0, %v6751
      %v6753 = vpop.f32.mrb[0].mxu0
      %v6754 = vpop.f32.mrb[0].mxu0
      %v6755 = vadd.f32 0.0, %v6754
      %v6756 = vpop.f32.mrb[0].mxu0
      %6757 = vmatprep.mubr.bf16.mxu0 0
      %6758 = vmatmul.mubr.bf16.gmra.mrb[0].mxu0 %v6605
      %v6759 = vpop.f32.mrb[0].mxu0
      %v6760 = vadd.f32 0.0, %v6759
      %v6761 = vpop.f32.mrb[0].mxu0
      %v6762 = vpop.f32.mrb[0].mxu0
      %v6763 = vadd.f32 0.0, %v6762
      %v6764 = vpop.f32.mrb[0].mxu0
      %6765 = vmatprep.mubr.bf16.mxu0 0
      %6766 = vmatmul.mubr.bf16.gmra.mrb[0].mxu0 %v6608
      %v6767 = vpop.f32.mrb[0].mxu0
      %v6768 = vadd.f32 0.0, %v6767
      %v6769 = vpop.f32.mrb[0].mxu0
      %v6770 = vpop.f32.mrb[0].mxu0
      %v6771 = vadd.f32 0.0, %v6770
      %v6772 = vpop.f32.mrb[0].mxu0
      %6773 = vdwg.mxu0
      %v6774 = vadd.f32 %v6415, %v6648
      %v6775 = vadd.f32 %v6416, %v6651
      %v6776 = vadd.f32 %v6417, %v6656
      %v6777 = vadd.f32 %v6418, %v6659
      %v6778 = vadd.f32 %v6419, %v6664
      %v6779 = vadd.f32 %v6420, %v6667
      %v6780 = vadd.f32 %v6421, %v6672
      %v6781 = vadd.f32 %v6422, %v6675
      %v6782 = vadd.f32 %v6423, %v6680
      %v6783 = vadd.f32 %v6424, %v6683
      %v6784 = vadd.f32 %v6425, %v6688
      %v6785 = vadd.f32 %v6426, %v6691
      %v6786 = vadd.f32 %v6427, %v6696
      %v6787 = vadd.f32 %v6428, %v6699
      %v6788 = vadd.f32 %v6429, %v6704
      %v6789 = vadd.f32 %v6430, %v6707
      %v6790 = vadd.f32 %v6431, %v6712
      %v6791 = vadd.f32 %v6432, %v6715
      %v6792 = vadd.f32 %v6433, %v6720
      %v6793 = vadd.f32 %v6434, %v6723
      %v6794 = vadd.f32 %v6435, %v6728
      %v6795 = vadd.f32 %v6436, %v6731
      %v6796 = vadd.f32 %v6437, %v6736
      %v6797 = vadd.f32 %v6438, %v6739
      %v6798 = vadd.f32 %v6439, %v6744
      %v6799 = vadd.f32 %v6440, %v6747
      %v6800 = vadd.f32 %v6441, %v6752
      %v6801 = vadd.f32 %v6442, %v6755
      %v6802 = vadd.f32 %v6443, %v6760
      %v6803 = vadd.f32 %v6444, %v6763
      %v6804 = vadd.f32 %v6445, %v6768
      %v6805 = vadd.f32 %v6446, %v6771
      %s6806 = scalar_lea.vmem %s212, 24
      %v6807 = vld [vmem:[%s6806] sm:$0xf]
      %v6808 = vld [vmem:[%s6806 + $0x4] sm:$0xf]
      %v6809 = vld [vmem:[%s6806 + $0xc] sm:$0xf]
      %v6810 = vld [vmem:[%s6806 + $0x10] sm:$0xf]
      %v6811 = vld [vmem:[%s6806 + $0x18] sm:$0xf]
      %v6812 = vld [vmem:[%s6806 + $0x1c] sm:$0xf]
      %v6813 = vld [vmem:[%s6806 + $0x24] sm:$0xf]
      %v6814 = vld [vmem:[%s6806 + $0x28] sm:$0xf]
      %v6815 = vld [vmem:[%s6806 + $0x30] sm:$0xf]
      %v6816 = vld [vmem:[%s6806 + $0x34] sm:$0xf]
      %v6817 = vld [vmem:[%s6806 + $0x3c] sm:$0xf]
      %v6818 = vld [vmem:[%s6806 + $0x40] sm:$0xf]
      %v6819 = vld [vmem:[%s6806 + $0x48] sm:$0xf]
      %v6820 = vld [vmem:[%s6806 + $0x4c] sm:$0xf]
      %v6821 = vld [vmem:[%s6806 + $0x54] sm:$0xf]
      %v6822 = vld [vmem:[%s6806 + $0x58] sm:$0xf]
      %v6823 = vld [vmem:[%s6806 + $0x60] sm:$0xf]
      %v6824 = vld [vmem:[%s6806 + $0x64] sm:$0xf]
      %v6825 = vld [vmem:[%s6806 + $0x6c] sm:$0xf]
      %v6826 = vld [vmem:[%s6806 + $0x70] sm:$0xf]
      %v6827 = vld [vmem:[%s6806 + $0x78] sm:$0xf]
      %v6828 = vld [vmem:[%s6806 + $0x7c] sm:$0xf]
      %v6829 = vld [vmem:[%s6806 + $0x84] sm:$0xf]
      %v6830 = vld [vmem:[%s6806 + $0x88] sm:$0xf]
      %v6831 = vld [vmem:[%s6806 + $0x90] sm:$0xf]
      %v6832 = vld [vmem:[%s6806 + $0x94] sm:$0xf]
      %v6833 = vld [vmem:[%s6806 + $0x9c] sm:$0xf]
      %v6834 = vld [vmem:[%s6806 + $0xa0] sm:$0xf]
      %v6835 = vld [vmem:[%s6806 + $0xa8] sm:$0xf]
      %v6836 = vld [vmem:[%s6806 + $0xac] sm:$0xf]
      %v6837 = vld [vmem:[%s6806 + $0xb4] sm:$0xf]
      %v6838 = vld [vmem:[%s6806 + $0xb8] sm:$0xf]
      %v6839 = vld [vmem:[%s6480] sm:$0xc]
      %v6872 = vunpack.c.l.b16 %v6807
      %v6873 = vunpack.c.l.b16 %v6808
      %v6874 = vunpack.c.l.b16 %v6809
      %v6875 = vunpack.c.l.b16 %v6810
      %v6876 = vunpack.c.l.b16 %v6811
      %v6877 = vunpack.c.l.b16 %v6812
      %v6878 = vunpack.c.l.b16 %v6813
      %v6879 = vunpack.c.l.b16 %v6814
      %v6880 = vunpack.c.l.b16 %v6815
      %v6881 = vunpack.c.l.b16 %v6816
      %v6882 = vunpack.c.l.b16 %v6817
      %v6883 = vunpack.c.l.b16 %v6818
      %v6884 = vunpack.c.l.b16 %v6819
      %v6885 = vunpack.c.l.b16 %v6820
      %v6886 = vunpack.c.l.b16 %v6821
      %v6887 = vunpack.c.l.b16 %v6822
      %v6888 = vunpack.c.l.b16 %v6823
      %v6889 = vunpack.c.l.b16 %v6824
      %v6890 = vunpack.c.l.b16 %v6825
      %v6891 = vunpack.c.l.b16 %v6826
      %v6892 = vunpack.c.l.b16 %v6827
      %v6893 = vunpack.c.l.b16 %v6828
      %v6894 = vunpack.c.l.b16 %v6829
      %v6895 = vunpack.c.l.b16 %v6830
      %v6896 = vunpack.c.l.b16 %v6831
      %v6897 = vunpack.c.l.b16 %v6832
      %v6898 = vunpack.c.l.b16 %v6833
      %v6899 = vunpack.c.l.b16 %v6834
      %v6900 = vunpack.c.l.b16 %v6835
      %v6901 = vunpack.c.l.b16 %v6836
      %v6902 = vunpack.c.l.b16 %v6837
      %v6903 = vunpack.c.l.b16 %v6838
      %v6904 = vpack.c.b16 %v6873, %v6872
      %v6905 = vpack.c.b16 %v6875, %v6874
      %v6906 = vpack.c.b16 %v6877, %v6876
      %v6907 = vpack.c.b16 %v6879, %v6878
      %v6908 = vpack.c.b16 %v6881, %v6880
      %v6909 = vpack.c.b16 %v6883, %v6882
      %v6910 = vpack.c.b16 %v6885, %v6884
      %v6911 = vpack.c.b16 %v6887, %v6886
      %v6912 = vpack.c.b16 %v6889, %v6888
      %v6913 = vpack.c.b16 %v6891, %v6890
      %v6914 = vpack.c.b16 %v6893, %v6892
      %v6915 = vpack.c.b16 %v6895, %v6894
      %v6916 = vpack.c.b16 %v6897, %v6896
      %v6917 = vpack.c.b16 %v6899, %v6898
      %v6918 = vpack.c.b16 %v6901, %v6900
      %v6919 = vpack.c.b16 %v6903, %v6902
      %v6921 = vunpack.c.l.b16 %v6839
      %v6922 = vpack.c.b16 %v6921, %v6921
      %v6924 = vshrl.u32 %v6922, 16
      %v6926 = vrot.slane %v6924, 2
      %v6927 = vshll.u32 %v6922, 16
      %v6929 = vrot.slane %v6927, 3
      %v6930 = vor.u32 %v6926, %v6929
      %v6932 = vsel %vm376, %v6904, 0
      %v6935 = vsel %vm376, %v6905, 0
      %v6938 = vsel %vm376, %v6906, 0
      %v6941 = vsel %vm376, %v6907, 0
      %v6944 = vsel %vm376, %v6908, 0
      %v6947 = vsel %vm376, %v6909, 0
      %v6950 = vsel %vm376, %v6910, 0
      %v6953 = vsel %vm376, %v6911, 0
      %v6956 = vsel %vm376, %v6912, 0
      %v6959 = vsel %vm376, %v6913, 0
      %v6962 = vsel %vm376, %v6914, 0
      %v6965 = vsel %vm376, %v6915, 0
      %v6968 = vsel %vm376, %v6916, 0
      %v6971 = vsel %vm376, %v6917, 0
      %v6974 = vsel %vm376, %v6918, 0
      %v6977 = vsel %vm376, %v6919, 0
      %v6980 = vand.u32 %v6930, %v428
      %6982 = vmatprep.subr.bf16.mxu0 0
      %6983 = vmatpush1.bf16.msra.mxu0 %v6980
      %6984 = vmatprep.subr.bf16.mxu0 0
      %6985 = vmatpush1.bf16.msra.mxu0 0
      %6986 = vmatprep.subr.bf16.mxu0 0
      %6987 = vmatpush1.bf16.msra.mxu0 0
      %6988 = vmatprep.subr.bf16.mxu0 0
      %6989 = vmatpush1.bf16.msra.mxu0 0
      %6990 = vmatprep.subr.bf16.mxu0 0
      %6991 = vmatpush1.bf16.msra.mxu0 0
      %6992 = vmatprep.subr.bf16.mxu0 0
      %6993 = vmatpush1.bf16.msra.mxu0 0
      %6994 = vmatprep.subr.bf16.mxu0 0
      %6995 = vmatpush1.bf16.msra.mxu0 0
      %6996 = vmatprep.subr.bf16.mxu0 0
      %6997 = vmatpush1.bf16.msra.mxu0 0
      %6998 = vmatprep.subr.bf16.mxu0 0
      %6999 = vmatpush1.bf16.msra.mxu0 0
      %7000 = vmatprep.subr.bf16.mxu0 0
      %7001 = vmatpush1.bf16.msra.mxu0 0
      %7002 = vmatprep.subr.bf16.mxu0 0
      %7003 = vmatpush1.bf16.msra.mxu0 0
      %7004 = vmatprep.subr.bf16.mxu0 0
      %7005 = vmatpush1.bf16.msra.mxu0 0
      %7006 = vmatprep.subr.bf16.mxu0 0
      %7007 = vmatpush1.bf16.msra.mxu0 0
      %7008 = vmatprep.subr.bf16.mxu0 0
      %7009 = vmatpush1.bf16.msra.mxu0 0
      %7010 = vmatprep.subr.bf16.mxu0 0
      %7011 = vmatpush1.bf16.msra.mxu0 0
      %7012 = vmatprep.subr.bf16.mxu0 0
      %7013 = vmatpush1.bf16.msra.mxu0 0
      %7014 = vmatprep.mubr.bf16.mxu0 0
      %7015 = vmatmul.mubr.bf16.gmra.mrb[0].mxu0 %v6932
      %v7016 = vpop.f32.mrb[0].mxu0
      %v7017 = vadd.f32 0.0, %v7016
      %v7018 = vpop.f32.mrb[0].mxu0
      %v7019 = vpop.f32.mrb[0].mxu0
      %v7020 = vadd.f32 0.0, %v7019
      %v7021 = vpop.f32.mrb[0].mxu0
      %7022 = vmatprep.mubr.bf16.mxu0 0
      %7023 = vmatmul.mubr.bf16.gmra.mrb[0].mxu0 %v6935
      %v7024 = vpop.f32.mrb[0].mxu0
      %v7025 = vadd.f32 0.0, %v7024
      %v7026 = vpop.f32.mrb[0].mxu0
      %v7027 = vpop.f32.mrb[0].mxu0
      %v7028 = vadd.f32 0.0, %v7027
      %v7029 = vpop.f32.mrb[0].mxu0
      %7030 = vmatprep.mubr.bf16.mxu0 0
      %7031 = vmatmul.mubr.bf16.gmra.mrb[0].mxu0 %v6938
      %v7032 = vpop.f32.mrb[0].mxu0
      %v7033 = vadd.f32 0.0, %v7032
      %v7034 = vpop.f32.mrb[0].mxu0
      %v7035 = vpop.f32.mrb[0].mxu0
      %v7036 = vadd.f32 0.0, %v7035
      %v7037 = vpop.f32.mrb[0].mxu0
      %7038 = vmatprep.mubr.bf16.mxu0 0
      %7039 = vmatmul.mubr.bf16.gmra.mrb[0].mxu0 %v6941
      %v7040 = vpop.f32.mrb[0].mxu0
      %v7041 = vadd.f32 0.0, %v7040
      %v7042 = vpop.f32.mrb[0].mxu0
      %v7043 = vpop.f32.mrb[0].mxu0
      %v7044 = vadd.f32 0.0, %v7043
      %v7045 = vpop.f32.mrb[0].mxu0
      %7046 = vmatprep.mubr.bf16.mxu0 0
      %7047 = vmatmul.mubr.bf16.gmra.mrb[0].mxu0 %v6944
      %v7048 = vpop.f32.mrb[0].mxu0
      %v7049 = vadd.f32 0.0, %v7048
      %v7050 = vpop.f32.mrb[0].mxu0
      %v7051 = vpop.f32.mrb[0].mxu0
      %v7052 = vadd.f32 0.0, %v7051
      %v7053 = vpop.f32.mrb[0].mxu0
      %7054 = vmatprep.mubr.bf16.mxu0 0
      %7055 = vmatmul.mubr.bf16.gmra.mrb[0].mxu0 %v6947
      %v7056 = vpop.f32.mrb[0].mxu0
      %v7057 = vadd.f32 0.0, %v7056
      %v7058 = vpop.f32.mrb[0].mxu0
      %v7059 = vpop.f32.mrb[0].mxu0
      %v7060 = vadd.f32 0.0, %v7059
      %v7061 = vpop.f32.mrb[0].mxu0
      %7062 = vmatprep.mubr.bf16.mxu0 0
      %7063 = vmatmul.mubr.bf16.gmra.mrb[0].mxu0 %v6950
      %v7064 = vpop.f32.mrb[0].mxu0
      %v7065 = vadd.f32 0.0, %v7064
      %v7066 = vpop.f32.mrb[0].mxu0
      %v7067 = vpop.f32.mrb[0].mxu0
      %v7068 = vadd.f32 0.0, %v7067
      %v7069 = vpop.f32.mrb[0].mxu0
      %7070 = vmatprep.mubr.bf16.mxu0 0
      %7071 = vmatmul.mubr.bf16.gmra.mrb[0].mxu0 %v6953
      %v7072 = vpop.f32.mrb[0].mxu0
      %v7073 = vadd.f32 0.0, %v7072
      %v7074 = vpop.f32.mrb[0].mxu0
      %v7075 = vpop.f32.mrb[0].mxu0
      %v7076 = vadd.f32 0.0, %v7075
      %v7077 = vpop.f32.mrb[0].mxu0
      %7078 = vmatprep.mubr.bf16.mxu0 0
      %7079 = vmatmul.mubr.bf16.gmra.mrb[0].mxu0 %v6956
      %v7080 = vpop.f32.mrb[0].mxu0
      %v7081 = vadd.f32 0.0, %v7080
      %v7082 = vpop.f32.mrb[0].mxu0
      %v7083 = vpop.f32.mrb[0].mxu0
      %v7084 = vadd.f32 0.0, %v7083
      %v7085 = vpop.f32.mrb[0].mxu0
      %7086 = vmatprep.mubr.bf16.mxu0 0
      %7087 = vmatmul.mubr.bf16.gmra.mrb[0].mxu0 %v6959
      %v7088 = vpop.f32.mrb[0].mxu0
      %v7089 = vadd.f32 0.0, %v7088
      %v7090 = vpop.f32.mrb[0].mxu0
      %v7091 = vpop.f32.mrb[0].mxu0
      %v7092 = vadd.f32 0.0, %v7091
      %v7093 = vpop.f32.mrb[0].mxu0
      %7094 = vmatprep.mubr.bf16.mxu0 0
      %7095 = vmatmul.mubr.bf16.gmra.mrb[0].mxu0 %v6962
      %v7096 = vpop.f32.mrb[0].mxu0
      %v7097 = vadd.f32 0.0, %v7096
      %v7098 = vpop.f32.mrb[0].mxu0
      %v7099 = vpop.f32.mrb[0].mxu0
      %v7100 = vadd.f32 0.0, %v7099
      %v7101 = vpop.f32.mrb[0].mxu0
      %7102 = vmatprep.mubr.bf16.mxu0 0
      %7103 = vmatmul.mubr.bf16.gmra.mrb[0].mxu0 %v6965
      %v7104 = vpop.f32.mrb[0].mxu0
      %v7105 = vadd.f32 0.0, %v7104
      %v7106 = vpop.f32.mrb[0].mxu0
      %v7107 = vpop.f32.mrb[0].mxu0
      %v7108 = vadd.f32 0.0, %v7107
      %v7109 = vpop.f32.mrb[0].mxu0
      %7110 = vmatprep.mubr.bf16.mxu0 0
      %7111 = vmatmul.mubr.bf16.gmra.mrb[0].mxu0 %v6968
      %v7112 = vpop.f32.mrb[0].mxu0
      %v7113 = vadd.f32 0.0, %v7112
      %v7114 = vpop.f32.mrb[0].mxu0
      %v7115 = vpop.f32.mrb[0].mxu0
      %v7116 = vadd.f32 0.0, %v7115
      %v7117 = vpop.f32.mrb[0].mxu0
      %7118 = vmatprep.mubr.bf16.mxu0 0
      %7119 = vmatmul.mubr.bf16.gmra.mrb[0].mxu0 %v6971
      %v7120 = vpop.f32.mrb[0].mxu0
      %v7121 = vadd.f32 0.0, %v7120
      %v7122 = vpop.f32.mrb[0].mxu0
      %v7123 = vpop.f32.mrb[0].mxu0
      %v7124 = vadd.f32 0.0, %v7123
      %v7125 = vpop.f32.mrb[0].mxu0
      %7126 = vmatprep.mubr.bf16.mxu0 0
      %7127 = vmatmul.mubr.bf16.gmra.mrb[0].mxu0 %v6974
      %v7128 = vpop.f32.mrb[0].mxu0
      %v7129 = vadd.f32 0.0, %v7128
      %v7130 = vpop.f32.mrb[0].mxu0
      %v7131 = vpop.f32.mrb[0].mxu0
      %v7132 = vadd.f32 0.0, %v7131
      %v7133 = vpop.f32.mrb[0].mxu0
      %7134 = vmatprep.mubr.bf16.mxu0 0
      %7135 = vmatmul.mubr.bf16.gmra.mrb[0].mxu0 %v6977
      %v7136 = vpop.f32.mrb[0].mxu0
      %v7137 = vadd.f32 0.0, %v7136
      %v7138 = vpop.f32.mrb[0].mxu0
      %v7139 = vpop.f32.mrb[0].mxu0
      %v7140 = vadd.f32 0.0, %v7139
      %v7141 = vpop.f32.mrb[0].mxu0
      %7142 = vdwg.mxu0
      %v7143 = vadd.f32 %v6774, %v7017
      %v7144 = vadd.f32 %v6775, %v7020
      %v7145 = vadd.f32 %v6776, %v7025
      %v7146 = vadd.f32 %v6777, %v7028
      %v7147 = vadd.f32 %v6778, %v7033
      %v7148 = vadd.f32 %v6779, %v7036
      %v7149 = vadd.f32 %v6780, %v7041
      %v7150 = vadd.f32 %v6781, %v7044
      %v7151 = vadd.f32 %v6782, %v7049
      %v7152 = vadd.f32 %v6783, %v7052
      %v7153 = vadd.f32 %v6784, %v7057
      %v7154 = vadd.f32 %v6785, %v7060
      %v7155 = vadd.f32 %v6786, %v7065
      %v7156 = vadd.f32 %v6787, %v7068
      %v7157 = vadd.f32 %v6788, %v7073
      %v7158 = vadd.f32 %v6789, %v7076
      %v7159 = vadd.f32 %v6790, %v7081
      %v7160 = vadd.f32 %v6791, %v7084
      %v7161 = vadd.f32 %v6792, %v7089
      %v7162 = vadd.f32 %v6793, %v7092
      %v7163 = vadd.f32 %v6794, %v7097
      %v7164 = vadd.f32 %v6795, %v7100
      %v7165 = vadd.f32 %v6796, %v7105
      %v7166 = vadd.f32 %v6797, %v7108
      %v7167 = vadd.f32 %v6798, %v7113
      %v7168 = vadd.f32 %v6799, %v7116
      %v7169 = vadd.f32 %v6800, %v7121
      %v7170 = vadd.f32 %v6801, %v7124
      %v7171 = vadd.f32 %v6802, %v7129
      %v7172 = vadd.f32 %v6803, %v7132
      %v7173 = vadd.f32 %v6804, %v7137
      %v7174 = vadd.f32 %v6805, %v7140
      %v7175 = vld [vmem:[%s6447] sm:$0xf]
      %v7176 = vld [vmem:[%s6447 + $0x4] sm:$0xf]
      %v7177 = vld [vmem:[%s6447 + $0x8] sm:$0x1]
      %v7178 = vld [vmem:[%s6447 + $0xc] sm:$0xf]
      %v7179 = vld [vmem:[%s6447 + $0x10] sm:$0xf]
      %v7180 = vld [vmem:[%s6447 + $0x14] sm:$0x1]
      %v7181 = vld [vmem:[%s6447 + $0x18] sm:$0xf]
      %v7182 = vld [vmem:[%s6447 + $0x1c] sm:$0xf]
      %v7183 = vld [vmem:[%s6447 + $0x20] sm:$0x1]
      %v7184 = vld [vmem:[%s6447 + $0x24] sm:$0xf]
      %v7185 = vld [vmem:[%s6447 + $0x28] sm:$0xf]
      %v7186 = vld [vmem:[%s6447 + $0x2c] sm:$0x1]
      %v7187 = vld [vmem:[%s6447 + $0x30] sm:$0xf]
      %v7188 = vld [vmem:[%s6447 + $0x34] sm:$0xf]
      %v7189 = vld [vmem:[%s6447 + $0x38] sm:$0x1]
      %v7190 = vld [vmem:[%s6447 + $0x3c] sm:$0xf]
      %v7191 = vld [vmem:[%s6447 + $0x40] sm:$0xf]
      %v7192 = vld [vmem:[%s6447 + $0x44] sm:$0x1]
      %v7193 = vld [vmem:[%s6447 + $0x48] sm:$0xf]
      %v7194 = vld [vmem:[%s6447 + $0x4c] sm:$0xf]
      %v7195 = vld [vmem:[%s6447 + $0x50] sm:$0x1]
      %v7196 = vld [vmem:[%s6447 + $0x54] sm:$0xf]
      %v7197 = vld [vmem:[%s6447 + $0x58] sm:$0xf]
      %v7198 = vld [vmem:[%s6447 + $0x5c] sm:$0x1]
      %v7199 = vld [vmem:[%s6447 + $0x60] sm:$0xf]
      %v7200 = vld [vmem:[%s6447 + $0x64] sm:$0xf]
      %v7201 = vld [vmem:[%s6447 + $0x68] sm:$0x1]
      %v7202 = vld [vmem:[%s6447 + $0x6c] sm:$0xf]
      %v7203 = vld [vmem:[%s6447 + $0x70] sm:$0xf]
      %v7204 = vld [vmem:[%s6447 + $0x74] sm:$0x1]
      %v7205 = vld [vmem:[%s6447 + $0x78] sm:$0xf]
      %v7206 = vld [vmem:[%s6447 + $0x7c] sm:$0xf]
      %v7207 = vld [vmem:[%s6447 + $0x80] sm:$0x1]
      %v7208 = vld [vmem:[%s6447 + $0x84] sm:$0xf]
      %v7209 = vld [vmem:[%s6447 + $0x88] sm:$0xf]
      %v7210 = vld [vmem:[%s6447 + $0x8c] sm:$0x1]
      %v7211 = vld [vmem:[%s6447 + $0x90] sm:$0xf]
      %v7212 = vld [vmem:[%s6447 + $0x94] sm:$0xf]
      %v7213 = vld [vmem:[%s6447 + $0x98] sm:$0x1]
      %v7214 = vld [vmem:[%s6447 + $0x9c] sm:$0xf]
      %v7215 = vld [vmem:[%s6447 + $0xa0] sm:$0xf]
      %v7216 = vld [vmem:[%s6447 + $0xa4] sm:$0x1]
      %v7217 = vld [vmem:[%s6447 + $0xa8] sm:$0xf]
      %v7218 = vld [vmem:[%s6447 + $0xac] sm:$0xf]
      %v7219 = vld [vmem:[%s6447 + $0xb0] sm:$0x1]
      %v7220 = vld [vmem:[%s6447 + $0xb4] sm:$0xf]
      %v7221 = vld [vmem:[%s6447 + $0xb8] sm:$0xf]
      %v7222 = vld [vmem:[%s6447 + $0xbc] sm:$0x1]
      %v7224 = vshrl.u32 %v7175, 16
      %v7226 = vrot.slane %v7224, 4
      %v7227 = vshll.u32 %v7175, 16
      %v7229 = vrot.slane %v7227, 5
      %v7230 = vor.u32 %v7226, %v7229
      %v7231 = vrot.slane %v7230, 4
      %v7233 = vshll.u32 %v7176, 16
      %v7235 = vrot.slane %v7233, 5
      %v7236 = vsel %vm939, %v7231, %v7235
      %v7237 = vshrl.u32 %v7176, 16
      %v7239 = vrot.slane %v7237, 4
      %v7240 = vor.u32 %v7239, %v7235
      %v7241 = vrot.slane %v7240, 4
      %v7243 = vshll.u32 %v7177, 16
      %v7245 = vrot.slane %v7243, 5
      %v7246 = vsel %vm939, %v7241, %v7245
      %v7248 = vshrl.u32 %v7178, 16
      %v7250 = vrot.slane %v7248, 4
      %v7251 = vshll.u32 %v7178, 16
      %v7253 = vrot.slane %v7251, 5
      %v7254 = vor.u32 %v7250, %v7253
      %v7255 = vrot.slane %v7254, 4
      %v7257 = vshll.u32 %v7179, 16
      %v7259 = vrot.slane %v7257, 5
      %v7260 = vsel %vm939, %v7255, %v7259
      %v7261 = vshrl.u32 %v7179, 16
      %v7263 = vrot.slane %v7261, 4
      %v7264 = vor.u32 %v7263, %v7259
      %v7265 = vrot.slane %v7264, 4
      %v7267 = vshll.u32 %v7180, 16
      %v7269 = vrot.slane %v7267, 5
      %v7270 = vsel %vm939, %v7265, %v7269
      %v7272 = vshrl.u32 %v7181, 16
      %v7274 = vrot.slane %v7272, 4
      %v7275 = vshll.u32 %v7181, 16
      %v7277 = vrot.slane %v7275, 5
      %v7278 = vor.u32 %v7274, %v7277
      %v7279 = vrot.slane %v7278, 4
      %v7281 = vshll.u32 %v7182, 16
      %v7283 = vrot.slane %v7281, 5
      %v7284 = vsel %vm939, %v7279, %v7283
      %v7285 = vshrl.u32 %v7182, 16
      %v7287 = vrot.slane %v7285, 4
      %v7288 = vor.u32 %v7287, %v7283
      %v7289 = vrot.slane %v7288, 4
      %v7291 = vshll.u32 %v7183, 16
      %v7293 = vrot.slane %v7291, 5
      %v7294 = vsel %vm939, %v7289, %v7293
      %v7296 = vshrl.u32 %v7184, 16
      %v7298 = vrot.slane %v7296, 4
      %v7299 = vshll.u32 %v7184, 16
      %v7301 = vrot.slane %v7299, 5
      %v7302 = vor.u32 %v7298, %v7301
      %v7303 = vrot.slane %v7302, 4
      %v7305 = vshll.u32 %v7185, 16
      %v7307 = vrot.slane %v7305, 5
      %v7308 = vsel %vm939, %v7303, %v7307
      %v7309 = vshrl.u32 %v7185, 16
      %v7311 = vrot.slane %v7309, 4
      %v7312 = vor.u32 %v7311, %v7307
      %v7313 = vrot.slane %v7312, 4
      %v7315 = vshll.u32 %v7186, 16
      %v7317 = vrot.slane %v7315, 5
      %v7318 = vsel %vm939, %v7313, %v7317
      %v7320 = vshrl.u32 %v7187, 16
      %v7322 = vrot.slane %v7320, 4
      %v7323 = vshll.u32 %v7187, 16
      %v7325 = vrot.slane %v7323, 5
      %v7326 = vor.u32 %v7322, %v7325
      %v7327 = vrot.slane %v7326, 4
      %v7329 = vshll.u32 %v7188, 16
      %v7331 = vrot.slane %v7329, 5
      %v7332 = vsel %vm939, %v7327, %v7331
      %v7333 = vshrl.u32 %v7188, 16
      %v7335 = vrot.slane %v7333, 4
      %v7336 = vor.u32 %v7335, %v7331
      %v7337 = vrot.slane %v7336, 4
      %v7339 = vshll.u32 %v7189, 16
      %v7341 = vrot.slane %v7339, 5
      %v7342 = vsel %vm939, %v7337, %v7341
      %v7344 = vshrl.u32 %v7190, 16
      %v7346 = vrot.slane %v7344, 4
      %v7347 = vshll.u32 %v7190, 16
      %v7349 = vrot.slane %v7347, 5
      %v7350 = vor.u32 %v7346, %v7349
      %v7351 = vrot.slane %v7350, 4
      %v7353 = vshll.u32 %v7191, 16
      %v7355 = vrot.slane %v7353, 5
      %v7356 = vsel %vm939, %v7351, %v7355
      %v7357 = vshrl.u32 %v7191, 16
      %v7359 = vrot.slane %v7357, 4
      %v7360 = vor.u32 %v7359, %v7355
      %v7361 = vrot.slane %v7360, 4
      %v7363 = vshll.u32 %v7192, 16
      %v7365 = vrot.slane %v7363, 5
      %v7366 = vsel %vm939, %v7361, %v7365
      %v7368 = vshrl.u32 %v7193, 16
      %v7370 = vrot.slane %v7368, 4
      %v7371 = vshll.u32 %v7193, 16
      %v7373 = vrot.slane %v7371, 5
      %v7374 = vor.u32 %v7370, %v7373
      %v7375 = vrot.slane %v7374, 4
      %v7377 = vshll.u32 %v7194, 16
      %v7379 = vrot.slane %v7377, 5
      %v7380 = vsel %vm939, %v7375, %v7379
      %v7381 = vshrl.u32 %v7194, 16
      %v7383 = vrot.slane %v7381, 4
      %v7384 = vor.u32 %v7383, %v7379
      %v7385 = vrot.slane %v7384, 4
      %v7387 = vshll.u32 %v7195, 16
      %v7389 = vrot.slane %v7387, 5
      %v7390 = vsel %vm939, %v7385, %v7389
      %v7392 = vshrl.u32 %v7196, 16
      %v7394 = vrot.slane %v7392, 4
      %v7395 = vshll.u32 %v7196, 16
      %v7397 = vrot.slane %v7395, 5
      %v7398 = vor.u32 %v7394, %v7397
      %v7399 = vrot.slane %v7398, 4
      %v7401 = vshll.u32 %v7197, 16
      %v7403 = vrot.slane %v7401, 5
      %v7404 = vsel %vm939, %v7399, %v7403
      %v7405 = vshrl.u32 %v7197, 16
      %v7407 = vrot.slane %v7405, 4
      %v7408 = vor.u32 %v7407, %v7403
      %v7409 = vrot.slane %v7408, 4
      %v7411 = vshll.u32 %v7198, 16
      %v7413 = vrot.slane %v7411, 5
      %v7414 = vsel %vm939, %v7409, %v7413
      %v7416 = vshrl.u32 %v7199, 16
      %v7418 = vrot.slane %v7416, 4
      %v7419 = vshll.u32 %v7199, 16
      %v7421 = vrot.slane %v7419, 5
      %v7422 = vor.u32 %v7418, %v7421
      %v7423 = vrot.slane %v7422, 4
      %v7425 = vshll.u32 %v7200, 16
      %v7427 = vrot.slane %v7425, 5
      %v7428 = vsel %vm939, %v7423, %v7427
      %v7429 = vshrl.u32 %v7200, 16
      %v7431 = vrot.slane %v7429, 4
      %v7432 = vor.u32 %v7431, %v7427
      %v7433 = vrot.slane %v7432, 4
      %v7435 = vshll.u32 %v7201, 16
      %v7437 = vrot.slane %v7435, 5
      %v7438 = vsel %vm939, %v7433, %v7437
      %v7440 = vshrl.u32 %v7202, 16
      %v7442 = vrot.slane %v7440, 4
      %v7443 = vshll.u32 %v7202, 16
      %v7445 = vrot.slane %v7443, 5
      %v7446 = vor.u32 %v7442, %v7445
      %v7447 = vrot.slane %v7446, 4
      %v7449 = vshll.u32 %v7203, 16
      %v7451 = vrot.slane %v7449, 5
      %v7452 = vsel %vm939, %v7447, %v7451
      %v7453 = vshrl.u32 %v7203, 16
      %v7455 = vrot.slane %v7453, 4
      %v7456 = vor.u32 %v7455, %v7451
      %v7457 = vrot.slane %v7456, 4
      %v7459 = vshll.u32 %v7204, 16
      %v7461 = vrot.slane %v7459, 5
      %v7462 = vsel %vm939, %v7457, %v7461
      %v7464 = vshrl.u32 %v7205, 16
      %v7466 = vrot.slane %v7464, 4
      %v7467 = vshll.u32 %v7205, 16
      %v7469 = vrot.slane %v7467, 5
      %v7470 = vor.u32 %v7466, %v7469
      %v7471 = vrot.slane %v7470, 4
      %v7473 = vshll.u32 %v7206, 16
      %v7475 = vrot.slane %v7473, 5
      %v7476 = vsel %vm939, %v7471, %v7475
      %v7477 = vshrl.u32 %v7206, 16
      %v7479 = vrot.slane %v7477, 4
      %v7480 = vor.u32 %v7479, %v7475
      %v7481 = vrot.slane %v7480, 4
      %v7483 = vshll.u32 %v7207, 16
      %v7485 = vrot.slane %v7483, 5
      %v7486 = vsel %vm939, %v7481, %v7485
      %v7488 = vshrl.u32 %v7208, 16
      %v7490 = vrot.slane %v7488, 4
      %v7491 = vshll.u32 %v7208, 16
      %v7493 = vrot.slane %v7491, 5
      %v7494 = vor.u32 %v7490, %v7493
      %v7495 = vrot.slane %v7494, 4
      %v7497 = vshll.u32 %v7209, 16
      %v7499 = vrot.slane %v7497, 5
      %v7500 = vsel %vm939, %v7495, %v7499
      %v7501 = vshrl.u32 %v7209, 16
      %v7503 = vrot.slane %v7501, 4
      %v7504 = vor.u32 %v7503, %v7499
      %v7505 = vrot.slane %v7504, 4
      %v7507 = vshll.u32 %v7210, 16
      %v7509 = vrot.slane %v7507, 5
      %v7510 = vsel %vm939, %v7505, %v7509
      %v7512 = vshrl.u32 %v7211, 16
      %v7514 = vrot.slane %v7512, 4
      %v7515 = vshll.u32 %v7211, 16
      %v7517 = vrot.slane %v7515, 5
      %v7518 = vor.u32 %v7514, %v7517
      %v7519 = vrot.slane %v7518, 4
      %v7521 = vshll.u32 %v7212, 16
      %v7523 = vrot.slane %v7521, 5
      %v7524 = vsel %vm939, %v7519, %v7523
      %v7525 = vshrl.u32 %v7212, 16
      %v7527 = vrot.slane %v7525, 4
      %v7528 = vor.u32 %v7527, %v7523
      %v7529 = vrot.slane %v7528, 4
      %v7531 = vshll.u32 %v7213, 16
      %v7533 = vrot.slane %v7531, 5
      %v7534 = vsel %vm939, %v7529, %v7533
      %v7536 = vshrl.u32 %v7214, 16
      %v7538 = vrot.slane %v7536, 4
      %v7539 = vshll.u32 %v7214, 16
      %v7541 = vrot.slane %v7539, 5
      %v7542 = vor.u32 %v7538, %v7541
      %v7543 = vrot.slane %v7542, 4
      %v7545 = vshll.u32 %v7215, 16
      %v7547 = vrot.slane %v7545, 5
      %v7548 = vsel %vm939, %v7543, %v7547
      %v7549 = vshrl.u32 %v7215, 16
      %v7551 = vrot.slane %v7549, 4
      %v7552 = vor.u32 %v7551, %v7547
      %v7553 = vrot.slane %v7552, 4
      %v7555 = vshll.u32 %v7216, 16
      %v7557 = vrot.slane %v7555, 5
      %v7558 = vsel %vm939, %v7553, %v7557
      %v7560 = vshrl.u32 %v7217, 16
      %v7562 = vrot.slane %v7560, 4
      %v7563 = vshll.u32 %v7217, 16
      %v7565 = vrot.slane %v7563, 5
      %v7566 = vor.u32 %v7562, %v7565
      %v7567 = vrot.slane %v7566, 4
      %v7569 = vshll.u32 %v7218, 16
      %v7571 = vrot.slane %v7569, 5
      %v7572 = vsel %vm939, %v7567, %v7571
      %v7573 = vshrl.u32 %v7218, 16
      %v7575 = vrot.slane %v7573, 4
      %v7576 = vor.u32 %v7575, %v7571
      %v7577 = vrot.slane %v7576, 4
      %v7579 = vshll.u32 %v7219, 16
      %v7581 = vrot.slane %v7579, 5
      %v7582 = vsel %vm939, %v7577, %v7581
      %v7584 = vshrl.u32 %v7220, 16
      %v7586 = vrot.slane %v7584, 4
      %v7587 = vshll.u32 %v7220, 16
      %v7589 = vrot.slane %v7587, 5
      %v7590 = vor.u32 %v7586, %v7589
      %v7591 = vrot.slane %v7590, 4
      %v7593 = vshll.u32 %v7221, 16
      %v7595 = vrot.slane %v7593, 5
      %v7596 = vsel %vm939, %v7591, %v7595
      %v7597 = vshrl.u32 %v7221, 16
      %v7599 = vrot.slane %v7597, 4
      %v7600 = vor.u32 %v7599, %v7595
      %v7601 = vrot.slane %v7600, 4
      %v7603 = vshll.u32 %v7222, 16
      %v7605 = vrot.slane %v7603, 5
      %v7606 = vsel %vm939, %v7601, %v7605
      %s7607 = scalar_lea.vmem %s2, 28
      %v7608 = vld [vmem:[%s7607] sm:$0x7]
      %v7609 = vunpack.c.l.b16 %v7236
      %v7610 = vunpack.c.l.b16 %v7246
      %v7611 = vunpack.c.l.b16 %v7260
      %v7612 = vunpack.c.l.b16 %v7270
      %v7613 = vunpack.c.l.b16 %v7284
      %v7614 = vunpack.c.l.b16 %v7294
      %v7615 = vunpack.c.l.b16 %v7308
      %v7616 = vunpack.c.l.b16 %v7318
      %v7617 = vunpack.c.l.b16 %v7332
      %v7618 = vunpack.c.l.b16 %v7342
      %v7619 = vunpack.c.l.b16 %v7356
      %v7620 = vunpack.c.l.b16 %v7366
      %v7621 = vunpack.c.l.b16 %v7380
      %v7622 = vunpack.c.l.b16 %v7390
      %v7623 = vunpack.c.l.b16 %v7404
      %v7624 = vunpack.c.l.b16 %v7414
      %v7625 = vunpack.c.l.b16 %v7428
      %v7626 = vunpack.c.l.b16 %v7438
      %v7627 = vunpack.c.l.b16 %v7452
      %v7628 = vunpack.c.l.b16 %v7462
      %v7629 = vunpack.c.l.b16 %v7476
      %v7630 = vunpack.c.l.b16 %v7486
      %v7631 = vunpack.c.l.b16 %v7500
      %v7632 = vunpack.c.l.b16 %v7510
      %v7633 = vunpack.c.l.b16 %v7524
      %v7634 = vunpack.c.l.b16 %v7534
      %v7635 = vunpack.c.l.b16 %v7548
      %v7636 = vunpack.c.l.b16 %v7558
      %v7637 = vunpack.c.l.b16 %v7572
      %v7638 = vunpack.c.l.b16 %v7582
      %v7639 = vunpack.c.l.b16 %v7596
      %v7640 = vunpack.c.l.b16 %v7606
      %v7641 = vpack.c.b16 %v7610, %v7609
      %v7642 = vpack.c.b16 %v7612, %v7611
      %v7643 = vpack.c.b16 %v7614, %v7613
      %v7644 = vpack.c.b16 %v7616, %v7615
      %v7645 = vpack.c.b16 %v7618, %v7617
      %v7646 = vpack.c.b16 %v7620, %v7619
      %v7647 = vpack.c.b16 %v7622, %v7621
      %v7648 = vpack.c.b16 %v7624, %v7623
      %v7649 = vpack.c.b16 %v7626, %v7625
      %v7650 = vpack.c.b16 %v7628, %v7627
      %v7651 = vpack.c.b16 %v7630, %v7629
      %v7652 = vpack.c.b16 %v7632, %v7631
      %v7653 = vpack.c.b16 %v7634, %v7633
      %v7654 = vpack.c.b16 %v7636, %v7635
      %v7655 = vpack.c.b16 %v7638, %v7637
      %v7656 = vpack.c.b16 %v7640, %v7639
      %v7658 = vsel %vm673, %v7641, 0
      %v7661 = vsel %vm673, %v7642, 0
      %v7664 = vsel %vm673, %v7643, 0
      %v7667 = vsel %vm673, %v7644, 0
      %v7670 = vsel %vm673, %v7645, 0
      %v7673 = vsel %vm673, %v7646, 0
      %v7676 = vsel %vm673, %v7647, 0
      %v7679 = vsel %vm673, %v7648, 0
      %v7682 = vsel %vm673, %v7649, 0
      %v7685 = vsel %vm673, %v7650, 0
      %v7688 = vsel %vm673, %v7651, 0
      %v7691 = vsel %vm673, %v7652, 0
      %v7694 = vsel %vm673, %v7653, 0
      %v7697 = vsel %vm673, %v7654, 0
      %v7700 = vsel %vm673, %v7655, 0
      %v7703 = vsel %vm673, %v7656, 0
      %v7706 = vand.u32 %v7608, %v724
      %7708 = vmatprep.subr.bf16.mxu0 0
      %7709 = vmatpush1.bf16.msra.mxu0 %v7706
      %7710 = vmatprep.subr.bf16.mxu0 0
      %7711 = vmatpush1.bf16.msra.mxu0 0
      %7712 = vmatprep.subr.bf16.mxu0 0
      %7713 = vmatpush1.bf16.msra.mxu0 0
      %7714 = vmatprep.subr.bf16.mxu0 0
      %7715 = vmatpush1.bf16.msra.mxu0 0
      %7716 = vmatprep.subr.bf16.mxu0 0
      %7717 = vmatpush1.bf16.msra.mxu0 0
      %7718 = vmatprep.subr.bf16.mxu0 0
      %7719 = vmatpush1.bf16.msra.mxu0 0
      %7720 = vmatprep.subr.bf16.mxu0 0
      %7721 = vmatpush1.bf16.msra.mxu0 0
      %7722 = vmatprep.subr.bf16.mxu0 0
      %7723 = vmatpush1.bf16.msra.mxu0 0
      %7724 = vmatprep.subr.bf16.mxu0 0
      %7725 = vmatpush1.bf16.msra.mxu0 0
      %7726 = vmatprep.subr.bf16.mxu0 0
      %7727 = vmatpush1.bf16.msra.mxu0 0
      %7728 = vmatprep.subr.bf16.mxu0 0
      %7729 = vmatpush1.bf16.msra.mxu0 0
      %7730 = vmatprep.subr.bf16.mxu0 0
      %7731 = vmatpush1.bf16.msra.mxu0 0
      %7732 = vmatprep.subr.bf16.mxu0 0
      %7733 = vmatpush1.bf16.msra.mxu0 0
      %7734 = vmatprep.subr.bf16.mxu0 0
      %7735 = vmatpush1.bf16.msra.mxu0 0
      %7736 = vmatprep.subr.bf16.mxu0 0
      %7737 = vmatpush1.bf16.msra.mxu0 0
      %7738 = vmatprep.subr.bf16.mxu0 0
      %7739 = vmatpush1.bf16.msra.mxu0 0
      %7740 = vmatprep.mubr.bf16.mxu0 0
      %7741 = vmatmul.mubr.bf16.gmra.mrb[0].mxu0 %v7658
      %v7742 = vpop.f32.mrb[0].mxu0
      %v7743 = vadd.f32 0.0, %v7742
      %v7744 = vpop.f32.mrb[0].mxu0
      %v7745 = vpop.f32.mrb[0].mxu0
      %v7746 = vadd.f32 0.0, %v7745
      %v7747 = vpop.f32.mrb[0].mxu0
      %7748 = vmatprep.mubr.bf16.mxu0 0
      %7749 = vmatmul.mubr.bf16.gmra.mrb[0].mxu0 %v7661
      %v7750 = vpop.f32.mrb[0].mxu0
      %v7751 = vadd.f32 0.0, %v7750
      %v7752 = vpop.f32.mrb[0].mxu0
      %v7753 = vpop.f32.mrb[0].mxu0
      %v7754 = vadd.f32 0.0, %v7753
      %v7755 = vpop.f32.mrb[0].mxu0
      %7756 = vmatprep.mubr.bf16.mxu0 0
      %7757 = vmatmul.mubr.bf16.gmra.mrb[0].mxu0 %v7664
      %v7758 = vpop.f32.mrb[0].mxu0
      %v7759 = vadd.f32 0.0, %v7758
      %v7760 = vpop.f32.mrb[0].mxu0
      %v7761 = vpop.f32.mrb[0].mxu0
      %v7762 = vadd.f32 0.0, %v7761
      %v7763 = vpop.f32.mrb[0].mxu0
      %7764 = vmatprep.mubr.bf16.mxu0 0
      %7765 = vmatmul.mubr.bf16.gmra.mrb[0].mxu0 %v7667
      %v7766 = vpop.f32.mrb[0].mxu0
      %v7767 = vadd.f32 0.0, %v7766
      %v7768 = vpop.f32.mrb[0].mxu0
      %v7769 = vpop.f32.mrb[0].mxu0
      %v7770 = vadd.f32 0.0, %v7769
      %v7771 = vpop.f32.mrb[0].mxu0
      %7772 = vmatprep.mubr.bf16.mxu0 0
      %7773 = vmatmul.mubr.bf16.gmra.mrb[0].mxu0 %v7670
      %v7774 = vpop.f32.mrb[0].mxu0
      %v7775 = vadd.f32 0.0, %v7774
      %v7776 = vpop.f32.mrb[0].mxu0
      %v7777 = vpop.f32.mrb[0].mxu0
      %v7778 = vadd.f32 0.0, %v7777
      %v7779 = vpop.f32.mrb[0].mxu0
      %7780 = vmatprep.mubr.bf16.mxu0 0
      %7781 = vmatmul.mubr.bf16.gmra.mrb[0].mxu0 %v7673
      %v7782 = vpop.f32.mrb[0].mxu0
      %v7783 = vadd.f32 0.0, %v7782
      %v7784 = vpop.f32.mrb[0].mxu0
      %v7785 = vpop.f32.mrb[0].mxu0
      %v7786 = vadd.f32 0.0, %v7785
      %v7787 = vpop.f32.mrb[0].mxu0
      %7788 = vmatprep.mubr.bf16.mxu0 0
      %7789 = vmatmul.mubr.bf16.gmra.mrb[0].mxu0 %v7676
      %v7790 = vpop.f32.mrb[0].mxu0
      %v7791 = vadd.f32 0.0, %v7790
      %v7792 = vpop.f32.mrb[0].mxu0
      %v7793 = vpop.f32.mrb[0].mxu0
      %v7794 = vadd.f32 0.0, %v7793
      %v7795 = vpop.f32.mrb[0].mxu0
      %7796 = vmatprep.mubr.bf16.mxu0 0
      %7797 = vmatmul.mubr.bf16.gmra.mrb[0].mxu0 %v7679
      %v7798 = vpop.f32.mrb[0].mxu0
      %v7799 = vadd.f32 0.0, %v7798
      %v7800 = vpop.f32.mrb[0].mxu0
      %v7801 = vpop.f32.mrb[0].mxu0
      %v7802 = vadd.f32 0.0, %v7801
      %v7803 = vpop.f32.mrb[0].mxu0
      %7804 = vmatprep.mubr.bf16.mxu0 0
      %7805 = vmatmul.mubr.bf16.gmra.mrb[0].mxu0 %v7682
      %v7806 = vpop.f32.mrb[0].mxu0
      %v7807 = vadd.f32 0.0, %v7806
      %v7808 = vpop.f32.mrb[0].mxu0
      %v7809 = vpop.f32.mrb[0].mxu0
      %v7810 = vadd.f32 0.0, %v7809
      %v7811 = vpop.f32.mrb[0].mxu0
      %7812 = vmatprep.mubr.bf16.mxu0 0
      %7813 = vmatmul.mubr.bf16.gmra.mrb[0].mxu0 %v7685
      %v7814 = vpop.f32.mrb[0].mxu0
      %v7815 = vadd.f32 0.0, %v7814
      %v7816 = vpop.f32.mrb[0].mxu0
      %v7817 = vpop.f32.mrb[0].mxu0
      %v7818 = vadd.f32 0.0, %v7817
      %v7819 = vpop.f32.mrb[0].mxu0
      %7820 = vmatprep.mubr.bf16.mxu0 0
      %7821 = vmatmul.mubr.bf16.gmra.mrb[0].mxu0 %v7688
      %v7822 = vpop.f32.mrb[0].mxu0
      %v7823 = vadd.f32 0.0, %v7822
      %v7824 = vpop.f32.mrb[0].mxu0
      %v7825 = vpop.f32.mrb[0].mxu0
      %v7826 = vadd.f32 0.0, %v7825
      %v7827 = vpop.f32.mrb[0].mxu0
      %7828 = vmatprep.mubr.bf16.mxu0 0
      %7829 = vmatmul.mubr.bf16.gmra.mrb[0].mxu0 %v7691
      %v7830 = vpop.f32.mrb[0].mxu0
      %v7831 = vadd.f32 0.0, %v7830
      %v7832 = vpop.f32.mrb[0].mxu0
      %v7833 = vpop.f32.mrb[0].mxu0
      %v7834 = vadd.f32 0.0, %v7833
      %v7835 = vpop.f32.mrb[0].mxu0
      %7836 = vmatprep.mubr.bf16.mxu0 0
      %7837 = vmatmul.mubr.bf16.gmra.mrb[0].mxu0 %v7694
      %v7838 = vpop.f32.mrb[0].mxu0
      %v7839 = vadd.f32 0.0, %v7838
      %v7840 = vpop.f32.mrb[0].mxu0
      %v7841 = vpop.f32.mrb[0].mxu0
      %v7842 = vadd.f32 0.0, %v7841
      %v7843 = vpop.f32.mrb[0].mxu0
      %7844 = vmatprep.mubr.bf16.mxu0 0
      %7845 = vmatmul.mubr.bf16.gmra.mrb[0].mxu0 %v7697
      %v7846 = vpop.f32.mrb[0].mxu0
      %v7847 = vadd.f32 0.0, %v7846
      %v7848 = vpop.f32.mrb[0].mxu0
      %v7849 = vpop.f32.mrb[0].mxu0
      %v7850 = vadd.f32 0.0, %v7849
      %v7851 = vpop.f32.mrb[0].mxu0
      %7852 = vmatprep.mubr.bf16.mxu0 0
      %7853 = vmatmul.mubr.bf16.gmra.mrb[0].mxu0 %v7700
      %v7854 = vpop.f32.mrb[0].mxu0
      %v7855 = vadd.f32 0.0, %v7854
      %v7856 = vpop.f32.mrb[0].mxu0
      %v7857 = vpop.f32.mrb[0].mxu0
      %v7858 = vadd.f32 0.0, %v7857
      %v7859 = vpop.f32.mrb[0].mxu0
      %7860 = vmatprep.mubr.bf16.mxu0 0
      %7861 = vmatmul.mubr.bf16.gmra.mrb[0].mxu0 %v7703
      %v7862 = vpop.f32.mrb[0].mxu0
      %v7863 = vadd.f32 0.0, %v7862
      %v7864 = vpop.f32.mrb[0].mxu0
      %v7865 = vpop.f32.mrb[0].mxu0
      %v7866 = vadd.f32 0.0, %v7865
      %v7867 = vpop.f32.mrb[0].mxu0
      %7868 = vdwg.mxu0
      %v7869 = vadd.f32 %v7143, %v7743
      %v7870 = vadd.f32 %v7144, %v7746
      %v7871 = vadd.f32 %v7145, %v7751
      %v7872 = vadd.f32 %v7146, %v7754
      %v7873 = vadd.f32 %v7147, %v7759
      %v7874 = vadd.f32 %v7148, %v7762
      %v7875 = vadd.f32 %v7149, %v7767
      %v7876 = vadd.f32 %v7150, %v7770
      %v7877 = vadd.f32 %v7151, %v7775
      %v7878 = vadd.f32 %v7152, %v7778
      %v7879 = vadd.f32 %v7153, %v7783
      %v7880 = vadd.f32 %v7154, %v7786
      %v7881 = vadd.f32 %v7155, %v7791
      %v7882 = vadd.f32 %v7156, %v7794
      %v7883 = vadd.f32 %v7157, %v7799
      %v7884 = vadd.f32 %v7158, %v7802
      %v7885 = vadd.f32 %v7159, %v7807
      %v7886 = vadd.f32 %v7160, %v7810
      %v7887 = vadd.f32 %v7161, %v7815
      %v7888 = vadd.f32 %v7162, %v7818
      %v7889 = vadd.f32 %v7163, %v7823
      %v7890 = vadd.f32 %v7164, %v7826
      %v7891 = vadd.f32 %v7165, %v7831
      %v7892 = vadd.f32 %v7166, %v7834
      %v7893 = vadd.f32 %v7167, %v7839
      %v7894 = vadd.f32 %v7168, %v7842
      %v7895 = vadd.f32 %v7169, %v7847
      %v7896 = vadd.f32 %v7170, %v7850
      %v7897 = vadd.f32 %v7171, %v7855
      %v7898 = vadd.f32 %v7172, %v7858
      %v7899 = vadd.f32 %v7173, %v7863
      %v7900 = vadd.f32 %v7174, %v7866
      %v7901 = vld [vmem:[%s6806] sm:$0xf]
      %v7902 = vld [vmem:[%s6806 + $0x4] sm:$0xf]
      %v7903 = vld [vmem:[%s6806 + $0x8] sm:$0x1]
      %v7904 = vld [vmem:[%s6806 + $0xc] sm:$0xf]
      %v7905 = vld [vmem:[%s6806 + $0x10] sm:$0xf]
      %v7906 = vld [vmem:[%s6806 + $0x14] sm:$0x1]
      %v7907 = vld [vmem:[%s6806 + $0x18] sm:$0xf]
      %v7908 = vld [vmem:[%s6806 + $0x1c] sm:$0xf]
      %v7909 = vld [vmem:[%s6806 + $0x20] sm:$0x1]
      %v7910 = vld [vmem:[%s6806 + $0x24] sm:$0xf]
      %v7911 = vld [vmem:[%s6806 + $0x28] sm:$0xf]
      %v7912 = vld [vmem:[%s6806 + $0x2c] sm:$0x1]
      %v7913 = vld [vmem:[%s6806 + $0x30] sm:$0xf]
      %v7914 = vld [vmem:[%s6806 + $0x34] sm:$0xf]
      %v7915 = vld [vmem:[%s6806 + $0x38] sm:$0x1]
      %v7916 = vld [vmem:[%s6806 + $0x3c] sm:$0xf]
      %v7917 = vld [vmem:[%s6806 + $0x40] sm:$0xf]
      %v7918 = vld [vmem:[%s6806 + $0x44] sm:$0x1]
      %v7919 = vld [vmem:[%s6806 + $0x48] sm:$0xf]
      %v7920 = vld [vmem:[%s6806 + $0x4c] sm:$0xf]
      %v7921 = vld [vmem:[%s6806 + $0x50] sm:$0x1]
      %v7922 = vld [vmem:[%s6806 + $0x54] sm:$0xf]
      %v7923 = vld [vmem:[%s6806 + $0x58] sm:$0xf]
      %v7924 = vld [vmem:[%s6806 + $0x5c] sm:$0x1]
      %v7925 = vld [vmem:[%s6806 + $0x60] sm:$0xf]
      %v7926 = vld [vmem:[%s6806 + $0x64] sm:$0xf]
      %v7927 = vld [vmem:[%s6806 + $0x68] sm:$0x1]
      %v7928 = vld [vmem:[%s6806 + $0x6c] sm:$0xf]
      %v7929 = vld [vmem:[%s6806 + $0x70] sm:$0xf]
      %v7930 = vld [vmem:[%s6806 + $0x74] sm:$0x1]
      %v7931 = vld [vmem:[%s6806 + $0x78] sm:$0xf]
      %v7932 = vld [vmem:[%s6806 + $0x7c] sm:$0xf]
      %v7933 = vld [vmem:[%s6806 + $0x80] sm:$0x1]
      %v7934 = vld [vmem:[%s6806 + $0x84] sm:$0xf]
      %v7935 = vld [vmem:[%s6806 + $0x88] sm:$0xf]
      %v7936 = vld [vmem:[%s6806 + $0x8c] sm:$0x1]
      %v7937 = vld [vmem:[%s6806 + $0x90] sm:$0xf]
      %v7938 = vld [vmem:[%s6806 + $0x94] sm:$0xf]
      %v7939 = vld [vmem:[%s6806 + $0x98] sm:$0x1]
      %v7940 = vld [vmem:[%s6806 + $0x9c] sm:$0xf]
      %v7941 = vld [vmem:[%s6806 + $0xa0] sm:$0xf]
      %v7942 = vld [vmem:[%s6806 + $0xa4] sm:$0x1]
      %v7943 = vld [vmem:[%s6806 + $0xa8] sm:$0xf]
      %v7944 = vld [vmem:[%s6806 + $0xac] sm:$0xf]
      %v7945 = vld [vmem:[%s6806 + $0xb0] sm:$0x1]
      %v7946 = vld [vmem:[%s6806 + $0xb4] sm:$0xf]
      %v7947 = vld [vmem:[%s6806 + $0xb8] sm:$0xf]
      %v7948 = vld [vmem:[%s6806 + $0xbc] sm:$0x1]
      %v7950 = vshrl.u32 %v7901, 16
      %v7952 = vrot.slane %v7950, 4
      %v7953 = vshll.u32 %v7901, 16
      %v7955 = vrot.slane %v7953, 5
      %v7956 = vor.u32 %v7952, %v7955
      %v7957 = vrot.slane %v7956, 4
      %v7959 = vshll.u32 %v7902, 16
      %v7961 = vrot.slane %v7959, 5
      %v7962 = vsel %vm939, %v7957, %v7961
      %v7963 = vshrl.u32 %v7902, 16
      %v7965 = vrot.slane %v7963, 4
      %v7966 = vor.u32 %v7965, %v7961
      %v7967 = vrot.slane %v7966, 4
      %v7969 = vshll.u32 %v7903, 16
      %v7971 = vrot.slane %v7969, 5
      %v7972 = vsel %vm939, %v7967, %v7971
      %v7974 = vshrl.u32 %v7904, 16
      %v7976 = vrot.slane %v7974, 4
      %v7977 = vshll.u32 %v7904, 16
      %v7979 = vrot.slane %v7977, 5
      %v7980 = vor.u32 %v7976, %v7979
      %v7981 = vrot.slane %v7980, 4
      %v7983 = vshll.u32 %v7905, 16
      %v7985 = vrot.slane %v7983, 5
      %v7986 = vsel %vm939, %v7981, %v7985
      %v7987 = vshrl.u32 %v7905, 16
      %v7989 = vrot.slane %v7987, 4
      %v7990 = vor.u32 %v7989, %v7985
      %v7991 = vrot.slane %v7990, 4
      %v7993 = vshll.u32 %v7906, 16
      %v7995 = vrot.slane %v7993, 5
      %v7996 = vsel %vm939, %v7991, %v7995
      %v7998 = vshrl.u32 %v7907, 16
      %v8000 = vrot.slane %v7998, 4
      %v8001 = vshll.u32 %v7907, 16
      %v8003 = vrot.slane %v8001, 5
      %v8004 = vor.u32 %v8000, %v8003
      %v8005 = vrot.slane %v8004, 4
      %v8007 = vshll.u32 %v7908, 16
      %v8009 = vrot.slane %v8007, 5
      %v8010 = vsel %vm939, %v8005, %v8009
      %v8011 = vshrl.u32 %v7908, 16
      %v8013 = vrot.slane %v8011, 4
      %v8014 = vor.u32 %v8013, %v8009
      %v8015 = vrot.slane %v8014, 4
      %v8017 = vshll.u32 %v7909, 16
      %v8019 = vrot.slane %v8017, 5
      %v8020 = vsel %vm939, %v8015, %v8019
      %v8022 = vshrl.u32 %v7910, 16
      %v8024 = vrot.slane %v8022, 4
      %v8025 = vshll.u32 %v7910, 16
      %v8027 = vrot.slane %v8025, 5
      %v8028 = vor.u32 %v8024, %v8027
      %v8029 = vrot.slane %v8028, 4
      %v8031 = vshll.u32 %v7911, 16
      %v8033 = vrot.slane %v8031, 5
      %v8034 = vsel %vm939, %v8029, %v8033
      %v8035 = vshrl.u32 %v7911, 16
      %v8037 = vrot.slane %v8035, 4
      %v8038 = vor.u32 %v8037, %v8033
      %v8039 = vrot.slane %v8038, 4
      %v8041 = vshll.u32 %v7912, 16
      %v8043 = vrot.slane %v8041, 5
      %v8044 = vsel %vm939, %v8039, %v8043
      %v8046 = vshrl.u32 %v7913, 16
      %v8048 = vrot.slane %v8046, 4
      %v8049 = vshll.u32 %v7913, 16
      %v8051 = vrot.slane %v8049, 5
      %v8052 = vor.u32 %v8048, %v8051
      %v8053 = vrot.slane %v8052, 4
      %v8055 = vshll.u32 %v7914, 16
      %v8057 = vrot.slane %v8055, 5
      %v8058 = vsel %vm939, %v8053, %v8057
      %v8059 = vshrl.u32 %v7914, 16
      %v8061 = vrot.slane %v8059, 4
      %v8062 = vor.u32 %v8061, %v8057
      %v8063 = vrot.slane %v8062, 4
      %v8065 = vshll.u32 %v7915, 16
      %v8067 = vrot.slane %v8065, 5
      %v8068 = vsel %vm939, %v8063, %v8067
      %v8070 = vshrl.u32 %v7916, 16
      %v8072 = vrot.slane %v8070, 4
      %v8073 = vshll.u32 %v7916, 16
      %v8075 = vrot.slane %v8073, 5
      %v8076 = vor.u32 %v8072, %v8075
      %v8077 = vrot.slane %v8076, 4
      %v8079 = vshll.u32 %v7917, 16
      %v8081 = vrot.slane %v8079, 5
      %v8082 = vsel %vm939, %v8077, %v8081
      %v8083 = vshrl.u32 %v7917, 16
      %v8085 = vrot.slane %v8083, 4
      %v8086 = vor.u32 %v8085, %v8081
      %v8087 = vrot.slane %v8086, 4
      %v8089 = vshll.u32 %v7918, 16
      %v8091 = vrot.slane %v8089, 5
      %v8092 = vsel %vm939, %v8087, %v8091
      %v8094 = vshrl.u32 %v7919, 16
      %v8096 = vrot.slane %v8094, 4
      %v8097 = vshll.u32 %v7919, 16
      %v8099 = vrot.slane %v8097, 5
      %v8100 = vor.u32 %v8096, %v8099
      %v8101 = vrot.slane %v8100, 4
      %v8103 = vshll.u32 %v7920, 16
      %v8105 = vrot.slane %v8103, 5
      %v8106 = vsel %vm939, %v8101, %v8105
      %v8107 = vshrl.u32 %v7920, 16
      %v8109 = vrot.slane %v8107, 4
      %v8110 = vor.u32 %v8109, %v8105
      %v8111 = vrot.slane %v8110, 4
      %v8113 = vshll.u32 %v7921, 16
      %v8115 = vrot.slane %v8113, 5
      %v8116 = vsel %vm939, %v8111, %v8115
      %v8118 = vshrl.u32 %v7922, 16
      %v8120 = vrot.slane %v8118, 4
      %v8121 = vshll.u32 %v7922, 16
      %v8123 = vrot.slane %v8121, 5
      %v8124 = vor.u32 %v8120, %v8123
      %v8125 = vrot.slane %v8124, 4
      %v8127 = vshll.u32 %v7923, 16
      %v8129 = vrot.slane %v8127, 5
      %v8130 = vsel %vm939, %v8125, %v8129
      %v8131 = vshrl.u32 %v7923, 16
      %v8133 = vrot.slane %v8131, 4
      %v8134 = vor.u32 %v8133, %v8129
      %v8135 = vrot.slane %v8134, 4
      %v8137 = vshll.u32 %v7924, 16
      %v8139 = vrot.slane %v8137, 5
      %v8140 = vsel %vm939, %v8135, %v8139
      %v8142 = vshrl.u32 %v7925, 16
      %v8144 = vrot.slane %v8142, 4
      %v8145 = vshll.u32 %v7925, 16
      %v8147 = vrot.slane %v8145, 5
      %v8148 = vor.u32 %v8144, %v8147
      %v8149 = vrot.slane %v8148, 4
      %v8151 = vshll.u32 %v7926, 16
      %v8153 = vrot.slane %v8151, 5
      %v8154 = vsel %vm939, %v8149, %v8153
      %v8155 = vshrl.u32 %v7926, 16
      %v8157 = vrot.slane %v8155, 4
      %v8158 = vor.u32 %v8157, %v8153
      %v8159 = vrot.slane %v8158, 4
      %v8161 = vshll.u32 %v7927, 16
      %v8163 = vrot.slane %v8161, 5
      %v8164 = vsel %vm939, %v8159, %v8163
      %v8166 = vshrl.u32 %v7928, 16
      %v8168 = vrot.slane %v8166, 4
      %v8169 = vshll.u32 %v7928, 16
      %v8171 = vrot.slane %v8169, 5
      %v8172 = vor.u32 %v8168, %v8171
      %v8173 = vrot.slane %v8172, 4
      %v8175 = vshll.u32 %v7929, 16
      %v8177 = vrot.slane %v8175, 5
      %v8178 = vsel %vm939, %v8173, %v8177
      %v8179 = vshrl.u32 %v7929, 16
      %v8181 = vrot.slane %v8179, 4
      %v8182 = vor.u32 %v8181, %v8177
      %v8183 = vrot.slane %v8182, 4
      %v8185 = vshll.u32 %v7930, 16
      %v8187 = vrot.slane %v8185, 5
      %v8188 = vsel %vm939, %v8183, %v8187
      %v8190 = vshrl.u32 %v7931, 16
      %v8192 = vrot.slane %v8190, 4
      %v8193 = vshll.u32 %v7931, 16
      %v8195 = vrot.slane %v8193, 5
      %v8196 = vor.u32 %v8192, %v8195
      %v8197 = vrot.slane %v8196, 4
      %v8199 = vshll.u32 %v7932, 16
      %v8201 = vrot.slane %v8199, 5
      %v8202 = vsel %vm939, %v8197, %v8201
      %v8203 = vshrl.u32 %v7932, 16
      %v8205 = vrot.slane %v8203, 4
      %v8206 = vor.u32 %v8205, %v8201
      %v8207 = vrot.slane %v8206, 4
      %v8209 = vshll.u32 %v7933, 16
      %v8211 = vrot.slane %v8209, 5
      %v8212 = vsel %vm939, %v8207, %v8211
      %v8214 = vshrl.u32 %v7934, 16
      %v8216 = vrot.slane %v8214, 4
      %v8217 = vshll.u32 %v7934, 16
      %v8219 = vrot.slane %v8217, 5
      %v8220 = vor.u32 %v8216, %v8219
      %v8221 = vrot.slane %v8220, 4
      %v8223 = vshll.u32 %v7935, 16
      %v8225 = vrot.slane %v8223, 5
      %v8226 = vsel %vm939, %v8221, %v8225
      %v8227 = vshrl.u32 %v7935, 16
      %v8229 = vrot.slane %v8227, 4
      %v8230 = vor.u32 %v8229, %v8225
      %v8231 = vrot.slane %v8230, 4
      %v8233 = vshll.u32 %v7936, 16
      %v8235 = vrot.slane %v8233, 5
      %v8236 = vsel %vm939, %v8231, %v8235
      %v8238 = vshrl.u32 %v7937, 16
      %v8240 = vrot.slane %v8238, 4
      %v8241 = vshll.u32 %v7937, 16
      %v8243 = vrot.slane %v8241, 5
      %v8244 = vor.u32 %v8240, %v8243
      %v8245 = vrot.slane %v8244, 4
      %v8247 = vshll.u32 %v7938, 16
      %v8249 = vrot.slane %v8247, 5
      %v8250 = vsel %vm939, %v8245, %v8249
      %v8251 = vshrl.u32 %v7938, 16
      %v8253 = vrot.slane %v8251, 4
      %v8254 = vor.u32 %v8253, %v8249
      %v8255 = vrot.slane %v8254, 4
      %v8257 = vshll.u32 %v7939, 16
      %v8259 = vrot.slane %v8257, 5
      %v8260 = vsel %vm939, %v8255, %v8259
      %v8262 = vshrl.u32 %v7940, 16
      %v8264 = vrot.slane %v8262, 4
      %v8265 = vshll.u32 %v7940, 16
      %v8267 = vrot.slane %v8265, 5
      %v8268 = vor.u32 %v8264, %v8267
      %v8269 = vrot.slane %v8268, 4
      %v8271 = vshll.u32 %v7941, 16
      %v8273 = vrot.slane %v8271, 5
      %v8274 = vsel %vm939, %v8269, %v8273
      %v8275 = vshrl.u32 %v7941, 16
      %v8277 = vrot.slane %v8275, 4
      %v8278 = vor.u32 %v8277, %v8273
      %v8279 = vrot.slane %v8278, 4
      %v8281 = vshll.u32 %v7942, 16
      %v8283 = vrot.slane %v8281, 5
      %v8284 = vsel %vm939, %v8279, %v8283
      %v8286 = vshrl.u32 %v7943, 16
      %v8288 = vrot.slane %v8286, 4
      %v8289 = vshll.u32 %v7943, 16
      %v8291 = vrot.slane %v8289, 5
      %v8292 = vor.u32 %v8288, %v8291
      %v8293 = vrot.slane %v8292, 4
      %v8295 = vshll.u32 %v7944, 16
      %v8297 = vrot.slane %v8295, 5
      %v8298 = vsel %vm939, %v8293, %v8297
      %v8299 = vshrl.u32 %v7944, 16
      %v8301 = vrot.slane %v8299, 4
      %v8302 = vor.u32 %v8301, %v8297
      %v8303 = vrot.slane %v8302, 4
      %v8305 = vshll.u32 %v7945, 16
      %v8307 = vrot.slane %v8305, 5
      %v8308 = vsel %vm939, %v8303, %v8307
      %v8310 = vshrl.u32 %v7946, 16
      %v8312 = vrot.slane %v8310, 4
      %v8313 = vshll.u32 %v7946, 16
      %v8315 = vrot.slane %v8313, 5
      %v8316 = vor.u32 %v8312, %v8315
      %v8317 = vrot.slane %v8316, 4
      %v8319 = vshll.u32 %v7947, 16
      %v8321 = vrot.slane %v8319, 5
      %v8322 = vsel %vm939, %v8317, %v8321
      %v8323 = vshrl.u32 %v7947, 16
      %v8325 = vrot.slane %v8323, 4
      %v8326 = vor.u32 %v8325, %v8321
      %v8327 = vrot.slane %v8326, 4
      %v8329 = vshll.u32 %v7948, 16
      %v8331 = vrot.slane %v8329, 5
      %v8332 = vsel %vm939, %v8327, %v8331
      %v8333 = vld [vmem:[%s7607] sm:$0xc]
      %v8334 = vunpack.c.l.b16 %v7962
      %v8335 = vunpack.c.l.b16 %v7972
      %v8336 = vunpack.c.l.b16 %v7986
      %v8337 = vunpack.c.l.b16 %v7996
      %v8338 = vunpack.c.l.b16 %v8010
      %v8339 = vunpack.c.l.b16 %v8020
      %v8340 = vunpack.c.l.b16 %v8034
      %v8341 = vunpack.c.l.b16 %v8044
      %v8342 = vunpack.c.l.b16 %v8058
      %v8343 = vunpack.c.l.b16 %v8068
      %v8344 = vunpack.c.l.b16 %v8082
      %v8345 = vunpack.c.l.b16 %v8092
      %v8346 = vunpack.c.l.b16 %v8106
      %v8347 = vunpack.c.l.b16 %v8116
      %v8348 = vunpack.c.l.b16 %v8130
      %v8349 = vunpack.c.l.b16 %v8140
      %v8350 = vunpack.c.l.b16 %v8154
      %v8351 = vunpack.c.l.b16 %v8164
      %v8352 = vunpack.c.l.b16 %v8178
      %v8353 = vunpack.c.l.b16 %v8188
      %v8354 = vunpack.c.l.b16 %v8202
      %v8355 = vunpack.c.l.b16 %v8212
      %v8356 = vunpack.c.l.b16 %v8226
      %v8357 = vunpack.c.l.b16 %v8236
      %v8358 = vunpack.c.l.b16 %v8250
      %v8359 = vunpack.c.l.b16 %v8260
      %v8360 = vunpack.c.l.b16 %v8274
      %v8361 = vunpack.c.l.b16 %v8284
      %v8362 = vunpack.c.l.b16 %v8298
      %v8363 = vunpack.c.l.b16 %v8308
      %v8364 = vunpack.c.l.b16 %v8322
      %v8365 = vunpack.c.l.b16 %v8332
      %v8366 = vpack.c.b16 %v8335, %v8334
      %v8367 = vpack.c.b16 %v8337, %v8336
      %v8368 = vpack.c.b16 %v8339, %v8338
      %v8369 = vpack.c.b16 %v8341, %v8340
      %v8370 = vpack.c.b16 %v8343, %v8342
      %v8371 = vpack.c.b16 %v8345, %v8344
      %v8372 = vpack.c.b16 %v8347, %v8346
      %v8373 = vpack.c.b16 %v8349, %v8348
      %v8374 = vpack.c.b16 %v8351, %v8350
      %v8375 = vpack.c.b16 %v8353, %v8352
      %v8376 = vpack.c.b16 %v8355, %v8354
      %v8377 = vpack.c.b16 %v8357, %v8356
      %v8378 = vpack.c.b16 %v8359, %v8358
      %v8379 = vpack.c.b16 %v8361, %v8360
      %v8380 = vpack.c.b16 %v8363, %v8362
      %v8381 = vpack.c.b16 %v8365, %v8364
      %v8383 = vunpack.c.l.b16 %v8333
      %v8384 = vpack.c.b16 %v8383, %v8383
      %v8386 = vshrl.u32 %v8384, 16
      %v8388 = vrot.slane %v8386, 2
      %v8389 = vshll.u32 %v8384, 16
      %v8391 = vrot.slane %v8389, 3
      %v8392 = vor.u32 %v8388, %v8391
      %v8394 = vsel %vm376, %v8366, 0
      %v8397 = vsel %vm376, %v8367, 0
      %v8400 = vsel %vm376, %v8368, 0
      %v8403 = vsel %vm376, %v8369, 0
      %v8406 = vsel %vm376, %v8370, 0
      %v8409 = vsel %vm376, %v8371, 0
      %v8412 = vsel %vm376, %v8372, 0
      %v8415 = vsel %vm376, %v8373, 0
      %v8418 = vsel %vm376, %v8374, 0
      %v8421 = vsel %vm376, %v8375, 0
      %v8424 = vsel %vm376, %v8376, 0
      %v8427 = vsel %vm376, %v8377, 0
      %v8430 = vsel %vm376, %v8378, 0
      %v8433 = vsel %vm376, %v8379, 0
      %v8436 = vsel %vm376, %v8380, 0
      %v8439 = vsel %vm376, %v8381, 0
      %v8442 = vand.u32 %v8392, %v428
      %8444 = vmatprep.subr.bf16.mxu0 0
      %8445 = vmatpush1.bf16.msra.mxu0 %v8442
      %8446 = vmatprep.subr.bf16.mxu0 0
      %8447 = vmatpush1.bf16.msra.mxu0 0
      %8448 = vmatprep.subr.bf16.mxu0 0
      %8449 = vmatpush1.bf16.msra.mxu0 0
      %8450 = vmatprep.subr.bf16.mxu0 0
      %8451 = vmatpush1.bf16.msra.mxu0 0
      %8452 = vmatprep.subr.bf16.mxu0 0
      %8453 = vmatpush1.bf16.msra.mxu0 0
      %8454 = vmatprep.subr.bf16.mxu0 0
      %8455 = vmatpush1.bf16.msra.mxu0 0
      %8456 = vmatprep.subr.bf16.mxu0 0
      %8457 = vmatpush1.bf16.msra.mxu0 0
      %8458 = vmatprep.subr.bf16.mxu0 0
      %8459 = vmatpush1.bf16.msra.mxu0 0
      %8460 = vmatprep.subr.bf16.mxu0 0
      %8461 = vmatpush1.bf16.msra.mxu0 0
      %8462 = vmatprep.subr.bf16.mxu0 0
      %8463 = vmatpush1.bf16.msra.mxu0 0
      %8464 = vmatprep.subr.bf16.mxu0 0
      %8465 = vmatpush1.bf16.msra.mxu0 0
      %8466 = vmatprep.subr.bf16.mxu0 0
      %8467 = vmatpush1.bf16.msra.mxu0 0
      %8468 = vmatprep.subr.bf16.mxu0 0
      %8469 = vmatpush1.bf16.msra.mxu0 0
      %8470 = vmatprep.subr.bf16.mxu0 0
      %8471 = vmatpush1.bf16.msra.mxu0 0
      %8472 = vmatprep.subr.bf16.mxu0 0
      %8473 = vmatpush1.bf16.msra.mxu0 0
      %8474 = vmatprep.subr.bf16.mxu0 0
      %8475 = vmatpush1.bf16.msra.mxu0 0
      %8476 = vmatprep.mubr.bf16.mxu0 0
      %8477 = vmatmul.mubr.bf16.gmra.mrb[0].mxu0 %v8394
      %v8478 = vpop.f32.mrb[0].mxu0
      %v8479 = vadd.f32 0.0, %v8478
      %v8480 = vpop.f32.mrb[0].mxu0
      %v8481 = vpop.f32.mrb[0].mxu0
      %v8482 = vadd.f32 0.0, %v8481
      %v8483 = vpop.f32.mrb[0].mxu0
      %8484 = vmatprep.mubr.bf16.mxu0 0
      %8485 = vmatmul.mubr.bf16.gmra.mrb[0].mxu0 %v8397
      %v8486 = vpop.f32.mrb[0].mxu0
      %v8487 = vadd.f32 0.0, %v8486
      %v8488 = vpop.f32.mrb[0].mxu0
      %v8489 = vpop.f32.mrb[0].mxu0
      %v8490 = vadd.f32 0.0, %v8489
      %v8491 = vpop.f32.mrb[0].mxu0
      %8492 = vmatprep.mubr.bf16.mxu0 0
      %8493 = vmatmul.mubr.bf16.gmra.mrb[0].mxu0 %v8400
      %v8494 = vpop.f32.mrb[0].mxu0
      %v8495 = vadd.f32 0.0, %v8494
      %v8496 = vpop.f32.mrb[0].mxu0
      %v8497 = vpop.f32.mrb[0].mxu0
      %v8498 = vadd.f32 0.0, %v8497
      %v8499 = vpop.f32.mrb[0].mxu0
      %8500 = vmatprep.mubr.bf16.mxu0 0
      %8501 = vmatmul.mubr.bf16.gmra.mrb[0].mxu0 %v8403
      %v8502 = vpop.f32.mrb[0].mxu0
      %v8503 = vadd.f32 0.0, %v8502
      %v8504 = vpop.f32.mrb[0].mxu0
      %v8505 = vpop.f32.mrb[0].mxu0
      %v8506 = vadd.f32 0.0, %v8505
      %v8507 = vpop.f32.mrb[0].mxu0
      %8508 = vmatprep.mubr.bf16.mxu0 0
      %8509 = vmatmul.mubr.bf16.gmra.mrb[0].mxu0 %v8406
      %v8510 = vpop.f32.mrb[0].mxu0
      %v8511 = vadd.f32 0.0, %v8510
      %v8512 = vpop.f32.mrb[0].mxu0
      %v8513 = vpop.f32.mrb[0].mxu0
      %v8514 = vadd.f32 0.0, %v8513
      %v8515 = vpop.f32.mrb[0].mxu0
      %8516 = vmatprep.mubr.bf16.mxu0 0
      %8517 = vmatmul.mubr.bf16.gmra.mrb[0].mxu0 %v8409
      %v8518 = vpop.f32.mrb[0].mxu0
      %v8519 = vadd.f32 0.0, %v8518
      %v8520 = vpop.f32.mrb[0].mxu0
      %v8521 = vpop.f32.mrb[0].mxu0
      %v8522 = vadd.f32 0.0, %v8521
      %v8523 = vpop.f32.mrb[0].mxu0
      %8524 = vmatprep.mubr.bf16.mxu0 0
      %8525 = vmatmul.mubr.bf16.gmra.mrb[0].mxu0 %v8412
      %v8526 = vpop.f32.mrb[0].mxu0
      %v8527 = vadd.f32 0.0, %v8526
      %v8528 = vpop.f32.mrb[0].mxu0
      %v8529 = vpop.f32.mrb[0].mxu0
      %v8530 = vadd.f32 0.0, %v8529
      %v8531 = vpop.f32.mrb[0].mxu0
      %8532 = vmatprep.mubr.bf16.mxu0 0
      %8533 = vmatmul.mubr.bf16.gmra.mrb[0].mxu0 %v8415
      %v8534 = vpop.f32.mrb[0].mxu0
      %v8535 = vadd.f32 0.0, %v8534
      %v8536 = vpop.f32.mrb[0].mxu0
      %v8537 = vpop.f32.mrb[0].mxu0
      %v8538 = vadd.f32 0.0, %v8537
      %v8539 = vpop.f32.mrb[0].mxu0
      %8540 = vmatprep.mubr.bf16.mxu0 0
      %8541 = vmatmul.mubr.bf16.gmra.mrb[0].mxu0 %v8418
      %v8542 = vpop.f32.mrb[0].mxu0
      %v8543 = vadd.f32 0.0, %v8542
      %v8544 = vpop.f32.mrb[0].mxu0
      %v8545 = vpop.f32.mrb[0].mxu0
      %v8546 = vadd.f32 0.0, %v8545
      %v8547 = vpop.f32.mrb[0].mxu0
      %8548 = vmatprep.mubr.bf16.mxu0 0
      %8549 = vmatmul.mubr.bf16.gmra.mrb[0].mxu0 %v8421
      %v8550 = vpop.f32.mrb[0].mxu0
      %v8551 = vadd.f32 0.0, %v8550
      %v8552 = vpop.f32.mrb[0].mxu0
      %v8553 = vpop.f32.mrb[0].mxu0
      %v8554 = vadd.f32 0.0, %v8553
      %v8555 = vpop.f32.mrb[0].mxu0
      %8556 = vmatprep.mubr.bf16.mxu0 0
      %8557 = vmatmul.mubr.bf16.gmra.mrb[0].mxu0 %v8424
      %v8558 = vpop.f32.mrb[0].mxu0
      %v8559 = vadd.f32 0.0, %v8558
      %v8560 = vpop.f32.mrb[0].mxu0
      %v8561 = vpop.f32.mrb[0].mxu0
      %v8562 = vadd.f32 0.0, %v8561
      %v8563 = vpop.f32.mrb[0].mxu0
      %8564 = vmatprep.mubr.bf16.mxu0 0
      %8565 = vmatmul.mubr.bf16.gmra.mrb[0].mxu0 %v8427
      %v8566 = vpop.f32.mrb[0].mxu0
      %v8567 = vadd.f32 0.0, %v8566
      %v8568 = vpop.f32.mrb[0].mxu0
      %v8569 = vpop.f32.mrb[0].mxu0
      %v8570 = vadd.f32 0.0, %v8569
      %v8571 = vpop.f32.mrb[0].mxu0
      %8572 = vmatprep.mubr.bf16.mxu0 0
      %8573 = vmatmul.mubr.bf16.gmra.mrb[0].mxu0 %v8430
      %v8574 = vpop.f32.mrb[0].mxu0
      %v8575 = vadd.f32 0.0, %v8574
      %v8576 = vpop.f32.mrb[0].mxu0
      %v8577 = vpop.f32.mrb[0].mxu0
      %v8578 = vadd.f32 0.0, %v8577
      %v8579 = vpop.f32.mrb[0].mxu0
      %8580 = vmatprep.mubr.bf16.mxu0 0
      %8581 = vmatmul.mubr.bf16.gmra.mrb[0].mxu0 %v8433
      %v8582 = vpop.f32.mrb[0].mxu0
      %v8583 = vadd.f32 0.0, %v8582
      %v8584 = vpop.f32.mrb[0].mxu0
      %v8585 = vpop.f32.mrb[0].mxu0
      %v8586 = vadd.f32 0.0, %v8585
      %v8587 = vpop.f32.mrb[0].mxu0
      %8588 = vmatprep.mubr.bf16.mxu0 0
      %8589 = vmatmul.mubr.bf16.gmra.mrb[0].mxu0 %v8436
      %v8590 = vpop.f32.mrb[0].mxu0
      %v8591 = vadd.f32 0.0, %v8590
      %v8592 = vpop.f32.mrb[0].mxu0
      %v8593 = vpop.f32.mrb[0].mxu0
      %v8594 = vadd.f32 0.0, %v8593
      %v8595 = vpop.f32.mrb[0].mxu0
      %8596 = vmatprep.mubr.bf16.mxu0 0
      %8597 = vmatmul.mubr.bf16.gmra.mrb[0].mxu0 %v8439
      %v8598 = vpop.f32.mrb[0].mxu0
      %v8599 = vadd.f32 0.0, %v8598
      %v8600 = vpop.f32.mrb[0].mxu0
      %v8601 = vpop.f32.mrb[0].mxu0
      %v8602 = vadd.f32 0.0, %v8601
      %v8603 = vpop.f32.mrb[0].mxu0
      %8604 = vdwg.mxu0
      %v8605 = vadd.f32 %v7869, %v8479
      %v8606 = vadd.f32 %v7870, %v8482
      %v8607 = vadd.f32 %v7871, %v8487
      %v8608 = vadd.f32 %v7872, %v8490
      %v8609 = vadd.f32 %v7873, %v8495
      %v8610 = vadd.f32 %v7874, %v8498
      %v8611 = vadd.f32 %v7875, %v8503
      %v8612 = vadd.f32 %v7876, %v8506
      %v8613 = vadd.f32 %v7877, %v8511
      %v8614 = vadd.f32 %v7878, %v8514
      %v8615 = vadd.f32 %v7879, %v8519
      %v8616 = vadd.f32 %v7880, %v8522
      %v8617 = vadd.f32 %v7881, %v8527
      %v8618 = vadd.f32 %v7882, %v8530
      %v8619 = vadd.f32 %v7883, %v8535
      %v8620 = vadd.f32 %v7884, %v8538
      %v8621 = vadd.f32 %v7885, %v8543
      %v8622 = vadd.f32 %v7886, %v8546
      %v8623 = vadd.f32 %v7887, %v8551
      %v8624 = vadd.f32 %v7888, %v8554
      %v8625 = vadd.f32 %v7889, %v8559
      %v8626 = vadd.f32 %v7890, %v8562
      %v8627 = vadd.f32 %v7891, %v8567
      %v8628 = vadd.f32 %v7892, %v8570
      %v8629 = vadd.f32 %v7893, %v8575
      %v8630 = vadd.f32 %v7894, %v8578
      %v8631 = vadd.f32 %v7895, %v8583
      %v8632 = vadd.f32 %v7896, %v8586
      %v8633 = vadd.f32 %v7897, %v8591
      %v8634 = vadd.f32 %v7898, %v8594
      %v8635 = vadd.f32 %v7899, %v8599
      %v8636 = vadd.f32 %v7900, %v8602
      %v8637 = vld [vmem:[%s6447] sm:$0xe]
      %v8638 = vld [vmem:[%s6447 + $0xc] sm:$0xe]
      %v8639 = vld [vmem:[%s6447 + $0x18] sm:$0xe]
      %v8640 = vld [vmem:[%s6447 + $0x24] sm:$0xe]
      %v8641 = vld [vmem:[%s6447 + $0x30] sm:$0xe]
      %v8642 = vld [vmem:[%s6447 + $0x3c] sm:$0xe]
      %v8643 = vld [vmem:[%s6447 + $0x48] sm:$0xe]
      %v8644 = vld [vmem:[%s6447 + $0x54] sm:$0xe]
      %v8645 = vld [vmem:[%s6447 + $0x60] sm:$0xe]
      %v8646 = vld [vmem:[%s6447 + $0x6c] sm:$0xe]
      %v8647 = vld [vmem:[%s6447 + $0x78] sm:$0xe]
      %v8648 = vld [vmem:[%s6447 + $0x84] sm:$0xe]
      %v8649 = vld [vmem:[%s6447 + $0x90] sm:$0xe]
      %v8650 = vld [vmem:[%s6447 + $0x9c] sm:$0xe]
      %v8651 = vld [vmem:[%s6447 + $0xa8] sm:$0xe]
      %v8652 = vld [vmem:[%s6447 + $0xb4] sm:$0xe]
      %v8701 = vrot.slane %v8637, 5
      %v8702 = vrot.slane %v8701, 4
      %v8703 = vrot.slane %v7176, 5
      %v8704 = vsel %vm2420, %v8702, %v8703
      %v8705 = vrot.slane %v8703, 4
      %v8706 = vrot.slane %v7177, 5
      %v8707 = vsel %vm2420, %v8705, %v8706
      %v8708 = vrot.slane %v8638, 5
      %v8709 = vrot.slane %v8708, 4
      %v8710 = vrot.slane %v7179, 5
      %v8711 = vsel %vm2420, %v8709, %v8710
      %v8712 = vrot.slane %v8710, 4
      %v8713 = vrot.slane %v7180, 5
      %v8714 = vsel %vm2420, %v8712, %v8713
      %v8715 = vrot.slane %v8639, 5
      %v8716 = vrot.slane %v8715, 4
      %v8717 = vrot.slane %v7182, 5
      %v8718 = vsel %vm2420, %v8716, %v8717
      %v8719 = vrot.slane %v8717, 4
      %v8720 = vrot.slane %v7183, 5
      %v8721 = vsel %vm2420, %v8719, %v8720
      %v8722 = vrot.slane %v8640, 5
      %v8723 = vrot.slane %v8722, 4
      %v8724 = vrot.slane %v7185, 5
      %v8725 = vsel %vm2420, %v8723, %v8724
      %v8726 = vrot.slane %v8724, 4
      %v8727 = vrot.slane %v7186, 5
      %v8728 = vsel %vm2420, %v8726, %v8727
      %v8729 = vrot.slane %v8641, 5
      %v8730 = vrot.slane %v8729, 4
      %v8731 = vrot.slane %v7188, 5
      %v8732 = vsel %vm2420, %v8730, %v8731
      %v8733 = vrot.slane %v8731, 4
      %v8734 = vrot.slane %v7189, 5
      %v8735 = vsel %vm2420, %v8733, %v8734
      %v8736 = vrot.slane %v8642, 5
      %v8737 = vrot.slane %v8736, 4
      %v8738 = vrot.slane %v7191, 5
      %v8739 = vsel %vm2420, %v8737, %v8738
      %v8740 = vrot.slane %v8738, 4
      %v8741 = vrot.slane %v7192, 5
      %v8742 = vsel %vm2420, %v8740, %v8741
      %v8743 = vrot.slane %v8643, 5
      %v8744 = vrot.slane %v8743, 4
      %v8745 = vrot.slane %v7194, 5
      %v8746 = vsel %vm2420, %v8744, %v8745
      %v8747 = vrot.slane %v8745, 4
      %v8748 = vrot.slane %v7195, 5
      %v8749 = vsel %vm2420, %v8747, %v8748
      %v8750 = vrot.slane %v8644, 5
      %v8751 = vrot.slane %v8750, 4
      %v8752 = vrot.slane %v7197, 5
      %v8753 = vsel %vm2420, %v8751, %v8752
      %v8754 = vrot.slane %v8752, 4
      %v8755 = vrot.slane %v7198, 5
      %v8756 = vsel %vm2420, %v8754, %v8755
      %v8757 = vrot.slane %v8645, 5
      %v8758 = vrot.slane %v8757, 4
      %v8759 = vrot.slane %v7200, 5
      %v8760 = vsel %vm2420, %v8758, %v8759
      %v8761 = vrot.slane %v8759, 4
      %v8762 = vrot.slane %v7201, 5
      %v8763 = vsel %vm2420, %v8761, %v8762
      %v8764 = vrot.slane %v8646, 5
      %v8765 = vrot.slane %v8764, 4
      %v8766 = vrot.slane %v7203, 5
      %v8767 = vsel %vm2420, %v8765, %v8766
      %v8768 = vrot.slane %v8766, 4
      %v8769 = vrot.slane %v7204, 5
      %v8770 = vsel %vm2420, %v8768, %v8769
      %v8771 = vrot.slane %v8647, 5
      %v8772 = vrot.slane %v8771, 4
      %v8773 = vrot.slane %v7206, 5
      %v8774 = vsel %vm2420, %v8772, %v8773
      %v8775 = vrot.slane %v8773, 4
      %v8776 = vrot.slane %v7207, 5
      %v8777 = vsel %vm2420, %v8775, %v8776
      %v8778 = vrot.slane %v8648, 5
      %v8779 = vrot.slane %v8778, 4
      %v8780 = vrot.slane %v7209, 5
      %v8781 = vsel %vm2420, %v8779, %v8780
      %v8782 = vrot.slane %v8780, 4
      %v8783 = vrot.slane %v7210, 5
      %v8784 = vsel %vm2420, %v8782, %v8783
      %v8785 = vrot.slane %v8649, 5
      %v8786 = vrot.slane %v8785, 4
      %v8787 = vrot.slane %v7212, 5
      %v8788 = vsel %vm2420, %v8786, %v8787
      %v8789 = vrot.slane %v8787, 4
      %v8790 = vrot.slane %v7213, 5
      %v8791 = vsel %vm2420, %v8789, %v8790
      %v8792 = vrot.slane %v8650, 5
      %v8793 = vrot.slane %v8792, 4
      %v8794 = vrot.slane %v7215, 5
      %v8795 = vsel %vm2420, %v8793, %v8794
      %v8796 = vrot.slane %v8794, 4
      %v8797 = vrot.slane %v7216, 5
      %v8798 = vsel %vm2420, %v8796, %v8797
      %v8799 = vrot.slane %v8651, 5
      %v8800 = vrot.slane %v8799, 4
      %v8801 = vrot.slane %v7218, 5
      %v8802 = vsel %vm2420, %v8800, %v8801
      %v8803 = vrot.slane %v8801, 4
      %v8804 = vrot.slane %v7219, 5
      %v8805 = vsel %vm2420, %v8803, %v8804
      %v8806 = vrot.slane %v8652, 5
      %v8807 = vrot.slane %v8806, 4
      %v8808 = vrot.slane %v7221, 5
      %v8809 = vsel %vm2420, %v8807, %v8808
      %v8810 = vrot.slane %v8808, 4
      %v8811 = vrot.slane %v7222, 5
      %v8812 = vsel %vm2420, %v8810, %v8811
      %s8813 = scalar_lea.vmem %s2, 32
      %v8814 = vld [vmem:[%s8813] sm:$0x7]
      %v8815 = vunpack.c.l.b16 %v8704
      %v8816 = vunpack.c.l.b16 %v8707
      %v8817 = vunpack.c.l.b16 %v8711
      %v8818 = vunpack.c.l.b16 %v8714
      %v8819 = vunpack.c.l.b16 %v8718
      %v8820 = vunpack.c.l.b16 %v8721
      %v8821 = vunpack.c.l.b16 %v8725
      %v8822 = vunpack.c.l.b16 %v8728
      %v8823 = vunpack.c.l.b16 %v8732
      %v8824 = vunpack.c.l.b16 %v8735
      %v8825 = vunpack.c.l.b16 %v8739
      %v8826 = vunpack.c.l.b16 %v8742
      %v8827 = vunpack.c.l.b16 %v8746
      %v8828 = vunpack.c.l.b16 %v8749
      %v8829 = vunpack.c.l.b16 %v8753
      %v8830 = vunpack.c.l.b16 %v8756
      %v8831 = vunpack.c.l.b16 %v8760
      %v8832 = vunpack.c.l.b16 %v8763
      %v8833 = vunpack.c.l.b16 %v8767
      %v8834 = vunpack.c.l.b16 %v8770
      %v8835 = vunpack.c.l.b16 %v8774
      %v8836 = vunpack.c.l.b16 %v8777
      %v8837 = vunpack.c.l.b16 %v8781
      %v8838 = vunpack.c.l.b16 %v8784
      %v8839 = vunpack.c.l.b16 %v8788
      %v8840 = vunpack.c.l.b16 %v8791
      %v8841 = vunpack.c.l.b16 %v8795
      %v8842 = vunpack.c.l.b16 %v8798
      %v8843 = vunpack.c.l.b16 %v8802
      %v8844 = vunpack.c.l.b16 %v8805
      %v8845 = vunpack.c.l.b16 %v8809
      %v8846 = vunpack.c.l.b16 %v8812
      %v8847 = vpack.c.b16 %v8816, %v8815
      %v8848 = vpack.c.b16 %v8818, %v8817
      %v8849 = vpack.c.b16 %v8820, %v8819
      %v8850 = vpack.c.b16 %v8822, %v8821
      %v8851 = vpack.c.b16 %v8824, %v8823
      %v8852 = vpack.c.b16 %v8826, %v8825
      %v8853 = vpack.c.b16 %v8828, %v8827
      %v8854 = vpack.c.b16 %v8830, %v8829
      %v8855 = vpack.c.b16 %v8832, %v8831
      %v8856 = vpack.c.b16 %v8834, %v8833
      %v8857 = vpack.c.b16 %v8836, %v8835
      %v8858 = vpack.c.b16 %v8838, %v8837
      %v8859 = vpack.c.b16 %v8840, %v8839
      %v8860 = vpack.c.b16 %v8842, %v8841
      %v8861 = vpack.c.b16 %v8844, %v8843
      %v8862 = vpack.c.b16 %v8846, %v8845
      %v8864 = vsel %vm673, %v8847, 0
      %v8867 = vsel %vm673, %v8848, 0
      %v8870 = vsel %vm673, %v8849, 0
      %v8873 = vsel %vm673, %v8850, 0
      %v8876 = vsel %vm673, %v8851, 0
      %v8879 = vsel %vm673, %v8852, 0
      %v8882 = vsel %vm673, %v8853, 0
      %v8885 = vsel %vm673, %v8854, 0
      %v8888 = vsel %vm673, %v8855, 0
      %v8891 = vsel %vm673, %v8856, 0
      %v8894 = vsel %vm673, %v8857, 0
      %v8897 = vsel %vm673, %v8858, 0
      %v8900 = vsel %vm673, %v8859, 0
      %v8903 = vsel %vm673, %v8860, 0
      %v8906 = vsel %vm673, %v8861, 0
      %v8909 = vsel %vm673, %v8862, 0
      %v8912 = vand.u32 %v8814, %v724
      %8914 = vmatprep.subr.bf16.mxu0 0
      %8915 = vmatpush1.bf16.msra.mxu0 %v8912
      %8916 = vmatprep.subr.bf16.mxu0 0
      %8917 = vmatpush1.bf16.msra.mxu0 0
      %8918 = vmatprep.subr.bf16.mxu0 0
      %8919 = vmatpush1.bf16.msra.mxu0 0
      %8920 = vmatprep.subr.bf16.mxu0 0
      %8921 = vmatpush1.bf16.msra.mxu0 0
      %8922 = vmatprep.subr.bf16.mxu0 0
      %8923 = vmatpush1.bf16.msra.mxu0 0
      %8924 = vmatprep.subr.bf16.mxu0 0
      %8925 = vmatpush1.bf16.msra.mxu0 0
      %8926 = vmatprep.subr.bf16.mxu0 0
      %8927 = vmatpush1.bf16.msra.mxu0 0
      %8928 = vmatprep.subr.bf16.mxu0 0
      %8929 = vmatpush1.bf16.msra.mxu0 0
      %8930 = vmatprep.subr.bf16.mxu0 0
      %8931 = vmatpush1.bf16.msra.mxu0 0
      %8932 = vmatprep.subr.bf16.mxu0 0
      %8933 = vmatpush1.bf16.msra.mxu0 0
      %8934 = vmatprep.subr.bf16.mxu0 0
      %8935 = vmatpush1.bf16.msra.mxu0 0
      %8936 = vmatprep.subr.bf16.mxu0 0
      %8937 = vmatpush1.bf16.msra.mxu0 0
      %8938 = vmatprep.subr.bf16.mxu0 0
      %8939 = vmatpush1.bf16.msra.mxu0 0
      %8940 = vmatprep.subr.bf16.mxu0 0
      %8941 = vmatpush1.bf16.msra.mxu0 0
      %8942 = vmatprep.subr.bf16.mxu0 0
      %8943 = vmatpush1.bf16.msra.mxu0 0
      %8944 = vmatprep.subr.bf16.mxu0 0
      %8945 = vmatpush1.bf16.msra.mxu0 0
      %8946 = vmatprep.mubr.bf16.mxu0 0
      %8947 = vmatmul.mubr.bf16.gmra.mrb[0].mxu0 %v8864
      %v8948 = vpop.f32.mrb[0].mxu0
      %v8949 = vadd.f32 0.0, %v8948
      %v8950 = vpop.f32.mrb[0].mxu0
      %v8951 = vpop.f32.mrb[0].mxu0
      %v8952 = vadd.f32 0.0, %v8951
      %v8953 = vpop.f32.mrb[0].mxu0
      %8954 = vmatprep.mubr.bf16.mxu0 0
      %8955 = vmatmul.mubr.bf16.gmra.mrb[0].mxu0 %v8867
      %v8956 = vpop.f32.mrb[0].mxu0
      %v8957 = vadd.f32 0.0, %v8956
      %v8958 = vpop.f32.mrb[0].mxu0
      %v8959 = vpop.f32.mrb[0].mxu0
      %v8960 = vadd.f32 0.0, %v8959
      %v8961 = vpop.f32.mrb[0].mxu0
      %8962 = vmatprep.mubr.bf16.mxu0 0
      %8963 = vmatmul.mubr.bf16.gmra.mrb[0].mxu0 %v8870
      %v8964 = vpop.f32.mrb[0].mxu0
      %v8965 = vadd.f32 0.0, %v8964
      %v8966 = vpop.f32.mrb[0].mxu0
      %v8967 = vpop.f32.mrb[0].mxu0
      %v8968 = vadd.f32 0.0, %v8967
      %v8969 = vpop.f32.mrb[0].mxu0
      %8970 = vmatprep.mubr.bf16.mxu0 0
      %8971 = vmatmul.mubr.bf16.gmra.mrb[0].mxu0 %v8873
      %v8972 = vpop.f32.mrb[0].mxu0
      %v8973 = vadd.f32 0.0, %v8972
      %v8974 = vpop.f32.mrb[0].mxu0
      %v8975 = vpop.f32.mrb[0].mxu0
      %v8976 = vadd.f32 0.0, %v8975
      %v8977 = vpop.f32.mrb[0].mxu0
      %8978 = vmatprep.mubr.bf16.mxu0 0
      %8979 = vmatmul.mubr.bf16.gmra.mrb[0].mxu0 %v8876
      %v8980 = vpop.f32.mrb[0].mxu0
      %v8981 = vadd.f32 0.0, %v8980
      %v8982 = vpop.f32.mrb[0].mxu0
      %v8983 = vpop.f32.mrb[0].mxu0
      %v8984 = vadd.f32 0.0, %v8983
      %v8985 = vpop.f32.mrb[0].mxu0
      %8986 = vmatprep.mubr.bf16.mxu0 0
      %8987 = vmatmul.mubr.bf16.gmra.mrb[0].mxu0 %v8879
      %v8988 = vpop.f32.mrb[0].mxu0
      %v8989 = vadd.f32 0.0, %v8988
      %v8990 = vpop.f32.mrb[0].mxu0
      %v8991 = vpop.f32.mrb[0].mxu0
      %v8992 = vadd.f32 0.0, %v8991
      %v8993 = vpop.f32.mrb[0].mxu0
      %8994 = vmatprep.mubr.bf16.mxu0 0
      %8995 = vmatmul.mubr.bf16.gmra.mrb[0].mxu0 %v8882
      %v8996 = vpop.f32.mrb[0].mxu0
      %v8997 = vadd.f32 0.0, %v8996
      %v8998 = vpop.f32.mrb[0].mxu0
      %v8999 = vpop.f32.mrb[0].mxu0
      %v9000 = vadd.f32 0.0, %v8999
      %v9001 = vpop.f32.mrb[0].mxu0
      %9002 = vmatprep.mubr.bf16.mxu0 0
      %9003 = vmatmul.mubr.bf16.gmra.mrb[0].mxu0 %v8885
      %v9004 = vpop.f32.mrb[0].mxu0
      %v9005 = vadd.f32 0.0, %v9004
      %v9006 = vpop.f32.mrb[0].mxu0
      %v9007 = vpop.f32.mrb[0].mxu0
      %v9008 = vadd.f32 0.0, %v9007
      %v9009 = vpop.f32.mrb[0].mxu0
      %9010 = vmatprep.mubr.bf16.mxu0 0
      %9011 = vmatmul.mubr.bf16.gmra.mrb[0].mxu0 %v8888
      %v9012 = vpop.f32.mrb[0].mxu0
      %v9013 = vadd.f32 0.0, %v9012
      %v9014 = vpop.f32.mrb[0].mxu0
      %v9015 = vpop.f32.mrb[0].mxu0
      %v9016 = vadd.f32 0.0, %v9015
      %v9017 = vpop.f32.mrb[0].mxu0
      %9018 = vmatprep.mubr.bf16.mxu0 0
      %9019 = vmatmul.mubr.bf16.gmra.mrb[0].mxu0 %v8891
      %v9020 = vpop.f32.mrb[0].mxu0
      %v9021 = vadd.f32 0.0, %v9020
      %v9022 = vpop.f32.mrb[0].mxu0
      %v9023 = vpop.f32.mrb[0].mxu0
      %v9024 = vadd.f32 0.0, %v9023
      %v9025 = vpop.f32.mrb[0].mxu0
      %9026 = vmatprep.mubr.bf16.mxu0 0
      %9027 = vmatmul.mubr.bf16.gmra.mrb[0].mxu0 %v8894
      %v9028 = vpop.f32.mrb[0].mxu0
      %v9029 = vadd.f32 0.0, %v9028
      %v9030 = vpop.f32.mrb[0].mxu0
      %v9031 = vpop.f32.mrb[0].mxu0
      %v9032 = vadd.f32 0.0, %v9031
      %v9033 = vpop.f32.mrb[0].mxu0
      %9034 = vmatprep.mubr.bf16.mxu0 0
      %9035 = vmatmul.mubr.bf16.gmra.mrb[0].mxu0 %v8897
      %v9036 = vpop.f32.mrb[0].mxu0
      %v9037 = vadd.f32 0.0, %v9036
      %v9038 = vpop.f32.mrb[0].mxu0
      %v9039 = vpop.f32.mrb[0].mxu0
      %v9040 = vadd.f32 0.0, %v9039
      %v9041 = vpop.f32.mrb[0].mxu0
      %9042 = vmatprep.mubr.bf16.mxu0 0
      %9043 = vmatmul.mubr.bf16.gmra.mrb[0].mxu0 %v8900
      %v9044 = vpop.f32.mrb[0].mxu0
      %v9045 = vadd.f32 0.0, %v9044
      %v9046 = vpop.f32.mrb[0].mxu0
      %v9047 = vpop.f32.mrb[0].mxu0
      %v9048 = vadd.f32 0.0, %v9047
      %v9049 = vpop.f32.mrb[0].mxu0
      %9050 = vmatprep.mubr.bf16.mxu0 0
      %9051 = vmatmul.mubr.bf16.gmra.mrb[0].mxu0 %v8903
      %v9052 = vpop.f32.mrb[0].mxu0
      %v9053 = vadd.f32 0.0, %v9052
      %v9054 = vpop.f32.mrb[0].mxu0
      %v9055 = vpop.f32.mrb[0].mxu0
      %v9056 = vadd.f32 0.0, %v9055
      %v9057 = vpop.f32.mrb[0].mxu0
      %9058 = vmatprep.mubr.bf16.mxu0 0
      %9059 = vmatmul.mubr.bf16.gmra.mrb[0].mxu0 %v8906
      %v9060 = vpop.f32.mrb[0].mxu0
      %v9061 = vadd.f32 0.0, %v9060
      %v9062 = vpop.f32.mrb[0].mxu0
      %v9063 = vpop.f32.mrb[0].mxu0
      %v9064 = vadd.f32 0.0, %v9063
      %v9065 = vpop.f32.mrb[0].mxu0
      %9066 = vmatprep.mubr.bf16.mxu0 0
      %9067 = vmatmul.mubr.bf16.gmra.mrb[0].mxu0 %v8909
      %v9068 = vpop.f32.mrb[0].mxu0
      %v9069 = vadd.f32 0.0, %v9068
      %v9070 = vpop.f32.mrb[0].mxu0
      %v9071 = vpop.f32.mrb[0].mxu0
      %v9072 = vadd.f32 0.0, %v9071
      %v9073 = vpop.f32.mrb[0].mxu0
      %9074 = vdwg.mxu0
      %v9075 = vadd.f32 %v8605, %v8949
      %v9076 = vadd.f32 %v8606, %v8952
      %v9077 = vadd.f32 %v8607, %v8957
      %v9078 = vadd.f32 %v8608, %v8960
      %v9079 = vadd.f32 %v8609, %v8965
      %v9080 = vadd.f32 %v8610, %v8968
      %v9081 = vadd.f32 %v8611, %v8973
      %v9082 = vadd.f32 %v8612, %v8976
      %v9083 = vadd.f32 %v8613, %v8981
      %v9084 = vadd.f32 %v8614, %v8984
      %v9085 = vadd.f32 %v8615, %v8989
      %v9086 = vadd.f32 %v8616, %v8992
      %v9087 = vadd.f32 %v8617, %v8997
      %v9088 = vadd.f32 %v8618, %v9000
      %v9089 = vadd.f32 %v8619, %v9005
      %v9090 = vadd.f32 %v8620, %v9008
      %v9091 = vadd.f32 %v8621, %v9013
      %v9092 = vadd.f32 %v8622, %v9016
      %v9093 = vadd.f32 %v8623, %v9021
      %v9094 = vadd.f32 %v8624, %v9024
      %v9095 = vadd.f32 %v8625, %v9029
      %v9096 = vadd.f32 %v8626, %v9032
      %v9097 = vadd.f32 %v8627, %v9037
      %v9098 = vadd.f32 %v8628, %v9040
      %v9099 = vadd.f32 %v8629, %v9045
      %v9100 = vadd.f32 %v8630, %v9048
      %v9101 = vadd.f32 %v8631, %v9053
      %v9102 = vadd.f32 %v8632, %v9056
      %v9103 = vadd.f32 %v8633, %v9061
      %v9104 = vadd.f32 %v8634, %v9064
      %v9105 = vadd.f32 %v8635, %v9069
      %v9106 = vadd.f32 %v8636, %v9072
      %v9107 = vld [vmem:[%s6806] sm:$0xe]
      %v9108 = vld [vmem:[%s6806 + $0xc] sm:$0xe]
      %v9109 = vld [vmem:[%s6806 + $0x18] sm:$0xe]
      %v9110 = vld [vmem:[%s6806 + $0x24] sm:$0xe]
      %v9111 = vld [vmem:[%s6806 + $0x30] sm:$0xe]
      %v9112 = vld [vmem:[%s6806 + $0x3c] sm:$0xe]
      %v9113 = vld [vmem:[%s6806 + $0x48] sm:$0xe]
      %v9114 = vld [vmem:[%s6806 + $0x54] sm:$0xe]
      %v9115 = vld [vmem:[%s6806 + $0x60] sm:$0xe]
      %v9116 = vld [vmem:[%s6806 + $0x6c] sm:$0xe]
      %v9117 = vld [vmem:[%s6806 + $0x78] sm:$0xe]
      %v9118 = vld [vmem:[%s6806 + $0x84] sm:$0xe]
      %v9119 = vld [vmem:[%s6806 + $0x90] sm:$0xe]
      %v9120 = vld [vmem:[%s6806 + $0x9c] sm:$0xe]
      %v9121 = vld [vmem:[%s6806 + $0xa8] sm:$0xe]
      %v9122 = vld [vmem:[%s6806 + $0xb4] sm:$0xe]
      %v9171 = vrot.slane %v9107, 5
      %v9172 = vrot.slane %v9171, 4
      %v9173 = vrot.slane %v7902, 5
      %v9174 = vsel %vm2420, %v9172, %v9173
      %v9175 = vrot.slane %v9173, 4
      %v9176 = vrot.slane %v7903, 5
      %v9177 = vsel %vm2420, %v9175, %v9176
      %v9178 = vrot.slane %v9108, 5
      %v9179 = vrot.slane %v9178, 4
      %v9180 = vrot.slane %v7905, 5
      %v9181 = vsel %vm2420, %v9179, %v9180
      %v9182 = vrot.slane %v9180, 4
      %v9183 = vrot.slane %v7906, 5
      %v9184 = vsel %vm2420, %v9182, %v9183
      %v9185 = vrot.slane %v9109, 5
      %v9186 = vrot.slane %v9185, 4
      %v9187 = vrot.slane %v7908, 5
      %v9188 = vsel %vm2420, %v9186, %v9187
      %v9189 = vrot.slane %v9187, 4
      %v9190 = vrot.slane %v7909, 5
      %v9191 = vsel %vm2420, %v9189, %v9190
      %v9192 = vrot.slane %v9110, 5
      %v9193 = vrot.slane %v9192, 4
      %v9194 = vrot.slane %v7911, 5
      %v9195 = vsel %vm2420, %v9193, %v9194
      %v9196 = vrot.slane %v9194, 4
      %v9197 = vrot.slane %v7912, 5
      %v9198 = vsel %vm2420, %v9196, %v9197
      %v9199 = vrot.slane %v9111, 5
      %v9200 = vrot.slane %v9199, 4
      %v9201 = vrot.slane %v7914, 5
      %v9202 = vsel %vm2420, %v9200, %v9201
      %v9203 = vrot.slane %v9201, 4
      %v9204 = vrot.slane %v7915, 5
      %v9205 = vsel %vm2420, %v9203, %v9204
      %v9206 = vrot.slane %v9112, 5
      %v9207 = vrot.slane %v9206, 4
      %v9208 = vrot.slane %v7917, 5
      %v9209 = vsel %vm2420, %v9207, %v9208
      %v9210 = vrot.slane %v9208, 4
      %v9211 = vrot.slane %v7918, 5
      %v9212 = vsel %vm2420, %v9210, %v9211
      %v9213 = vrot.slane %v9113, 5
      %v9214 = vrot.slane %v9213, 4
      %v9215 = vrot.slane %v7920, 5
      %v9216 = vsel %vm2420, %v9214, %v9215
      %v9217 = vrot.slane %v9215, 4
      %v9218 = vrot.slane %v7921, 5
      %v9219 = vsel %vm2420, %v9217, %v9218
      %v9220 = vrot.slane %v9114, 5
      %v9221 = vrot.slane %v9220, 4
      %v9222 = vrot.slane %v7923, 5
      %v9223 = vsel %vm2420, %v9221, %v9222
      %v9224 = vrot.slane %v9222, 4
      %v9225 = vrot.slane %v7924, 5
      %v9226 = vsel %vm2420, %v9224, %v9225
      %v9227 = vrot.slane %v9115, 5
      %v9228 = vrot.slane %v9227, 4
      %v9229 = vrot.slane %v7926, 5
      %v9230 = vsel %vm2420, %v9228, %v9229
      %v9231 = vrot.slane %v9229, 4
      %v9232 = vrot.slane %v7927, 5
      %v9233 = vsel %vm2420, %v9231, %v9232
      %v9234 = vrot.slane %v9116, 5
      %v9235 = vrot.slane %v9234, 4
      %v9236 = vrot.slane %v7929, 5
      %v9237 = vsel %vm2420, %v9235, %v9236
      %v9238 = vrot.slane %v9236, 4
      %v9239 = vrot.slane %v7930, 5
      %v9240 = vsel %vm2420, %v9238, %v9239
      %v9241 = vrot.slane %v9117, 5
      %v9242 = vrot.slane %v9241, 4
      %v9243 = vrot.slane %v7932, 5
      %v9244 = vsel %vm2420, %v9242, %v9243
      %v9245 = vrot.slane %v9243, 4
      %v9246 = vrot.slane %v7933, 5
      %v9247 = vsel %vm2420, %v9245, %v9246
      %v9248 = vrot.slane %v9118, 5
      %v9249 = vrot.slane %v9248, 4
      %v9250 = vrot.slane %v7935, 5
      %v9251 = vsel %vm2420, %v9249, %v9250
      %v9252 = vrot.slane %v9250, 4
      %v9253 = vrot.slane %v7936, 5
      %v9254 = vsel %vm2420, %v9252, %v9253
      %v9255 = vrot.slane %v9119, 5
      %v9256 = vrot.slane %v9255, 4
      %v9257 = vrot.slane %v7938, 5
      %v9258 = vsel %vm2420, %v9256, %v9257
      %v9259 = vrot.slane %v9257, 4
      %v9260 = vrot.slane %v7939, 5
      %v9261 = vsel %vm2420, %v9259, %v9260
      %v9262 = vrot.slane %v9120, 5
      %v9263 = vrot.slane %v9262, 4
      %v9264 = vrot.slane %v7941, 5
      %v9265 = vsel %vm2420, %v9263, %v9264
      %v9266 = vrot.slane %v9264, 4
      %v9267 = vrot.slane %v7942, 5
      %v9268 = vsel %vm2420, %v9266, %v9267
      %v9269 = vrot.slane %v9121, 5
      %v9270 = vrot.slane %v9269, 4
      %v9271 = vrot.slane %v7944, 5
      %v9272 = vsel %vm2420, %v9270, %v9271
      %v9273 = vrot.slane %v9271, 4
      %v9274 = vrot.slane %v7945, 5
      %v9275 = vsel %vm2420, %v9273, %v9274
      %v9276 = vrot.slane %v9122, 5
      %v9277 = vrot.slane %v9276, 4
      %v9278 = vrot.slane %v7947, 5
      %v9279 = vsel %vm2420, %v9277, %v9278
      %v9280 = vrot.slane %v9278, 4
      %v9281 = vrot.slane %v7948, 5
      %v9282 = vsel %vm2420, %v9280, %v9281
      %v9283 = vld [vmem:[%s8813] sm:$0xc]
      %v9284 = vunpack.c.l.b16 %v9174
      %v9285 = vunpack.c.l.b16 %v9177
      %v9286 = vunpack.c.l.b16 %v9181
      %v9287 = vunpack.c.l.b16 %v9184
      %v9288 = vunpack.c.l.b16 %v9188
      %v9289 = vunpack.c.l.b16 %v9191
      %v9290 = vunpack.c.l.b16 %v9195
      %v9291 = vunpack.c.l.b16 %v9198
      %v9292 = vunpack.c.l.b16 %v9202
      %v9293 = vunpack.c.l.b16 %v9205
      %v9294 = vunpack.c.l.b16 %v9209
      %v9295 = vunpack.c.l.b16 %v9212
      %v9296 = vunpack.c.l.b16 %v9216
      %v9297 = vunpack.c.l.b16 %v9219
      %v9298 = vunpack.c.l.b16 %v9223
      %v9299 = vunpack.c.l.b16 %v9226
      %v9300 = vunpack.c.l.b16 %v9230
      %v9301 = vunpack.c.l.b16 %v9233
      %v9302 = vunpack.c.l.b16 %v9237
      %v9303 = vunpack.c.l.b16 %v9240
      %v9304 = vunpack.c.l.b16 %v9244
      %v9305 = vunpack.c.l.b16 %v9247
      %v9306 = vunpack.c.l.b16 %v9251
      %v9307 = vunpack.c.l.b16 %v9254
      %v9308 = vunpack.c.l.b16 %v9258
      %v9309 = vunpack.c.l.b16 %v9261
      %v9310 = vunpack.c.l.b16 %v9265
      %v9311 = vunpack.c.l.b16 %v9268
      %v9312 = vunpack.c.l.b16 %v9272
      %v9313 = vunpack.c.l.b16 %v9275
      %v9314 = vunpack.c.l.b16 %v9279
      %v9315 = vunpack.c.l.b16 %v9282
      %v9316 = vpack.c.b16 %v9285, %v9284
      %v9317 = vpack.c.b16 %v9287, %v9286
      %v9318 = vpack.c.b16 %v9289, %v9288
      %v9319 = vpack.c.b16 %v9291, %v9290
      %v9320 = vpack.c.b16 %v9293, %v9292
      %v9321 = vpack.c.b16 %v9295, %v9294
      %v9322 = vpack.c.b16 %v9297, %v9296
      %v9323 = vpack.c.b16 %v9299, %v9298
      %v9324 = vpack.c.b16 %v9301, %v9300
      %v9325 = vpack.c.b16 %v9303, %v9302
      %v9326 = vpack.c.b16 %v9305, %v9304
      %v9327 = vpack.c.b16 %v9307, %v9306
      %v9328 = vpack.c.b16 %v9309, %v9308
      %v9329 = vpack.c.b16 %v9311, %v9310
      %v9330 = vpack.c.b16 %v9313, %v9312
      %v9331 = vpack.c.b16 %v9315, %v9314
      %v9333 = vunpack.c.l.b16 %v9283
      %v9334 = vpack.c.b16 %v9333, %v9333
      %v9336 = vshrl.u32 %v9334, 16
      %v9338 = vrot.slane %v9336, 2
      %v9339 = vshll.u32 %v9334, 16
      %v9341 = vrot.slane %v9339, 3
      %v9342 = vor.u32 %v9338, %v9341
      %v9344 = vsel %vm376, %v9316, 0
      %v9347 = vsel %vm376, %v9317, 0
      %v9350 = vsel %vm376, %v9318, 0
      %v9353 = vsel %vm376, %v9319, 0
      %v9356 = vsel %vm376, %v9320, 0
      %v9359 = vsel %vm376, %v9321, 0
      %v9362 = vsel %vm376, %v9322, 0
      %v9365 = vsel %vm376, %v9323, 0
      %v9368 = vsel %vm376, %v9324, 0
      %v9371 = vsel %vm376, %v9325, 0
      %v9374 = vsel %vm376, %v9326, 0
      %v9377 = vsel %vm376, %v9327, 0
      %v9380 = vsel %vm376, %v9328, 0
      %v9383 = vsel %vm376, %v9329, 0
      %v9386 = vsel %vm376, %v9330, 0
      %v9389 = vsel %vm376, %v9331, 0
      %v9392 = vand.u32 %v9342, %v428
      %9394 = vmatprep.subr.bf16.mxu0 0
      %9395 = vmatpush1.bf16.msra.mxu0 %v9392
      %9396 = vmatprep.subr.bf16.mxu0 0
      %9397 = vmatpush1.bf16.msra.mxu0 0
      %9398 = vmatprep.subr.bf16.mxu0 0
      %9399 = vmatpush1.bf16.msra.mxu0 0
      %9400 = vmatprep.subr.bf16.mxu0 0
      %9401 = vmatpush1.bf16.msra.mxu0 0
      %9402 = vmatprep.subr.bf16.mxu0 0
      %9403 = vmatpush1.bf16.msra.mxu0 0
      %9404 = vmatprep.subr.bf16.mxu0 0
      %9405 = vmatpush1.bf16.msra.mxu0 0
      %9406 = vmatprep.subr.bf16.mxu0 0
      %9407 = vmatpush1.bf16.msra.mxu0 0
      %9408 = vmatprep.subr.bf16.mxu0 0
      %9409 = vmatpush1.bf16.msra.mxu0 0
      %9410 = vmatprep.subr.bf16.mxu0 0
      %9411 = vmatpush1.bf16.msra.mxu0 0
      %9412 = vmatprep.subr.bf16.mxu0 0
      %9413 = vmatpush1.bf16.msra.mxu0 0
      %9414 = vmatprep.subr.bf16.mxu0 0
      %9415 = vmatpush1.bf16.msra.mxu0 0
      %9416 = vmatprep.subr.bf16.mxu0 0
      %9417 = vmatpush1.bf16.msra.mxu0 0
      %9418 = vmatprep.subr.bf16.mxu0 0
      %9419 = vmatpush1.bf16.msra.mxu0 0
      %9420 = vmatprep.subr.bf16.mxu0 0
      %9421 = vmatpush1.bf16.msra.mxu0 0
      %9422 = vmatprep.subr.bf16.mxu0 0
      %9423 = vmatpush1.bf16.msra.mxu0 0
      %9424 = vmatprep.subr.bf16.mxu0 0
      %9425 = vmatpush1.bf16.msra.mxu0 0
      %9426 = vmatprep.mubr.bf16.mxu0 0
      %9427 = vmatmul.mubr.bf16.gmra.mrb[0].mxu0 %v9344
      %v9428 = vpop.f32.mrb[0].mxu0
      %v9429 = vadd.f32 0.0, %v9428
      %v9430 = vpop.f32.mrb[0].mxu0
      %v9431 = vpop.f32.mrb[0].mxu0
      %v9432 = vadd.f32 0.0, %v9431
      %v9433 = vpop.f32.mrb[0].mxu0
      %9434 = vmatprep.mubr.bf16.mxu0 0
      %9435 = vmatmul.mubr.bf16.gmra.mrb[0].mxu0 %v9347
      %v9436 = vpop.f32.mrb[0].mxu0
      %v9437 = vadd.f32 0.0, %v9436
      %v9438 = vpop.f32.mrb[0].mxu0
      %v9439 = vpop.f32.mrb[0].mxu0
      %v9440 = vadd.f32 0.0, %v9439
      %v9441 = vpop.f32.mrb[0].mxu0
      %9442 = vmatprep.mubr.bf16.mxu0 0
      %9443 = vmatmul.mubr.bf16.gmra.mrb[0].mxu0 %v9350
      %v9444 = vpop.f32.mrb[0].mxu0
      %v9445 = vadd.f32 0.0, %v9444
      %v9446 = vpop.f32.mrb[0].mxu0
      %v9447 = vpop.f32.mrb[0].mxu0
      %v9448 = vadd.f32 0.0, %v9447
      %v9449 = vpop.f32.mrb[0].mxu0
      %9450 = vmatprep.mubr.bf16.mxu0 0
      %9451 = vmatmul.mubr.bf16.gmra.mrb[0].mxu0 %v9353
      %v9452 = vpop.f32.mrb[0].mxu0
      %v9453 = vadd.f32 0.0, %v9452
      %v9454 = vpop.f32.mrb[0].mxu0
      %v9455 = vpop.f32.mrb[0].mxu0
      %v9456 = vadd.f32 0.0, %v9455
      %v9457 = vpop.f32.mrb[0].mxu0
      %9458 = vmatprep.mubr.bf16.mxu0 0
      %9459 = vmatmul.mubr.bf16.gmra.mrb[0].mxu0 %v9356
      %v9460 = vpop.f32.mrb[0].mxu0
      %v9461 = vadd.f32 0.0, %v9460
      %v9462 = vpop.f32.mrb[0].mxu0
      %v9463 = vpop.f32.mrb[0].mxu0
      %v9464 = vadd.f32 0.0, %v9463
      %v9465 = vpop.f32.mrb[0].mxu0
      %9466 = vmatprep.mubr.bf16.mxu0 0
      %9467 = vmatmul.mubr.bf16.gmra.mrb[0].mxu0 %v9359
      %v9468 = vpop.f32.mrb[0].mxu0
      %v9469 = vadd.f32 0.0, %v9468
      %v9470 = vpop.f32.mrb[0].mxu0
      %v9471 = vpop.f32.mrb[0].mxu0
      %v9472 = vadd.f32 0.0, %v9471
      %v9473 = vpop.f32.mrb[0].mxu0
      %9474 = vmatprep.mubr.bf16.mxu0 0
      %9475 = vmatmul.mubr.bf16.gmra.mrb[0].mxu0 %v9362
      %v9476 = vpop.f32.mrb[0].mxu0
      %v9477 = vadd.f32 0.0, %v9476
      %v9478 = vpop.f32.mrb[0].mxu0
      %v9479 = vpop.f32.mrb[0].mxu0
      %v9480 = vadd.f32 0.0, %v9479
      %v9481 = vpop.f32.mrb[0].mxu0
      %9482 = vmatprep.mubr.bf16.mxu0 0
      %9483 = vmatmul.mubr.bf16.gmra.mrb[0].mxu0 %v9365
      %v9484 = vpop.f32.mrb[0].mxu0
      %v9485 = vadd.f32 0.0, %v9484
      %v9486 = vpop.f32.mrb[0].mxu0
      %v9487 = vpop.f32.mrb[0].mxu0
      %v9488 = vadd.f32 0.0, %v9487
      %v9489 = vpop.f32.mrb[0].mxu0
      %9490 = vmatprep.mubr.bf16.mxu0 0
      %9491 = vmatmul.mubr.bf16.gmra.mrb[0].mxu0 %v9368
      %v9492 = vpop.f32.mrb[0].mxu0
      %v9493 = vadd.f32 0.0, %v9492
      %v9494 = vpop.f32.mrb[0].mxu0
      %v9495 = vpop.f32.mrb[0].mxu0
      %v9496 = vadd.f32 0.0, %v9495
      %v9497 = vpop.f32.mrb[0].mxu0
      %9498 = vmatprep.mubr.bf16.mxu0 0
      %9499 = vmatmul.mubr.bf16.gmra.mrb[0].mxu0 %v9371
      %v9500 = vpop.f32.mrb[0].mxu0
      %v9501 = vadd.f32 0.0, %v9500
      %v9502 = vpop.f32.mrb[0].mxu0
      %v9503 = vpop.f32.mrb[0].mxu0
      %v9504 = vadd.f32 0.0, %v9503
      %v9505 = vpop.f32.mrb[0].mxu0
      %9506 = vmatprep.mubr.bf16.mxu0 0
      %9507 = vmatmul.mubr.bf16.gmra.mrb[0].mxu0 %v9374
      %v9508 = vpop.f32.mrb[0].mxu0
      %v9509 = vadd.f32 0.0, %v9508
      %v9510 = vpop.f32.mrb[0].mxu0
      %v9511 = vpop.f32.mrb[0].mxu0
      %v9512 = vadd.f32 0.0, %v9511
      %v9513 = vpop.f32.mrb[0].mxu0
      %9514 = vmatprep.mubr.bf16.mxu0 0
      %9515 = vmatmul.mubr.bf16.gmra.mrb[0].mxu0 %v9377
      %v9516 = vpop.f32.mrb[0].mxu0
      %v9517 = vadd.f32 0.0, %v9516
      %v9518 = vpop.f32.mrb[0].mxu0
      %v9519 = vpop.f32.mrb[0].mxu0
      %v9520 = vadd.f32 0.0, %v9519
      %v9521 = vpop.f32.mrb[0].mxu0
      %9522 = vmatprep.mubr.bf16.mxu0 0
      %9523 = vmatmul.mubr.bf16.gmra.mrb[0].mxu0 %v9380
      %v9524 = vpop.f32.mrb[0].mxu0
      %v9525 = vadd.f32 0.0, %v9524
      %v9526 = vpop.f32.mrb[0].mxu0
      %v9527 = vpop.f32.mrb[0].mxu0
      %v9528 = vadd.f32 0.0, %v9527
      %v9529 = vpop.f32.mrb[0].mxu0
      %9530 = vmatprep.mubr.bf16.mxu0 0
      %9531 = vmatmul.mubr.bf16.gmra.mrb[0].mxu0 %v9383
      %v9532 = vpop.f32.mrb[0].mxu0
      %v9533 = vadd.f32 0.0, %v9532
      %v9534 = vpop.f32.mrb[0].mxu0
      %v9535 = vpop.f32.mrb[0].mxu0
      %v9536 = vadd.f32 0.0, %v9535
      %v9537 = vpop.f32.mrb[0].mxu0
      %9538 = vmatprep.mubr.bf16.mxu0 0
      %9539 = vmatmul.mubr.bf16.gmra.mrb[0].mxu0 %v9386
      %v9540 = vpop.f32.mrb[0].mxu0
      %v9541 = vadd.f32 0.0, %v9540
      %v9542 = vpop.f32.mrb[0].mxu0
      %v9543 = vpop.f32.mrb[0].mxu0
      %v9544 = vadd.f32 0.0, %v9543
      %v9545 = vpop.f32.mrb[0].mxu0
      %9546 = vmatprep.mubr.bf16.mxu0 0
      %9547 = vmatmul.mubr.bf16.gmra.mrb[0].mxu0 %v9389
      %v9548 = vpop.f32.mrb[0].mxu0
      %v9549 = vadd.f32 0.0, %v9548
      %v9550 = vpop.f32.mrb[0].mxu0
      %v9551 = vpop.f32.mrb[0].mxu0
      %v9552 = vadd.f32 0.0, %v9551
      %v9553 = vpop.f32.mrb[0].mxu0
      %9554 = vdwg.mxu0
      %v9555 = vadd.f32 %v9075, %v9429
      %v9556 = vadd.f32 %v9076, %v9432
      %v9557 = vadd.f32 %v9077, %v9437
      %v9558 = vadd.f32 %v9078, %v9440
      %v9559 = vadd.f32 %v9079, %v9445
      %v9560 = vadd.f32 %v9080, %v9448
      %v9561 = vadd.f32 %v9081, %v9453
      %v9562 = vadd.f32 %v9082, %v9456
      %v9563 = vadd.f32 %v9083, %v9461
      %v9564 = vadd.f32 %v9084, %v9464
      %v9565 = vadd.f32 %v9085, %v9469
      %v9566 = vadd.f32 %v9086, %v9472
      %v9567 = vadd.f32 %v9087, %v9477
      %v9568 = vadd.f32 %v9088, %v9480
      %v9569 = vadd.f32 %v9089, %v9485
      %v9570 = vadd.f32 %v9090, %v9488
      %v9571 = vadd.f32 %v9091, %v9493
      %v9572 = vadd.f32 %v9092, %v9496
      %v9573 = vadd.f32 %v9093, %v9501
      %v9574 = vadd.f32 %v9094, %v9504
      %v9575 = vadd.f32 %v9095, %v9509
      %v9576 = vadd.f32 %v9096, %v9512
      %v9577 = vadd.f32 %v9097, %v9517
      %v9578 = vadd.f32 %v9098, %v9520
      %v9579 = vadd.f32 %v9099, %v9525
      %v9580 = vadd.f32 %v9100, %v9528
      %v9581 = vadd.f32 %v9101, %v9533
      %v9582 = vadd.f32 %v9102, %v9536
      %v9583 = vadd.f32 %v9103, %v9541
      %v9584 = vadd.f32 %v9104, %v9544
      %v9585 = vadd.f32 %v9105, %v9549
      %v9586 = vadd.f32 %v9106, %v9552
      %v9587 = vld [vmem:[%s3] sm:$0x1]
      %v9589 = vlaneseq
      %v9590 = vshrl.u32 %v9589, 7
      %v9591 = vsub.s32 0, %v9590
      %v9592 = vrot.slane %v9587, %v9591
      %v9594 = vadd.f32 %v9555, %v9592
      %v9595 = vadd.f32 %v9556, %v9592
      %v9596 = vadd.f32 %v9557, %v9592
      %v9597 = vadd.f32 %v9558, %v9592
      %v9598 = vadd.f32 %v9559, %v9592
      %v9599 = vadd.f32 %v9560, %v9592
      %v9600 = vadd.f32 %v9561, %v9592
      %v9601 = vadd.f32 %v9562, %v9592
      %v9602 = vadd.f32 %v9563, %v9592
      %v9603 = vadd.f32 %v9564, %v9592
      %v9604 = vadd.f32 %v9565, %v9592
      %v9605 = vadd.f32 %v9566, %v9592
      %v9606 = vadd.f32 %v9567, %v9592
      %v9607 = vadd.f32 %v9568, %v9592
      %v9608 = vadd.f32 %v9569, %v9592
      %v9609 = vadd.f32 %v9570, %v9592
      %v9610 = vadd.f32 %v9571, %v9592
      %v9611 = vadd.f32 %v9572, %v9592
      %v9612 = vadd.f32 %v9573, %v9592
      %v9613 = vadd.f32 %v9574, %v9592
      %v9614 = vadd.f32 %v9575, %v9592
      %v9615 = vadd.f32 %v9576, %v9592
      %v9616 = vadd.f32 %v9577, %v9592
      %v9617 = vadd.f32 %v9578, %v9592
      %v9618 = vadd.f32 %v9579, %v9592
      %v9619 = vadd.f32 %v9580, %v9592
      %v9620 = vadd.f32 %v9581, %v9592
      %v9621 = vadd.f32 %v9582, %v9592
      %v9622 = vadd.f32 %v9583, %v9592
      %v9623 = vadd.f32 %v9584, %v9592
      %v9624 = vadd.f32 %v9585, %v9592
      %v9625 = vadd.f32 %v9586, %v9592
      %vm9626 = vcmask 31744
      %9627 = vst.msk [vmem:[%s217] sm:$0xff] %vm9626, %v9594
      %9628 = vst.msk [vmem:[%s217 + $0x8] sm:$0xff] %vm9626, %v9595
      %9629 = vst.msk [vmem:[%s217 + $0x10] sm:$0xff] %vm9626, %v9596
      %9630 = vst.msk [vmem:[%s217 + $0x18] sm:$0xff] %vm9626, %v9597
      %9631 = vst.msk [vmem:[%s217 + $0x20] sm:$0xff] %vm9626, %v9598
      %9632 = vst.msk [vmem:[%s217 + $0x28] sm:$0xff] %vm9626, %v9599
      %9633 = vst.msk [vmem:[%s217 + $0x30] sm:$0xff] %vm9626, %v9600
      %9634 = vst.msk [vmem:[%s217 + $0x38] sm:$0xff] %vm9626, %v9601
      %9635 = vst.msk [vmem:[%s217 + $0x40] sm:$0xff] %vm9626, %v9602
      %9636 = vst.msk [vmem:[%s217 + $0x48] sm:$0xff] %vm9626, %v9603
      %9637 = vst.msk [vmem:[%s217 + $0x50] sm:$0xff] %vm9626, %v9604
      %9638 = vst.msk [vmem:[%s217 + $0x58] sm:$0xff] %vm9626, %v9605
      %9639 = vst.msk [vmem:[%s217 + $0x60] sm:$0xff] %vm9626, %v9606
      %9640 = vst.msk [vmem:[%s217 + $0x68] sm:$0xff] %vm9626, %v9607
      %9641 = vst.msk [vmem:[%s217 + $0x70] sm:$0xff] %vm9626, %v9608
      %9642 = vst.msk [vmem:[%s217 + $0x78] sm:$0xff] %vm9626, %v9609
      %9643 = vst.msk [vmem:[%s217 + $0x80] sm:$0xff] %vm9626, %v9610
      %9644 = vst.msk [vmem:[%s217 + $0x88] sm:$0xff] %vm9626, %v9611
      %9645 = vst.msk [vmem:[%s217 + $0x90] sm:$0xff] %vm9626, %v9612
      %9646 = vst.msk [vmem:[%s217 + $0x98] sm:$0xff] %vm9626, %v9613
      %9647 = vst.msk [vmem:[%s217 + $0xa0] sm:$0xff] %vm9626, %v9614
      %9648 = vst.msk [vmem:[%s217 + $0xa8] sm:$0xff] %vm9626, %v9615
      %9649 = vst.msk [vmem:[%s217 + $0xb0] sm:$0xff] %vm9626, %v9616
      %9650 = vst.msk [vmem:[%s217 + $0xb8] sm:$0xff] %vm9626, %v9617
      %9651 = vst.msk [vmem:[%s217 + $0xc0] sm:$0xff] %vm9626, %v9618
      %9652 = vst.msk [vmem:[%s217 + $0xc8] sm:$0xff] %vm9626, %v9619
      %9653 = vst.msk [vmem:[%s217 + $0xd0] sm:$0xff] %vm9626, %v9620
      %9654 = vst.msk [vmem:[%s217 + $0xd8] sm:$0xff] %vm9626, %v9621
      %9655 = vst.msk [vmem:[%s217 + $0xe0] sm:$0xff] %vm9626, %v9622
      %9656 = vst.msk [vmem:[%s217 + $0xe8] sm:$0xff] %vm9626, %v9623
      %9657 = vst.msk [vmem:[%s217 + $0xf0] sm:$0xff] %vm9626, %v9624
      %9658 = vst.msk [vmem:[%s217 + $0xf8] sm:$0xff] %vm9626, %v9625
      %p9659 = scmp.lt.s32.totalorder %s15, 1
      %s9660 = scalar_select %p9659, %s15, 1
      %s9661 = smul.addr %s9660, 32
      %s9662 = smul.addr %s9661, 8
      %s9663 = scalar_lea.vmem %s4, %s9662
      // Predicated region
      $region37: #{tpu_custom_call.1} parent=35 // pred_check
        %p9664 = pneg %p127
      $region38: #{tpu_custom_call.1} parent=35 // pred_check_branch
        %9666 = sbr.rel (%p9664) target = $region40
      $region39: #{tpu_custom_call.1} parent=35 // pred_region
        _
      $region40: #{tpu_custom_call.1} parent=35 // pred_fallthru
        _
    $region36: #{tpu_custom_call.1} parent=5 // pred_fallthru
      _
    %p9667 = scmp.le.s32.totalorder 2, %s10
    // Predicated region
    $region41: #{tpu_custom_call.1} parent=5 // pred_check
      %p9668 = pneg %p9667
    $region42: #{tpu_custom_call.1} parent=5 // pred_check_branch
      %9670 = sbr.rel (%p9668) target = $region44
    $region43: #{tpu_custom_call.1} parent=5 // pred_region
      %s9671 = ssub.s32 %s10, 2
      // Predicated region
      $region45: #{tpu_custom_call.1} parent=43 // pred_check
        %p9672 = pneg %p133
      $region46: #{tpu_custom_call.1} parent=43 // pred_check_branch
        %9674 = sbr.rel (%p9672) target = $region48
      $region47: #{tpu_custom_call.1} parent=43 // pred_region
        %p9675 = scmp.lt.s32.totalorder %s16, 1
        %s9676 = scalar_select %p9675, %s16, 1
        %s9677 = smul.addr %s9676, 32
        %s9678 = smul.addr %s9677, 8
        %s9679 = scalar_lea.vmem %s4, %s9678
      $region48: #{tpu_custom_call.1} parent=43 // pred_fallthru
        _
    $region44: #{tpu_custom_call.1} parent=5 // pred_fallthru
      _
  $region6: #{tpu_custom_call.1} parent=0 // loop_footer
    %s14 = sadd.s32 1, %s10
  $region7: #{tpu_custom_call.1} parent=0 // loop_footer_branch
    %9 = sbr.rel target = $region3
  $region8: #{tpu_custom_call.1} parent=0 // loop_exit
    _

</llo_original>
